<compile_context>
chip_gen: v7x
topology: tpu7x:2x2x1
jax: 0.10.0
libtpu: 0.0.40
codegen_flags: <defaults>
</compile_context>

<pallas_src>
import jax
import jax.numpy as jnp
from jax.experimental import pallas as pl
from jax.experimental.pallas import tpu as pltpu

INV_SQRT2 = 0.7071067811865476
LN_EPS = 1e-5  # PyTorch nn.LayerNorm default


def projection_head_kernel(x_ref, w1_ref, w2_ref, prm_ref, o_ref):
    mm_dtype = w1_ref.dtype

    # Packed per-feature parameters: rows are [b1, b2, gamma, beta], each (1, P).
    b1 = prm_ref[0:1, :]
    b2 = prm_ref[1:2, :]
    gamma = prm_ref[2:3, :]
    beta = prm_ref[3:4, :]

    # ---- Linear 1: cast x to the MXU dtype in-kernel (VPU op hidden under the MXU),
    # f32 accumulate on the MXU result path.
    h = jnp.dot(x_ref[...].astype(mm_dtype), w1_ref[...],
                preferred_element_type=jnp.float32) + b1

    # ---- Exact erf-based GELU in f32 (matches torch.nn.GELU() default).
    h = 0.5 * h * (1.0 + jax.lax.erf(h * INV_SQRT2))

    # ---- Linear 2: cast activation back to the MXU dtype, f32 accumulate.
    p = jnp.dot(h.astype(mm_dtype), w2_ref[...],
                preferred_element_type=jnp.float32) + b2

    # ---- LayerNorm over the last dim (biased variance, eps inside rsqrt).
    mean = jnp.mean(p, axis=-1, keepdims=True)
    c = p - mean
    var = jnp.mean(c * c, axis=-1, keepdims=True)
    y = c * jax.lax.rsqrt(var + LN_EPS)
    y = y * gamma + beta

    o_ref[...] = y.astype(o_ref.dtype)


def make_projection_head_params(w1, b1, w2, b2, gamma, beta, matmul_dtype=jnp.bfloat16):
    """One-time (init-time) parameter prep: cast weights to the MXU dtype and pack the
    four (P,) vectors into a single (4, P) f32 block. Do NOT call per forward pass."""
    E, P = w1.shape
    assert w2.shape == (P, P)
    w1_mm = w1.astype(matmul_dtype)
    w2_mm = w2.astype(matmul_dtype)
    packed = jnp.stack([b1, b2, gamma, beta], axis=0).astype(jnp.float32)  # (4, P)
    return w1_mm, w2_mm, packed


def _round_up(n, m):
    return ((n + m - 1) // m) * m


def _vmem_cap_bytes():
    # Generation-aware VMEM ceiling (v5e/v6e: 128 MiB, v7x: 64 MiB per TensorCore).
    try:
        return int(pltpu.get_tpu_info().vmem_capacity_bytes)
    except Exception:
        return 64 * 1024 * 1024  # conservative fallback: assume the smallest (v7x)


def projection_head(x, w1_mm, w2_mm, packed_params, *, block_b=256, out_dtype=None):
    """Fused ProjectionHead forward.

    x: (B, E) float (f32 or bf16 -- cast to the MXU dtype happens inside the kernel).
    w1_mm: (E, P), w2_mm: (P, P) already in the MXU dtype (see make_projection_head_params).
    packed_params: (4, P) f32 rows = [b1, b2, gamma, beta].
    out_dtype: defaults to x.dtype; pass jnp.bfloat16 to halve the output HBM stream
    when the downstream consumer tolerates it.
    """
    B, E = x.shape
    P = w1_mm.shape[1]
    if out_dtype is None:
        out_dtype = x.dtype

    # Lane-dense feature dims -> unmasked vector stores, full MXU/VPU lane utilization.
    assert E % 128 == 0 and P % 128 == 0, "pad embedding/projection dims to a multiple of 128"
    assert w1_mm.shape == (E, P) and w2_mm.shape == (P, P) and packed_params.shape == (4, P)

    # Batch tile: multiple of 16 (bf16 sublane packing); shrink for small batches so
    # tiny inputs are not padded up to a huge tile.
    block_b = _round_up(max(int(block_b), 16), 16)
    block_b = min(block_b, _round_up(B, 16))
    n_blocks = pl.cdiv(B, block_b)
    B_pad = n_blocks * block_b

    x_in = x
    if B_pad != B:
        x_in = jnp.pad(x_in, ((0, B_pad - B), (0, 0)))

    # VMEM budget: single-buffered resident weights + params, double-buffered x/out
    # tiles, f32 intermediates; 2x safety factor, generation-aware ceiling w/ headroom.
    mm_bytes = jnp.dtype(w1_mm.dtype).itemsize
    x_bytes = jnp.dtype(x_in.dtype).itemsize
    out_bytes = jnp.dtype(out_dtype).itemsize
    vmem_bytes = (
        (E * P + P * P) * mm_bytes        # W1, W2 resident (single-buffered)
        + 4 * P * 4                       # packed param block
        + 2 * block_b * E * x_bytes       # x tile (double-buffered)
        + 2 * block_b * P * out_bytes     # out tile (double-buffered)
        + 4 * block_b * max(E, P) * 4     # f32 intermediates (h, p, y, temps)
    )
    vmem_limit = int(min(max(2 * vmem_bytes, 16 << 20), _vmem_cap_bytes() - (8 << 20)))

    def run(single_buffer_invariants):
        def inv_spec(shape):
            # Constant index_map -> the block never changes; single-buffer it.
            if single_buffer_invariants:
                return pl.BlockSpec(shape, lambda i: (0, 0), pipeline_mode=pl.Buffered(1))
            return pl.BlockSpec(shape, lambda i: (0, 0))

        return pl.pallas_call(
            projection_head_kernel,
            out_shape=jax.ShapeDtypeStruct((B_pad, P), out_dtype),
            grid_spec=pltpu.PrefetchScalarGridSpec(
                num_scalar_prefetch=0,
                grid=(n_blocks,),
                in_specs=[
                    pl.BlockSpec((block_b, E), lambda i: (i, 0)),  # x tile (pipelined over batch)
                    inv_spec((E, P)),                              # W1 (resident)
                    inv_spec((P, P)),                              # W2 (resident)
                    inv_spec((4, P)),                              # [b1, b2, gamma, beta]
                ],
                out_specs=pl.BlockSpec((block_b, P), lambda i: (i, 0)),
            ),
            compiler_params=pltpu.CompilerParams(
                dimension_semantics=("parallel",),  # batch tiles shard across v7x TensorCores
                vmem_limit_bytes=vmem_limit,
            ),
        )(x_in, w1_mm, w2_mm, packed_params)

    try:
        out = run(single_buffer_invariants=True)
    except Exception:
        # Fallback for JAX/Mosaic builds that reject pipeline_mode=pl.Buffered(1);
        # identical semantics, just default double-buffering of the resident blocks.
        out = run(single_buffer_invariants=False)

    return out[:B] if B_pad != B else out


def reference(x, w1, b1, w2, b2, gamma, beta, matmul_dtype=jnp.bfloat16):
    """Pure-JAX reference with the same dtype recipe (bf16 matmul operands, f32 math)."""
    xm = x.astype(matmul_dtype)
    h = jnp.dot(xm, w1.astype(matmul_dtype), preferred_element_type=jnp.float32) + b1
    h = 0.5 * h * (1.0 + jax.lax.erf(h * INV_SQRT2))
    p = jnp.dot(h.astype(matmul_dtype), w2.astype(matmul_dtype),
                preferred_element_type=jnp.float32) + b2
    mean = jnp.mean(p, axis=-1, keepdims=True)
    c = p - mean
    var = jnp.mean(c * c, axis=-1, keepdims=True)
    y = c * jax.lax.rsqrt(var + LN_EPS)
    return (y * gamma + beta).astype(x.dtype)


if __name__ == "__main__":
    # Module defaults: embedding_dim = projection_dim = 512 (lane-dense).
    # Batch 512 with block_b=256 -> 2 grid steps (even count for v7x megacore).
    B, E, P = 512, 512, 512

    key = jax.random.PRNGKey(0)
    kx, kw1, kb1, kw2, kb2 = jax.random.split(key, 5)

    x = jax.random.normal(kx, (B, E), dtype=jnp.float32)

    # Deterministic synthetic parameters (torch Linear weight (out,in) stored transposed as (in,out)).
    w1 = jax.random.normal(kw1, (E, P), dtype=jnp.float32) * (1.0 / jnp.sqrt(E))
    b1 = jax.random.normal(kb1, (P,), dtype=jnp.float32) * 0.01
    w2 = jax.random.normal(kw2, (P, P), dtype=jnp.float32) * (1.0 / jnp.sqrt(P))
    b2 = jax.random.normal(kb2, (P,), dtype=jnp.float32) * 0.01
    gamma = jnp.ones((P,), dtype=jnp.float32)   # nn.LayerNorm init
    beta = jnp.zeros((P,), dtype=jnp.float32)

    # One-time parameter prep (weight casts + packing) -- outside the hot path.
    w1_mm, w2_mm, packed = make_projection_head_params(w1, b1, w2, b2, gamma, beta)

    out = projection_head(x, w1_mm, w2_mm, packed, block_b=256)
    out = jax.block_until_ready(out)

    ref = reference(x, w1, b1, w2, b2, gamma, beta)
    assert out.shape == (B, P)
    max_err = float(jnp.max(jnp.abs(out - ref)))
    assert jnp.allclose(out, ref, atol=2e-3, rtol=2e-3), f"mismatch vs reference (max abs err {max_err})"

    print("KERNEL_OK")
</pallas_src>

<mosaic_0001>
module attributes {stable_mosaic.version = 11 : i64} {
  func.func @projection_head_kernel(%arg0: i32, %arg1: memref<256x512xf32, #tpu.memory_space<vmem>>, %arg2: memref<512x512xbf16, #tpu.memory_space<vmem>>, %arg3: memref<512x512xbf16, #tpu.memory_space<vmem>>, %arg4: memref<4x512xf32, #tpu.memory_space<vmem>>, %arg5: memref<256x512xf32, #tpu.memory_space<vmem>>) attributes {dimension_semantics = [#tpu.dimension_semantics<parallel>], iteration_bounds = array<i64: 2>, scalar_prefetch = 0 : i64, scratch_operands = 0 : i64, tpu.core_type = #tpu.core_type<tc>, window_params = [{transform_indices = @transform_0, window_bounds = array<i64: 256, 512>}, {pipeline_mode = #tpu.pipeline_mode<synchronous>, transform_indices = @transform_1, window_bounds = array<i64: 512, 512>}, {pipeline_mode = #tpu.pipeline_mode<synchronous>, transform_indices = @transform_2, window_bounds = array<i64: 512, 512>}, {pipeline_mode = #tpu.pipeline_mode<synchronous>, transform_indices = @transform_3, window_bounds = array<i64: 4, 512>}, {transform_indices = @transform_4, window_bounds = array<i64: 256, 512>}]} {
    %c0 = arith.constant 0 : index
    %c0_0 = arith.constant 0 : index
    %0 = vector.load %arg4[%c0, %c0_0] : memref<4x512xf32, #tpu.memory_space<vmem>>, vector<1x512xf32>
    %c1 = arith.constant 1 : index
    %c0_1 = arith.constant 0 : index
    %1 = vector.load %arg4[%c1, %c0_1] : memref<4x512xf32, #tpu.memory_space<vmem>>, vector<1x512xf32>
    %c2 = arith.constant 2 : index
    %c0_2 = arith.constant 0 : index
    %2 = vector.load %arg4[%c2, %c0_2] : memref<4x512xf32, #tpu.memory_space<vmem>>, vector<1x512xf32>
    %c3 = arith.constant 3 : index
    %c0_3 = arith.constant 0 : index
    %3 = vector.load %arg4[%c3, %c0_3] : memref<4x512xf32, #tpu.memory_space<vmem>>, vector<1x512xf32>
    %c0_4 = arith.constant 0 : index
    %c0_5 = arith.constant 0 : index
    %4 = vector.load %arg1[%c0_4, %c0_5] : memref<256x512xf32, #tpu.memory_space<vmem>>, vector<256x512xf32>
    %5 = arith.truncf %4 : vector<256x512xf32> to vector<256x512xbf16>
    %c0_6 = arith.constant 0 : index
    %c0_7 = arith.constant 0 : index
    %6 = vector.load %arg2[%c0_6, %c0_7] : memref<512x512xbf16, #tpu.memory_space<vmem>>, vector<512x512xbf16>
    %cst = arith.constant dense<0.000000e+00> : vector<256x512xf32>
    %7 = tpu.matmul %5, %6, %cst {dimension_numbers = #tpu.dot_dimension_numbers<[1], [0], [0], [1], [0, 0, 1, 1], [], []>} : vector<256x512xbf16>, vector<512x512xbf16>, vector<256x512xf32> -> vector<256x512xf32>
    %8 = vector.broadcast %0 : vector<1x512xf32> to vector<256x512xf32>
    %9 = arith.addf %7, %8 : vector<256x512xf32>
    %cst_8 = arith.constant 5.000000e-01 : f32
    %10 = vector.broadcast %cst_8 : f32 to vector<256x512xf32>
    %11 = arith.mulf %10, %9 : vector<256x512xf32>
    %cst_9 = arith.constant 0.707106769 : f32
    %12 = vector.broadcast %cst_9 : f32 to vector<256x512xf32>
    %13 = arith.mulf %9, %12 : vector<256x512xf32>
    %14 = math.erf %13 : vector<256x512xf32>
    %cst_10 = arith.constant 1.000000e+00 : f32
    %15 = vector.broadcast %cst_10 : f32 to vector<256x512xf32>
    %16 = arith.addf %15, %14 : vector<256x512xf32>
    %17 = arith.mulf %11, %16 : vector<256x512xf32>
    %18 = arith.truncf %17 : vector<256x512xf32> to vector<256x512xbf16>
    %c0_11 = arith.constant 0 : index
    %c0_12 = arith.constant 0 : index
    %19 = vector.load %arg3[%c0_11, %c0_12] : memref<512x512xbf16, #tpu.memory_space<vmem>>, vector<512x512xbf16>
    %cst_13 = arith.constant dense<0.000000e+00> : vector<256x512xf32>
    %20 = tpu.matmul %18, %19, %cst_13 {dimension_numbers = #tpu.dot_dimension_numbers<[1], [0], [0], [1], [0, 0, 1, 1], [], []>} : vector<256x512xbf16>, vector<512x512xbf16>, vector<256x512xf32> -> vector<256x512xf32>
    %21 = vector.broadcast %1 : vector<1x512xf32> to vector<256x512xf32>
    %22 = arith.addf %20, %21 : vector<256x512xf32>
    %cst_14 = arith.constant dense<0.000000e+00> : vector<256xf32>
    %23 = vector.multi_reduction <add>, %22, %cst_14 [1] : vector<256x512xf32> to vector<256xf32>
    %24 = vector.shape_cast %23 : vector<256xf32> to vector<256x1xf32>
    %cst_15 = arith.constant 5.120000e+02 : f32
    %25 = vector.broadcast %cst_15 : f32 to vector<256x1xf32>
    %26 = arith.divf %24, %25 : vector<256x1xf32>
    %27 = vector.broadcast %26 : vector<256x1xf32> to vector<256x512xf32>
    %28 = arith.subf %22, %27 : vector<256x512xf32>
    %29 = arith.mulf %28, %28 : vector<256x512xf32>
    %cst_16 = arith.constant dense<0.000000e+00> : vector<256xf32>
    %30 = vector.multi_reduction <add>, %29, %cst_16 [1] : vector<256x512xf32> to vector<256xf32>
    %31 = vector.shape_cast %30 : vector<256xf32> to vector<256x1xf32>
    %cst_17 = arith.constant 5.120000e+02 : f32
    %32 = vector.broadcast %cst_17 : f32 to vector<256x1xf32>
    %33 = arith.divf %31, %32 : vector<256x1xf32>
    %cst_18 = arith.constant 9.99999974E-6 : f32
    %34 = vector.broadcast %cst_18 : f32 to vector<256x1xf32>
    %35 = arith.addf %33, %34 : vector<256x1xf32>
    %36 = math.rsqrt %35 : vector<256x1xf32>
    %37 = vector.broadcast %36 : vector<256x1xf32> to vector<256x512xf32>
    %38 = arith.mulf %28, %37 : vector<256x512xf32>
    %39 = vector.broadcast %2 : vector<1x512xf32> to vector<256x512xf32>
    %40 = arith.mulf %38, %39 : vector<256x512xf32>
    %41 = vector.broadcast %3 : vector<1x512xf32> to vector<256x512xf32>
    %42 = arith.addf %40, %41 : vector<256x512xf32>
    %c0_19 = arith.constant 0 : index
    %c0_20 = arith.constant 0 : index
    %43 = vector.load %arg5[%c0_19, %c0_20] : memref<256x512xf32, #tpu.memory_space<vmem>>, vector<256x512xf32>
    tpu.vector_store %arg5[%c0_19, %c0_20], %42 {strides = array<i32>} : memref<256x512xf32, #tpu.memory_space<vmem>>, vector<256x512xf32>,
    return
  }
  func.func @transform_0(%arg0: i32) -> (i32, i32) {
    %c0_i32 = arith.constant 0 : i32
    %c0_i32_0 = arith.constant 0 : i32
    return %arg0, %c0_i32 : i32, i32
  }
  func.func @transform_1(%arg0: i32) -> (i32, i32) {
    %c0_i32 = arith.constant 0 : i32
    %c0_i32_0 = arith.constant 0 : i32
    %c0_i32_1 = arith.constant 0 : i32
    return %c0_i32, %c0_i32_0 : i32, i32
  }
  func.func @transform_2(%arg0: i32) -> (i32, i32) {
    %c0_i32 = arith.constant 0 : i32
    %c0_i32_0 = arith.constant 0 : i32
    %c0_i32_1 = arith.constant 0 : i32
    return %c0_i32, %c0_i32_0 : i32, i32
  }
  func.func @transform_3(%arg0: i32) -> (i32, i32) {
    %c0_i32 = arith.constant 0 : i32
    %c0_i32_0 = arith.constant 0 : i32
    %c0_i32_1 = arith.constant 0 : i32
    return %c0_i32, %c0_i32_0 : i32, i32
  }
  func.func @transform_4(%arg0: i32) -> (i32, i32) {
    %c0_i32 = arith.constant 0 : i32
    %c0_i32_0 = arith.constant 0 : i32
    return %arg0, %c0_i32 : i32, i32
  }
}

module attributes {stable_mosaic.version = 11 : i64} {
  func.func @projection_head_kernel(%arg0: i32, %arg1: memref<256x512xf32, #tpu.memory_space<vmem>>, %arg2: memref<512x512xbf16, #tpu.memory_space<vmem>>, %arg3: memref<512x512xbf16, #tpu.memory_space<vmem>>, %arg4: memref<4x512xf32, #tpu.memory_space<vmem>>, %arg5: memref<256x512xf32, #tpu.memory_space<vmem>>) attributes {dimension_semantics = [#tpu.dimension_semantics<parallel>], iteration_bounds = array<i64: 2>, scalar_prefetch = 0 : i64, scratch_operands = 0 : i64, tpu.core_type = #tpu.core_type<tc>, window_params = [{transform_indices = @transform_0, window_bounds = array<i64: 256, 512>}, {pipeline_mode = #tpu.pipeline_mode<synchronous>, transform_indices = @transform_1, window_bounds = array<i64: 512, 512>}, {pipeline_mode = #tpu.pipeline_mode<synchronous>, transform_indices = @transform_2, window_bounds = array<i64: 512, 512>}, {pipeline_mode = #tpu.pipeline_mode<synchronous>, transform_indices = @transform_3, window_bounds = array<i64: 4, 512>}, {transform_indices = @transform_4, window_bounds = array<i64: 256, 512>}]} {
    %c0 = arith.constant 0 : index
    %c0_0 = arith.constant 0 : index
    %0 = vector.load %arg4[%c0, %c0_0] : memref<4x512xf32, #tpu.memory_space<vmem>>, vector<1x512xf32>
    %c1 = arith.constant 1 : index
    %c0_1 = arith.constant 0 : index
    %1 = vector.load %arg4[%c1, %c0_1] : memref<4x512xf32, #tpu.memory_space<vmem>>, vector<1x512xf32>
    %c2 = arith.constant 2 : index
    %c0_2 = arith.constant 0 : index
    %2 = vector.load %arg4[%c2, %c0_2] : memref<4x512xf32, #tpu.memory_space<vmem>>, vector<1x512xf32>
    %c3 = arith.constant 3 : index
    %c0_3 = arith.constant 0 : index
    %3 = vector.load %arg4[%c3, %c0_3] : memref<4x512xf32, #tpu.memory_space<vmem>>, vector<1x512xf32>
    %c0_4 = arith.constant 0 : index
    %c0_5 = arith.constant 0 : index
    %4 = vector.load %arg1[%c0_4, %c0_5] : memref<256x512xf32, #tpu.memory_space<vmem>>, vector<256x512xf32>
    %5 = arith.truncf %4 : vector<256x512xf32> to vector<256x512xbf16>
    %c0_6 = arith.constant 0 : index
    %c0_7 = arith.constant 0 : index
    %6 = vector.load %arg2[%c0_6, %c0_7] : memref<512x512xbf16, #tpu.memory_space<vmem>>, vector<512x512xbf16>
    %cst = arith.constant dense<0.000000e+00> : vector<256x512xf32>
    %7 = tpu.matmul %5, %6, %cst {dimension_numbers = #tpu.dot_dimension_numbers<[1], [0], [0], [1], [0, 0, 1, 1], [], []>} : vector<256x512xbf16>, vector<512x512xbf16>, vector<256x512xf32> -> vector<256x512xf32>
    %8 = vector.broadcast %0 : vector<1x512xf32> to vector<256x512xf32>
    %9 = arith.addf %7, %8 : vector<256x512xf32>
    %cst_8 = arith.constant 5.000000e-01 : f32
    %10 = vector.broadcast %cst_8 : f32 to vector<256x512xf32>
    %11 = arith.mulf %10, %9 : vector<256x512xf32>
    %cst_9 = arith.constant 0.707106769 : f32
    %12 = vector.broadcast %cst_9 : f32 to vector<256x512xf32>
    %13 = arith.mulf %9, %12 : vector<256x512xf32>
    %14 = math.erf %13 : vector<256x512xf32>
    %cst_10 = arith.constant 1.000000e+00 : f32
    %15 = vector.broadcast %cst_10 : f32 to vector<256x512xf32>
    %16 = arith.addf %15, %14 : vector<256x512xf32>
    %17 = arith.mulf %11, %16 : vector<256x512xf32>
    %18 = arith.truncf %17 : vector<256x512xf32> to vector<256x512xbf16>
    %c0_11 = arith.constant 0 : index
    %c0_12 = arith.constant 0 : index
    %19 = vector.load %arg3[%c0_11, %c0_12] : memref<512x512xbf16, #tpu.memory_space<vmem>>, vector<512x512xbf16>
    %cst_13 = arith.constant dense<0.000000e+00> : vector<256x512xf32>
    %20 = tpu.matmul %18, %19, %cst_13 {dimension_numbers = #tpu.dot_dimension_numbers<[1], [0], [0], [1], [0, 0, 1, 1], [], []>} : vector<256x512xbf16>, vector<512x512xbf16>, vector<256x512xf32> -> vector<256x512xf32>
    %21 = vector.broadcast %1 : vector<1x512xf32> to vector<256x512xf32>
    %22 = arith.addf %20, %21 : vector<256x512xf32>
    %cst_14 = arith.constant dense<0.000000e+00> : vector<256xf32>
    %23 = vector.multi_reduction <add>, %22, %cst_14 [1] : vector<256x512xf32> to vector<256xf32>
    %24 = vector.shape_cast %23 : vector<256xf32> to vector<256x1xf32>
    %cst_15 = arith.constant 5.120000e+02 : f32
    %25 = vector.broadcast %cst_15 : f32 to vector<256x1xf32>
    %26 = arith.divf %24, %25 : vector<256x1xf32>
    %27 = vector.broadcast %26 : vector<256x1xf32> to vector<256x512xf32>
    %28 = arith.subf %22, %27 : vector<256x512xf32>
    %29 = arith.mulf %28, %28 : vector<256x512xf32>
    %cst_16 = arith.constant dense<0.000000e+00> : vector<256xf32>
    %30 = vector.multi_reduction <add>, %29, %cst_16 [1] : vector<256x512xf32> to vector<256xf32>
    %31 = vector.shape_cast %30 : vector<256xf32> to vector<256x1xf32>
    %cst_17 = arith.constant 5.120000e+02 : f32
    %32 = vector.broadcast %cst_17 : f32 to vector<256x1xf32>
    %33 = arith.divf %31, %32 : vector<256x1xf32>
    %cst_18 = arith.constant 9.99999974E-6 : f32
    %34 = vector.broadcast %cst_18 : f32 to vector<256x1xf32>
    %35 = arith.addf %33, %34 : vector<256x1xf32>
    %36 = math.rsqrt %35 : vector<256x1xf32>
    %37 = vector.broadcast %36 : vector<256x1xf32> to vector<256x512xf32>
    %38 = arith.mulf %28, %37 : vector<256x512xf32>
    %39 = vector.broadcast %2 : vector<1x512xf32> to vector<256x512xf32>
    %40 = arith.mulf %38, %39 : vector<256x512xf32>
    %41 = vector.broadcast %3 : vector<1x512xf32> to vector<256x512xf32>
    %42 = arith.addf %40, %41 : vector<256x512xf32>
    %c0_19 = arith.constant 0 : index
    %c0_20 = arith.constant 0 : index
    %43 = vector.load %arg5[%c0_19, %c0_20] : memref<256x512xf32, #tpu.memory_space<vmem>>, vector<256x512xf32>
    tpu.vector_store %arg5[%c0_19, %c0_20], %42 {strides = array<i32>} : memref<256x512xf32, #tpu.memory_space<vmem>>, vector<256x512xf32>,
    return
  }
  func.func @transform_0(%arg0: i32) -> (i32, i32) {
    %c0_i32 = arith.constant 0 : i32
    %c0_i32_0 = arith.constant 0 : i32
    return %arg0, %c0_i32 : i32, i32
  }
  func.func @transform_1(%arg0: i32) -> (i32, i32) {
    %c0_i32 = arith.constant 0 : i32
    %c0_i32_0 = arith.constant 0 : i32
    %c0_i32_1 = arith.constant 0 : i32
    return %c0_i32, %c0_i32_0 : i32, i32
  }
  func.func @transform_2(%arg0: i32) -> (i32, i32) {
    %c0_i32 = arith.constant 0 : i32
    %c0_i32_0 = arith.constant 0 : i32
    %c0_i32_1 = arith.constant 0 : i32
    return %c0_i32, %c0_i32_0 : i32, i32
  }
  func.func @transform_3(%arg0: i32) -> (i32, i32) {
    %c0_i32 = arith.constant 0 : i32
    %c0_i32_0 = arith.constant 0 : i32
    %c0_i32_1 = arith.constant 0 : i32
    return %c0_i32, %c0_i32_0 : i32, i32
  }
  func.func @transform_4(%arg0: i32) -> (i32, i32) {
    %c0_i32 = arith.constant 0 : i32
    %c0_i32_0 = arith.constant 0 : i32
    return %arg0, %c0_i32 : i32, i32
  }
}

</mosaic_0001>

<llo_original>
// kernel: tpu_custom_call.1
$region0: #{tpu_custom_call.1}
  #allocation0 [shape = 'u32[]', space=smem, size = 0x4, offset = 0x4, fixed_abs, tag = 'smem constant byte address 0x4 - core index']
  #allocation1 [shape = 'u32[144,128]{1,0:T(1,128)}', space=vmem, size = 0x12000, scoped, tag = 'internal scratch']
  %s0 = inlined_call_operand.hbm [shape: f32[512,512], index: 0, kind: input, shape index: {}]
  %s1 = inlined_call_operand.hbm [shape: bf16[512,512], index: 1, kind: input, shape index: {}]
  %s2 = inlined_call_operand.hbm [shape: bf16[512,512], index: 2, kind: input, shape index: {}]
  %s3 = inlined_call_operand.hbm [shape: f32[4,512], index: 3, kind: input, shape index: {}]
  %s4 = inlined_call_operand.hbm [shape: f32[512,512], index: 4, kind: output, shape index: {}]
  %s5 = sld [smem:[#allocation0]]
  $region65: #{tpu_custom_call.1} parent=0
    _
  %s7 = ssub.s32 1, %s5
  %s8 = scalar_select 0, %s7, %s5
  $region1: #{tpu_custom_call.1} parent=0
    #allocation2 [shape = 'u8[1048576]{0}', space=vmem, size = 0x100000, scoped, tag = 'input window, operand 0']
    #allocation3 [shape = 's32[2]{0}', space=sflag, size = 0x8, scoped, tag = 'scoped memory for tpu_custom_call.1']
    #allocation4 [shape = 's32[2]{0}', space=sflag, size = 0x8, scoped, tag = 'scoped memory for tpu_custom_call.1']
    #allocation5 [shape = 'u8[524288]{0}', space=vmem, size = 0x80000, scoped, tag = 'input window, operand 1, single buffered']
    #allocation6 [shape = 's32[1]{0}', space=sflag, size = 0x4, scoped, tag = 'scoped memory for tpu_custom_call.1']
    #allocation7 [shape = 'u8[524288]{0}', space=vmem, size = 0x80000, scoped, tag = 'input window, operand 2, single buffered']
    #allocation8 [shape = 'u8[8192]{0}', space=vmem, size = 0x2000, scoped, tag = 'input window, operand 3, single buffered']
    #allocation9 [shape = 's32[1]{0}', space=sflag, size = 0x4, scoped, tag = 'scoped memory for tpu_custom_call.1']
    #allocation10 [shape = 'u8[1048576]{0}', space=vmem, size = 0x100000, scoped, tag = 'output window, operand 0']
    %9 = vsyncpa [#allocation3], 0
    %s10 = scalar_lea.sflag [#allocation3], 1
    %11 = vsyncpa %s10, 0
    %12 = vsyncpa [#allocation6], 0
    %13 = vsyncpa [#allocation9], 0
    %14 = vsyncpa [#allocation4], 0
    %s15 = scalar_lea.sflag [#allocation4], 1
    %16 = vsyncpa %s15, 0
    loop: start=0, step=1, limit=4
    $region2: #{tpu_custom_call.1} parent=1 // loop_pre_header
      _
    $region3: #{tpu_custom_call.1} parent=1 // loop_header
      %s18 = sphi 0, %s22
      %p19 = scmp.ge.s32.totalorder %s18, 4
      %s28 = sphi 0, %s30
      %s31 = sphi 0, %s28
      %s32 = sphi 0, %s31
      %s48 = sphi 0, %s32
      %s52 = sphi 0, %s52
      %s54 = sphi 0, %s52
      %s55 = sphi 0, %s54
      %s69 = sphi 0, %s55
      %s73 = sphi 0, %s73
      %s75 = sphi 0, %s73
      %s76 = sphi 0, %s75
      %s90 = sphi 0, %s76
      %s94 = sphi 0, %s94
      %s96 = sphi 0, %s94
      %s97 = sphi 0, %s96
      %s111 = sphi 0, %s97
      %s117 = sphi 0, %s119
      %s120 = sphi 0, %s117
      %s121 = sphi 0, %s120
      %s137 = sphi 0, %s121
    $region4: #{tpu_custom_call.1} parent=1 // loop_header_branch
      %21 = sbr.rel (%p19) target = $region8
    $region5: #{tpu_custom_call.1} parent=1 // loop_body
      %s23 = ssub.s32 %s18, 1
      %s24 = ssub.s32 %s18, 2
      %s25 = sadd.s32 %s18, 1
      %s26 = ssub.s32 %s18, %s25
      %p27 = scmp.eq.s32.totalorder %s26, 0
      %s29 = sadd.s32 %s28, 1
      %s30 = scalar_select %p27, %s28, %s29
      %p33 = pneg %p27
      %p34 = scmp.eq.s32.totalorder %s18, 1
      %p35 = por %p33, %p34
      %p36 = scmp.ne.s32.totalorder %s28, %s31
      %p37 = scmp.eq.s32.totalorder %s18, 0
      %p38 = por %p36, %p37
      %p39 = scmp.ne.s32.totalorder %s28, %s31
      %p40 = scmp.eq.s32.totalorder %s23, 1
      %p41 = por %p39, %p40
      %p42 = scmp.ne.s32.totalorder %s31, %s32
      %p43 = scmp.eq.s32.totalorder %s23, 0
      %p44 = por %p42, %p43
      %p45 = scmp.ne.s32.totalorder %s31, %s32
      %p46 = scmp.eq.s32.totalorder %s24, 1
      %p47 = por %p45, %p46
      %p49 = scmp.ne.s32.totalorder %s32, %s48
      %p50 = scmp.eq.s32.totalorder %s24, 0
      %p51 = por %p49, %p50
      %s53 = sadd.s32 %s52, 1
      %p56 = scmp.eq.s32.totalorder %s18, 1
      %p57 = scmp.ne.s32.totalorder %s52, %s54
      %p58 = scmp.eq.s32.totalorder %s18, 0
      %p59 = por %p57, %p58
      %p60 = scmp.ne.s32.totalorder %s52, %s54
      %p61 = scmp.eq.s32.totalorder %s23, 1
      %p62 = por %p60, %p61
      %p63 = scmp.ne.s32.totalorder %s54, %s55
      %p64 = scmp.eq.s32.totalorder %s23, 0
      %p65 = por %p63, %p64
      %p66 = scmp.ne.s32.totalorder %s54, %s55
      %p67 = scmp.eq.s32.totalorder %s24, 1
      %p68 = por %p66, %p67
      %p70 = scmp.ne.s32.totalorder %s55, %s69
      %p71 = scmp.eq.s32.totalorder %s24, 0
      %p72 = por %p70, %p71
      %s74 = sadd.s32 %s73, 1
      %p77 = scmp.eq.s32.totalorder %s18, 1
      %p78 = scmp.ne.s32.totalorder %s73, %s75
      %p79 = scmp.eq.s32.totalorder %s18, 0
      %p80 = por %p78, %p79
      %p81 = scmp.ne.s32.totalorder %s73, %s75
      %p82 = scmp.eq.s32.totalorder %s23, 1
      %p83 = por %p81, %p82
      %p84 = scmp.ne.s32.totalorder %s75, %s76
      %p85 = scmp.eq.s32.totalorder %s23, 0
      %p86 = por %p84, %p85
      %p87 = scmp.ne.s32.totalorder %s75, %s76
      %p88 = scmp.eq.s32.totalorder %s24, 1
      %p89 = por %p87, %p88
      %p91 = scmp.ne.s32.totalorder %s76, %s90
      %p92 = scmp.eq.s32.totalorder %s24, 0
      %p93 = por %p91, %p92
      %s95 = sadd.s32 %s94, 1
      %p98 = scmp.eq.s32.totalorder %s18, 1
      %p99 = scmp.ne.s32.totalorder %s94, %s96
      %p100 = scmp.eq.s32.totalorder %s18, 0
      %p101 = por %p99, %p100
      %p102 = scmp.ne.s32.totalorder %s94, %s96
      %p103 = scmp.eq.s32.totalorder %s23, 1
      %p104 = por %p102, %p103
      %p105 = scmp.ne.s32.totalorder %s96, %s97
      %p106 = scmp.eq.s32.totalorder %s23, 0
      %p107 = por %p105, %p106
      %p108 = scmp.ne.s32.totalorder %s96, %s97
      %p109 = scmp.eq.s32.totalorder %s24, 1
      %p110 = por %p108, %p109
      %p112 = scmp.ne.s32.totalorder %s97, %s111
      %p113 = scmp.eq.s32.totalorder %s24, 0
      %p114 = por %p112, %p113
      %s115 = ssub.s32 %s18, %s25
      %p116 = scmp.eq.s32.totalorder %s115, 0
      %s118 = sadd.s32 %s117, 1
      %s119 = scalar_select %p116, %s117, %s118
      %p122 = pneg %p116
      %p123 = scmp.eq.s32.totalorder %s18, 1
      %p124 = por %p122, %p123
      %p125 = scmp.ne.s32.totalorder %s117, %s120
      %p126 = scmp.eq.s32.totalorder %s18, 0
      %p127 = por %p125, %p126
      %p128 = scmp.ne.s32.totalorder %s117, %s120
      %p129 = scmp.eq.s32.totalorder %s23, 1
      %p130 = por %p128, %p129
      %p131 = scmp.ne.s32.totalorder %s120, %s121
      %p132 = scmp.eq.s32.totalorder %s23, 0
      %p133 = por %p131, %p132
      %p134 = scmp.ne.s32.totalorder %s120, %s121
      %p135 = scmp.eq.s32.totalorder %s24, 1
      %p136 = por %p134, %p135
      %p138 = scmp.ne.s32.totalorder %s121, %s137
      %p139 = scmp.eq.s32.totalorder %s24, 0
      %p140 = por %p138, %p139
      %p141 = scmp.le.s32.totalorder 1, %s18
      %p142 = scmp.lt.s32.totalorder %s18, 3
      %p143 = pnand %p141, %p142
      %p144 = pneg %p143
      // Predicated region
      $region9: #{tpu_custom_call.1} parent=5 // pred_check
        _
      $region10: #{tpu_custom_call.1} parent=5 // pred_check_branch
        %146 = sbr.rel (%p143) target = $region12
      $region11: #{tpu_custom_call.1} parent=5 // pred_region
        %s147 = ssub.s32 %s18, 1
        // Predicated region
        $region13: #{tpu_custom_call.1} parent=11 // pred_check
          %p148 = pneg %p65
        $region14: #{tpu_custom_call.1} parent=11 // pred_check_branch
          %150 = sbr.rel (%p148) target = $region16
        $region15: #{tpu_custom_call.1} parent=11 // pred_region
          %s152 = ssub.s32 16384, 16384
          %153 = vsyncadd [#allocation6], %s152
          %s154 = sshll.u32 [#allocation5], 4
          %s155 = int_to_ptr.vmem [resolvable:$true] %s154
          %160 = dma.hbm_to_vmem [thread:$0]  %s1, 16384, %s155, [#allocation6], 256, 256, 16
        $region16: #{tpu_custom_call.1} parent=11 // pred_fallthru
          _
        // Predicated region
        $region17: #{tpu_custom_call.1} parent=11 // pred_check
          %p161 = pneg %p86
        $region18: #{tpu_custom_call.1} parent=11 // pred_check_branch
          %163 = sbr.rel (%p161) target = $region20
        $region19: #{tpu_custom_call.1} parent=11 // pred_region
          %s165 = ssub.s32 16384, 16384
          %166 = vsyncadd [#allocation6], %s165
          %s167 = sshll.u32 [#allocation7], 4
          %s168 = int_to_ptr.vmem [resolvable:$true] %s167
          %173 = dma.hbm_to_vmem [thread:$0]  %s2, 16384, %s168, [#allocation6], 256, 256, 16
        $region20: #{tpu_custom_call.1} parent=11 // pred_fallthru
          _
        // Predicated region
        $region21: #{tpu_custom_call.1} parent=11 // pred_check
          %p174 = pneg %p107
        $region22: #{tpu_custom_call.1} parent=11 // pred_check_branch
          %176 = sbr.rel (%p174) target = $region24
        $region23: #{tpu_custom_call.1} parent=11 // pred_region
          %s178 = ssub.s32 256, 256
          %179 = vsyncadd [#allocation9], %s178
          %s181 = sshll.u32 [#allocation8], 4
          %s182 = int_to_ptr.vmem [resolvable:$true] %s181
          %184 = dma.hbm_to_vmem [thread:$0]  %s3, 256, %s182, [#allocation9]
        $region24: #{tpu_custom_call.1} parent=11 // pred_fallthru
          _
      $region12: #{tpu_custom_call.1} parent=5 // pred_fallthru
        _
      %p185 = scmp.lt.s32.totalorder %s18, 2
      // Predicated region
      $region25: #{tpu_custom_call.1} parent=5 // pred_check
        %p186 = pneg %p185
      $region26: #{tpu_custom_call.1} parent=5 // pred_check_branch
        %188 = sbr.rel (%p186) target = $region28
      $region27: #{tpu_custom_call.1} parent=5 // pred_region
        // Predicated region
        $region29: #{tpu_custom_call.1} parent=27 // pred_check
          %p189 = pneg %p38
        $region30: #{tpu_custom_call.1} parent=27 // pred_check_branch
          %191 = sbr.rel (%p189) target = $region32
        $region31: #{tpu_custom_call.1} parent=27 // pred_region
          %s192 = sand.u32 %s28, 1
          %s193 = scalar_lea.sflag [#allocation3], %s192
          %s194 = sand.u32 %s28, 1
          %s195 = smul.addr %s194, 1024
          %s196 = scalar_lea.vmem [#allocation2], %s195
          %s197 = smul.u32 32, %s18
          %s199 = ssub.s32 16384, 16384
          %200 = vsyncadd %s193, %s199
          %s201 = smul.addr %s197, 4
          %s202 = smul.addr %s201, 128
          %s203 = scalar_lea.hbm %s0, %s202
          %s204 = sshll.u32 %s196, 4
          %s205 = int_to_ptr.vmem [resolvable:$true] %s204
          %210 = dma.hbm_to_vmem [thread:$0]  %s203, 16384, %s205, %s193, 512, 512, 32
        $region32: #{tpu_custom_call.1} parent=27 // pred_fallthru
          _
      $region28: #{tpu_custom_call.1} parent=5 // pred_fallthru
        _
      %p211 = scmp.le.s32.totalorder 1, %s18
      %p212 = scmp.lt.s32.totalorder %s18, 3
      %p213 = pnand %p211, %p212
      %p214 = pneg %p213
      // Predicated region
      $region33: #{tpu_custom_call.1} parent=5 // pred_check
        _
      $region34: #{tpu_custom_call.1} parent=5 // pred_check_branch
        %216 = sbr.rel (%p213) target = $region36
      $region35: #{tpu_custom_call.1} parent=5 // pred_region
        %s217 = ssub.s32 %s18, 1
        %s218 = sand.u32 %s31, 1
        %s219 = scalar_lea.sflag [#allocation3], %s218
        %s220 = sand.u32 %s31, 1
        %s221 = smul.addr %s220, 1024
        %s222 = scalar_lea.vmem [#allocation2], %s221
        // Predicated region
        $region37: #{tpu_custom_call.1} parent=35 // pred_check
          %p223 = pneg %p44
        $region38: #{tpu_custom_call.1} parent=35 // pred_check_branch
          %225 = sbr.rel (%p223) target = $region40
        $region39: #{tpu_custom_call.1} parent=35 // pred_region
          %226 = dma.done %s219, 16384
        $region40: #{tpu_custom_call.1} parent=35 // pred_fallthru
          _
        // Predicated region
        $region41: #{tpu_custom_call.1} parent=35 // pred_check
          %p227 = pneg %p65
        $region42: #{tpu_custom_call.1} parent=35 // pred_check_branch
          %229 = sbr.rel (%p227) target = $region44
        $region43: #{tpu_custom_call.1} parent=35 // pred_region
          %230 = dma.done [#allocation6], 16384
        $region44: #{tpu_custom_call.1} parent=35 // pred_fallthru
          _
        // Predicated region
        $region45: #{tpu_custom_call.1} parent=35 // pred_check
          %p231 = pneg %p86
        $region46: #{tpu_custom_call.1} parent=35 // pred_check_branch
          %233 = sbr.rel (%p231) target = $region48
        $region47: #{tpu_custom_call.1} parent=35 // pred_region
          %234 = dma.done [#allocation6], 16384
        $region48: #{tpu_custom_call.1} parent=35 // pred_fallthru
          _
        // Predicated region
        $region49: #{tpu_custom_call.1} parent=35 // pred_check
          %p235 = pneg %p107
        $region50: #{tpu_custom_call.1} parent=35 // pred_check_branch
          %237 = sbr.rel (%p235) target = $region52
        $region51: #{tpu_custom_call.1} parent=35 // pred_region
          %238 = dma.done [#allocation9], 256
        $region52: #{tpu_custom_call.1} parent=35 // pred_fallthru
          _
        %s239 = sand.u32 %s31, 1
        %s240 = scalar_lea.sflag [#allocation3], %s239
        %s241 = sand.u32 %s31, 1
        %s242 = smul.addr %s241, 1024
        %s243 = scalar_lea.vmem [#allocation2], %s242
        %p244 = pneg %p44
        %p245 = pneg %p41
        %p246 = pneg %p65
        %p247 = pneg %p62
        %p248 = pneg %p86
        %p249 = pneg %p83
        %p250 = pneg %p107
        %p251 = pneg %p104
        %p252 = pneg %p133
        %p253 = pneg %p130
        %s254 = sand.u32 %s120, 1
        %s255 = scalar_lea.sflag [#allocation4], %s254
        %s256 = sand.u32 %s120, 1
        %s257 = smul.addr %s256, 1024
        %s258 = scalar_lea.vmem [#allocation10], %s257
        %s259 = smul.u32 32, %s23
        %s260 = smul.u32 32, %s23
        %v261 = vld [vmem:[#allocation8] ss:$4 sm:$0xf]
        %s262 = scalar_lea.vmem [#allocation8], 1
        %v263 = vld [vmem:[%s262] ss:$4 sm:$0xf]
        %s264 = scalar_lea.vmem [#allocation8], 2
        %v265 = vld [vmem:[%s264] ss:$4 sm:$0xf]
        %s266 = scalar_lea.vmem [#allocation8], 3
        %v267 = vld [vmem:[%s266] ss:$4 sm:$0xf]
        %v268 = vld [vmem:[%s222] sm:$0xff]
        %v269 = vld [vmem:[%s222 + $0x8] sm:$0xff]
        %v270 = vld [vmem:[%s222 + $0x10] sm:$0xff]
        %v271 = vld [vmem:[%s222 + $0x18] sm:$0xff]
        %v272 = vld [vmem:[%s222 + $0x20] sm:$0xff]
        %v273 = vld [vmem:[%s222 + $0x28] sm:$0xff]
        %v274 = vld [vmem:[%s222 + $0x30] sm:$0xff]
        %v275 = vld [vmem:[%s222 + $0x38] sm:$0xff]
        %v276 = vld [vmem:[%s222 + $0x40] sm:$0xff]
        %v277 = vld [vmem:[%s222 + $0x48] sm:$0xff]
        %v278 = vld [vmem:[%s222 + $0x50] sm:$0xff]
        %v279 = vld [vmem:[%s222 + $0x58] sm:$0xff]
        %v280 = vld [vmem:[%s222 + $0x60] sm:$0xff]
        %v281 = vld [vmem:[%s222 + $0x68] sm:$0xff]
        %v282 = vld [vmem:[%s222 + $0x70] sm:$0xff]
        %v283 = vld [vmem:[%s222 + $0x78] sm:$0xff]
        %v284 = vld [vmem:[%s222 + $0x80] sm:$0xff]
        %v285 = vld [vmem:[%s222 + $0x88] sm:$0xff]
        %v286 = vld [vmem:[%s222 + $0x90] sm:$0xff]
        %v287 = vld [vmem:[%s222 + $0x98] sm:$0xff]
        %v288 = vld [vmem:[%s222 + $0xa0] sm:$0xff]
        %v289 = vld [vmem:[%s222 + $0xa8] sm:$0xff]
        %v290 = vld [vmem:[%s222 + $0xb0] sm:$0xff]
        %v291 = vld [vmem:[%s222 + $0xb8] sm:$0xff]
        %v292 = vld [vmem:[%s222 + $0xc0] sm:$0xff]
        %v293 = vld [vmem:[%s222 + $0xc8] sm:$0xff]
        %v294 = vld [vmem:[%s222 + $0xd0] sm:$0xff]
        %v295 = vld [vmem:[%s222 + $0xd8] sm:$0xff]
        %v296 = vld [vmem:[%s222 + $0xe0] sm:$0xff]
        %v297 = vld [vmem:[%s222 + $0xe8] sm:$0xff]
        %v298 = vld [vmem:[%s222 + $0xf0] sm:$0xff]
        %v299 = vld [vmem:[%s222 + $0xf8] sm:$0xff]
        %v300 = vld [vmem:[%s222 + $0x100] sm:$0xff]
        %v301 = vld [vmem:[%s222 + $0x108] sm:$0xff]
        %v302 = vld [vmem:[%s222 + $0x110] sm:$0xff]
        %v303 = vld [vmem:[%s222 + $0x118] sm:$0xff]
        %v304 = vld [vmem:[%s222 + $0x120] sm:$0xff]
        %v305 = vld [vmem:[%s222 + $0x128] sm:$0xff]
        %v306 = vld [vmem:[%s222 + $0x130] sm:$0xff]
        %v307 = vld [vmem:[%s222 + $0x138] sm:$0xff]
        %v308 = vld [vmem:[%s222 + $0x140] sm:$0xff]
        %v309 = vld [vmem:[%s222 + $0x148] sm:$0xff]
        %v310 = vld [vmem:[%s222 + $0x150] sm:$0xff]
        %v311 = vld [vmem:[%s222 + $0x158] sm:$0xff]
        %v312 = vld [vmem:[%s222 + $0x160] sm:$0xff]
        %v313 = vld [vmem:[%s222 + $0x168] sm:$0xff]
        %v314 = vld [vmem:[%s222 + $0x170] sm:$0xff]
        %v315 = vld [vmem:[%s222 + $0x178] sm:$0xff]
        %v316 = vld [vmem:[%s222 + $0x180] sm:$0xff]
        %v317 = vld [vmem:[%s222 + $0x188] sm:$0xff]
        %v318 = vld [vmem:[%s222 + $0x190] sm:$0xff]
        %v319 = vld [vmem:[%s222 + $0x198] sm:$0xff]
        %v320 = vld [vmem:[%s222 + $0x1a0] sm:$0xff]
        %v321 = vld [vmem:[%s222 + $0x1a8] sm:$0xff]
        %v322 = vld [vmem:[%s222 + $0x1b0] sm:$0xff]
        %v323 = vld [vmem:[%s222 + $0x1b8] sm:$0xff]
        %v324 = vld [vmem:[%s222 + $0x1c0] sm:$0xff]
        %v325 = vld [vmem:[%s222 + $0x1c8] sm:$0xff]
        %v326 = vld [vmem:[%s222 + $0x1d0] sm:$0xff]
        %v327 = vld [vmem:[%s222 + $0x1d8] sm:$0xff]
        %v328 = vld [vmem:[%s222 + $0x1e0] sm:$0xff]
        %v329 = vld [vmem:[%s222 + $0x1e8] sm:$0xff]
        %v330 = vld [vmem:[%s222 + $0x1f0] sm:$0xff]
        %v331 = vld [vmem:[%s222 + $0x1f8] sm:$0xff]
        %v332 = vld [vmem:[%s222 + $0x200] sm:$0xff]
        %v333 = vld [vmem:[%s222 + $0x208] sm:$0xff]
        %v334 = vld [vmem:[%s222 + $0x210] sm:$0xff]
        %v335 = vld [vmem:[%s222 + $0x218] sm:$0xff]
        %v336 = vld [vmem:[%s222 + $0x220] sm:$0xff]
        %v337 = vld [vmem:[%s222 + $0x228] sm:$0xff]
        %v338 = vld [vmem:[%s222 + $0x230] sm:$0xff]
        %v339 = vld [vmem:[%s222 + $0x238] sm:$0xff]
        %v340 = vld [vmem:[%s222 + $0x240] sm:$0xff]
        %v341 = vld [vmem:[%s222 + $0x248] sm:$0xff]
        %v342 = vld [vmem:[%s222 + $0x250] sm:$0xff]
        %v343 = vld [vmem:[%s222 + $0x258] sm:$0xff]
        %v344 = vld [vmem:[%s222 + $0x260] sm:$0xff]
        %v345 = vld [vmem:[%s222 + $0x268] sm:$0xff]
        %v346 = vld [vmem:[%s222 + $0x270] sm:$0xff]
        %v347 = vld [vmem:[%s222 + $0x278] sm:$0xff]
        %v348 = vld [vmem:[%s222 + $0x280] sm:$0xff]
        %v349 = vld [vmem:[%s222 + $0x288] sm:$0xff]
        %v350 = vld [vmem:[%s222 + $0x290] sm:$0xff]
        %v351 = vld [vmem:[%s222 + $0x298] sm:$0xff]
        %v352 = vld [vmem:[%s222 + $0x2a0] sm:$0xff]
        %v353 = vld [vmem:[%s222 + $0x2a8] sm:$0xff]
        %v354 = vld [vmem:[%s222 + $0x2b0] sm:$0xff]
        %v355 = vld [vmem:[%s222 + $0x2b8] sm:$0xff]
        %v356 = vld [vmem:[%s222 + $0x2c0] sm:$0xff]
        %v357 = vld [vmem:[%s222 + $0x2c8] sm:$0xff]
        %v358 = vld [vmem:[%s222 + $0x2d0] sm:$0xff]
        %v359 = vld [vmem:[%s222 + $0x2d8] sm:$0xff]
        %v360 = vld [vmem:[%s222 + $0x2e0] sm:$0xff]
        %v361 = vld [vmem:[%s222 + $0x2e8] sm:$0xff]
        %v362 = vld [vmem:[%s222 + $0x2f0] sm:$0xff]
        %v363 = vld [vmem:[%s222 + $0x2f8] sm:$0xff]
        %v364 = vld [vmem:[%s222 + $0x300] sm:$0xff]
        %v365 = vld [vmem:[%s222 + $0x308] sm:$0xff]
        %v366 = vld [vmem:[%s222 + $0x310] sm:$0xff]
        %v367 = vld [vmem:[%s222 + $0x318] sm:$0xff]
        %v368 = vld [vmem:[%s222 + $0x320] sm:$0xff]
        %v369 = vld [vmem:[%s222 + $0x328] sm:$0xff]
        %v370 = vld [vmem:[%s222 + $0x330] sm:$0xff]
        %v371 = vld [vmem:[%s222 + $0x338] sm:$0xff]
        %v372 = vld [vmem:[%s222 + $0x340] sm:$0xff]
        %v373 = vld [vmem:[%s222 + $0x348] sm:$0xff]
        %v374 = vld [vmem:[%s222 + $0x350] sm:$0xff]
        %v375 = vld [vmem:[%s222 + $0x358] sm:$0xff]
        %v376 = vld [vmem:[%s222 + $0x360] sm:$0xff]
        %v377 = vld [vmem:[%s222 + $0x368] sm:$0xff]
        %v378 = vld [vmem:[%s222 + $0x370] sm:$0xff]
        %v379 = vld [vmem:[%s222 + $0x378] sm:$0xff]
        %v380 = vld [vmem:[%s222 + $0x380] sm:$0xff]
        %v381 = vld [vmem:[%s222 + $0x388] sm:$0xff]
        %v382 = vld [vmem:[%s222 + $0x390] sm:$0xff]
        %v383 = vld [vmem:[%s222 + $0x398] sm:$0xff]
        %v384 = vld [vmem:[%s222 + $0x3a0] sm:$0xff]
        %v385 = vld [vmem:[%s222 + $0x3a8] sm:$0xff]
        %v386 = vld [vmem:[%s222 + $0x3b0] sm:$0xff]
        %v387 = vld [vmem:[%s222 + $0x3b8] sm:$0xff]
        %v388 = vld [vmem:[%s222 + $0x3c0] sm:$0xff]
        %v389 = vld [vmem:[%s222 + $0x3c8] sm:$0xff]
        %v390 = vld [vmem:[%s222 + $0x3d0] sm:$0xff]
        %v391 = vld [vmem:[%s222 + $0x3d8] sm:$0xff]
        %v392 = vld [vmem:[%s222 + $0x3e0] sm:$0xff]
        %v393 = vld [vmem:[%s222 + $0x3e8] sm:$0xff]
        %v394 = vld [vmem:[%s222 + $0x3f0] sm:$0xff]
        %v395 = vld [vmem:[%s222 + $0x3f8] sm:$0xff]
        %v396 = vpack.c.bf16 %v272, %v268
        %v397 = vpack.c.bf16 %v273, %v269
        %v398 = vpack.c.bf16 %v274, %v270
        %v399 = vpack.c.bf16 %v275, %v271
        %v400 = vpack.c.bf16 %v280, %v276
        %v401 = vpack.c.bf16 %v281, %v277
        %v402 = vpack.c.bf16 %v282, %v278
        %v403 = vpack.c.bf16 %v283, %v279
        %v404 = vpack.c.bf16 %v288, %v284
        %v405 = vpack.c.bf16 %v289, %v285
        %v406 = vpack.c.bf16 %v290, %v286
        %v407 = vpack.c.bf16 %v291, %v287
        %v408 = vpack.c.bf16 %v296, %v292
        %v409 = vpack.c.bf16 %v297, %v293
        %v410 = vpack.c.bf16 %v298, %v294
        %v411 = vpack.c.bf16 %v299, %v295
        %v412 = vpack.c.bf16 %v304, %v300
        %v413 = vpack.c.bf16 %v305, %v301
        %v414 = vpack.c.bf16 %v306, %v302
        %v415 = vpack.c.bf16 %v307, %v303
        %v416 = vpack.c.bf16 %v312, %v308
        %v417 = vpack.c.bf16 %v313, %v309
        %v418 = vpack.c.bf16 %v314, %v310
        %v419 = vpack.c.bf16 %v315, %v311
        %v420 = vpack.c.bf16 %v320, %v316
        %v421 = vpack.c.bf16 %v321, %v317
        %v422 = vpack.c.bf16 %v322, %v318
        %v423 = vpack.c.bf16 %v323, %v319
        %v424 = vpack.c.bf16 %v328, %v324
        %v425 = vpack.c.bf16 %v329, %v325
        %v426 = vpack.c.bf16 %v330, %v326
        %v427 = vpack.c.bf16 %v331, %v327
        %v428 = vpack.c.bf16 %v336, %v332
        %v429 = vpack.c.bf16 %v337, %v333
        %v430 = vpack.c.bf16 %v338, %v334
        %v431 = vpack.c.bf16 %v339, %v335
        %v432 = vpack.c.bf16 %v344, %v340
        %v433 = vpack.c.bf16 %v345, %v341
        %v434 = vpack.c.bf16 %v346, %v342
        %v435 = vpack.c.bf16 %v347, %v343
        %v436 = vpack.c.bf16 %v352, %v348
        %v437 = vpack.c.bf16 %v353, %v349
        %v438 = vpack.c.bf16 %v354, %v350
        %v439 = vpack.c.bf16 %v355, %v351
        %v440 = vpack.c.bf16 %v360, %v356
        %v441 = vpack.c.bf16 %v361, %v357
        %v442 = vpack.c.bf16 %v362, %v358
        %v443 = vpack.c.bf16 %v363, %v359
        %v444 = vpack.c.bf16 %v368, %v364
        %v445 = vpack.c.bf16 %v369, %v365
        %v446 = vpack.c.bf16 %v370, %v366
        %v447 = vpack.c.bf16 %v371, %v367
        %v448 = vpack.c.bf16 %v376, %v372
        %v449 = vpack.c.bf16 %v377, %v373
        %v450 = vpack.c.bf16 %v378, %v374
        %v451 = vpack.c.bf16 %v379, %v375
        %v452 = vpack.c.bf16 %v384, %v380
        %v453 = vpack.c.bf16 %v385, %v381
        %v454 = vpack.c.bf16 %v386, %v382
        %v455 = vpack.c.bf16 %v387, %v383
        %v456 = vpack.c.bf16 %v392, %v388
        %v457 = vpack.c.bf16 %v393, %v389
        %v458 = vpack.c.bf16 %v394, %v390
        %v459 = vpack.c.bf16 %v395, %v391
        %v460 = vld [vmem:[#allocation5] sm:$0xff]
        %v461 = vld [vmem:[#allocation5 + $0x8] sm:$0xff]
        %v462 = vld [vmem:[#allocation5 + $0x10] sm:$0xff]
        %v463 = vld [vmem:[#allocation5 + $0x18] sm:$0xff]
        %v464 = vld [vmem:[#allocation5 + $0x20] sm:$0xff]
        %v465 = vld [vmem:[#allocation5 + $0x28] sm:$0xff]
        %v466 = vld [vmem:[#allocation5 + $0x30] sm:$0xff]
        %v467 = vld [vmem:[#allocation5 + $0x38] sm:$0xff]
        %v468 = vld [vmem:[#allocation5 + $0x40] sm:$0xff]
        %v469 = vld [vmem:[#allocation5 + $0x48] sm:$0xff]
        %v470 = vld [vmem:[#allocation5 + $0x50] sm:$0xff]
        %v471 = vld [vmem:[#allocation5 + $0x58] sm:$0xff]
        %v472 = vld [vmem:[#allocation5 + $0x60] sm:$0xff]
        %v473 = vld [vmem:[#allocation5 + $0x68] sm:$0xff]
        %v474 = vld [vmem:[#allocation5 + $0x70] sm:$0xff]
        %v475 = vld [vmem:[#allocation5 + $0x78] sm:$0xff]
        %v476 = vld [vmem:[#allocation5 + $0x80] sm:$0xff]
        %v477 = vld [vmem:[#allocation5 + $0x88] sm:$0xff]
        %v478 = vld [vmem:[#allocation5 + $0x90] sm:$0xff]
        %v479 = vld [vmem:[#allocation5 + $0x98] sm:$0xff]
        %v480 = vld [vmem:[#allocation5 + $0xa0] sm:$0xff]
        %v481 = vld [vmem:[#allocation5 + $0xa8] sm:$0xff]
        %v482 = vld [vmem:[#allocation5 + $0xb0] sm:$0xff]
        %v483 = vld [vmem:[#allocation5 + $0xb8] sm:$0xff]
        %v484 = vld [vmem:[#allocation5 + $0xc0] sm:$0xff]
        %v485 = vld [vmem:[#allocation5 + $0xc8] sm:$0xff]
        %v486 = vld [vmem:[#allocation5 + $0xd0] sm:$0xff]
        %v487 = vld [vmem:[#allocation5 + $0xd8] sm:$0xff]
        %v488 = vld [vmem:[#allocation5 + $0xe0] sm:$0xff]
        %v489 = vld [vmem:[#allocation5 + $0xe8] sm:$0xff]
        %v490 = vld [vmem:[#allocation5 + $0xf0] sm:$0xff]
        %v491 = vld [vmem:[#allocation5 + $0xf8] sm:$0xff]
        %v492 = vld [vmem:[#allocation5 + $0x100] sm:$0xff]
        %v493 = vld [vmem:[#allocation5 + $0x108] sm:$0xff]
        %v494 = vld [vmem:[#allocation5 + $0x110] sm:$0xff]
        %v495 = vld [vmem:[#allocation5 + $0x118] sm:$0xff]
        %v496 = vld [vmem:[#allocation5 + $0x120] sm:$0xff]
        %v497 = vld [vmem:[#allocation5 + $0x128] sm:$0xff]
        %v498 = vld [vmem:[#allocation5 + $0x130] sm:$0xff]
        %v499 = vld [vmem:[#allocation5 + $0x138] sm:$0xff]
        %v500 = vld [vmem:[#allocation5 + $0x140] sm:$0xff]
        %v501 = vld [vmem:[#allocation5 + $0x148] sm:$0xff]
        %v502 = vld [vmem:[#allocation5 + $0x150] sm:$0xff]
        %v503 = vld [vmem:[#allocation5 + $0x158] sm:$0xff]
        %v504 = vld [vmem:[#allocation5 + $0x160] sm:$0xff]
        %v505 = vld [vmem:[#allocation5 + $0x168] sm:$0xff]
        %v506 = vld [vmem:[#allocation5 + $0x170] sm:$0xff]
        %v507 = vld [vmem:[#allocation5 + $0x178] sm:$0xff]
        %v508 = vld [vmem:[#allocation5 + $0x180] sm:$0xff]
        %v509 = vld [vmem:[#allocation5 + $0x188] sm:$0xff]
        %v510 = vld [vmem:[#allocation5 + $0x190] sm:$0xff]
        %v511 = vld [vmem:[#allocation5 + $0x198] sm:$0xff]
        %v512 = vld [vmem:[#allocation5 + $0x1a0] sm:$0xff]
        %v513 = vld [vmem:[#allocation5 + $0x1a8] sm:$0xff]
        %v514 = vld [vmem:[#allocation5 + $0x1b0] sm:$0xff]
        %v515 = vld [vmem:[#allocation5 + $0x1b8] sm:$0xff]
        %v516 = vld [vmem:[#allocation5 + $0x1c0] sm:$0xff]
        %v517 = vld [vmem:[#allocation5 + $0x1c8] sm:$0xff]
        %v518 = vld [vmem:[#allocation5 + $0x1d0] sm:$0xff]
        %v519 = vld [vmem:[#allocation5 + $0x1d8] sm:$0xff]
        %v520 = vld [vmem:[#allocation5 + $0x1e0] sm:$0xff]
        %v521 = vld [vmem:[#allocation5 + $0x1e8] sm:$0xff]
        %v522 = vld [vmem:[#allocation5 + $0x1f0] sm:$0xff]
        %v523 = vld [vmem:[#allocation5 + $0x1f8] sm:$0xff]
        %v524 = vld [vmem:[#allocation5 + $0x200] sm:$0xff]
        %v525 = vld [vmem:[#allocation5 + $0x208] sm:$0xff]
        %v526 = vld [vmem:[#allocation5 + $0x210] sm:$0xff]
        %v527 = vld [vmem:[#allocation5 + $0x218] sm:$0xff]
        %v528 = vld [vmem:[#allocation5 + $0x220] sm:$0xff]
        %v529 = vld [vmem:[#allocation5 + $0x228] sm:$0xff]
        %v530 = vld [vmem:[#allocation5 + $0x230] sm:$0xff]
        %v531 = vld [vmem:[#allocation5 + $0x238] sm:$0xff]
        %v532 = vld [vmem:[#allocation5 + $0x240] sm:$0xff]
        %v533 = vld [vmem:[#allocation5 + $0x248] sm:$0xff]
        %v534 = vld [vmem:[#allocation5 + $0x250] sm:$0xff]
        %v535 = vld [vmem:[#allocation5 + $0x258] sm:$0xff]
        %v536 = vld [vmem:[#allocation5 + $0x260] sm:$0xff]
        %v537 = vld [vmem:[#allocation5 + $0x268] sm:$0xff]
        %v538 = vld [vmem:[#allocation5 + $0x270] sm:$0xff]
        %v539 = vld [vmem:[#allocation5 + $0x278] sm:$0xff]
        %v540 = vld [vmem:[#allocation5 + $0x280] sm:$0xff]
        %v541 = vld [vmem:[#allocation5 + $0x288] sm:$0xff]
        %v542 = vld [vmem:[#allocation5 + $0x290] sm:$0xff]
        %v543 = vld [vmem:[#allocation5 + $0x298] sm:$0xff]
        %v544 = vld [vmem:[#allocation5 + $0x2a0] sm:$0xff]
        %v545 = vld [vmem:[#allocation5 + $0x2a8] sm:$0xff]
        %v546 = vld [vmem:[#allocation5 + $0x2b0] sm:$0xff]
        %v547 = vld [vmem:[#allocation5 + $0x2b8] sm:$0xff]
        %v548 = vld [vmem:[#allocation5 + $0x2c0] sm:$0xff]
        %v549 = vld [vmem:[#allocation5 + $0x2c8] sm:$0xff]
        %v550 = vld [vmem:[#allocation5 + $0x2d0] sm:$0xff]
        %v551 = vld [vmem:[#allocation5 + $0x2d8] sm:$0xff]
        %v552 = vld [vmem:[#allocation5 + $0x2e0] sm:$0xff]
        %v553 = vld [vmem:[#allocation5 + $0x2e8] sm:$0xff]
        %v554 = vld [vmem:[#allocation5 + $0x2f0] sm:$0xff]
        %v555 = vld [vmem:[#allocation5 + $0x2f8] sm:$0xff]
        %v556 = vld [vmem:[#allocation5 + $0x300] sm:$0xff]
        %v557 = vld [vmem:[#allocation5 + $0x308] sm:$0xff]
        %v558 = vld [vmem:[#allocation5 + $0x310] sm:$0xff]
        %v559 = vld [vmem:[#allocation5 + $0x318] sm:$0xff]
        %v560 = vld [vmem:[#allocation5 + $0x320] sm:$0xff]
        %v561 = vld [vmem:[#allocation5 + $0x328] sm:$0xff]
        %v562 = vld [vmem:[#allocation5 + $0x330] sm:$0xff]
        %v563 = vld [vmem:[#allocation5 + $0x338] sm:$0xff]
        %v564 = vld [vmem:[#allocation5 + $0x340] sm:$0xff]
        %v565 = vld [vmem:[#allocation5 + $0x348] sm:$0xff]
        %v566 = vld [vmem:[#allocation5 + $0x350] sm:$0xff]
        %v567 = vld [vmem:[#allocation5 + $0x358] sm:$0xff]
        %v568 = vld [vmem:[#allocation5 + $0x360] sm:$0xff]
        %v569 = vld [vmem:[#allocation5 + $0x368] sm:$0xff]
        %v570 = vld [vmem:[#allocation5 + $0x370] sm:$0xff]
        %v571 = vld [vmem:[#allocation5 + $0x378] sm:$0xff]
        %v572 = vld [vmem:[#allocation5 + $0x380] sm:$0xff]
        %v573 = vld [vmem:[#allocation5 + $0x388] sm:$0xff]
        %v574 = vld [vmem:[#allocation5 + $0x390] sm:$0xff]
        %v575 = vld [vmem:[#allocation5 + $0x398] sm:$0xff]
        %v576 = vld [vmem:[#allocation5 + $0x3a0] sm:$0xff]
        %v577 = vld [vmem:[#allocation5 + $0x3a8] sm:$0xff]
        %v578 = vld [vmem:[#allocation5 + $0x3b0] sm:$0xff]
        %v579 = vld [vmem:[#allocation5 + $0x3b8] sm:$0xff]
        %v580 = vld [vmem:[#allocation5 + $0x3c0] sm:$0xff]
        %v581 = vld [vmem:[#allocation5 + $0x3c8] sm:$0xff]
        %v582 = vld [vmem:[#allocation5 + $0x3d0] sm:$0xff]
        %v583 = vld [vmem:[#allocation5 + $0x3d8] sm:$0xff]
        %v584 = vld [vmem:[#allocation5 + $0x3e0] sm:$0xff]
        %v585 = vld [vmem:[#allocation5 + $0x3e8] sm:$0xff]
        %v586 = vld [vmem:[#allocation5 + $0x3f0] sm:$0xff]
        %v587 = vld [vmem:[#allocation5 + $0x3f8] sm:$0xff]
        %v589 = vlaneseq
        %v590 = vshrl.u32 %v589, 7
        %v591 = vsub.s32 0, %v590
        %v592 = vrot.slane %v261, %v591
        %v593 = vlaneseq
        %v594 = vshrl.u32 %v593, 7
        %v595 = vsub.s32 1, %v594
        %v596 = vrot.slane %v261, %v595
        %v597 = vlaneseq
        %v598 = vshrl.u32 %v597, 7
        %v599 = vsub.s32 2, %v598
        %v600 = vrot.slane %v261, %v599
        %v601 = vlaneseq
        %v602 = vshrl.u32 %v601, 7
        %v603 = vsub.s32 3, %v602
        %v604 = vrot.slane %v261, %v603
        %v737 = vunpack.c.l.b16 %v460
        %v738 = vunpack.c.h.b16 %v460
        %v739 = vunpack.c.l.b16 %v461
        %v740 = vunpack.c.h.b16 %v461
        %v741 = vunpack.c.l.b16 %v462
        %v742 = vunpack.c.h.b16 %v462
        %v743 = vunpack.c.l.b16 %v463
        %v744 = vunpack.c.h.b16 %v463
        %v745 = vunpack.c.l.b16 %v464
        %v746 = vunpack.c.h.b16 %v464
        %v747 = vunpack.c.l.b16 %v465
        %v748 = vunpack.c.h.b16 %v465
        %v749 = vunpack.c.l.b16 %v466
        %v750 = vunpack.c.h.b16 %v466
        %v751 = vunpack.c.l.b16 %v467
        %v752 = vunpack.c.h.b16 %v467
        %v753 = vunpack.c.l.b16 %v468
        %v754 = vunpack.c.h.b16 %v468
        %v755 = vunpack.c.l.b16 %v469
        %v756 = vunpack.c.h.b16 %v469
        %v757 = vunpack.c.l.b16 %v470
        %v758 = vunpack.c.h.b16 %v470
        %v759 = vunpack.c.l.b16 %v471
        %v760 = vunpack.c.h.b16 %v471
        %v761 = vunpack.c.l.b16 %v472
        %v762 = vunpack.c.h.b16 %v472
        %v763 = vunpack.c.l.b16 %v473
        %v764 = vunpack.c.h.b16 %v473
        %v765 = vunpack.c.l.b16 %v474
        %v766 = vunpack.c.h.b16 %v474
        %v767 = vunpack.c.l.b16 %v475
        %v768 = vunpack.c.h.b16 %v475
        %v769 = vunpack.c.l.b16 %v476
        %v770 = vunpack.c.h.b16 %v476
        %v771 = vunpack.c.l.b16 %v477
        %v772 = vunpack.c.h.b16 %v477
        %v773 = vunpack.c.l.b16 %v478
        %v774 = vunpack.c.h.b16 %v478
        %v775 = vunpack.c.l.b16 %v479
        %v776 = vunpack.c.h.b16 %v479
        %v777 = vunpack.c.l.b16 %v480
        %v778 = vunpack.c.h.b16 %v480
        %v779 = vunpack.c.l.b16 %v481
        %v780 = vunpack.c.h.b16 %v481
        %v781 = vunpack.c.l.b16 %v482
        %v782 = vunpack.c.h.b16 %v482
        %v783 = vunpack.c.l.b16 %v483
        %v784 = vunpack.c.h.b16 %v483
        %v785 = vunpack.c.l.b16 %v484
        %v786 = vunpack.c.h.b16 %v484
        %v787 = vunpack.c.l.b16 %v485
        %v788 = vunpack.c.h.b16 %v485
        %v789 = vunpack.c.l.b16 %v486
        %v790 = vunpack.c.h.b16 %v486
        %v791 = vunpack.c.l.b16 %v487
        %v792 = vunpack.c.h.b16 %v487
        %v793 = vunpack.c.l.b16 %v488
        %v794 = vunpack.c.h.b16 %v488
        %v795 = vunpack.c.l.b16 %v489
        %v796 = vunpack.c.h.b16 %v489
        %v797 = vunpack.c.l.b16 %v490
        %v798 = vunpack.c.h.b16 %v490
        %v799 = vunpack.c.l.b16 %v491
        %v800 = vunpack.c.h.b16 %v491
        %v801 = vunpack.c.l.b16 %v492
        %v802 = vunpack.c.h.b16 %v492
        %v803 = vunpack.c.l.b16 %v493
        %v804 = vunpack.c.h.b16 %v493
        %v805 = vunpack.c.l.b16 %v494
        %v806 = vunpack.c.h.b16 %v494
        %v807 = vunpack.c.l.b16 %v495
        %v808 = vunpack.c.h.b16 %v495
        %v809 = vunpack.c.l.b16 %v496
        %v810 = vunpack.c.h.b16 %v496
        %v811 = vunpack.c.l.b16 %v497
        %v812 = vunpack.c.h.b16 %v497
        %v813 = vunpack.c.l.b16 %v498
        %v814 = vunpack.c.h.b16 %v498
        %v815 = vunpack.c.l.b16 %v499
        %v816 = vunpack.c.h.b16 %v499
        %v817 = vunpack.c.l.b16 %v500
        %v818 = vunpack.c.h.b16 %v500
        %v819 = vunpack.c.l.b16 %v501
        %v820 = vunpack.c.h.b16 %v501
        %v821 = vunpack.c.l.b16 %v502
        %v822 = vunpack.c.h.b16 %v502
        %v823 = vunpack.c.l.b16 %v503
        %v824 = vunpack.c.h.b16 %v503
        %v825 = vunpack.c.l.b16 %v504
        %v826 = vunpack.c.h.b16 %v504
        %v827 = vunpack.c.l.b16 %v505
        %v828 = vunpack.c.h.b16 %v505
        %v829 = vunpack.c.l.b16 %v506
        %v830 = vunpack.c.h.b16 %v506
        %v831 = vunpack.c.l.b16 %v507
        %v832 = vunpack.c.h.b16 %v507
        %v833 = vunpack.c.l.b16 %v508
        %v834 = vunpack.c.h.b16 %v508
        %v835 = vunpack.c.l.b16 %v509
        %v836 = vunpack.c.h.b16 %v509
        %v837 = vunpack.c.l.b16 %v510
        %v838 = vunpack.c.h.b16 %v510
        %v839 = vunpack.c.l.b16 %v511
        %v840 = vunpack.c.h.b16 %v511
        %v841 = vunpack.c.l.b16 %v512
        %v842 = vunpack.c.h.b16 %v512
        %v843 = vunpack.c.l.b16 %v513
        %v844 = vunpack.c.h.b16 %v513
        %v845 = vunpack.c.l.b16 %v514
        %v846 = vunpack.c.h.b16 %v514
        %v847 = vunpack.c.l.b16 %v515
        %v848 = vunpack.c.h.b16 %v515
        %v849 = vunpack.c.l.b16 %v516
        %v850 = vunpack.c.h.b16 %v516
        %v851 = vunpack.c.l.b16 %v517
        %v852 = vunpack.c.h.b16 %v517
        %v853 = vunpack.c.l.b16 %v518
        %v854 = vunpack.c.h.b16 %v518
        %v855 = vunpack.c.l.b16 %v519
        %v856 = vunpack.c.h.b16 %v519
        %v857 = vunpack.c.l.b16 %v520
        %v858 = vunpack.c.h.b16 %v520
        %v859 = vunpack.c.l.b16 %v521
        %v860 = vunpack.c.h.b16 %v521
        %v861 = vunpack.c.l.b16 %v522
        %v862 = vunpack.c.h.b16 %v522
        %v863 = vunpack.c.l.b16 %v523
        %v864 = vunpack.c.h.b16 %v523
        %v865 = vunpack.c.l.b16 %v524
        %v866 = vunpack.c.h.b16 %v524
        %v867 = vunpack.c.l.b16 %v525
        %v868 = vunpack.c.h.b16 %v525
        %v869 = vunpack.c.l.b16 %v526
        %v870 = vunpack.c.h.b16 %v526
        %v871 = vunpack.c.l.b16 %v527
        %v872 = vunpack.c.h.b16 %v527
        %v873 = vunpack.c.l.b16 %v528
        %v874 = vunpack.c.h.b16 %v528
        %v875 = vunpack.c.l.b16 %v529
        %v876 = vunpack.c.h.b16 %v529
        %v877 = vunpack.c.l.b16 %v530
        %v878 = vunpack.c.h.b16 %v530
        %v879 = vunpack.c.l.b16 %v531
        %v880 = vunpack.c.h.b16 %v531
        %v881 = vunpack.c.l.b16 %v532
        %v882 = vunpack.c.h.b16 %v532
        %v883 = vunpack.c.l.b16 %v533
        %v884 = vunpack.c.h.b16 %v533
        %v885 = vunpack.c.l.b16 %v534
        %v886 = vunpack.c.h.b16 %v534
        %v887 = vunpack.c.l.b16 %v535
        %v888 = vunpack.c.h.b16 %v535
        %v889 = vunpack.c.l.b16 %v536
        %v890 = vunpack.c.h.b16 %v536
        %v891 = vunpack.c.l.b16 %v537
        %v892 = vunpack.c.h.b16 %v537
        %v893 = vunpack.c.l.b16 %v538
        %v894 = vunpack.c.h.b16 %v538
        %v895 = vunpack.c.l.b16 %v539
        %v896 = vunpack.c.h.b16 %v539
        %v897 = vunpack.c.l.b16 %v540
        %v898 = vunpack.c.h.b16 %v540
        %v899 = vunpack.c.l.b16 %v541
        %v900 = vunpack.c.h.b16 %v541
        %v901 = vunpack.c.l.b16 %v542
        %v902 = vunpack.c.h.b16 %v542
        %v903 = vunpack.c.l.b16 %v543
        %v904 = vunpack.c.h.b16 %v543
        %v905 = vunpack.c.l.b16 %v544
        %v906 = vunpack.c.h.b16 %v544
        %v907 = vunpack.c.l.b16 %v545
        %v908 = vunpack.c.h.b16 %v545
        %v909 = vunpack.c.l.b16 %v546
        %v910 = vunpack.c.h.b16 %v546
        %v911 = vunpack.c.l.b16 %v547
        %v912 = vunpack.c.h.b16 %v547
        %v913 = vunpack.c.l.b16 %v548
        %v914 = vunpack.c.h.b16 %v548
        %v915 = vunpack.c.l.b16 %v549
        %v916 = vunpack.c.h.b16 %v549
        %v917 = vunpack.c.l.b16 %v550
        %v918 = vunpack.c.h.b16 %v550
        %v919 = vunpack.c.l.b16 %v551
        %v920 = vunpack.c.h.b16 %v551
        %v921 = vunpack.c.l.b16 %v552
        %v922 = vunpack.c.h.b16 %v552
        %v923 = vunpack.c.l.b16 %v553
        %v924 = vunpack.c.h.b16 %v553
        %v925 = vunpack.c.l.b16 %v554
        %v926 = vunpack.c.h.b16 %v554
        %v927 = vunpack.c.l.b16 %v555
        %v928 = vunpack.c.h.b16 %v555
        %v929 = vunpack.c.l.b16 %v556
        %v930 = vunpack.c.h.b16 %v556
        %v931 = vunpack.c.l.b16 %v557
        %v932 = vunpack.c.h.b16 %v557
        %v933 = vunpack.c.l.b16 %v558
        %v934 = vunpack.c.h.b16 %v558
        %v935 = vunpack.c.l.b16 %v559
        %v936 = vunpack.c.h.b16 %v559
        %v937 = vunpack.c.l.b16 %v560
        %v938 = vunpack.c.h.b16 %v560
        %v939 = vunpack.c.l.b16 %v561
        %v940 = vunpack.c.h.b16 %v561
        %v941 = vunpack.c.l.b16 %v562
        %v942 = vunpack.c.h.b16 %v562
        %v943 = vunpack.c.l.b16 %v563
        %v944 = vunpack.c.h.b16 %v563
        %v945 = vunpack.c.l.b16 %v564
        %v946 = vunpack.c.h.b16 %v564
        %v947 = vunpack.c.l.b16 %v565
        %v948 = vunpack.c.h.b16 %v565
        %v949 = vunpack.c.l.b16 %v566
        %v950 = vunpack.c.h.b16 %v566
        %v951 = vunpack.c.l.b16 %v567
        %v952 = vunpack.c.h.b16 %v567
        %v953 = vunpack.c.l.b16 %v568
        %v954 = vunpack.c.h.b16 %v568
        %v955 = vunpack.c.l.b16 %v569
        %v956 = vunpack.c.h.b16 %v569
        %v957 = vunpack.c.l.b16 %v570
        %v958 = vunpack.c.h.b16 %v570
        %v959 = vunpack.c.l.b16 %v571
        %v960 = vunpack.c.h.b16 %v571
        %v961 = vunpack.c.l.b16 %v572
        %v962 = vunpack.c.h.b16 %v572
        %v963 = vunpack.c.l.b16 %v573
        %v964 = vunpack.c.h.b16 %v573
        %v965 = vunpack.c.l.b16 %v574
        %v966 = vunpack.c.h.b16 %v574
        %v967 = vunpack.c.l.b16 %v575
        %v968 = vunpack.c.h.b16 %v575
        %v969 = vunpack.c.l.b16 %v576
        %v970 = vunpack.c.h.b16 %v576
        %v971 = vunpack.c.l.b16 %v577
        %v972 = vunpack.c.h.b16 %v577
        %v973 = vunpack.c.l.b16 %v578
        %v974 = vunpack.c.h.b16 %v578
        %v975 = vunpack.c.l.b16 %v579
        %v976 = vunpack.c.h.b16 %v579
        %v977 = vunpack.c.l.b16 %v580
        %v978 = vunpack.c.h.b16 %v580
        %v979 = vunpack.c.l.b16 %v581
        %v980 = vunpack.c.h.b16 %v581
        %v981 = vunpack.c.l.b16 %v582
        %v982 = vunpack.c.h.b16 %v582
        %v983 = vunpack.c.l.b16 %v583
        %v984 = vunpack.c.h.b16 %v583
        %v985 = vunpack.c.l.b16 %v584
        %v986 = vunpack.c.h.b16 %v584
        %v987 = vunpack.c.l.b16 %v585
        %v988 = vunpack.c.h.b16 %v585
        %v989 = vunpack.c.l.b16 %v586
        %v990 = vunpack.c.h.b16 %v586
        %v991 = vunpack.c.l.b16 %v587
        %v992 = vunpack.c.h.b16 %v587
        %v993 = vpack.c.b16 %v741, %v737
        %v994 = vpack.c.b16 %v742, %v738
        %v995 = vpack.c.b16 %v743, %v739
        %v996 = vpack.c.b16 %v744, %v740
        %v997 = vpack.c.b16 %v749, %v745
        %v998 = vpack.c.b16 %v750, %v746
        %v999 = vpack.c.b16 %v751, %v747
        %v1000 = vpack.c.b16 %v752, %v748
        %v1001 = vpack.c.b16 %v757, %v753
        %v1002 = vpack.c.b16 %v758, %v754
        %v1003 = vpack.c.b16 %v759, %v755
        %v1004 = vpack.c.b16 %v760, %v756
        %v1005 = vpack.c.b16 %v765, %v761
        %v1006 = vpack.c.b16 %v766, %v762
        %v1007 = vpack.c.b16 %v767, %v763
        %v1008 = vpack.c.b16 %v768, %v764
        %v1009 = vpack.c.b16 %v773, %v769
        %v1010 = vpack.c.b16 %v774, %v770
        %v1011 = vpack.c.b16 %v775, %v771
        %v1012 = vpack.c.b16 %v776, %v772
        %v1013 = vpack.c.b16 %v781, %v777
        %v1014 = vpack.c.b16 %v782, %v778
        %v1015 = vpack.c.b16 %v783, %v779
        %v1016 = vpack.c.b16 %v784, %v780
        %v1017 = vpack.c.b16 %v789, %v785
        %v1018 = vpack.c.b16 %v790, %v786
        %v1019 = vpack.c.b16 %v791, %v787
        %v1020 = vpack.c.b16 %v792, %v788
        %v1021 = vpack.c.b16 %v797, %v793
        %v1022 = vpack.c.b16 %v798, %v794
        %v1023 = vpack.c.b16 %v799, %v795
        %v1024 = vpack.c.b16 %v800, %v796
        %v1025 = vpack.c.b16 %v805, %v801
        %v1026 = vpack.c.b16 %v806, %v802
        %v1027 = vpack.c.b16 %v807, %v803
        %v1028 = vpack.c.b16 %v808, %v804
        %v1029 = vpack.c.b16 %v813, %v809
        %v1030 = vpack.c.b16 %v814, %v810
        %v1031 = vpack.c.b16 %v815, %v811
        %v1032 = vpack.c.b16 %v816, %v812
        %v1033 = vpack.c.b16 %v821, %v817
        %v1034 = vpack.c.b16 %v822, %v818
        %v1035 = vpack.c.b16 %v823, %v819
        %v1036 = vpack.c.b16 %v824, %v820
        %v1037 = vpack.c.b16 %v829, %v825
        %v1038 = vpack.c.b16 %v830, %v826
        %v1039 = vpack.c.b16 %v831, %v827
        %v1040 = vpack.c.b16 %v832, %v828
        %v1041 = vpack.c.b16 %v837, %v833
        %v1042 = vpack.c.b16 %v838, %v834
        %v1043 = vpack.c.b16 %v839, %v835
        %v1044 = vpack.c.b16 %v840, %v836
        %v1045 = vpack.c.b16 %v845, %v841
        %v1046 = vpack.c.b16 %v846, %v842
        %v1047 = vpack.c.b16 %v847, %v843
        %v1048 = vpack.c.b16 %v848, %v844
        %v1049 = vpack.c.b16 %v853, %v849
        %v1050 = vpack.c.b16 %v854, %v850
        %v1051 = vpack.c.b16 %v855, %v851
        %v1052 = vpack.c.b16 %v856, %v852
        %v1053 = vpack.c.b16 %v861, %v857
        %v1054 = vpack.c.b16 %v862, %v858
        %v1055 = vpack.c.b16 %v863, %v859
        %v1056 = vpack.c.b16 %v864, %v860
        %v1057 = vpack.c.b16 %v869, %v865
        %v1058 = vpack.c.b16 %v870, %v866
        %v1059 = vpack.c.b16 %v871, %v867
        %v1060 = vpack.c.b16 %v872, %v868
        %v1061 = vpack.c.b16 %v877, %v873
        %v1062 = vpack.c.b16 %v878, %v874
        %v1063 = vpack.c.b16 %v879, %v875
        %v1064 = vpack.c.b16 %v880, %v876
        %v1065 = vpack.c.b16 %v885, %v881
        %v1066 = vpack.c.b16 %v886, %v882
        %v1067 = vpack.c.b16 %v887, %v883
        %v1068 = vpack.c.b16 %v888, %v884
        %v1069 = vpack.c.b16 %v893, %v889
        %v1070 = vpack.c.b16 %v894, %v890
        %v1071 = vpack.c.b16 %v895, %v891
        %v1072 = vpack.c.b16 %v896, %v892
        %v1073 = vpack.c.b16 %v901, %v897
        %v1074 = vpack.c.b16 %v902, %v898
        %v1075 = vpack.c.b16 %v903, %v899
        %v1076 = vpack.c.b16 %v904, %v900
        %v1077 = vpack.c.b16 %v909, %v905
        %v1078 = vpack.c.b16 %v910, %v906
        %v1079 = vpack.c.b16 %v911, %v907
        %v1080 = vpack.c.b16 %v912, %v908
        %v1081 = vpack.c.b16 %v917, %v913
        %v1082 = vpack.c.b16 %v918, %v914
        %v1083 = vpack.c.b16 %v919, %v915
        %v1084 = vpack.c.b16 %v920, %v916
        %v1085 = vpack.c.b16 %v925, %v921
        %v1086 = vpack.c.b16 %v926, %v922
        %v1087 = vpack.c.b16 %v927, %v923
        %v1088 = vpack.c.b16 %v928, %v924
        %v1089 = vpack.c.b16 %v933, %v929
        %v1090 = vpack.c.b16 %v934, %v930
        %v1091 = vpack.c.b16 %v935, %v931
        %v1092 = vpack.c.b16 %v936, %v932
        %v1093 = vpack.c.b16 %v941, %v937
        %v1094 = vpack.c.b16 %v942, %v938
        %v1095 = vpack.c.b16 %v943, %v939
        %v1096 = vpack.c.b16 %v944, %v940
        %v1097 = vpack.c.b16 %v949, %v945
        %v1098 = vpack.c.b16 %v950, %v946
        %v1099 = vpack.c.b16 %v951, %v947
        %v1100 = vpack.c.b16 %v952, %v948
        %v1101 = vpack.c.b16 %v957, %v953
        %v1102 = vpack.c.b16 %v958, %v954
        %v1103 = vpack.c.b16 %v959, %v955
        %v1104 = vpack.c.b16 %v960, %v956
        %v1105 = vpack.c.b16 %v965, %v961
        %v1106 = vpack.c.b16 %v966, %v962
        %v1107 = vpack.c.b16 %v967, %v963
        %v1108 = vpack.c.b16 %v968, %v964
        %v1109 = vpack.c.b16 %v973, %v969
        %v1110 = vpack.c.b16 %v974, %v970
        %v1111 = vpack.c.b16 %v975, %v971
        %v1112 = vpack.c.b16 %v976, %v972
        %v1113 = vpack.c.b16 %v981, %v977
        %v1114 = vpack.c.b16 %v982, %v978
        %v1115 = vpack.c.b16 %v983, %v979
        %v1116 = vpack.c.b16 %v984, %v980
        %v1117 = vpack.c.b16 %v989, %v985
        %v1118 = vpack.c.b16 %v990, %v986
        %v1119 = vpack.c.b16 %v991, %v987
        %v1120 = vpack.c.b16 %v992, %v988
        %1249 = vmatprep.subr.bf16.mxu0 %v994
        %1250 = vmatpush1.bf16.msra.mxu0 %v993
        %1251 = vmatprep.subr.bf16.mxu0 %v998
        %1252 = vmatpush1.bf16.msra.mxu0 %v997
        %1253 = vmatprep.subr.bf16.mxu0 %v1002
        %1254 = vmatpush1.bf16.msra.mxu0 %v1001
        %1255 = vmatprep.subr.bf16.mxu0 %v1006
        %1256 = vmatpush1.bf16.msra.mxu0 %v1005
        %1257 = vmatprep.subr.bf16.mxu0 %v1010
        %1258 = vmatpush1.bf16.msra.mxu0 %v1009
        %1259 = vmatprep.subr.bf16.mxu0 %v1014
        %1260 = vmatpush1.bf16.msra.mxu0 %v1013
        %1261 = vmatprep.subr.bf16.mxu0 %v1018
        %1262 = vmatpush1.bf16.msra.mxu0 %v1017
        %1263 = vmatprep.subr.bf16.mxu0 %v1022
        %1264 = vmatpush1.bf16.msra.mxu0 %v1021
        %1265 = vmatprep.subr.bf16.mxu0 %v1026
        %1266 = vmatpush1.bf16.msra.mxu0 %v1025
        %1267 = vmatprep.subr.bf16.mxu0 %v1030
        %1268 = vmatpush1.bf16.msra.mxu0 %v1029
        %1269 = vmatprep.subr.bf16.mxu0 %v1034
        %1270 = vmatpush1.bf16.msra.mxu0 %v1033
        %1271 = vmatprep.subr.bf16.mxu0 %v1038
        %1272 = vmatpush1.bf16.msra.mxu0 %v1037
        %1273 = vmatprep.subr.bf16.mxu0 %v1042
        %1274 = vmatpush1.bf16.msra.mxu0 %v1041
        %1275 = vmatprep.subr.bf16.mxu0 %v1046
        %1276 = vmatpush1.bf16.msra.mxu0 %v1045
        %1277 = vmatprep.subr.bf16.mxu0 %v1050
        %1278 = vmatpush1.bf16.msra.mxu0 %v1049
        %1279 = vmatprep.subr.bf16.mxu0 %v1054
        %1280 = vmatpush1.bf16.msra.mxu0 %v1053
        %1281 = vmatprep.mubr.bf16.mxu0 %v397
        %1282 = vmatmul.mubr.bf16.gmra.mrb[0].mxu0 %v396
        %v1283 = vpop.f32.mrb[0].mxu0
        %v1284 = vadd.f32 %v592, %v1283
        %v1285 = vpop.f32.mrb[0].mxu0
        %v1286 = vadd.f32 %v596, %v1285
        %v1287 = vpop.f32.mrb[0].mxu0
        %v1288 = vadd.f32 %v592, %v1287
        %v1289 = vpop.f32.mrb[0].mxu0
        %v1290 = vadd.f32 %v596, %v1289
        %1291 = vmatprep.mubr.bf16.mxu0 %v401
        %1292 = vmatmul.mubr.bf16.gmra.mrb[0].mxu0 %v400
        %v1293 = vpop.f32.mrb[0].mxu0
        %v1294 = vadd.f32 %v592, %v1293
        %v1295 = vpop.f32.mrb[0].mxu0
        %v1296 = vadd.f32 %v596, %v1295
        %v1297 = vpop.f32.mrb[0].mxu0
        %v1298 = vadd.f32 %v592, %v1297
        %v1299 = vpop.f32.mrb[0].mxu0
        %v1300 = vadd.f32 %v596, %v1299
        %1301 = vmatprep.mubr.bf16.mxu0 %v405
        %1302 = vmatmul.mubr.bf16.gmra.mrb[0].mxu0 %v404
        %v1303 = vpop.f32.mrb[0].mxu0
        %v1304 = vadd.f32 %v592, %v1303
        %v1305 = vpop.f32.mrb[0].mxu0
        %v1306 = vadd.f32 %v596, %v1305
        %v1307 = vpop.f32.mrb[0].mxu0
        %v1308 = vadd.f32 %v592, %v1307
        %v1309 = vpop.f32.mrb[0].mxu0
        %v1310 = vadd.f32 %v596, %v1309
        %1311 = vmatprep.mubr.bf16.mxu0 %v409
        %1312 = vmatmul.mubr.bf16.gmra.mrb[0].mxu0 %v408
        %v1313 = vpop.f32.mrb[0].mxu0
        %v1314 = vadd.f32 %v592, %v1313
        %v1315 = vpop.f32.mrb[0].mxu0
        %v1316 = vadd.f32 %v596, %v1315
        %v1317 = vpop.f32.mrb[0].mxu0
        %v1318 = vadd.f32 %v592, %v1317
        %v1319 = vpop.f32.mrb[0].mxu0
        %v1320 = vadd.f32 %v596, %v1319
        %1321 = vmatprep.mubr.bf16.mxu0 %v413
        %1322 = vmatmul.mubr.bf16.gmra.mrb[0].mxu0 %v412
        %v1323 = vpop.f32.mrb[0].mxu0
        %v1324 = vadd.f32 %v592, %v1323
        %v1325 = vpop.f32.mrb[0].mxu0
        %v1326 = vadd.f32 %v596, %v1325
        %v1327 = vpop.f32.mrb[0].mxu0
        %v1328 = vadd.f32 %v592, %v1327
        %v1329 = vpop.f32.mrb[0].mxu0
        %v1330 = vadd.f32 %v596, %v1329
        %1331 = vmatprep.mubr.bf16.mxu0 %v417
        %1332 = vmatmul.mubr.bf16.gmra.mrb[0].mxu0 %v416
        %v1333 = vpop.f32.mrb[0].mxu0
        %v1334 = vadd.f32 %v592, %v1333
        %v1335 = vpop.f32.mrb[0].mxu0
        %v1336 = vadd.f32 %v596, %v1335
        %v1337 = vpop.f32.mrb[0].mxu0
        %v1338 = vadd.f32 %v592, %v1337
        %v1339 = vpop.f32.mrb[0].mxu0
        %v1340 = vadd.f32 %v596, %v1339
        %1341 = vmatprep.mubr.bf16.mxu0 %v421
        %1342 = vmatmul.mubr.bf16.gmra.mrb[0].mxu0 %v420
        %v1343 = vpop.f32.mrb[0].mxu0
        %v1344 = vadd.f32 %v592, %v1343
        %v1345 = vpop.f32.mrb[0].mxu0
        %v1346 = vadd.f32 %v596, %v1345
        %v1347 = vpop.f32.mrb[0].mxu0
        %v1348 = vadd.f32 %v592, %v1347
        %v1349 = vpop.f32.mrb[0].mxu0
        %v1350 = vadd.f32 %v596, %v1349
        %1351 = vmatprep.mubr.bf16.mxu0 %v425
        %1352 = vmatmul.mubr.bf16.gmra.mrb[0].mxu0 %v424
        %v1353 = vpop.f32.mrb[0].mxu0
        %v1354 = vadd.f32 %v592, %v1353
        %v1355 = vpop.f32.mrb[0].mxu0
        %v1356 = vadd.f32 %v596, %v1355
        %v1357 = vpop.f32.mrb[0].mxu0
        %v1358 = vadd.f32 %v592, %v1357
        %v1359 = vpop.f32.mrb[0].mxu0
        %v1360 = vadd.f32 %v596, %v1359
        %1361 = vmatprep.mubr.bf16.mxu0 %v429
        %1362 = vmatmul.mubr.bf16.gmra.mrb[0].mxu0 %v428
        %v1363 = vpop.f32.mrb[0].mxu0
        %v1364 = vadd.f32 %v592, %v1363
        %v1365 = vpop.f32.mrb[0].mxu0
        %v1366 = vadd.f32 %v596, %v1365
        %v1367 = vpop.f32.mrb[0].mxu0
        %v1368 = vadd.f32 %v592, %v1367
        %v1369 = vpop.f32.mrb[0].mxu0
        %v1370 = vadd.f32 %v596, %v1369
        %1371 = vmatprep.mubr.bf16.mxu0 %v433
        %1372 = vmatmul.mubr.bf16.gmra.mrb[0].mxu0 %v432
        %v1373 = vpop.f32.mrb[0].mxu0
        %v1374 = vadd.f32 %v592, %v1373
        %v1375 = vpop.f32.mrb[0].mxu0
        %v1376 = vadd.f32 %v596, %v1375
        %v1377 = vpop.f32.mrb[0].mxu0
        %v1378 = vadd.f32 %v592, %v1377
        %v1379 = vpop.f32.mrb[0].mxu0
        %v1380 = vadd.f32 %v596, %v1379
        %1381 = vmatprep.mubr.bf16.mxu0 %v437
        %1382 = vmatmul.mubr.bf16.gmra.mrb[0].mxu0 %v436
        %v1383 = vpop.f32.mrb[0].mxu0
        %v1384 = vadd.f32 %v592, %v1383
        %v1385 = vpop.f32.mrb[0].mxu0
        %v1386 = vadd.f32 %v596, %v1385
        %v1387 = vpop.f32.mrb[0].mxu0
        %v1388 = vadd.f32 %v592, %v1387
        %v1389 = vpop.f32.mrb[0].mxu0
        %v1390 = vadd.f32 %v596, %v1389
        %1391 = vmatprep.mubr.bf16.mxu0 %v441
        %1392 = vmatmul.mubr.bf16.gmra.mrb[0].mxu0 %v440
        %v1393 = vpop.f32.mrb[0].mxu0
        %v1394 = vadd.f32 %v592, %v1393
        %v1395 = vpop.f32.mrb[0].mxu0
        %v1396 = vadd.f32 %v596, %v1395
        %v1397 = vpop.f32.mrb[0].mxu0
        %v1398 = vadd.f32 %v592, %v1397
        %v1399 = vpop.f32.mrb[0].mxu0
        %v1400 = vadd.f32 %v596, %v1399
        %1401 = vmatprep.mubr.bf16.mxu0 %v445
        %1402 = vmatmul.mubr.bf16.gmra.mrb[0].mxu0 %v444
        %v1403 = vpop.f32.mrb[0].mxu0
        %v1404 = vadd.f32 %v592, %v1403
        %v1405 = vpop.f32.mrb[0].mxu0
        %v1406 = vadd.f32 %v596, %v1405
        %v1407 = vpop.f32.mrb[0].mxu0
        %v1408 = vadd.f32 %v592, %v1407
        %v1409 = vpop.f32.mrb[0].mxu0
        %v1410 = vadd.f32 %v596, %v1409
        %1411 = vmatprep.mubr.bf16.mxu0 %v449
        %1412 = vmatmul.mubr.bf16.gmra.mrb[0].mxu0 %v448
        %v1413 = vpop.f32.mrb[0].mxu0
        %v1414 = vadd.f32 %v592, %v1413
        %v1415 = vpop.f32.mrb[0].mxu0
        %v1416 = vadd.f32 %v596, %v1415
        %v1417 = vpop.f32.mrb[0].mxu0
        %v1418 = vadd.f32 %v592, %v1417
        %v1419 = vpop.f32.mrb[0].mxu0
        %v1420 = vadd.f32 %v596, %v1419
        %1421 = vmatprep.mubr.bf16.mxu0 %v453
        %1422 = vmatmul.mubr.bf16.gmra.mrb[0].mxu0 %v452
        %v1423 = vpop.f32.mrb[0].mxu0
        %v1424 = vadd.f32 %v592, %v1423
        %v1425 = vpop.f32.mrb[0].mxu0
        %v1426 = vadd.f32 %v596, %v1425
        %v1427 = vpop.f32.mrb[0].mxu0
        %v1428 = vadd.f32 %v592, %v1427
        %v1429 = vpop.f32.mrb[0].mxu0
        %v1430 = vadd.f32 %v596, %v1429
        %1431 = vmatprep.mubr.bf16.mxu0 %v457
        %1432 = vmatmul.mubr.bf16.gmra.mrb[0].mxu0 %v456
        %v1433 = vpop.f32.mrb[0].mxu0
        %v1434 = vadd.f32 %v592, %v1433
        %v1435 = vpop.f32.mrb[0].mxu0
        %v1436 = vadd.f32 %v596, %v1435
        %v1437 = vpop.f32.mrb[0].mxu0
        %v1438 = vadd.f32 %v592, %v1437
        %v1439 = vpop.f32.mrb[0].mxu0
        %v1440 = vadd.f32 %v596, %v1439
        %1441 = vdwg.mxu0
        %1442 = vmatprep.subr.bf16.mxu0 %v1058
        %1443 = vmatpush1.bf16.msra.mxu0 %v1057
        %1444 = vmatprep.subr.bf16.mxu0 %v1062
        %1445 = vmatpush1.bf16.msra.mxu0 %v1061
        %1446 = vmatprep.subr.bf16.mxu0 %v1066
        %1447 = vmatpush1.bf16.msra.mxu0 %v1065
        %1448 = vmatprep.subr.bf16.mxu0 %v1070
        %1449 = vmatpush1.bf16.msra.mxu0 %v1069
        %1450 = vmatprep.subr.bf16.mxu0 %v1074
        %1451 = vmatpush1.bf16.msra.mxu0 %v1073
        %1452 = vmatprep.subr.bf16.mxu0 %v1078
        %1453 = vmatpush1.bf16.msra.mxu0 %v1077
        %1454 = vmatprep.subr.bf16.mxu0 %v1082
        %1455 = vmatpush1.bf16.msra.mxu0 %v1081
        %1456 = vmatprep.subr.bf16.mxu0 %v1086
        %1457 = vmatpush1.bf16.msra.mxu0 %v1085
        %1458 = vmatprep.subr.bf16.mxu0 %v1090
        %1459 = vmatpush1.bf16.msra.mxu0 %v1089
        %1460 = vmatprep.subr.bf16.mxu0 %v1094
        %1461 = vmatpush1.bf16.msra.mxu0 %v1093
        %1462 = vmatprep.subr.bf16.mxu0 %v1098
        %1463 = vmatpush1.bf16.msra.mxu0 %v1097
        %1464 = vmatprep.subr.bf16.mxu0 %v1102
        %1465 = vmatpush1.bf16.msra.mxu0 %v1101
        %1466 = vmatprep.subr.bf16.mxu0 %v1106
        %1467 = vmatpush1.bf16.msra.mxu0 %v1105
        %1468 = vmatprep.subr.bf16.mxu0 %v1110
        %1469 = vmatpush1.bf16.msra.mxu0 %v1109
        %1470 = vmatprep.subr.bf16.mxu0 %v1114
        %1471 = vmatpush1.bf16.msra.mxu0 %v1113
        %1472 = vmatprep.subr.bf16.mxu0 %v1118
        %1473 = vmatpush1.bf16.msra.mxu0 %v1117
        %1474 = vmatprep.mubr.bf16.mxu0 %v399
        %1475 = vmatmul.mubr.bf16.gmra.mrb[0].mxu0 %v398
        %v1476 = vpop.f32.mrb[0].mxu0
        %v1477 = vadd.f32 %v1284, %v1476
        %v1478 = vpop.f32.mrb[0].mxu0
        %v1479 = vadd.f32 %v1286, %v1478
        %v1480 = vpop.f32.mrb[0].mxu0
        %v1481 = vadd.f32 %v1288, %v1480
        %v1482 = vpop.f32.mrb[0].mxu0
        %v1483 = vadd.f32 %v1290, %v1482
        %1484 = vmatprep.mubr.bf16.mxu0 %v403
        %1485 = vmatmul.mubr.bf16.gmra.mrb[0].mxu0 %v402
        %v1486 = vpop.f32.mrb[0].mxu0
        %v1487 = vadd.f32 %v1294, %v1486
        %v1488 = vpop.f32.mrb[0].mxu0
        %v1489 = vadd.f32 %v1296, %v1488
        %v1490 = vpop.f32.mrb[0].mxu0
        %v1491 = vadd.f32 %v1298, %v1490
        %v1492 = vpop.f32.mrb[0].mxu0
        %v1493 = vadd.f32 %v1300, %v1492
        %1494 = vmatprep.mubr.bf16.mxu0 %v407
        %1495 = vmatmul.mubr.bf16.gmra.mrb[0].mxu0 %v406
        %v1496 = vpop.f32.mrb[0].mxu0
        %v1497 = vadd.f32 %v1304, %v1496
        %v1498 = vpop.f32.mrb[0].mxu0
        %v1499 = vadd.f32 %v1306, %v1498
        %v1500 = vpop.f32.mrb[0].mxu0
        %v1501 = vadd.f32 %v1308, %v1500
        %v1502 = vpop.f32.mrb[0].mxu0
        %v1503 = vadd.f32 %v1310, %v1502
        %1504 = vmatprep.mubr.bf16.mxu0 %v411
        %1505 = vmatmul.mubr.bf16.gmra.mrb[0].mxu0 %v410
        %v1506 = vpop.f32.mrb[0].mxu0
        %v1507 = vadd.f32 %v1314, %v1506
        %v1508 = vpop.f32.mrb[0].mxu0
        %v1509 = vadd.f32 %v1316, %v1508
        %v1510 = vpop.f32.mrb[0].mxu0
        %v1511 = vadd.f32 %v1318, %v1510
        %v1512 = vpop.f32.mrb[0].mxu0
        %v1513 = vadd.f32 %v1320, %v1512
        %1514 = vmatprep.mubr.bf16.mxu0 %v415
        %1515 = vmatmul.mubr.bf16.gmra.mrb[0].mxu0 %v414
        %v1516 = vpop.f32.mrb[0].mxu0
        %v1517 = vadd.f32 %v1324, %v1516
        %v1518 = vpop.f32.mrb[0].mxu0
        %v1519 = vadd.f32 %v1326, %v1518
        %v1520 = vpop.f32.mrb[0].mxu0
        %v1521 = vadd.f32 %v1328, %v1520
        %v1522 = vpop.f32.mrb[0].mxu0
        %v1523 = vadd.f32 %v1330, %v1522
        %1524 = vmatprep.mubr.bf16.mxu0 %v419
        %1525 = vmatmul.mubr.bf16.gmra.mrb[0].mxu0 %v418
        %v1526 = vpop.f32.mrb[0].mxu0
        %v1527 = vadd.f32 %v1334, %v1526
        %v1528 = vpop.f32.mrb[0].mxu0
        %v1529 = vadd.f32 %v1336, %v1528
        %v1530 = vpop.f32.mrb[0].mxu0
        %v1531 = vadd.f32 %v1338, %v1530
        %v1532 = vpop.f32.mrb[0].mxu0
        %v1533 = vadd.f32 %v1340, %v1532
        %1534 = vmatprep.mubr.bf16.mxu0 %v423
        %1535 = vmatmul.mubr.bf16.gmra.mrb[0].mxu0 %v422
        %v1536 = vpop.f32.mrb[0].mxu0
        %v1537 = vadd.f32 %v1344, %v1536
        %v1538 = vpop.f32.mrb[0].mxu0
        %v1539 = vadd.f32 %v1346, %v1538
        %v1540 = vpop.f32.mrb[0].mxu0
        %v1541 = vadd.f32 %v1348, %v1540
        %v1542 = vpop.f32.mrb[0].mxu0
        %v1543 = vadd.f32 %v1350, %v1542
        %1544 = vmatprep.mubr.bf16.mxu0 %v427
        %1545 = vmatmul.mubr.bf16.gmra.mrb[0].mxu0 %v426
        %v1546 = vpop.f32.mrb[0].mxu0
        %v1547 = vadd.f32 %v1354, %v1546
        %v1548 = vpop.f32.mrb[0].mxu0
        %v1549 = vadd.f32 %v1356, %v1548
        %v1550 = vpop.f32.mrb[0].mxu0
        %v1551 = vadd.f32 %v1358, %v1550
        %v1552 = vpop.f32.mrb[0].mxu0
        %v1553 = vadd.f32 %v1360, %v1552
        %1554 = vmatprep.mubr.bf16.mxu0 %v431
        %1555 = vmatmul.mubr.bf16.gmra.mrb[0].mxu0 %v430
        %v1556 = vpop.f32.mrb[0].mxu0
        %v1557 = vadd.f32 %v1364, %v1556
        %v1558 = vpop.f32.mrb[0].mxu0
        %v1559 = vadd.f32 %v1366, %v1558
        %v1560 = vpop.f32.mrb[0].mxu0
        %v1561 = vadd.f32 %v1368, %v1560
        %v1562 = vpop.f32.mrb[0].mxu0
        %v1563 = vadd.f32 %v1370, %v1562
        %1564 = vmatprep.mubr.bf16.mxu0 %v435
        %1565 = vmatmul.mubr.bf16.gmra.mrb[0].mxu0 %v434
        %v1566 = vpop.f32.mrb[0].mxu0
        %v1567 = vadd.f32 %v1374, %v1566
        %v1568 = vpop.f32.mrb[0].mxu0
        %v1569 = vadd.f32 %v1376, %v1568
        %v1570 = vpop.f32.mrb[0].mxu0
        %v1571 = vadd.f32 %v1378, %v1570
        %v1572 = vpop.f32.mrb[0].mxu0
        %v1573 = vadd.f32 %v1380, %v1572
        %1574 = vmatprep.mubr.bf16.mxu0 %v439
        %1575 = vmatmul.mubr.bf16.gmra.mrb[0].mxu0 %v438
        %v1576 = vpop.f32.mrb[0].mxu0
        %v1577 = vadd.f32 %v1384, %v1576
        %v1578 = vpop.f32.mrb[0].mxu0
        %v1579 = vadd.f32 %v1386, %v1578
        %v1580 = vpop.f32.mrb[0].mxu0
        %v1581 = vadd.f32 %v1388, %v1580
        %v1582 = vpop.f32.mrb[0].mxu0
        %v1583 = vadd.f32 %v1390, %v1582
        %1584 = vmatprep.mubr.bf16.mxu0 %v443
        %1585 = vmatmul.mubr.bf16.gmra.mrb[0].mxu0 %v442
        %v1586 = vpop.f32.mrb[0].mxu0
        %v1587 = vadd.f32 %v1394, %v1586
        %v1588 = vpop.f32.mrb[0].mxu0
        %v1589 = vadd.f32 %v1396, %v1588
        %v1590 = vpop.f32.mrb[0].mxu0
        %v1591 = vadd.f32 %v1398, %v1590
        %v1592 = vpop.f32.mrb[0].mxu0
        %v1593 = vadd.f32 %v1400, %v1592
        %1594 = vmatprep.mubr.bf16.mxu0 %v447
        %1595 = vmatmul.mubr.bf16.gmra.mrb[0].mxu0 %v446
        %v1596 = vpop.f32.mrb[0].mxu0
        %v1597 = vadd.f32 %v1404, %v1596
        %v1598 = vpop.f32.mrb[0].mxu0
        %v1599 = vadd.f32 %v1406, %v1598
        %v1600 = vpop.f32.mrb[0].mxu0
        %v1601 = vadd.f32 %v1408, %v1600
        %v1602 = vpop.f32.mrb[0].mxu0
        %v1603 = vadd.f32 %v1410, %v1602
        %1604 = vmatprep.mubr.bf16.mxu0 %v451
        %1605 = vmatmul.mubr.bf16.gmra.mrb[0].mxu0 %v450
        %v1606 = vpop.f32.mrb[0].mxu0
        %v1607 = vadd.f32 %v1414, %v1606
        %v1608 = vpop.f32.mrb[0].mxu0
        %v1609 = vadd.f32 %v1416, %v1608
        %v1610 = vpop.f32.mrb[0].mxu0
        %v1611 = vadd.f32 %v1418, %v1610
        %v1612 = vpop.f32.mrb[0].mxu0
        %v1613 = vadd.f32 %v1420, %v1612
        %1614 = vmatprep.mubr.bf16.mxu0 %v455
        %1615 = vmatmul.mubr.bf16.gmra.mrb[0].mxu0 %v454
        %v1616 = vpop.f32.mrb[0].mxu0
        %v1617 = vadd.f32 %v1424, %v1616
        %v1618 = vpop.f32.mrb[0].mxu0
        %v1619 = vadd.f32 %v1426, %v1618
        %v1620 = vpop.f32.mrb[0].mxu0
        %v1621 = vadd.f32 %v1428, %v1620
        %v1622 = vpop.f32.mrb[0].mxu0
        %v1623 = vadd.f32 %v1430, %v1622
        %1624 = vmatprep.mubr.bf16.mxu0 %v459
        %1625 = vmatmul.mubr.bf16.gmra.mrb[0].mxu0 %v458
        %v1626 = vpop.f32.mrb[0].mxu0
        %v1627 = vadd.f32 %v1434, %v1626
        %v1628 = vpop.f32.mrb[0].mxu0
        %v1629 = vadd.f32 %v1436, %v1628
        %v1630 = vpop.f32.mrb[0].mxu0
        %v1631 = vadd.f32 %v1438, %v1630
        %v1632 = vpop.f32.mrb[0].mxu0
        %v1633 = vadd.f32 %v1440, %v1632
        %1634 = vdwg.mxu0
        %1635 = vmatprep.subr.bf16.mxu0 %v996
        %1636 = vmatpush1.bf16.msra.mxu0 %v995
        %1637 = vmatprep.subr.bf16.mxu0 %v1000
        %1638 = vmatpush1.bf16.msra.mxu0 %v999
        %1639 = vmatprep.subr.bf16.mxu0 %v1004
        %1640 = vmatpush1.bf16.msra.mxu0 %v1003
        %1641 = vmatprep.subr.bf16.mxu0 %v1008
        %1642 = vmatpush1.bf16.msra.mxu0 %v1007
        %1643 = vmatprep.subr.bf16.mxu0 %v1012
        %1644 = vmatpush1.bf16.msra.mxu0 %v1011
        %1645 = vmatprep.subr.bf16.mxu0 %v1016
        %1646 = vmatpush1.bf16.msra.mxu0 %v1015
        %1647 = vmatprep.subr.bf16.mxu0 %v1020
        %1648 = vmatpush1.bf16.msra.mxu0 %v1019
        %1649 = vmatprep.subr.bf16.mxu0 %v1024
        %1650 = vmatpush1.bf16.msra.mxu0 %v1023
        %1651 = vmatprep.subr.bf16.mxu0 %v1028
        %1652 = vmatpush1.bf16.msra.mxu0 %v1027
        %1653 = vmatprep.subr.bf16.mxu0 %v1032
        %1654 = vmatpush1.bf16.msra.mxu0 %v1031
        %1655 = vmatprep.subr.bf16.mxu0 %v1036
        %1656 = vmatpush1.bf16.msra.mxu0 %v1035
        %1657 = vmatprep.subr.bf16.mxu0 %v1040
        %1658 = vmatpush1.bf16.msra.mxu0 %v1039
        %1659 = vmatprep.subr.bf16.mxu0 %v1044
        %1660 = vmatpush1.bf16.msra.mxu0 %v1043
        %1661 = vmatprep.subr.bf16.mxu0 %v1048
        %1662 = vmatpush1.bf16.msra.mxu0 %v1047
        %1663 = vmatprep.subr.bf16.mxu0 %v1052
        %1664 = vmatpush1.bf16.msra.mxu0 %v1051
        %1665 = vmatprep.subr.bf16.mxu0 %v1056
        %1666 = vmatpush1.bf16.msra.mxu0 %v1055
        %1667 = vmatprep.mubr.bf16.mxu0 %v397
        %1668 = vmatmul.mubr.bf16.gmra.mrb[0].mxu0 %v396
        %v1669 = vpop.f32.mrb[0].mxu0
        %v1670 = vadd.f32 %v600, %v1669
        %v1671 = vpop.f32.mrb[0].mxu0
        %v1672 = vadd.f32 %v604, %v1671
        %v1673 = vpop.f32.mrb[0].mxu0
        %v1674 = vadd.f32 %v600, %v1673
        %v1675 = vpop.f32.mrb[0].mxu0
        %v1676 = vadd.f32 %v604, %v1675
        %1677 = vmatprep.mubr.bf16.mxu0 %v401
        %1678 = vmatmul.mubr.bf16.gmra.mrb[0].mxu0 %v400
        %v1679 = vpop.f32.mrb[0].mxu0
        %v1680 = vadd.f32 %v600, %v1679
        %v1681 = vpop.f32.mrb[0].mxu0
        %v1682 = vadd.f32 %v604, %v1681
        %v1683 = vpop.f32.mrb[0].mxu0
        %v1684 = vadd.f32 %v600, %v1683
        %v1685 = vpop.f32.mrb[0].mxu0
        %v1686 = vadd.f32 %v604, %v1685
        %1687 = vmatprep.mubr.bf16.mxu0 %v405
        %1688 = vmatmul.mubr.bf16.gmra.mrb[0].mxu0 %v404
        %v1689 = vpop.f32.mrb[0].mxu0
        %v1690 = vadd.f32 %v600, %v1689
        %v1691 = vpop.f32.mrb[0].mxu0
        %v1692 = vadd.f32 %v604, %v1691
        %v1693 = vpop.f32.mrb[0].mxu0
        %v1694 = vadd.f32 %v600, %v1693
        %v1695 = vpop.f32.mrb[0].mxu0
        %v1696 = vadd.f32 %v604, %v1695
        %1697 = vmatprep.mubr.bf16.mxu0 %v409
        %1698 = vmatmul.mubr.bf16.gmra.mrb[0].mxu0 %v408
        %v1699 = vpop.f32.mrb[0].mxu0
        %v1700 = vadd.f32 %v600, %v1699
        %v1701 = vpop.f32.mrb[0].mxu0
        %v1702 = vadd.f32 %v604, %v1701
        %v1703 = vpop.f32.mrb[0].mxu0
        %v1704 = vadd.f32 %v600, %v1703
        %v1705 = vpop.f32.mrb[0].mxu0
        %v1706 = vadd.f32 %v604, %v1705
        %1707 = vmatprep.mubr.bf16.mxu0 %v413
        %1708 = vmatmul.mubr.bf16.gmra.mrb[0].mxu0 %v412
        %v1709 = vpop.f32.mrb[0].mxu0
        %v1710 = vadd.f32 %v600, %v1709
        %v1711 = vpop.f32.mrb[0].mxu0
        %v1712 = vadd.f32 %v604, %v1711
        %v1713 = vpop.f32.mrb[0].mxu0
        %v1714 = vadd.f32 %v600, %v1713
        %v1715 = vpop.f32.mrb[0].mxu0
        %v1716 = vadd.f32 %v604, %v1715
        %1717 = vmatprep.mubr.bf16.mxu0 %v417
        %1718 = vmatmul.mubr.bf16.gmra.mrb[0].mxu0 %v416
        %v1719 = vpop.f32.mrb[0].mxu0
        %v1720 = vadd.f32 %v600, %v1719
        %v1721 = vpop.f32.mrb[0].mxu0
        %v1722 = vadd.f32 %v604, %v1721
        %v1723 = vpop.f32.mrb[0].mxu0
        %v1724 = vadd.f32 %v600, %v1723
        %v1725 = vpop.f32.mrb[0].mxu0
        %v1726 = vadd.f32 %v604, %v1725
        %1727 = vmatprep.mubr.bf16.mxu0 %v421
        %1728 = vmatmul.mubr.bf16.gmra.mrb[0].mxu0 %v420
        %v1729 = vpop.f32.mrb[0].mxu0
        %v1730 = vadd.f32 %v600, %v1729
        %v1731 = vpop.f32.mrb[0].mxu0
        %v1732 = vadd.f32 %v604, %v1731
        %v1733 = vpop.f32.mrb[0].mxu0
        %v1734 = vadd.f32 %v600, %v1733
        %v1735 = vpop.f32.mrb[0].mxu0
        %v1736 = vadd.f32 %v604, %v1735
        %1737 = vmatprep.mubr.bf16.mxu0 %v425
        %1738 = vmatmul.mubr.bf16.gmra.mrb[0].mxu0 %v424
        %v1739 = vpop.f32.mrb[0].mxu0
        %v1740 = vadd.f32 %v600, %v1739
        %v1741 = vpop.f32.mrb[0].mxu0
        %v1742 = vadd.f32 %v604, %v1741
        %v1743 = vpop.f32.mrb[0].mxu0
        %v1744 = vadd.f32 %v600, %v1743
        %v1745 = vpop.f32.mrb[0].mxu0
        %v1746 = vadd.f32 %v604, %v1745
        %1747 = vmatprep.mubr.bf16.mxu0 %v429
        %1748 = vmatmul.mubr.bf16.gmra.mrb[0].mxu0 %v428
        %v1749 = vpop.f32.mrb[0].mxu0
        %v1750 = vadd.f32 %v600, %v1749
        %v1751 = vpop.f32.mrb[0].mxu0
        %v1752 = vadd.f32 %v604, %v1751
        %v1753 = vpop.f32.mrb[0].mxu0
        %v1754 = vadd.f32 %v600, %v1753
        %v1755 = vpop.f32.mrb[0].mxu0
        %v1756 = vadd.f32 %v604, %v1755
        %1757 = vmatprep.mubr.bf16.mxu0 %v433
        %1758 = vmatmul.mubr.bf16.gmra.mrb[0].mxu0 %v432
        %v1759 = vpop.f32.mrb[0].mxu0
        %v1760 = vadd.f32 %v600, %v1759
        %v1761 = vpop.f32.mrb[0].mxu0
        %v1762 = vadd.f32 %v604, %v1761
        %v1763 = vpop.f32.mrb[0].mxu0
        %v1764 = vadd.f32 %v600, %v1763
        %v1765 = vpop.f32.mrb[0].mxu0
        %v1766 = vadd.f32 %v604, %v1765
        %1767 = vmatprep.mubr.bf16.mxu0 %v437
        %1768 = vmatmul.mubr.bf16.gmra.mrb[0].mxu0 %v436
        %v1769 = vpop.f32.mrb[0].mxu0
        %v1770 = vadd.f32 %v600, %v1769
        %v1771 = vpop.f32.mrb[0].mxu0
        %v1772 = vadd.f32 %v604, %v1771
        %v1773 = vpop.f32.mrb[0].mxu0
        %v1774 = vadd.f32 %v600, %v1773
        %v1775 = vpop.f32.mrb[0].mxu0
        %v1776 = vadd.f32 %v604, %v1775
        %1777 = vmatprep.mubr.bf16.mxu0 %v441
        %1778 = vmatmul.mubr.bf16.gmra.mrb[0].mxu0 %v440
        %v1779 = vpop.f32.mrb[0].mxu0
        %v1780 = vadd.f32 %v600, %v1779
        %v1781 = vpop.f32.mrb[0].mxu0
        %v1782 = vadd.f32 %v604, %v1781
        %v1783 = vpop.f32.mrb[0].mxu0
        %v1784 = vadd.f32 %v600, %v1783
        %v1785 = vpop.f32.mrb[0].mxu0
        %v1786 = vadd.f32 %v604, %v1785
        %1787 = vmatprep.mubr.bf16.mxu0 %v445
        %1788 = vmatmul.mubr.bf16.gmra.mrb[0].mxu0 %v444
        %v1789 = vpop.f32.mrb[0].mxu0
        %v1790 = vadd.f32 %v600, %v1789
        %v1791 = vpop.f32.mrb[0].mxu0
        %v1792 = vadd.f32 %v604, %v1791
        %v1793 = vpop.f32.mrb[0].mxu0
        %v1794 = vadd.f32 %v600, %v1793
        %v1795 = vpop.f32.mrb[0].mxu0
        %v1796 = vadd.f32 %v604, %v1795
        %1797 = vmatprep.mubr.bf16.mxu0 %v449
        %1798 = vmatmul.mubr.bf16.gmra.mrb[0].mxu0 %v448
        %v1799 = vpop.f32.mrb[0].mxu0
        %v1800 = vadd.f32 %v600, %v1799
        %v1801 = vpop.f32.mrb[0].mxu0
        %v1802 = vadd.f32 %v604, %v1801
        %v1803 = vpop.f32.mrb[0].mxu0
        %v1804 = vadd.f32 %v600, %v1803
        %v1805 = vpop.f32.mrb[0].mxu0
        %v1806 = vadd.f32 %v604, %v1805
        %1807 = vmatprep.mubr.bf16.mxu0 %v453
        %1808 = vmatmul.mubr.bf16.gmra.mrb[0].mxu0 %v452
        %v1809 = vpop.f32.mrb[0].mxu0
        %v1810 = vadd.f32 %v600, %v1809
        %v1811 = vpop.f32.mrb[0].mxu0
        %v1812 = vadd.f32 %v604, %v1811
        %v1813 = vpop.f32.mrb[0].mxu0
        %v1814 = vadd.f32 %v600, %v1813
        %v1815 = vpop.f32.mrb[0].mxu0
        %v1816 = vadd.f32 %v604, %v1815
        %1817 = vmatprep.mubr.bf16.mxu0 %v457
        %1818 = vmatmul.mubr.bf16.gmra.mrb[0].mxu0 %v456
        %v1819 = vpop.f32.mrb[0].mxu0
        %v1820 = vadd.f32 %v600, %v1819
        %v1821 = vpop.f32.mrb[0].mxu0
        %v1822 = vadd.f32 %v604, %v1821
        %v1823 = vpop.f32.mrb[0].mxu0
        %v1824 = vadd.f32 %v600, %v1823
        %v1825 = vpop.f32.mrb[0].mxu0
        %v1826 = vadd.f32 %v604, %v1825
        %1827 = vdwg.mxu0
        %1828 = vmatprep.subr.bf16.mxu0 %v1060
        %1829 = vmatpush1.bf16.msra.mxu0 %v1059
        %1830 = vmatprep.subr.bf16.mxu0 %v1064
        %1831 = vmatpush1.bf16.msra.mxu0 %v1063
        %1832 = vmatprep.subr.bf16.mxu0 %v1068
        %1833 = vmatpush1.bf16.msra.mxu0 %v1067
        %1834 = vmatprep.subr.bf16.mxu0 %v1072
        %1835 = vmatpush1.bf16.msra.mxu0 %v1071
        %1836 = vmatprep.subr.bf16.mxu0 %v1076
        %1837 = vmatpush1.bf16.msra.mxu0 %v1075
        %1838 = vmatprep.subr.bf16.mxu0 %v1080
        %1839 = vmatpush1.bf16.msra.mxu0 %v1079
        %1840 = vmatprep.subr.bf16.mxu0 %v1084
        %1841 = vmatpush1.bf16.msra.mxu0 %v1083
        %1842 = vmatprep.subr.bf16.mxu0 %v1088
        %1843 = vmatpush1.bf16.msra.mxu0 %v1087
        %1844 = vmatprep.subr.bf16.mxu0 %v1092
        %1845 = vmatpush1.bf16.msra.mxu0 %v1091
        %1846 = vmatprep.subr.bf16.mxu0 %v1096
        %1847 = vmatpush1.bf16.msra.mxu0 %v1095
        %1848 = vmatprep.subr.bf16.mxu0 %v1100
        %1849 = vmatpush1.bf16.msra.mxu0 %v1099
        %1850 = vmatprep.subr.bf16.mxu0 %v1104
        %1851 = vmatpush1.bf16.msra.mxu0 %v1103
        %1852 = vmatprep.subr.bf16.mxu0 %v1108
        %1853 = vmatpush1.bf16.msra.mxu0 %v1107
        %1854 = vmatprep.subr.bf16.mxu0 %v1112
        %1855 = vmatpush1.bf16.msra.mxu0 %v1111
        %1856 = vmatprep.subr.bf16.mxu0 %v1116
        %1857 = vmatpush1.bf16.msra.mxu0 %v1115
        %1858 = vmatprep.subr.bf16.mxu0 %v1120
        %1859 = vmatpush1.bf16.msra.mxu0 %v1119
        %1860 = vmatprep.mubr.bf16.mxu0 %v399
        %1861 = vmatmul.mubr.bf16.gmra.mrb[0].mxu0 %v398
        %v1862 = vpop.f32.mrb[0].mxu0
        %v1863 = vadd.f32 %v1670, %v1862
        %v1864 = vpop.f32.mrb[0].mxu0
        %v1865 = vadd.f32 %v1672, %v1864
        %v1866 = vpop.f32.mrb[0].mxu0
        %v1867 = vadd.f32 %v1674, %v1866
        %v1868 = vpop.f32.mrb[0].mxu0
        %v1869 = vadd.f32 %v1676, %v1868
        %1870 = vmatprep.mubr.bf16.mxu0 %v403
        %1871 = vmatmul.mubr.bf16.gmra.mrb[0].mxu0 %v402
        %v1872 = vpop.f32.mrb[0].mxu0
        %v1873 = vadd.f32 %v1680, %v1872
        %v1874 = vpop.f32.mrb[0].mxu0
        %v1875 = vadd.f32 %v1682, %v1874
        %v1876 = vpop.f32.mrb[0].mxu0
        %v1877 = vadd.f32 %v1684, %v1876
        %v1878 = vpop.f32.mrb[0].mxu0
        %v1879 = vadd.f32 %v1686, %v1878
        %1880 = vmatprep.mubr.bf16.mxu0 %v407
        %1881 = vmatmul.mubr.bf16.gmra.mrb[0].mxu0 %v406
        %v1882 = vpop.f32.mrb[0].mxu0
        %v1883 = vadd.f32 %v1690, %v1882
        %v1884 = vpop.f32.mrb[0].mxu0
        %v1885 = vadd.f32 %v1692, %v1884
        %v1886 = vpop.f32.mrb[0].mxu0
        %v1887 = vadd.f32 %v1694, %v1886
        %v1888 = vpop.f32.mrb[0].mxu0
        %v1889 = vadd.f32 %v1696, %v1888
        %1890 = vmatprep.mubr.bf16.mxu0 %v411
        %1891 = vmatmul.mubr.bf16.gmra.mrb[0].mxu0 %v410
        %v1892 = vpop.f32.mrb[0].mxu0
        %v1893 = vadd.f32 %v1700, %v1892
        %v1894 = vpop.f32.mrb[0].mxu0
        %v1895 = vadd.f32 %v1702, %v1894
        %v1896 = vpop.f32.mrb[0].mxu0
        %v1897 = vadd.f32 %v1704, %v1896
        %v1898 = vpop.f32.mrb[0].mxu0
        %v1899 = vadd.f32 %v1706, %v1898
        %1900 = vmatprep.mubr.bf16.mxu0 %v415
        %1901 = vmatmul.mubr.bf16.gmra.mrb[0].mxu0 %v414
        %v1902 = vpop.f32.mrb[0].mxu0
        %v1903 = vadd.f32 %v1710, %v1902
        %v1904 = vpop.f32.mrb[0].mxu0
        %v1905 = vadd.f32 %v1712, %v1904
        %v1906 = vpop.f32.mrb[0].mxu0
        %v1907 = vadd.f32 %v1714, %v1906
        %v1908 = vpop.f32.mrb[0].mxu0
        %v1909 = vadd.f32 %v1716, %v1908
        %1910 = vmatprep.mubr.bf16.mxu0 %v419
        %1911 = vmatmul.mubr.bf16.gmra.mrb[0].mxu0 %v418
        %v1912 = vpop.f32.mrb[0].mxu0
        %v1913 = vadd.f32 %v1720, %v1912
        %v1914 = vpop.f32.mrb[0].mxu0
        %v1915 = vadd.f32 %v1722, %v1914
        %v1916 = vpop.f32.mrb[0].mxu0
        %v1917 = vadd.f32 %v1724, %v1916
        %v1918 = vpop.f32.mrb[0].mxu0
        %v1919 = vadd.f32 %v1726, %v1918
        %1920 = vmatprep.mubr.bf16.mxu0 %v423
        %1921 = vmatmul.mubr.bf16.gmra.mrb[0].mxu0 %v422
        %v1922 = vpop.f32.mrb[0].mxu0
        %v1923 = vadd.f32 %v1730, %v1922
        %v1924 = vpop.f32.mrb[0].mxu0
        %v1925 = vadd.f32 %v1732, %v1924
        %v1926 = vpop.f32.mrb[0].mxu0
        %v1927 = vadd.f32 %v1734, %v1926
        %v1928 = vpop.f32.mrb[0].mxu0
        %v1929 = vadd.f32 %v1736, %v1928
        %1930 = vmatprep.mubr.bf16.mxu0 %v427
        %1931 = vmatmul.mubr.bf16.gmra.mrb[0].mxu0 %v426
        %v1932 = vpop.f32.mrb[0].mxu0
        %v1933 = vadd.f32 %v1740, %v1932
        %v1934 = vpop.f32.mrb[0].mxu0
        %v1935 = vadd.f32 %v1742, %v1934
        %v1936 = vpop.f32.mrb[0].mxu0
        %v1937 = vadd.f32 %v1744, %v1936
        %v1938 = vpop.f32.mrb[0].mxu0
        %v1939 = vadd.f32 %v1746, %v1938
        %1940 = vmatprep.mubr.bf16.mxu0 %v431
        %1941 = vmatmul.mubr.bf16.gmra.mrb[0].mxu0 %v430
        %v1942 = vpop.f32.mrb[0].mxu0
        %v1943 = vadd.f32 %v1750, %v1942
        %v1944 = vpop.f32.mrb[0].mxu0
        %v1945 = vadd.f32 %v1752, %v1944
        %v1946 = vpop.f32.mrb[0].mxu0
        %v1947 = vadd.f32 %v1754, %v1946
        %v1948 = vpop.f32.mrb[0].mxu0
        %v1949 = vadd.f32 %v1756, %v1948
        %1950 = vmatprep.mubr.bf16.mxu0 %v435
        %1951 = vmatmul.mubr.bf16.gmra.mrb[0].mxu0 %v434
        %v1952 = vpop.f32.mrb[0].mxu0
        %v1953 = vadd.f32 %v1760, %v1952
        %v1954 = vpop.f32.mrb[0].mxu0
        %v1955 = vadd.f32 %v1762, %v1954
        %v1956 = vpop.f32.mrb[0].mxu0
        %v1957 = vadd.f32 %v1764, %v1956
        %v1958 = vpop.f32.mrb[0].mxu0
        %v1959 = vadd.f32 %v1766, %v1958
        %1960 = vmatprep.mubr.bf16.mxu0 %v439
        %1961 = vmatmul.mubr.bf16.gmra.mrb[0].mxu0 %v438
        %v1962 = vpop.f32.mrb[0].mxu0
        %v1963 = vadd.f32 %v1770, %v1962
        %v1964 = vpop.f32.mrb[0].mxu0
        %v1965 = vadd.f32 %v1772, %v1964
        %v1966 = vpop.f32.mrb[0].mxu0
        %v1967 = vadd.f32 %v1774, %v1966
        %v1968 = vpop.f32.mrb[0].mxu0
        %v1969 = vadd.f32 %v1776, %v1968
        %1970 = vmatprep.mubr.bf16.mxu0 %v443
        %1971 = vmatmul.mubr.bf16.gmra.mrb[0].mxu0 %v442
        %v1972 = vpop.f32.mrb[0].mxu0
        %v1973 = vadd.f32 %v1780, %v1972
        %v1974 = vpop.f32.mrb[0].mxu0
        %v1975 = vadd.f32 %v1782, %v1974
        %v1976 = vpop.f32.mrb[0].mxu0
        %v1977 = vadd.f32 %v1784, %v1976
        %v1978 = vpop.f32.mrb[0].mxu0
        %v1979 = vadd.f32 %v1786, %v1978
        %1980 = vmatprep.mubr.bf16.mxu0 %v447
        %1981 = vmatmul.mubr.bf16.gmra.mrb[0].mxu0 %v446
        %v1982 = vpop.f32.mrb[0].mxu0
        %v1983 = vadd.f32 %v1790, %v1982
        %v1984 = vpop.f32.mrb[0].mxu0
        %v1985 = vadd.f32 %v1792, %v1984
        %v1986 = vpop.f32.mrb[0].mxu0
        %v1987 = vadd.f32 %v1794, %v1986
        %v1988 = vpop.f32.mrb[0].mxu0
        %v1989 = vadd.f32 %v1796, %v1988
        %1990 = vmatprep.mubr.bf16.mxu0 %v451
        %1991 = vmatmul.mubr.bf16.gmra.mrb[0].mxu0 %v450
        %v1992 = vpop.f32.mrb[0].mxu0
        %v1993 = vadd.f32 %v1800, %v1992
        %v1994 = vpop.f32.mrb[0].mxu0
        %v1995 = vadd.f32 %v1802, %v1994
        %v1996 = vpop.f32.mrb[0].mxu0
        %v1997 = vadd.f32 %v1804, %v1996
        %v1998 = vpop.f32.mrb[0].mxu0
        %v1999 = vadd.f32 %v1806, %v1998
        %2000 = vmatprep.mubr.bf16.mxu0 %v455
        %2001 = vmatmul.mubr.bf16.gmra.mrb[0].mxu0 %v454
        %v2002 = vpop.f32.mrb[0].mxu0
        %v2003 = vadd.f32 %v1810, %v2002
        %v2004 = vpop.f32.mrb[0].mxu0
        %v2005 = vadd.f32 %v1812, %v2004
        %v2006 = vpop.f32.mrb[0].mxu0
        %v2007 = vadd.f32 %v1814, %v2006
        %v2008 = vpop.f32.mrb[0].mxu0
        %v2009 = vadd.f32 %v1816, %v2008
        %2010 = vmatprep.mubr.bf16.mxu0 %v459
        %2011 = vmatmul.mubr.bf16.gmra.mrb[0].mxu0 %v458
        %v2012 = vpop.f32.mrb[0].mxu0
        %v2013 = vadd.f32 %v1820, %v2012
        %v2014 = vpop.f32.mrb[0].mxu0
        %v2015 = vadd.f32 %v1822, %v2014
        %v2016 = vpop.f32.mrb[0].mxu0
        %v2017 = vadd.f32 %v1824, %v2016
        %v2018 = vpop.f32.mrb[0].mxu0
        %v2019 = vadd.f32 %v1826, %v2018
        %2020 = vdwg.mxu0
        %v2021 = vmul.f32 %v1477, 0.5
        %v2022 = vmul.f32 %v1479, 0.5
        %v2023 = vmul.f32 %v1863, 0.5
        %v2024 = vmul.f32 %v1865, 0.5
        %v2025 = vmul.f32 %v1481, 0.5
        %v2026 = vmul.f32 %v1483, 0.5
        %v2027 = vmul.f32 %v1867, 0.5
        %v2028 = vmul.f32 %v1869, 0.5
        %v2029 = vmul.f32 %v1487, 0.5
        %v2030 = vmul.f32 %v1489, 0.5
        %v2031 = vmul.f32 %v1873, 0.5
        %v2032 = vmul.f32 %v1875, 0.5
        %v2033 = vmul.f32 %v1491, 0.5
        %v2034 = vmul.f32 %v1493, 0.5
        %v2035 = vmul.f32 %v1877, 0.5
        %v2036 = vmul.f32 %v1879, 0.5
        %v2037 = vmul.f32 %v1497, 0.5
        %v2038 = vmul.f32 %v1499, 0.5
        %v2039 = vmul.f32 %v1883, 0.5
        %v2040 = vmul.f32 %v1885, 0.5
        %v2041 = vmul.f32 %v1501, 0.5
        %v2042 = vmul.f32 %v1503, 0.5
        %v2043 = vmul.f32 %v1887, 0.5
        %v2044 = vmul.f32 %v1889, 0.5
        %v2045 = vmul.f32 %v1507, 0.5
        %v2046 = vmul.f32 %v1509, 0.5
        %v2047 = vmul.f32 %v1893, 0.5
        %v2048 = vmul.f32 %v1895, 0.5
        %v2049 = vmul.f32 %v1511, 0.5
        %v2050 = vmul.f32 %v1513, 0.5
        %v2051 = vmul.f32 %v1897, 0.5
        %v2052 = vmul.f32 %v1899, 0.5
        %v2053 = vmul.f32 %v1517, 0.5
        %v2054 = vmul.f32 %v1519, 0.5
        %v2055 = vmul.f32 %v1903, 0.5
        %v2056 = vmul.f32 %v1905, 0.5
        %v2057 = vmul.f32 %v1521, 0.5
        %v2058 = vmul.f32 %v1523, 0.5
        %v2059 = vmul.f32 %v1907, 0.5
        %v2060 = vmul.f32 %v1909, 0.5
        %v2061 = vmul.f32 %v1527, 0.5
        %v2062 = vmul.f32 %v1529, 0.5
        %v2063 = vmul.f32 %v1913, 0.5
        %v2064 = vmul.f32 %v1915, 0.5
        %v2065 = vmul.f32 %v1531, 0.5
        %v2066 = vmul.f32 %v1533, 0.5
        %v2067 = vmul.f32 %v1917, 0.5
        %v2068 = vmul.f32 %v1919, 0.5
        %v2069 = vmul.f32 %v1537, 0.5
        %v2070 = vmul.f32 %v1539, 0.5
        %v2071 = vmul.f32 %v1923, 0.5
        %v2072 = vmul.f32 %v1925, 0.5
        %v2073 = vmul.f32 %v1541, 0.5
        %v2074 = vmul.f32 %v1543, 0.5
        %v2075 = vmul.f32 %v1927, 0.5
        %v2076 = vmul.f32 %v1929, 0.5
        %v2077 = vmul.f32 %v1547, 0.5
        %v2078 = vmul.f32 %v1549, 0.5
        %v2079 = vmul.f32 %v1933, 0.5
        %v2080 = vmul.f32 %v1935, 0.5
        %v2081 = vmul.f32 %v1551, 0.5
        %v2082 = vmul.f32 %v1553, 0.5
        %v2083 = vmul.f32 %v1937, 0.5
        %v2084 = vmul.f32 %v1939, 0.5
        %v2085 = vmul.f32 %v1557, 0.5
        %v2086 = vmul.f32 %v1559, 0.5
        %v2087 = vmul.f32 %v1943, 0.5
        %v2088 = vmul.f32 %v1945, 0.5
        %v2089 = vmul.f32 %v1561, 0.5
        %v2090 = vmul.f32 %v1563, 0.5
        %v2091 = vmul.f32 %v1947, 0.5
        %v2092 = vmul.f32 %v1949, 0.5
        %v2093 = vmul.f32 %v1567, 0.5
        %v2094 = vmul.f32 %v1569, 0.5
        %v2095 = vmul.f32 %v1953, 0.5
        %v2096 = vmul.f32 %v1955, 0.5
        %v2097 = vmul.f32 %v1571, 0.5
        %v2098 = vmul.f32 %v1573, 0.5
        %v2099 = vmul.f32 %v1957, 0.5
        %v2100 = vmul.f32 %v1959, 0.5
        %v2101 = vmul.f32 %v1577, 0.5
        %v2102 = vmul.f32 %v1579, 0.5
        %v2103 = vmul.f32 %v1963, 0.5
        %v2104 = vmul.f32 %v1965, 0.5
        %v2105 = vmul.f32 %v1581, 0.5
        %v2106 = vmul.f32 %v1583, 0.5
        %v2107 = vmul.f32 %v1967, 0.5
        %v2108 = vmul.f32 %v1969, 0.5
        %v2109 = vmul.f32 %v1587, 0.5
        %v2110 = vmul.f32 %v1589, 0.5
        %v2111 = vmul.f32 %v1973, 0.5
        %v2112 = vmul.f32 %v1975, 0.5
        %v2113 = vmul.f32 %v1591, 0.5
        %v2114 = vmul.f32 %v1593, 0.5
        %v2115 = vmul.f32 %v1977, 0.5
        %v2116 = vmul.f32 %v1979, 0.5
        %v2117 = vmul.f32 %v1597, 0.5
        %v2118 = vmul.f32 %v1599, 0.5
        %v2119 = vmul.f32 %v1983, 0.5
        %v2120 = vmul.f32 %v1985, 0.5
        %v2121 = vmul.f32 %v1601, 0.5
        %v2122 = vmul.f32 %v1603, 0.5
        %v2123 = vmul.f32 %v1987, 0.5
        %v2124 = vmul.f32 %v1989, 0.5
        %v2125 = vmul.f32 %v1607, 0.5
        %v2126 = vmul.f32 %v1609, 0.5
        %v2127 = vmul.f32 %v1993, 0.5
        %v2128 = vmul.f32 %v1995, 0.5
        %v2129 = vmul.f32 %v1611, 0.5
        %v2130 = vmul.f32 %v1613, 0.5
        %v2131 = vmul.f32 %v1997, 0.5
        %v2132 = vmul.f32 %v1999, 0.5
        %v2133 = vmul.f32 %v1617, 0.5
        %v2134 = vmul.f32 %v1619, 0.5
        %v2135 = vmul.f32 %v2003, 0.5
        %v2136 = vmul.f32 %v2005, 0.5
        %v2137 = vmul.f32 %v1621, 0.5
        %v2138 = vmul.f32 %v1623, 0.5
        %v2139 = vmul.f32 %v2007, 0.5
        %v2140 = vmul.f32 %v2009, 0.5
        %v2141 = vmul.f32 %v1627, 0.5
        %v2142 = vmul.f32 %v1629, 0.5
        %v2143 = vmul.f32 %v2013, 0.5
        %v2144 = vmul.f32 %v2015, 0.5
        %v2145 = vmul.f32 %v1631, 0.5
        %v2146 = vmul.f32 %v1633, 0.5
        %v2147 = vmul.f32 %v2017, 0.5
        %v2148 = vmul.f32 %v2019, 0.5
        %v2149 = vmul.f32 %v1477, 0.70710677
        %v2150 = vmul.f32 %v1479, 0.70710677
        %v2151 = vmul.f32 %v1863, 0.70710677
        %v2152 = vmul.f32 %v1865, 0.70710677
        %v2153 = vmul.f32 %v1481, 0.70710677
        %v2154 = vmul.f32 %v1483, 0.70710677
        %v2155 = vmul.f32 %v1867, 0.70710677
        %v2156 = vmul.f32 %v1869, 0.70710677
        %v2157 = vmul.f32 %v1487, 0.70710677
        %v2158 = vmul.f32 %v1489, 0.70710677
        %v2159 = vmul.f32 %v1873, 0.70710677
        %v2160 = vmul.f32 %v1875, 0.70710677
        %v2161 = vmul.f32 %v1491, 0.70710677
        %v2162 = vmul.f32 %v1493, 0.70710677
        %v2163 = vmul.f32 %v1877, 0.70710677
        %v2164 = vmul.f32 %v1879, 0.70710677
        %v2165 = vmul.f32 %v1497, 0.70710677
        %v2166 = vmul.f32 %v1499, 0.70710677
        %v2167 = vmul.f32 %v1883, 0.70710677
        %v2168 = vmul.f32 %v1885, 0.70710677
        %v2169 = vmul.f32 %v1501, 0.70710677
        %v2170 = vmul.f32 %v1503, 0.70710677
        %v2171 = vmul.f32 %v1887, 0.70710677
        %v2172 = vmul.f32 %v1889, 0.70710677
        %v2173 = vmul.f32 %v1507, 0.70710677
        %v2174 = vmul.f32 %v1509, 0.70710677
        %v2175 = vmul.f32 %v1893, 0.70710677
        %v2176 = vmul.f32 %v1895, 0.70710677
        %v2177 = vmul.f32 %v1511, 0.70710677
        %v2178 = vmul.f32 %v1513, 0.70710677
        %v2179 = vmul.f32 %v1897, 0.70710677
        %v2180 = vmul.f32 %v1899, 0.70710677
        %v2181 = vmul.f32 %v1517, 0.70710677
        %v2182 = vmul.f32 %v1519, 0.70710677
        %v2183 = vmul.f32 %v1903, 0.70710677
        %v2184 = vmul.f32 %v1905, 0.70710677
        %v2185 = vmul.f32 %v1521, 0.70710677
        %v2186 = vmul.f32 %v1523, 0.70710677
        %v2187 = vmul.f32 %v1907, 0.70710677
        %v2188 = vmul.f32 %v1909, 0.70710677
        %v2189 = vmul.f32 %v1527, 0.70710677
        %v2190 = vmul.f32 %v1529, 0.70710677
        %v2191 = vmul.f32 %v1913, 0.70710677
        %v2192 = vmul.f32 %v1915, 0.70710677
        %v2193 = vmul.f32 %v1531, 0.70710677
        %v2194 = vmul.f32 %v1533, 0.70710677
        %v2195 = vmul.f32 %v1917, 0.70710677
        %v2196 = vmul.f32 %v1919, 0.70710677
        %v2197 = vmul.f32 %v1537, 0.70710677
        %v2198 = vmul.f32 %v1539, 0.70710677
        %v2199 = vmul.f32 %v1923, 0.70710677
        %v2200 = vmul.f32 %v1925, 0.70710677
        %v2201 = vmul.f32 %v1541, 0.70710677
        %v2202 = vmul.f32 %v1543, 0.70710677
        %v2203 = vmul.f32 %v1927, 0.70710677
        %v2204 = vmul.f32 %v1929, 0.70710677
        %v2205 = vmul.f32 %v1547, 0.70710677
        %v2206 = vmul.f32 %v1549, 0.70710677
        %v2207 = vmul.f32 %v1933, 0.70710677
        %v2208 = vmul.f32 %v1935, 0.70710677
        %v2209 = vmul.f32 %v1551, 0.70710677
        %v2210 = vmul.f32 %v1553, 0.70710677
        %v2211 = vmul.f32 %v1937, 0.70710677
        %v2212 = vmul.f32 %v1939, 0.70710677
        %v2213 = vmul.f32 %v1557, 0.70710677
        %v2214 = vmul.f32 %v1559, 0.70710677
        %v2215 = vmul.f32 %v1943, 0.70710677
        %v2216 = vmul.f32 %v1945, 0.70710677
        %v2217 = vmul.f32 %v1561, 0.70710677
        %v2218 = vmul.f32 %v1563, 0.70710677
        %v2219 = vmul.f32 %v1947, 0.70710677
        %v2220 = vmul.f32 %v1949, 0.70710677
        %v2221 = vmul.f32 %v1567, 0.70710677
        %v2222 = vmul.f32 %v1569, 0.70710677
        %v2223 = vmul.f32 %v1953, 0.70710677
        %v2224 = vmul.f32 %v1955, 0.70710677
        %v2225 = vmul.f32 %v1571, 0.70710677
        %v2226 = vmul.f32 %v1573, 0.70710677
        %v2227 = vmul.f32 %v1957, 0.70710677
        %v2228 = vmul.f32 %v1959, 0.70710677
        %v2229 = vmul.f32 %v1577, 0.70710677
        %v2230 = vmul.f32 %v1579, 0.70710677
        %v2231 = vmul.f32 %v1963, 0.70710677
        %v2232 = vmul.f32 %v1965, 0.70710677
        %v2233 = vmul.f32 %v1581, 0.70710677
        %v2234 = vmul.f32 %v1583, 0.70710677
        %v2235 = vmul.f32 %v1967, 0.70710677
        %v2236 = vmul.f32 %v1969, 0.70710677
        %v2237 = vmul.f32 %v1587, 0.70710677
        %v2238 = vmul.f32 %v1589, 0.70710677
        %v2239 = vmul.f32 %v1973, 0.70710677
        %v2240 = vmul.f32 %v1975, 0.70710677
        %v2241 = vmul.f32 %v1591, 0.70710677
        %v2242 = vmul.f32 %v1593, 0.70710677
        %v2243 = vmul.f32 %v1977, 0.70710677
        %v2244 = vmul.f32 %v1979, 0.70710677
        %v2245 = vmul.f32 %v1597, 0.70710677
        %v2246 = vmul.f32 %v1599, 0.70710677
        %v2247 = vmul.f32 %v1983, 0.70710677
        %v2248 = vmul.f32 %v1985, 0.70710677
        %v2249 = vmul.f32 %v1601, 0.70710677
        %v2250 = vmul.f32 %v1603, 0.70710677
        %v2251 = vmul.f32 %v1987, 0.70710677
        %v2252 = vmul.f32 %v1989, 0.70710677
        %v2253 = vmul.f32 %v1607, 0.70710677
        %v2254 = vmul.f32 %v1609, 0.70710677
        %v2255 = vmul.f32 %v1993, 0.70710677
        %v2256 = vmul.f32 %v1995, 0.70710677
        %v2257 = vmul.f32 %v1611, 0.70710677
        %v2258 = vmul.f32 %v1613, 0.70710677
        %v2259 = vmul.f32 %v1997, 0.70710677
        %v2260 = vmul.f32 %v1999, 0.70710677
        %v2261 = vmul.f32 %v1617, 0.70710677
        %v2262 = vmul.f32 %v1619, 0.70710677
        %v2263 = vmul.f32 %v2003, 0.70710677
        %v2264 = vmul.f32 %v2005, 0.70710677
        %v2265 = vmul.f32 %v1621, 0.70710677
        %v2266 = vmul.f32 %v1623, 0.70710677
        %v2267 = vmul.f32 %v2007, 0.70710677
        %v2268 = vmul.f32 %v2009, 0.70710677
        %v2269 = vmul.f32 %v1627, 0.70710677
        %v2270 = vmul.f32 %v1629, 0.70710677
        %v2271 = vmul.f32 %v2013, 0.70710677
        %v2272 = vmul.f32 %v2015, 0.70710677
        %v2273 = vmul.f32 %v1631, 0.70710677
        %v2274 = vmul.f32 %v1633, 0.70710677
        %v2275 = vmul.f32 %v2017, 0.70710677
        %v2276 = vmul.f32 %v2019, 0.70710677
        %v2277 = verf.f32.pop %v2149
        %v2278 = verf.f32.pop %v2150
        %v2279 = verf.f32.pop %v2151
        %v2280 = verf.f32.pop %v2152
        %v2281 = verf.f32.pop %v2153
        %v2282 = verf.f32.pop %v2154
        %v2283 = verf.f32.pop %v2155
        %v2284 = verf.f32.pop %v2156
        %v2285 = verf.f32.pop %v2157
        %v2286 = verf.f32.pop %v2158
        %v2287 = verf.f32.pop %v2159
        %v2288 = verf.f32.pop %v2160
        %v2289 = verf.f32.pop %v2161
        %v2290 = verf.f32.pop %v2162
        %v2291 = verf.f32.pop %v2163
        %v2292 = verf.f32.pop %v2164
        %v2293 = verf.f32.pop %v2165
        %v2294 = verf.f32.pop %v2166
        %v2295 = verf.f32.pop %v2167
        %v2296 = verf.f32.pop %v2168
        %v2297 = verf.f32.pop %v2169
        %v2298 = verf.f32.pop %v2170
        %v2299 = verf.f32.pop %v2171
        %v2300 = verf.f32.pop %v2172
        %v2301 = verf.f32.pop %v2173
        %v2302 = verf.f32.pop %v2174
        %v2303 = verf.f32.pop %v2175
        %v2304 = verf.f32.pop %v2176
        %v2305 = verf.f32.pop %v2177
        %v2306 = verf.f32.pop %v2178
        %v2307 = verf.f32.pop %v2179
        %v2308 = verf.f32.pop %v2180
        %v2309 = verf.f32.pop %v2181
        %v2310 = verf.f32.pop %v2182
        %v2311 = verf.f32.pop %v2183
        %v2312 = verf.f32.pop %v2184
        %v2313 = verf.f32.pop %v2185
        %v2314 = verf.f32.pop %v2186
        %v2315 = verf.f32.pop %v2187
        %v2316 = verf.f32.pop %v2188
        %v2317 = verf.f32.pop %v2189
        %v2318 = verf.f32.pop %v2190
        %v2319 = verf.f32.pop %v2191
        %v2320 = verf.f32.pop %v2192
        %v2321 = verf.f32.pop %v2193
        %v2322 = verf.f32.pop %v2194
        %v2323 = verf.f32.pop %v2195
        %v2324 = verf.f32.pop %v2196
        %v2325 = verf.f32.pop %v2197
        %v2326 = verf.f32.pop %v2198
        %v2327 = verf.f32.pop %v2199
        %v2328 = verf.f32.pop %v2200
        %v2329 = verf.f32.pop %v2201
        %v2330 = verf.f32.pop %v2202
        %v2331 = verf.f32.pop %v2203
        %v2332 = verf.f32.pop %v2204
        %v2333 = verf.f32.pop %v2205
        %v2334 = verf.f32.pop %v2206
        %v2335 = verf.f32.pop %v2207
        %v2336 = verf.f32.pop %v2208
        %v2337 = verf.f32.pop %v2209
        %v2338 = verf.f32.pop %v2210
        %v2339 = verf.f32.pop %v2211
        %v2340 = verf.f32.pop %v2212
        %v2341 = verf.f32.pop %v2213
        %v2342 = verf.f32.pop %v2214
        %v2343 = verf.f32.pop %v2215
        %v2344 = verf.f32.pop %v2216
        %v2345 = verf.f32.pop %v2217
        %v2346 = verf.f32.pop %v2218
        %v2347 = verf.f32.pop %v2219
        %v2348 = verf.f32.pop %v2220
        %v2349 = verf.f32.pop %v2221
        %v2350 = verf.f32.pop %v2222
        %v2351 = verf.f32.pop %v2223
        %v2352 = verf.f32.pop %v2224
        %v2353 = verf.f32.pop %v2225
        %v2354 = verf.f32.pop %v2226
        %v2355 = verf.f32.pop %v2227
        %v2356 = verf.f32.pop %v2228
        %v2357 = verf.f32.pop %v2229
        %v2358 = verf.f32.pop %v2230
        %v2359 = verf.f32.pop %v2231
        %v2360 = verf.f32.pop %v2232
        %v2361 = verf.f32.pop %v2233
        %v2362 = verf.f32.pop %v2234
        %v2363 = verf.f32.pop %v2235
        %v2364 = verf.f32.pop %v2236
        %v2365 = verf.f32.pop %v2237
        %v2366 = verf.f32.pop %v2238
        %v2367 = verf.f32.pop %v2239
        %v2368 = verf.f32.pop %v2240
        %v2369 = verf.f32.pop %v2241
        %v2370 = verf.f32.pop %v2242
        %v2371 = verf.f32.pop %v2243
        %v2372 = verf.f32.pop %v2244
        %v2373 = verf.f32.pop %v2245
        %v2374 = verf.f32.pop %v2246
        %v2375 = verf.f32.pop %v2247
        %v2376 = verf.f32.pop %v2248
        %v2377 = verf.f32.pop %v2249
        %v2378 = verf.f32.pop %v2250
        %v2379 = verf.f32.pop %v2251
        %v2380 = verf.f32.pop %v2252
        %v2381 = verf.f32.pop %v2253
        %v2382 = verf.f32.pop %v2254
        %v2383 = verf.f32.pop %v2255
        %v2384 = verf.f32.pop %v2256
        %v2385 = verf.f32.pop %v2257
        %v2386 = verf.f32.pop %v2258
        %v2387 = verf.f32.pop %v2259
        %v2388 = verf.f32.pop %v2260
        %v2389 = verf.f32.pop %v2261
        %v2390 = verf.f32.pop %v2262
        %v2391 = verf.f32.pop %v2263
        %v2392 = verf.f32.pop %v2264
        %v2393 = verf.f32.pop %v2265
        %v2394 = verf.f32.pop %v2266
        %v2395 = verf.f32.pop %v2267
        %v2396 = verf.f32.pop %v2268
        %v2397 = verf.f32.pop %v2269
        %v2398 = verf.f32.pop %v2270
        %v2399 = verf.f32.pop %v2271
        %v2400 = verf.f32.pop %v2272
        %v2401 = verf.f32.pop %v2273
        %v2402 = verf.f32.pop %v2274
        %v2403 = verf.f32.pop %v2275
        %v2404 = verf.f32.pop %v2276
        %v2405 = vadd.f32 %v2277, 1.0
        %v2406 = vadd.f32 %v2278, 1.0
        %v2407 = vadd.f32 %v2279, 1.0
        %v2408 = vadd.f32 %v2280, 1.0
        %v2409 = vadd.f32 %v2281, 1.0
        %v2410 = vadd.f32 %v2282, 1.0
        %v2411 = vadd.f32 %v2283, 1.0
        %v2412 = vadd.f32 %v2284, 1.0
        %v2413 = vadd.f32 %v2285, 1.0
        %v2414 = vadd.f32 %v2286, 1.0
        %v2415 = vadd.f32 %v2287, 1.0
        %v2416 = vadd.f32 %v2288, 1.0
        %v2417 = vadd.f32 %v2289, 1.0
        %v2418 = vadd.f32 %v2290, 1.0
        %v2419 = vadd.f32 %v2291, 1.0
        %v2420 = vadd.f32 %v2292, 1.0
        %v2421 = vadd.f32 %v2293, 1.0
        %v2422 = vadd.f32 %v2294, 1.0
        %v2423 = vadd.f32 %v2295, 1.0
        %v2424 = vadd.f32 %v2296, 1.0
        %v2425 = vadd.f32 %v2297, 1.0
        %v2426 = vadd.f32 %v2298, 1.0
        %v2427 = vadd.f32 %v2299, 1.0
        %v2428 = vadd.f32 %v2300, 1.0
        %v2429 = vadd.f32 %v2301, 1.0
        %v2430 = vadd.f32 %v2302, 1.0
        %v2431 = vadd.f32 %v2303, 1.0
        %v2432 = vadd.f32 %v2304, 1.0
        %v2433 = vadd.f32 %v2305, 1.0
        %v2434 = vadd.f32 %v2306, 1.0
        %v2435 = vadd.f32 %v2307, 1.0
        %v2436 = vadd.f32 %v2308, 1.0
        %v2437 = vadd.f32 %v2309, 1.0
        %v2438 = vadd.f32 %v2310, 1.0
        %v2439 = vadd.f32 %v2311, 1.0
        %v2440 = vadd.f32 %v2312, 1.0
        %v2441 = vadd.f32 %v2313, 1.0
        %v2442 = vadd.f32 %v2314, 1.0
        %v2443 = vadd.f32 %v2315, 1.0
        %v2444 = vadd.f32 %v2316, 1.0
        %v2445 = vadd.f32 %v2317, 1.0
        %v2446 = vadd.f32 %v2318, 1.0
        %v2447 = vadd.f32 %v2319, 1.0
        %v2448 = vadd.f32 %v2320, 1.0
        %v2449 = vadd.f32 %v2321, 1.0
        %v2450 = vadd.f32 %v2322, 1.0
        %v2451 = vadd.f32 %v2323, 1.0
        %v2452 = vadd.f32 %v2324, 1.0
        %v2453 = vadd.f32 %v2325, 1.0
        %v2454 = vadd.f32 %v2326, 1.0
        %v2455 = vadd.f32 %v2327, 1.0
        %v2456 = vadd.f32 %v2328, 1.0
        %v2457 = vadd.f32 %v2329, 1.0
        %v2458 = vadd.f32 %v2330, 1.0
        %v2459 = vadd.f32 %v2331, 1.0
        %v2460 = vadd.f32 %v2332, 1.0
        %v2461 = vadd.f32 %v2333, 1.0
        %v2462 = vadd.f32 %v2334, 1.0
        %v2463 = vadd.f32 %v2335, 1.0
        %v2464 = vadd.f32 %v2336, 1.0
        %v2465 = vadd.f32 %v2337, 1.0
        %v2466 = vadd.f32 %v2338, 1.0
        %v2467 = vadd.f32 %v2339, 1.0
        %v2468 = vadd.f32 %v2340, 1.0
        %v2469 = vadd.f32 %v2341, 1.0
        %v2470 = vadd.f32 %v2342, 1.0
        %v2471 = vadd.f32 %v2343, 1.0
        %v2472 = vadd.f32 %v2344, 1.0
        %v2473 = vadd.f32 %v2345, 1.0
        %v2474 = vadd.f32 %v2346, 1.0
        %v2475 = vadd.f32 %v2347, 1.0
        %v2476 = vadd.f32 %v2348, 1.0
        %v2477 = vadd.f32 %v2349, 1.0
        %v2478 = vadd.f32 %v2350, 1.0
        %v2479 = vadd.f32 %v2351, 1.0
        %v2480 = vadd.f32 %v2352, 1.0
        %v2481 = vadd.f32 %v2353, 1.0
        %v2482 = vadd.f32 %v2354, 1.0
        %v2483 = vadd.f32 %v2355, 1.0
        %v2484 = vadd.f32 %v2356, 1.0
        %v2485 = vadd.f32 %v2357, 1.0
        %v2486 = vadd.f32 %v2358, 1.0
        %v2487 = vadd.f32 %v2359, 1.0
        %v2488 = vadd.f32 %v2360, 1.0
        %v2489 = vadd.f32 %v2361, 1.0
        %v2490 = vadd.f32 %v2362, 1.0
        %v2491 = vadd.f32 %v2363, 1.0
        %v2492 = vadd.f32 %v2364, 1.0
        %v2493 = vadd.f32 %v2365, 1.0
        %v2494 = vadd.f32 %v2366, 1.0
        %v2495 = vadd.f32 %v2367, 1.0
        %v2496 = vadd.f32 %v2368, 1.0
        %v2497 = vadd.f32 %v2369, 1.0
        %v2498 = vadd.f32 %v2370, 1.0
        %v2499 = vadd.f32 %v2371, 1.0
        %v2500 = vadd.f32 %v2372, 1.0
        %v2501 = vadd.f32 %v2373, 1.0
        %v2502 = vadd.f32 %v2374, 1.0
        %v2503 = vadd.f32 %v2375, 1.0
        %v2504 = vadd.f32 %v2376, 1.0
        %v2505 = vadd.f32 %v2377, 1.0
        %v2506 = vadd.f32 %v2378, 1.0
        %v2507 = vadd.f32 %v2379, 1.0
        %v2508 = vadd.f32 %v2380, 1.0
        %v2509 = vadd.f32 %v2381, 1.0
        %v2510 = vadd.f32 %v2382, 1.0
        %v2511 = vadd.f32 %v2383, 1.0
        %v2512 = vadd.f32 %v2384, 1.0
        %v2513 = vadd.f32 %v2385, 1.0
        %v2514 = vadd.f32 %v2386, 1.0
        %v2515 = vadd.f32 %v2387, 1.0
        %v2516 = vadd.f32 %v2388, 1.0
        %v2517 = vadd.f32 %v2389, 1.0
        %v2518 = vadd.f32 %v2390, 1.0
        %v2519 = vadd.f32 %v2391, 1.0
        %v2520 = vadd.f32 %v2392, 1.0
        %v2521 = vadd.f32 %v2393, 1.0
        %v2522 = vadd.f32 %v2394, 1.0
        %v2523 = vadd.f32 %v2395, 1.0
        %v2524 = vadd.f32 %v2396, 1.0
        %v2525 = vadd.f32 %v2397, 1.0
        %v2526 = vadd.f32 %v2398, 1.0
        %v2527 = vadd.f32 %v2399, 1.0
        %v2528 = vadd.f32 %v2400, 1.0
        %v2529 = vadd.f32 %v2401, 1.0
        %v2530 = vadd.f32 %v2402, 1.0
        %v2531 = vadd.f32 %v2403, 1.0
        %v2532 = vadd.f32 %v2404, 1.0
        %v2533 = vmul.f32 %v2021, %v2405
        %v2534 = vmul.f32 %v2022, %v2406
        %v2535 = vmul.f32 %v2023, %v2407
        %v2536 = vmul.f32 %v2024, %v2408
        %v2537 = vmul.f32 %v2025, %v2409
        %v2538 = vmul.f32 %v2026, %v2410
        %v2539 = vmul.f32 %v2027, %v2411
        %v2540 = vmul.f32 %v2028, %v2412
        %v2541 = vmul.f32 %v2029, %v2413
        %v2542 = vmul.f32 %v2030, %v2414
        %v2543 = vmul.f32 %v2031, %v2415
        %v2544 = vmul.f32 %v2032, %v2416
        %v2545 = vmul.f32 %v2033, %v2417
        %v2546 = vmul.f32 %v2034, %v2418
        %v2547 = vmul.f32 %v2035, %v2419
        %v2548 = vmul.f32 %v2036, %v2420
        %v2549 = vmul.f32 %v2037, %v2421
        %v2550 = vmul.f32 %v2038, %v2422
        %v2551 = vmul.f32 %v2039, %v2423
        %v2552 = vmul.f32 %v2040, %v2424
        %v2553 = vmul.f32 %v2041, %v2425
        %v2554 = vmul.f32 %v2042, %v2426
        %v2555 = vmul.f32 %v2043, %v2427
        %v2556 = vmul.f32 %v2044, %v2428
        %v2557 = vmul.f32 %v2045, %v2429
        %v2558 = vmul.f32 %v2046, %v2430
        %v2559 = vmul.f32 %v2047, %v2431
        %v2560 = vmul.f32 %v2048, %v2432
        %v2561 = vmul.f32 %v2049, %v2433
        %v2562 = vmul.f32 %v2050, %v2434
        %v2563 = vmul.f32 %v2051, %v2435
        %v2564 = vmul.f32 %v2052, %v2436
        %v2565 = vmul.f32 %v2053, %v2437
        %v2566 = vmul.f32 %v2054, %v2438
        %v2567 = vmul.f32 %v2055, %v2439
        %v2568 = vmul.f32 %v2056, %v2440
        %v2569 = vmul.f32 %v2057, %v2441
        %v2570 = vmul.f32 %v2058, %v2442
        %v2571 = vmul.f32 %v2059, %v2443
        %v2572 = vmul.f32 %v2060, %v2444
        %v2573 = vmul.f32 %v2061, %v2445
        %v2574 = vmul.f32 %v2062, %v2446
        %v2575 = vmul.f32 %v2063, %v2447
        %v2576 = vmul.f32 %v2064, %v2448
        %v2577 = vmul.f32 %v2065, %v2449
        %v2578 = vmul.f32 %v2066, %v2450
        %v2579 = vmul.f32 %v2067, %v2451
        %v2580 = vmul.f32 %v2068, %v2452
        %v2581 = vmul.f32 %v2069, %v2453
        %v2582 = vmul.f32 %v2070, %v2454
        %v2583 = vmul.f32 %v2071, %v2455
        %v2584 = vmul.f32 %v2072, %v2456
        %v2585 = vmul.f32 %v2073, %v2457
        %v2586 = vmul.f32 %v2074, %v2458
        %v2587 = vmul.f32 %v2075, %v2459
        %v2588 = vmul.f32 %v2076, %v2460
        %v2589 = vmul.f32 %v2077, %v2461
        %v2590 = vmul.f32 %v2078, %v2462
        %v2591 = vmul.f32 %v2079, %v2463
        %v2592 = vmul.f32 %v2080, %v2464
        %v2593 = vmul.f32 %v2081, %v2465
        %v2594 = vmul.f32 %v2082, %v2466
        %v2595 = vmul.f32 %v2083, %v2467
        %v2596 = vmul.f32 %v2084, %v2468
        %v2597 = vmul.f32 %v2085, %v2469
        %v2598 = vmul.f32 %v2086, %v2470
        %v2599 = vmul.f32 %v2087, %v2471
        %v2600 = vmul.f32 %v2088, %v2472
        %v2601 = vmul.f32 %v2089, %v2473
        %v2602 = vmul.f32 %v2090, %v2474
        %v2603 = vmul.f32 %v2091, %v2475
        %v2604 = vmul.f32 %v2092, %v2476
        %v2605 = vmul.f32 %v2093, %v2477
        %v2606 = vmul.f32 %v2094, %v2478
        %v2607 = vmul.f32 %v2095, %v2479
        %v2608 = vmul.f32 %v2096, %v2480
        %v2609 = vmul.f32 %v2097, %v2481
        %v2610 = vmul.f32 %v2098, %v2482
        %v2611 = vmul.f32 %v2099, %v2483
        %v2612 = vmul.f32 %v2100, %v2484
        %v2613 = vmul.f32 %v2101, %v2485
        %v2614 = vmul.f32 %v2102, %v2486
        %v2615 = vmul.f32 %v2103, %v2487
        %v2616 = vmul.f32 %v2104, %v2488
        %v2617 = vmul.f32 %v2105, %v2489
        %v2618 = vmul.f32 %v2106, %v2490
        %v2619 = vmul.f32 %v2107, %v2491
        %v2620 = vmul.f32 %v2108, %v2492
        %v2621 = vmul.f32 %v2109, %v2493
        %v2622 = vmul.f32 %v2110, %v2494
        %v2623 = vmul.f32 %v2111, %v2495
        %v2624 = vmul.f32 %v2112, %v2496
        %v2625 = vmul.f32 %v2113, %v2497
        %v2626 = vmul.f32 %v2114, %v2498
        %v2627 = vmul.f32 %v2115, %v2499
        %v2628 = vmul.f32 %v2116, %v2500
        %v2629 = vmul.f32 %v2117, %v2501
        %v2630 = vmul.f32 %v2118, %v2502
        %v2631 = vmul.f32 %v2119, %v2503
        %v2632 = vmul.f32 %v2120, %v2504
        %v2633 = vmul.f32 %v2121, %v2505
        %v2634 = vmul.f32 %v2122, %v2506
        %v2635 = vmul.f32 %v2123, %v2507
        %v2636 = vmul.f32 %v2124, %v2508
        %v2637 = vmul.f32 %v2125, %v2509
        %v2638 = vmul.f32 %v2126, %v2510
        %v2639 = vmul.f32 %v2127, %v2511
        %v2640 = vmul.f32 %v2128, %v2512
        %v2641 = vmul.f32 %v2129, %v2513
        %v2642 = vmul.f32 %v2130, %v2514
        %v2643 = vmul.f32 %v2131, %v2515
        %v2644 = vmul.f32 %v2132, %v2516
        %v2645 = vmul.f32 %v2133, %v2517
        %v2646 = vmul.f32 %v2134, %v2518
        %v2647 = vmul.f32 %v2135, %v2519
        %v2648 = vmul.f32 %v2136, %v2520
        %v2649 = vmul.f32 %v2137, %v2521
        %v2650 = vmul.f32 %v2138, %v2522
        %v2651 = vmul.f32 %v2139, %v2523
        %v2652 = vmul.f32 %v2140, %v2524
        %v2653 = vmul.f32 %v2141, %v2525
        %v2654 = vmul.f32 %v2142, %v2526
        %v2655 = vmul.f32 %v2143, %v2527
        %v2656 = vmul.f32 %v2144, %v2528
        %v2657 = vmul.f32 %v2145, %v2529
        %v2658 = vmul.f32 %v2146, %v2530
        %v2659 = vmul.f32 %v2147, %v2531
        %v2660 = vmul.f32 %v2148, %v2532
        %v2661 = vpack.c.bf16 %v2537, %v2533
        %v2662 = vpack.c.bf16 %v2538, %v2534
        %v2663 = vpack.c.bf16 %v2539, %v2535
        %v2664 = vpack.c.bf16 %v2540, %v2536
        %v2665 = vpack.c.bf16 %v2545, %v2541
        %v2666 = vpack.c.bf16 %v2546, %v2542
        %v2667 = vpack.c.bf16 %v2547, %v2543
        %v2668 = vpack.c.bf16 %v2548, %v2544
        %v2669 = vpack.c.bf16 %v2553, %v2549
        %v2670 = vpack.c.bf16 %v2554, %v2550
        %v2671 = vpack.c.bf16 %v2555, %v2551
        %v2672 = vpack.c.bf16 %v2556, %v2552
        %v2673 = vpack.c.bf16 %v2561, %v2557
        %v2674 = vpack.c.bf16 %v2562, %v2558
        %v2675 = vpack.c.bf16 %v2563, %v2559
        %v2676 = vpack.c.bf16 %v2564, %v2560
        %v2677 = vpack.c.bf16 %v2569, %v2565
        %v2678 = vpack.c.bf16 %v2570, %v2566
        %v2679 = vpack.c.bf16 %v2571, %v2567
        %v2680 = vpack.c.bf16 %v2572, %v2568
        %v2681 = vpack.c.bf16 %v2577, %v2573
        %v2682 = vpack.c.bf16 %v2578, %v2574
        %v2683 = vpack.c.bf16 %v2579, %v2575
        %v2684 = vpack.c.bf16 %v2580, %v2576
        %v2685 = vpack.c.bf16 %v2585, %v2581
        %v2686 = vpack.c.bf16 %v2586, %v2582
        %v2687 = vpack.c.bf16 %v2587, %v2583
        %v2688 = vpack.c.bf16 %v2588, %v2584
        %v2689 = vpack.c.bf16 %v2593, %v2589
        %v2690 = vpack.c.bf16 %v2594, %v2590
        %v2691 = vpack.c.bf16 %v2595, %v2591
        %v2692 = vpack.c.bf16 %v2596, %v2592
        %v2693 = vpack.c.bf16 %v2601, %v2597
        %v2694 = vpack.c.bf16 %v2602, %v2598
        %v2695 = vpack.c.bf16 %v2603, %v2599
        %v2696 = vpack.c.bf16 %v2604, %v2600
        %v2697 = vpack.c.bf16 %v2609, %v2605
        %v2698 = vpack.c.bf16 %v2610, %v2606
        %v2699 = vpack.c.bf16 %v2611, %v2607
        %v2700 = vpack.c.bf16 %v2612, %v2608
        %v2701 = vpack.c.bf16 %v2617, %v2613
        %v2702 = vpack.c.bf16 %v2618, %v2614
        %v2703 = vpack.c.bf16 %v2619, %v2615
        %v2704 = vpack.c.bf16 %v2620, %v2616
        %v2705 = vpack.c.bf16 %v2625, %v2621
        %v2706 = vpack.c.bf16 %v2626, %v2622
        %v2707 = vpack.c.bf16 %v2627, %v2623
        %v2708 = vpack.c.bf16 %v2628, %v2624
        %v2709 = vpack.c.bf16 %v2633, %v2629
        %v2710 = vpack.c.bf16 %v2634, %v2630
        %v2711 = vpack.c.bf16 %v2635, %v2631
        %v2712 = vpack.c.bf16 %v2636, %v2632
        %v2713 = vpack.c.bf16 %v2641, %v2637
        %v2714 = vpack.c.bf16 %v2642, %v2638
        %v2715 = vpack.c.bf16 %v2643, %v2639
        %v2716 = vpack.c.bf16 %v2644, %v2640
        %v2717 = vpack.c.bf16 %v2649, %v2645
        %v2718 = vpack.c.bf16 %v2650, %v2646
        %v2719 = vpack.c.bf16 %v2651, %v2647
        %v2720 = vpack.c.bf16 %v2652, %v2648
        %v2721 = vpack.c.bf16 %v2657, %v2653
        %v2722 = vpack.c.bf16 %v2658, %v2654
        %v2723 = vpack.c.bf16 %v2659, %v2655
        %v2724 = vpack.c.bf16 %v2660, %v2656
        %v2725 = vld [vmem:[#allocation7] sm:$0xff]
        %v2726 = vld [vmem:[#allocation7 + $0x8] sm:$0xff]
        %v2727 = vld [vmem:[#allocation7 + $0x10] sm:$0xff]
        %v2728 = vld [vmem:[#allocation7 + $0x18] sm:$0xff]
        %v2729 = vld [vmem:[#allocation7 + $0x20] sm:$0xff]
        %v2730 = vld [vmem:[#allocation7 + $0x28] sm:$0xff]
        %v2731 = vld [vmem:[#allocation7 + $0x30] sm:$0xff]
        %v2732 = vld [vmem:[#allocation7 + $0x38] sm:$0xff]
        %v2733 = vld [vmem:[#allocation7 + $0x40] sm:$0xff]
        %v2734 = vld [vmem:[#allocation7 + $0x48] sm:$0xff]
        %v2735 = vld [vmem:[#allocation7 + $0x50] sm:$0xff]
        %v2736 = vld [vmem:[#allocation7 + $0x58] sm:$0xff]
        %v2737 = vld [vmem:[#allocation7 + $0x60] sm:$0xff]
        %v2738 = vld [vmem:[#allocation7 + $0x68] sm:$0xff]
        %v2739 = vld [vmem:[#allocation7 + $0x70] sm:$0xff]
        %v2740 = vld [vmem:[#allocation7 + $0x78] sm:$0xff]
        %v2741 = vld [vmem:[#allocation7 + $0x80] sm:$0xff]
        %v2742 = vld [vmem:[#allocation7 + $0x88] sm:$0xff]
        %v2743 = vld [vmem:[#allocation7 + $0x90] sm:$0xff]
        %v2744 = vld [vmem:[#allocation7 + $0x98] sm:$0xff]
        %v2745 = vld [vmem:[#allocation7 + $0xa0] sm:$0xff]
        %v2746 = vld [vmem:[#allocation7 + $0xa8] sm:$0xff]
        %v2747 = vld [vmem:[#allocation7 + $0xb0] sm:$0xff]
        %v2748 = vld [vmem:[#allocation7 + $0xb8] sm:$0xff]
        %v2749 = vld [vmem:[#allocation7 + $0xc0] sm:$0xff]
        %v2750 = vld [vmem:[#allocation7 + $0xc8] sm:$0xff]
        %v2751 = vld [vmem:[#allocation7 + $0xd0] sm:$0xff]
        %v2752 = vld [vmem:[#allocation7 + $0xd8] sm:$0xff]
        %v2753 = vld [vmem:[#allocation7 + $0xe0] sm:$0xff]
        %v2754 = vld [vmem:[#allocation7 + $0xe8] sm:$0xff]
        %v2755 = vld [vmem:[#allocation7 + $0xf0] sm:$0xff]
        %v2756 = vld [vmem:[#allocation7 + $0xf8] sm:$0xff]
        %v2757 = vld [vmem:[#allocation7 + $0x100] sm:$0xff]
        %v2758 = vld [vmem:[#allocation7 + $0x108] sm:$0xff]
        %v2759 = vld [vmem:[#allocation7 + $0x110] sm:$0xff]
        %v2760 = vld [vmem:[#allocation7 + $0x118] sm:$0xff]
        %v2761 = vld [vmem:[#allocation7 + $0x120] sm:$0xff]
        %v2762 = vld [vmem:[#allocation7 + $0x128] sm:$0xff]
        %v2763 = vld [vmem:[#allocation7 + $0x130] sm:$0xff]
        %v2764 = vld [vmem:[#allocation7 + $0x138] sm:$0xff]
        %v2765 = vld [vmem:[#allocation7 + $0x140] sm:$0xff]
        %v2766 = vld [vmem:[#allocation7 + $0x148] sm:$0xff]
        %v2767 = vld [vmem:[#allocation7 + $0x150] sm:$0xff]
        %v2768 = vld [vmem:[#allocation7 + $0x158] sm:$0xff]
        %v2769 = vld [vmem:[#allocation7 + $0x160] sm:$0xff]
        %v2770 = vld [vmem:[#allocation7 + $0x168] sm:$0xff]
        %v2771 = vld [vmem:[#allocation7 + $0x170] sm:$0xff]
        %v2772 = vld [vmem:[#allocation7 + $0x178] sm:$0xff]
        %v2773 = vld [vmem:[#allocation7 + $0x180] sm:$0xff]
        %v2774 = vld [vmem:[#allocation7 + $0x188] sm:$0xff]
        %v2775 = vld [vmem:[#allocation7 + $0x190] sm:$0xff]
        %v2776 = vld [vmem:[#allocation7 + $0x198] sm:$0xff]
        %v2777 = vld [vmem:[#allocation7 + $0x1a0] sm:$0xff]
        %v2778 = vld [vmem:[#allocation7 + $0x1a8] sm:$0xff]
        %v2779 = vld [vmem:[#allocation7 + $0x1b0] sm:$0xff]
        %v2780 = vld [vmem:[#allocation7 + $0x1b8] sm:$0xff]
        %v2781 = vld [vmem:[#allocation7 + $0x1c0] sm:$0xff]
        %v2782 = vld [vmem:[#allocation7 + $0x1c8] sm:$0xff]
        %v2783 = vld [vmem:[#allocation7 + $0x1d0] sm:$0xff]
        %v2784 = vld [vmem:[#allocation7 + $0x1d8] sm:$0xff]
        %v2785 = vld [vmem:[#allocation7 + $0x1e0] sm:$0xff]
        %v2786 = vld [vmem:[#allocation7 + $0x1e8] sm:$0xff]
        %v2787 = vld [vmem:[#allocation7 + $0x1f0] sm:$0xff]
        %v2788 = vld [vmem:[#allocation7 + $0x1f8] sm:$0xff]
        %v2789 = vld [vmem:[#allocation7 + $0x200] sm:$0xff]
        %v2790 = vld [vmem:[#allocation7 + $0x208] sm:$0xff]
        %v2791 = vld [vmem:[#allocation7 + $0x210] sm:$0xff]
        %v2792 = vld [vmem:[#allocation7 + $0x218] sm:$0xff]
        %v2793 = vld [vmem:[#allocation7 + $0x220] sm:$0xff]
        %v2794 = vld [vmem:[#allocation7 + $0x228] sm:$0xff]
        %v2795 = vld [vmem:[#allocation7 + $0x230] sm:$0xff]
        %v2796 = vld [vmem:[#allocation7 + $0x238] sm:$0xff]
        %v2797 = vld [vmem:[#allocation7 + $0x240] sm:$0xff]
        %v2798 = vld [vmem:[#allocation7 + $0x248] sm:$0xff]
        %v2799 = vld [vmem:[#allocation7 + $0x250] sm:$0xff]
        %v2800 = vld [vmem:[#allocation7 + $0x258] sm:$0xff]
        %v2801 = vld [vmem:[#allocation7 + $0x260] sm:$0xff]
        %v2802 = vld [vmem:[#allocation7 + $0x268] sm:$0xff]
        %v2803 = vld [vmem:[#allocation7 + $0x270] sm:$0xff]
        %v2804 = vld [vmem:[#allocation7 + $0x278] sm:$0xff]
        %v2805 = vld [vmem:[#allocation7 + $0x280] sm:$0xff]
        %v2806 = vld [vmem:[#allocation7 + $0x288] sm:$0xff]
        %v2807 = vld [vmem:[#allocation7 + $0x290] sm:$0xff]
        %v2808 = vld [vmem:[#allocation7 + $0x298] sm:$0xff]
        %v2809 = vld [vmem:[#allocation7 + $0x2a0] sm:$0xff]
        %v2810 = vld [vmem:[#allocation7 + $0x2a8] sm:$0xff]
        %v2811 = vld [vmem:[#allocation7 + $0x2b0] sm:$0xff]
        %v2812 = vld [vmem:[#allocation7 + $0x2b8] sm:$0xff]
        %v2813 = vld [vmem:[#allocation7 + $0x2c0] sm:$0xff]
        %v2814 = vld [vmem:[#allocation7 + $0x2c8] sm:$0xff]
        %v2815 = vld [vmem:[#allocation7 + $0x2d0] sm:$0xff]
        %v2816 = vld [vmem:[#allocation7 + $0x2d8] sm:$0xff]
        %v2817 = vld [vmem:[#allocation7 + $0x2e0] sm:$0xff]
        %v2818 = vld [vmem:[#allocation7 + $0x2e8] sm:$0xff]
        %v2819 = vld [vmem:[#allocation7 + $0x2f0] sm:$0xff]
        %v2820 = vld [vmem:[#allocation7 + $0x2f8] sm:$0xff]
        %v2821 = vld [vmem:[#allocation7 + $0x300] sm:$0xff]
        %v2822 = vld [vmem:[#allocation7 + $0x308] sm:$0xff]
        %v2823 = vld [vmem:[#allocation7 + $0x310] sm:$0xff]
        %v2824 = vld [vmem:[#allocation7 + $0x318] sm:$0xff]
        %v2825 = vld [vmem:[#allocation7 + $0x320] sm:$0xff]
        %v2826 = vld [vmem:[#allocation7 + $0x328] sm:$0xff]
        %v2827 = vld [vmem:[#allocation7 + $0x330] sm:$0xff]
        %v2828 = vld [vmem:[#allocation7 + $0x338] sm:$0xff]
        %v2829 = vld [vmem:[#allocation7 + $0x340] sm:$0xff]
        %v2830 = vld [vmem:[#allocation7 + $0x348] sm:$0xff]
        %v2831 = vld [vmem:[#allocation7 + $0x350] sm:$0xff]
        %v2832 = vld [vmem:[#allocation7 + $0x358] sm:$0xff]
        %v2833 = vld [vmem:[#allocation7 + $0x360] sm:$0xff]
        %v2834 = vld [vmem:[#allocation7 + $0x368] sm:$0xff]
        %v2835 = vld [vmem:[#allocation7 + $0x370] sm:$0xff]
        %v2836 = vld [vmem:[#allocation7 + $0x378] sm:$0xff]
        %v2837 = vld [vmem:[#allocation7 + $0x380] sm:$0xff]
        %v2838 = vld [vmem:[#allocation7 + $0x388] sm:$0xff]
        %v2839 = vld [vmem:[#allocation7 + $0x390] sm:$0xff]
        %v2840 = vld [vmem:[#allocation7 + $0x398] sm:$0xff]
        %v2841 = vld [vmem:[#allocation7 + $0x3a0] sm:$0xff]
        %v2842 = vld [vmem:[#allocation7 + $0x3a8] sm:$0xff]
        %v2843 = vld [vmem:[#allocation7 + $0x3b0] sm:$0xff]
        %v2844 = vld [vmem:[#allocation7 + $0x3b8] sm:$0xff]
        %v2845 = vld [vmem:[#allocation7 + $0x3c0] sm:$0xff]
        %v2846 = vld [vmem:[#allocation7 + $0x3c8] sm:$0xff]
        %v2847 = vld [vmem:[#allocation7 + $0x3d0] sm:$0xff]
        %v2848 = vld [vmem:[#allocation7 + $0x3d8] sm:$0xff]
        %v2849 = vld [vmem:[#allocation7 + $0x3e0] sm:$0xff]
        %v2850 = vld [vmem:[#allocation7 + $0x3e8] sm:$0xff]
        %v2851 = vld [vmem:[#allocation7 + $0x3f0] sm:$0xff]
        %v2852 = vld [vmem:[#allocation7 + $0x3f8] sm:$0xff]
        %v2854 = vlaneseq
        %v2855 = vshrl.u32 %v2854, 7
        %v2856 = vsub.s32 0, %v2855
        %v2857 = vrot.slane %v263, %v2856
        %v2858 = vlaneseq
        %v2859 = vshrl.u32 %v2858, 7
        %v2860 = vsub.s32 1, %v2859
        %v2861 = vrot.slane %v263, %v2860
        %v2862 = vlaneseq
        %v2863 = vshrl.u32 %v2862, 7
        %v2864 = vsub.s32 2, %v2863
        %v2865 = vrot.slane %v263, %v2864
        %v2866 = vlaneseq
        %v2867 = vshrl.u32 %v2866, 7
        %v2868 = vsub.s32 3, %v2867
        %v2869 = vrot.slane %v263, %v2868
        %v3002 = vunpack.c.l.b16 %v2725
        %v3003 = vunpack.c.h.b16 %v2725
        %v3004 = vunpack.c.l.b16 %v2726
        %v3005 = vunpack.c.h.b16 %v2726
        %v3006 = vunpack.c.l.b16 %v2727
        %v3007 = vunpack.c.h.b16 %v2727
        %v3008 = vunpack.c.l.b16 %v2728
        %v3009 = vunpack.c.h.b16 %v2728
        %v3010 = vunpack.c.l.b16 %v2729
        %v3011 = vunpack.c.h.b16 %v2729
        %v3012 = vunpack.c.l.b16 %v2730
        %v3013 = vunpack.c.h.b16 %v2730
        %v3014 = vunpack.c.l.b16 %v2731
        %v3015 = vunpack.c.h.b16 %v2731
        %v3016 = vunpack.c.l.b16 %v2732
        %v3017 = vunpack.c.h.b16 %v2732
        %v3018 = vunpack.c.l.b16 %v2733
        %v3019 = vunpack.c.h.b16 %v2733
        %v3020 = vunpack.c.l.b16 %v2734
        %v3021 = vunpack.c.h.b16 %v2734
        %v3022 = vunpack.c.l.b16 %v2735
        %v3023 = vunpack.c.h.b16 %v2735
        %v3024 = vunpack.c.l.b16 %v2736
        %v3025 = vunpack.c.h.b16 %v2736
        %v3026 = vunpack.c.l.b16 %v2737
        %v3027 = vunpack.c.h.b16 %v2737
        %v3028 = vunpack.c.l.b16 %v2738
        %v3029 = vunpack.c.h.b16 %v2738
        %v3030 = vunpack.c.l.b16 %v2739
        %v3031 = vunpack.c.h.b16 %v2739
        %v3032 = vunpack.c.l.b16 %v2740
        %v3033 = vunpack.c.h.b16 %v2740
        %v3034 = vunpack.c.l.b16 %v2741
        %v3035 = vunpack.c.h.b16 %v2741
        %v3036 = vunpack.c.l.b16 %v2742
        %v3037 = vunpack.c.h.b16 %v2742
        %v3038 = vunpack.c.l.b16 %v2743
        %v3039 = vunpack.c.h.b16 %v2743
        %v3040 = vunpack.c.l.b16 %v2744
        %v3041 = vunpack.c.h.b16 %v2744
        %v3042 = vunpack.c.l.b16 %v2745
        %v3043 = vunpack.c.h.b16 %v2745
        %v3044 = vunpack.c.l.b16 %v2746
        %v3045 = vunpack.c.h.b16 %v2746
        %v3046 = vunpack.c.l.b16 %v2747
        %v3047 = vunpack.c.h.b16 %v2747
        %v3048 = vunpack.c.l.b16 %v2748
        %v3049 = vunpack.c.h.b16 %v2748
        %v3050 = vunpack.c.l.b16 %v2749
        %v3051 = vunpack.c.h.b16 %v2749
        %v3052 = vunpack.c.l.b16 %v2750
        %v3053 = vunpack.c.h.b16 %v2750
        %v3054 = vunpack.c.l.b16 %v2751
        %v3055 = vunpack.c.h.b16 %v2751
        %v3056 = vunpack.c.l.b16 %v2752
        %v3057 = vunpack.c.h.b16 %v2752
        %v3058 = vunpack.c.l.b16 %v2753
        %v3059 = vunpack.c.h.b16 %v2753
        %v3060 = vunpack.c.l.b16 %v2754
        %v3061 = vunpack.c.h.b16 %v2754
        %v3062 = vunpack.c.l.b16 %v2755
        %v3063 = vunpack.c.h.b16 %v2755
        %v3064 = vunpack.c.l.b16 %v2756
        %v3065 = vunpack.c.h.b16 %v2756
        %v3066 = vunpack.c.l.b16 %v2757
        %v3067 = vunpack.c.h.b16 %v2757
        %v3068 = vunpack.c.l.b16 %v2758
        %v3069 = vunpack.c.h.b16 %v2758
        %v3070 = vunpack.c.l.b16 %v2759
        %v3071 = vunpack.c.h.b16 %v2759
        %v3072 = vunpack.c.l.b16 %v2760
        %v3073 = vunpack.c.h.b16 %v2760
        %v3074 = vunpack.c.l.b16 %v2761
        %v3075 = vunpack.c.h.b16 %v2761
        %v3076 = vunpack.c.l.b16 %v2762
        %v3077 = vunpack.c.h.b16 %v2762
        %v3078 = vunpack.c.l.b16 %v2763
        %v3079 = vunpack.c.h.b16 %v2763
        %v3080 = vunpack.c.l.b16 %v2764
        %v3081 = vunpack.c.h.b16 %v2764
        %v3082 = vunpack.c.l.b16 %v2765
        %v3083 = vunpack.c.h.b16 %v2765
        %v3084 = vunpack.c.l.b16 %v2766
        %v3085 = vunpack.c.h.b16 %v2766
        %v3086 = vunpack.c.l.b16 %v2767
        %v3087 = vunpack.c.h.b16 %v2767
        %v3088 = vunpack.c.l.b16 %v2768
        %v3089 = vunpack.c.h.b16 %v2768
        %v3090 = vunpack.c.l.b16 %v2769
        %v3091 = vunpack.c.h.b16 %v2769
        %v3092 = vunpack.c.l.b16 %v2770
        %v3093 = vunpack.c.h.b16 %v2770
        %v3094 = vunpack.c.l.b16 %v2771
        %v3095 = vunpack.c.h.b16 %v2771
        %v3096 = vunpack.c.l.b16 %v2772
        %v3097 = vunpack.c.h.b16 %v2772
        %v3098 = vunpack.c.l.b16 %v2773
        %v3099 = vunpack.c.h.b16 %v2773
        %v3100 = vunpack.c.l.b16 %v2774
        %v3101 = vunpack.c.h.b16 %v2774
        %v3102 = vunpack.c.l.b16 %v2775
        %v3103 = vunpack.c.h.b16 %v2775
        %v3104 = vunpack.c.l.b16 %v2776
        %v3105 = vunpack.c.h.b16 %v2776
        %v3106 = vunpack.c.l.b16 %v2777
        %v3107 = vunpack.c.h.b16 %v2777
        %v3108 = vunpack.c.l.b16 %v2778
        %v3109 = vunpack.c.h.b16 %v2778
        %v3110 = vunpack.c.l.b16 %v2779
        %v3111 = vunpack.c.h.b16 %v2779
        %v3112 = vunpack.c.l.b16 %v2780
        %v3113 = vunpack.c.h.b16 %v2780
        %v3114 = vunpack.c.l.b16 %v2781
        %v3115 = vunpack.c.h.b16 %v2781
        %v3116 = vunpack.c.l.b16 %v2782
        %v3117 = vunpack.c.h.b16 %v2782
        %v3118 = vunpack.c.l.b16 %v2783
        %v3119 = vunpack.c.h.b16 %v2783
        %v3120 = vunpack.c.l.b16 %v2784
        %v3121 = vunpack.c.h.b16 %v2784
        %v3122 = vunpack.c.l.b16 %v2785
        %v3123 = vunpack.c.h.b16 %v2785
        %v3124 = vunpack.c.l.b16 %v2786
        %v3125 = vunpack.c.h.b16 %v2786
        %v3126 = vunpack.c.l.b16 %v2787
        %v3127 = vunpack.c.h.b16 %v2787
        %v3128 = vunpack.c.l.b16 %v2788
        %v3129 = vunpack.c.h.b16 %v2788
        %v3130 = vunpack.c.l.b16 %v2789
        %v3131 = vunpack.c.h.b16 %v2789
        %v3132 = vunpack.c.l.b16 %v2790
        %v3133 = vunpack.c.h.b16 %v2790
        %v3134 = vunpack.c.l.b16 %v2791
        %v3135 = vunpack.c.h.b16 %v2791
        %v3136 = vunpack.c.l.b16 %v2792
        %v3137 = vunpack.c.h.b16 %v2792
        %v3138 = vunpack.c.l.b16 %v2793
        %v3139 = vunpack.c.h.b16 %v2793
        %v3140 = vunpack.c.l.b16 %v2794
        %v3141 = vunpack.c.h.b16 %v2794
        %v3142 = vunpack.c.l.b16 %v2795
        %v3143 = vunpack.c.h.b16 %v2795
        %v3144 = vunpack.c.l.b16 %v2796
        %v3145 = vunpack.c.h.b16 %v2796
        %v3146 = vunpack.c.l.b16 %v2797
        %v3147 = vunpack.c.h.b16 %v2797
        %v3148 = vunpack.c.l.b16 %v2798
        %v3149 = vunpack.c.h.b16 %v2798
        %v3150 = vunpack.c.l.b16 %v2799
        %v3151 = vunpack.c.h.b16 %v2799
        %v3152 = vunpack.c.l.b16 %v2800
        %v3153 = vunpack.c.h.b16 %v2800
        %v3154 = vunpack.c.l.b16 %v2801
        %v3155 = vunpack.c.h.b16 %v2801
        %v3156 = vunpack.c.l.b16 %v2802
        %v3157 = vunpack.c.h.b16 %v2802
        %v3158 = vunpack.c.l.b16 %v2803
        %v3159 = vunpack.c.h.b16 %v2803
        %v3160 = vunpack.c.l.b16 %v2804
        %v3161 = vunpack.c.h.b16 %v2804
        %v3162 = vunpack.c.l.b16 %v2805
        %v3163 = vunpack.c.h.b16 %v2805
        %v3164 = vunpack.c.l.b16 %v2806
        %v3165 = vunpack.c.h.b16 %v2806
        %v3166 = vunpack.c.l.b16 %v2807
        %v3167 = vunpack.c.h.b16 %v2807
        %v3168 = vunpack.c.l.b16 %v2808
        %v3169 = vunpack.c.h.b16 %v2808
        %v3170 = vunpack.c.l.b16 %v2809
        %v3171 = vunpack.c.h.b16 %v2809
        %v3172 = vunpack.c.l.b16 %v2810
        %v3173 = vunpack.c.h.b16 %v2810
        %v3174 = vunpack.c.l.b16 %v2811
        %v3175 = vunpack.c.h.b16 %v2811
        %v3176 = vunpack.c.l.b16 %v2812
        %v3177 = vunpack.c.h.b16 %v2812
        %v3178 = vunpack.c.l.b16 %v2813
        %v3179 = vunpack.c.h.b16 %v2813
        %v3180 = vunpack.c.l.b16 %v2814
        %v3181 = vunpack.c.h.b16 %v2814
        %v3182 = vunpack.c.l.b16 %v2815
        %v3183 = vunpack.c.h.b16 %v2815
        %v3184 = vunpack.c.l.b16 %v2816
        %v3185 = vunpack.c.h.b16 %v2816
        %v3186 = vunpack.c.l.b16 %v2817
        %v3187 = vunpack.c.h.b16 %v2817
        %v3188 = vunpack.c.l.b16 %v2818
        %v3189 = vunpack.c.h.b16 %v2818
        %v3190 = vunpack.c.l.b16 %v2819
        %v3191 = vunpack.c.h.b16 %v2819
        %v3192 = vunpack.c.l.b16 %v2820
        %v3193 = vunpack.c.h.b16 %v2820
        %v3194 = vunpack.c.l.b16 %v2821
        %v3195 = vunpack.c.h.b16 %v2821
        %v3196 = vunpack.c.l.b16 %v2822
        %v3197 = vunpack.c.h.b16 %v2822
        %v3198 = vunpack.c.l.b16 %v2823
        %v3199 = vunpack.c.h.b16 %v2823
        %v3200 = vunpack.c.l.b16 %v2824
        %v3201 = vunpack.c.h.b16 %v2824
        %v3202 = vunpack.c.l.b16 %v2825
        %v3203 = vunpack.c.h.b16 %v2825
        %v3204 = vunpack.c.l.b16 %v2826
        %v3205 = vunpack.c.h.b16 %v2826
        %v3206 = vunpack.c.l.b16 %v2827
        %v3207 = vunpack.c.h.b16 %v2827
        %v3208 = vunpack.c.l.b16 %v2828
        %v3209 = vunpack.c.h.b16 %v2828
        %v3210 = vunpack.c.l.b16 %v2829
        %v3211 = vunpack.c.h.b16 %v2829
        %v3212 = vunpack.c.l.b16 %v2830
        %v3213 = vunpack.c.h.b16 %v2830
        %v3214 = vunpack.c.l.b16 %v2831
        %v3215 = vunpack.c.h.b16 %v2831
        %v3216 = vunpack.c.l.b16 %v2832
        %v3217 = vunpack.c.h.b16 %v2832
        %v3218 = vunpack.c.l.b16 %v2833
        %v3219 = vunpack.c.h.b16 %v2833
        %v3220 = vunpack.c.l.b16 %v2834
        %v3221 = vunpack.c.h.b16 %v2834
        %v3222 = vunpack.c.l.b16 %v2835
        %v3223 = vunpack.c.h.b16 %v2835
        %v3224 = vunpack.c.l.b16 %v2836
        %v3225 = vunpack.c.h.b16 %v2836
        %v3226 = vunpack.c.l.b16 %v2837
        %v3227 = vunpack.c.h.b16 %v2837
        %v3228 = vunpack.c.l.b16 %v2838
        %v3229 = vunpack.c.h.b16 %v2838
        %v3230 = vunpack.c.l.b16 %v2839
        %v3231 = vunpack.c.h.b16 %v2839
        %v3232 = vunpack.c.l.b16 %v2840
        %v3233 = vunpack.c.h.b16 %v2840
        %v3234 = vunpack.c.l.b16 %v2841
        %v3235 = vunpack.c.h.b16 %v2841
        %v3236 = vunpack.c.l.b16 %v2842
        %v3237 = vunpack.c.h.b16 %v2842
        %v3238 = vunpack.c.l.b16 %v2843
        %v3239 = vunpack.c.h.b16 %v2843
        %v3240 = vunpack.c.l.b16 %v2844
        %v3241 = vunpack.c.h.b16 %v2844
        %v3242 = vunpack.c.l.b16 %v2845
        %v3243 = vunpack.c.h.b16 %v2845
        %v3244 = vunpack.c.l.b16 %v2846
        %v3245 = vunpack.c.h.b16 %v2846
        %v3246 = vunpack.c.l.b16 %v2847
        %v3247 = vunpack.c.h.b16 %v2847
        %v3248 = vunpack.c.l.b16 %v2848
        %v3249 = vunpack.c.h.b16 %v2848
        %v3250 = vunpack.c.l.b16 %v2849
        %v3251 = vunpack.c.h.b16 %v2849
        %v3252 = vunpack.c.l.b16 %v2850
        %v3253 = vunpack.c.h.b16 %v2850
        %v3254 = vunpack.c.l.b16 %v2851
        %v3255 = vunpack.c.h.b16 %v2851
        %v3256 = vunpack.c.l.b16 %v2852
        %v3257 = vunpack.c.h.b16 %v2852
        %v3258 = vpack.c.b16 %v3006, %v3002
        %v3259 = vpack.c.b16 %v3007, %v3003
        %v3260 = vpack.c.b16 %v3008, %v3004
        %v3261 = vpack.c.b16 %v3009, %v3005
        %v3262 = vpack.c.b16 %v3014, %v3010
        %v3263 = vpack.c.b16 %v3015, %v3011
        %v3264 = vpack.c.b16 %v3016, %v3012
        %v3265 = vpack.c.b16 %v3017, %v3013
        %v3266 = vpack.c.b16 %v3022, %v3018
        %v3267 = vpack.c.b16 %v3023, %v3019
        %v3268 = vpack.c.b16 %v3024, %v3020
        %v3269 = vpack.c.b16 %v3025, %v3021
        %v3270 = vpack.c.b16 %v3030, %v3026
        %v3271 = vpack.c.b16 %v3031, %v3027
        %v3272 = vpack.c.b16 %v3032, %v3028
        %v3273 = vpack.c.b16 %v3033, %v3029
        %v3274 = vpack.c.b16 %v3038, %v3034
        %v3275 = vpack.c.b16 %v3039, %v3035
        %v3276 = vpack.c.b16 %v3040, %v3036
        %v3277 = vpack.c.b16 %v3041, %v3037
        %v3278 = vpack.c.b16 %v3046, %v3042
        %v3279 = vpack.c.b16 %v3047, %v3043
        %v3280 = vpack.c.b16 %v3048, %v3044
        %v3281 = vpack.c.b16 %v3049, %v3045
        %v3282 = vpack.c.b16 %v3054, %v3050
        %v3283 = vpack.c.b16 %v3055, %v3051
        %v3284 = vpack.c.b16 %v3056, %v3052
        %v3285 = vpack.c.b16 %v3057, %v3053
        %v3286 = vpack.c.b16 %v3062, %v3058
        %v3287 = vpack.c.b16 %v3063, %v3059
        %v3288 = vpack.c.b16 %v3064, %v3060
        %v3289 = vpack.c.b16 %v3065, %v3061
        %v3290 = vpack.c.b16 %v3070, %v3066
        %v3291 = vpack.c.b16 %v3071, %v3067
        %v3292 = vpack.c.b16 %v3072, %v3068
        %v3293 = vpack.c.b16 %v3073, %v3069
        %v3294 = vpack.c.b16 %v3078, %v3074
        %v3295 = vpack.c.b16 %v3079, %v3075
        %v3296 = vpack.c.b16 %v3080, %v3076
        %v3297 = vpack.c.b16 %v3081, %v3077
        %v3298 = vpack.c.b16 %v3086, %v3082
        %v3299 = vpack.c.b16 %v3087, %v3083
        %v3300 = vpack.c.b16 %v3088, %v3084
        %v3301 = vpack.c.b16 %v3089, %v3085
        %v3302 = vpack.c.b16 %v3094, %v3090
        %v3303 = vpack.c.b16 %v3095, %v3091
        %v3304 = vpack.c.b16 %v3096, %v3092
        %v3305 = vpack.c.b16 %v3097, %v3093
        %v3306 = vpack.c.b16 %v3102, %v3098
        %v3307 = vpack.c.b16 %v3103, %v3099
        %v3308 = vpack.c.b16 %v3104, %v3100
        %v3309 = vpack.c.b16 %v3105, %v3101
        %v3310 = vpack.c.b16 %v3110, %v3106
        %v3311 = vpack.c.b16 %v3111, %v3107
        %v3312 = vpack.c.b16 %v3112, %v3108
        %v3313 = vpack.c.b16 %v3113, %v3109
        %v3314 = vpack.c.b16 %v3118, %v3114
        %v3315 = vpack.c.b16 %v3119, %v3115
        %v3316 = vpack.c.b16 %v3120, %v3116
        %v3317 = vpack.c.b16 %v3121, %v3117
        %v3318 = vpack.c.b16 %v3126, %v3122
        %v3319 = vpack.c.b16 %v3127, %v3123
        %v3320 = vpack.c.b16 %v3128, %v3124
        %v3321 = vpack.c.b16 %v3129, %v3125
        %v3322 = vpack.c.b16 %v3134, %v3130
        %v3323 = vpack.c.b16 %v3135, %v3131
        %v3324 = vpack.c.b16 %v3136, %v3132
        %v3325 = vpack.c.b16 %v3137, %v3133
        %v3326 = vpack.c.b16 %v3142, %v3138
        %v3327 = vpack.c.b16 %v3143, %v3139
        %v3328 = vpack.c.b16 %v3144, %v3140
        %v3329 = vpack.c.b16 %v3145, %v3141
        %v3330 = vpack.c.b16 %v3150, %v3146
        %v3331 = vpack.c.b16 %v3151, %v3147
        %v3332 = vpack.c.b16 %v3152, %v3148
        %v3333 = vpack.c.b16 %v3153, %v3149
        %v3334 = vpack.c.b16 %v3158, %v3154
        %v3335 = vpack.c.b16 %v3159, %v3155
        %v3336 = vpack.c.b16 %v3160, %v3156
        %v3337 = vpack.c.b16 %v3161, %v3157
        %v3338 = vpack.c.b16 %v3166, %v3162
        %v3339 = vpack.c.b16 %v3167, %v3163
        %v3340 = vpack.c.b16 %v3168, %v3164
        %v3341 = vpack.c.b16 %v3169, %v3165
        %v3342 = vpack.c.b16 %v3174, %v3170
        %v3343 = vpack.c.b16 %v3175, %v3171
        %v3344 = vpack.c.b16 %v3176, %v3172
        %v3345 = vpack.c.b16 %v3177, %v3173
        %v3346 = vpack.c.b16 %v3182, %v3178
        %v3347 = vpack.c.b16 %v3183, %v3179
        %v3348 = vpack.c.b16 %v3184, %v3180
        %v3349 = vpack.c.b16 %v3185, %v3181
        %v3350 = vpack.c.b16 %v3190, %v3186
        %v3351 = vpack.c.b16 %v3191, %v3187
        %v3352 = vpack.c.b16 %v3192, %v3188
        %v3353 = vpack.c.b16 %v3193, %v3189
        %v3354 = vpack.c.b16 %v3198, %v3194
        %v3355 = vpack.c.b16 %v3199, %v3195
        %v3356 = vpack.c.b16 %v3200, %v3196
        %v3357 = vpack.c.b16 %v3201, %v3197
        %v3358 = vpack.c.b16 %v3206, %v3202
        %v3359 = vpack.c.b16 %v3207, %v3203
        %v3360 = vpack.c.b16 %v3208, %v3204
        %v3361 = vpack.c.b16 %v3209, %v3205
        %v3362 = vpack.c.b16 %v3214, %v3210
        %v3363 = vpack.c.b16 %v3215, %v3211
        %v3364 = vpack.c.b16 %v3216, %v3212
        %v3365 = vpack.c.b16 %v3217, %v3213
        %v3366 = vpack.c.b16 %v3222, %v3218
        %v3367 = vpack.c.b16 %v3223, %v3219
        %v3368 = vpack.c.b16 %v3224, %v3220
        %v3369 = vpack.c.b16 %v3225, %v3221
        %v3370 = vpack.c.b16 %v3230, %v3226
        %v3371 = vpack.c.b16 %v3231, %v3227
        %v3372 = vpack.c.b16 %v3232, %v3228
        %v3373 = vpack.c.b16 %v3233, %v3229
        %v3374 = vpack.c.b16 %v3238, %v3234
        %v3375 = vpack.c.b16 %v3239, %v3235
        %v3376 = vpack.c.b16 %v3240, %v3236
        %v3377 = vpack.c.b16 %v3241, %v3237
        %v3378 = vpack.c.b16 %v3246, %v3242
        %v3379 = vpack.c.b16 %v3247, %v3243
        %v3380 = vpack.c.b16 %v3248, %v3244
        %v3381 = vpack.c.b16 %v3249, %v3245
        %v3382 = vpack.c.b16 %v3254, %v3250
        %v3383 = vpack.c.b16 %v3255, %v3251
        %v3384 = vpack.c.b16 %v3256, %v3252
        %v3385 = vpack.c.b16 %v3257, %v3253
        %3514 = vmatprep.subr.bf16.mxu0 %v3259
        %3515 = vmatpush1.bf16.msra.mxu0 %v3258
        %3516 = vmatprep.subr.bf16.mxu0 %v3263
        %3517 = vmatpush1.bf16.msra.mxu0 %v3262
        %3518 = vmatprep.subr.bf16.mxu0 %v3267
        %3519 = vmatpush1.bf16.msra.mxu0 %v3266
        %3520 = vmatprep.subr.bf16.mxu0 %v3271
        %3521 = vmatpush1.bf16.msra.mxu0 %v3270
        %3522 = vmatprep.subr.bf16.mxu0 %v3275
        %3523 = vmatpush1.bf16.msra.mxu0 %v3274
        %3524 = vmatprep.subr.bf16.mxu0 %v3279
        %3525 = vmatpush1.bf16.msra.mxu0 %v3278
        %3526 = vmatprep.subr.bf16.mxu0 %v3283
        %3527 = vmatpush1.bf16.msra.mxu0 %v3282
        %3528 = vmatprep.subr.bf16.mxu0 %v3287
        %3529 = vmatpush1.bf16.msra.mxu0 %v3286
        %3530 = vmatprep.subr.bf16.mxu0 %v3291
        %3531 = vmatpush1.bf16.msra.mxu0 %v3290
        %3532 = vmatprep.subr.bf16.mxu0 %v3295
        %3533 = vmatpush1.bf16.msra.mxu0 %v3294
        %3534 = vmatprep.subr.bf16.mxu0 %v3299
        %3535 = vmatpush1.bf16.msra.mxu0 %v3298
        %3536 = vmatprep.subr.bf16.mxu0 %v3303
        %3537 = vmatpush1.bf16.msra.mxu0 %v3302
        %3538 = vmatprep.subr.bf16.mxu0 %v3307
        %3539 = vmatpush1.bf16.msra.mxu0 %v3306
        %3540 = vmatprep.subr.bf16.mxu0 %v3311
        %3541 = vmatpush1.bf16.msra.mxu0 %v3310
        %3542 = vmatprep.subr.bf16.mxu0 %v3315
        %3543 = vmatpush1.bf16.msra.mxu0 %v3314
        %3544 = vmatprep.subr.bf16.mxu0 %v3319
        %3545 = vmatpush1.bf16.msra.mxu0 %v3318
        %3546 = vmatprep.mubr.bf16.mxu0 %v2662
        %3547 = vmatmul.mubr.bf16.gmra.mrb[0].mxu0 %v2661
        %v3548 = vpop.f32.mrb[0].mxu0
        %v3549 = vadd.f32 %v2857, %v3548
        %v3550 = vpop.f32.mrb[0].mxu0
        %v3551 = vadd.f32 %v2861, %v3550
        %v3552 = vpop.f32.mrb[0].mxu0
        %v3553 = vadd.f32 %v2857, %v3552
        %v3554 = vpop.f32.mrb[0].mxu0
        %v3555 = vadd.f32 %v2861, %v3554
        %3556 = vmatprep.mubr.bf16.mxu0 %v2666
        %3557 = vmatmul.mubr.bf16.gmra.mrb[0].mxu0 %v2665
        %v3558 = vpop.f32.mrb[0].mxu0
        %v3559 = vadd.f32 %v2857, %v3558
        %v3560 = vpop.f32.mrb[0].mxu0
        %v3561 = vadd.f32 %v2861, %v3560
        %v3562 = vpop.f32.mrb[0].mxu0
        %v3563 = vadd.f32 %v2857, %v3562
        %v3564 = vpop.f32.mrb[0].mxu0
        %v3565 = vadd.f32 %v2861, %v3564
        %3566 = vmatprep.mubr.bf16.mxu0 %v2670
        %3567 = vmatmul.mubr.bf16.gmra.mrb[0].mxu0 %v2669
        %v3568 = vpop.f32.mrb[0].mxu0
        %v3569 = vadd.f32 %v2857, %v3568
        %v3570 = vpop.f32.mrb[0].mxu0
        %v3571 = vadd.f32 %v2861, %v3570
        %v3572 = vpop.f32.mrb[0].mxu0
        %v3573 = vadd.f32 %v2857, %v3572
        %v3574 = vpop.f32.mrb[0].mxu0
        %v3575 = vadd.f32 %v2861, %v3574
        %3576 = vmatprep.mubr.bf16.mxu0 %v2674
        %3577 = vmatmul.mubr.bf16.gmra.mrb[0].mxu0 %v2673
        %v3578 = vpop.f32.mrb[0].mxu0
        %v3579 = vadd.f32 %v2857, %v3578
        %v3580 = vpop.f32.mrb[0].mxu0
        %v3581 = vadd.f32 %v2861, %v3580
        %v3582 = vpop.f32.mrb[0].mxu0
        %v3583 = vadd.f32 %v2857, %v3582
        %v3584 = vpop.f32.mrb[0].mxu0
        %v3585 = vadd.f32 %v2861, %v3584
        %3586 = vmatprep.mubr.bf16.mxu0 %v2678
        %3587 = vmatmul.mubr.bf16.gmra.mrb[0].mxu0 %v2677
        %v3588 = vpop.f32.mrb[0].mxu0
        %v3589 = vadd.f32 %v2857, %v3588
        %v3590 = vpop.f32.mrb[0].mxu0
        %v3591 = vadd.f32 %v2861, %v3590
        %v3592 = vpop.f32.mrb[0].mxu0
        %v3593 = vadd.f32 %v2857, %v3592
        %v3594 = vpop.f32.mrb[0].mxu0
        %v3595 = vadd.f32 %v2861, %v3594
        %3596 = vmatprep.mubr.bf16.mxu0 %v2682
        %3597 = vmatmul.mubr.bf16.gmra.mrb[0].mxu0 %v2681
        %v3598 = vpop.f32.mrb[0].mxu0
        %v3599 = vadd.f32 %v2857, %v3598
        %v3600 = vpop.f32.mrb[0].mxu0
        %v3601 = vadd.f32 %v2861, %v3600
        %v3602 = vpop.f32.mrb[0].mxu0
        %v3603 = vadd.f32 %v2857, %v3602
        %v3604 = vpop.f32.mrb[0].mxu0
        %v3605 = vadd.f32 %v2861, %v3604
        %3606 = vmatprep.mubr.bf16.mxu0 %v2686
        %3607 = vmatmul.mubr.bf16.gmra.mrb[0].mxu0 %v2685
        %v3608 = vpop.f32.mrb[0].mxu0
        %v3609 = vadd.f32 %v2857, %v3608
        %v3610 = vpop.f32.mrb[0].mxu0
        %v3611 = vadd.f32 %v2861, %v3610
        %v3612 = vpop.f32.mrb[0].mxu0
        %v3613 = vadd.f32 %v2857, %v3612
        %v3614 = vpop.f32.mrb[0].mxu0
        %v3615 = vadd.f32 %v2861, %v3614
        %3616 = vmatprep.mubr.bf16.mxu0 %v2690
        %3617 = vmatmul.mubr.bf16.gmra.mrb[0].mxu0 %v2689
        %v3618 = vpop.f32.mrb[0].mxu0
        %v3619 = vadd.f32 %v2857, %v3618
        %v3620 = vpop.f32.mrb[0].mxu0
        %v3621 = vadd.f32 %v2861, %v3620
        %v3622 = vpop.f32.mrb[0].mxu0
        %v3623 = vadd.f32 %v2857, %v3622
        %v3624 = vpop.f32.mrb[0].mxu0
        %v3625 = vadd.f32 %v2861, %v3624
        %3626 = vmatprep.mubr.bf16.mxu0 %v2694
        %3627 = vmatmul.mubr.bf16.gmra.mrb[0].mxu0 %v2693
        %v3628 = vpop.f32.mrb[0].mxu0
        %v3629 = vadd.f32 %v2857, %v3628
        %v3630 = vpop.f32.mrb[0].mxu0
        %v3631 = vadd.f32 %v2861, %v3630
        %v3632 = vpop.f32.mrb[0].mxu0
        %v3633 = vadd.f32 %v2857, %v3632
        %v3634 = vpop.f32.mrb[0].mxu0
        %v3635 = vadd.f32 %v2861, %v3634
        %3636 = vmatprep.mubr.bf16.mxu0 %v2698
        %3637 = vmatmul.mubr.bf16.gmra.mrb[0].mxu0 %v2697
        %v3638 = vpop.f32.mrb[0].mxu0
        %v3639 = vadd.f32 %v2857, %v3638
        %v3640 = vpop.f32.mrb[0].mxu0
        %v3641 = vadd.f32 %v2861, %v3640
        %v3642 = vpop.f32.mrb[0].mxu0
        %v3643 = vadd.f32 %v2857, %v3642
        %v3644 = vpop.f32.mrb[0].mxu0
        %v3645 = vadd.f32 %v2861, %v3644
        %3646 = vmatprep.mubr.bf16.mxu0 %v2702
        %3647 = vmatmul.mubr.bf16.gmra.mrb[0].mxu0 %v2701
        %v3648 = vpop.f32.mrb[0].mxu0
        %v3649 = vadd.f32 %v2857, %v3648
        %v3650 = vpop.f32.mrb[0].mxu0
        %v3651 = vadd.f32 %v2861, %v3650
        %v3652 = vpop.f32.mrb[0].mxu0
        %v3653 = vadd.f32 %v2857, %v3652
        %v3654 = vpop.f32.mrb[0].mxu0
        %v3655 = vadd.f32 %v2861, %v3654
        %3656 = vmatprep.mubr.bf16.mxu0 %v2706
        %3657 = vmatmul.mubr.bf16.gmra.mrb[0].mxu0 %v2705
        %v3658 = vpop.f32.mrb[0].mxu0
        %v3659 = vadd.f32 %v2857, %v3658
        %v3660 = vpop.f32.mrb[0].mxu0
        %v3661 = vadd.f32 %v2861, %v3660
        %v3662 = vpop.f32.mrb[0].mxu0
        %v3663 = vadd.f32 %v2857, %v3662
        %v3664 = vpop.f32.mrb[0].mxu0
        %v3665 = vadd.f32 %v2861, %v3664
        %3666 = vmatprep.mubr.bf16.mxu0 %v2710
        %3667 = vmatmul.mubr.bf16.gmra.mrb[0].mxu0 %v2709
        %v3668 = vpop.f32.mrb[0].mxu0
        %v3669 = vadd.f32 %v2857, %v3668
        %v3670 = vpop.f32.mrb[0].mxu0
        %v3671 = vadd.f32 %v2861, %v3670
        %v3672 = vpop.f32.mrb[0].mxu0
        %v3673 = vadd.f32 %v2857, %v3672
        %v3674 = vpop.f32.mrb[0].mxu0
        %v3675 = vadd.f32 %v2861, %v3674
        %3676 = vmatprep.mubr.bf16.mxu0 %v2714
        %3677 = vmatmul.mubr.bf16.gmra.mrb[0].mxu0 %v2713
        %v3678 = vpop.f32.mrb[0].mxu0
        %v3679 = vadd.f32 %v2857, %v3678
        %v3680 = vpop.f32.mrb[0].mxu0
        %v3681 = vadd.f32 %v2861, %v3680
        %v3682 = vpop.f32.mrb[0].mxu0
        %v3683 = vadd.f32 %v2857, %v3682
        %v3684 = vpop.f32.mrb[0].mxu0
        %v3685 = vadd.f32 %v2861, %v3684
        %3686 = vmatprep.mubr.bf16.mxu0 %v2718
        %3687 = vmatmul.mubr.bf16.gmra.mrb[0].mxu0 %v2717
        %v3688 = vpop.f32.mrb[0].mxu0
        %v3689 = vadd.f32 %v2857, %v3688
        %v3690 = vpop.f32.mrb[0].mxu0
        %v3691 = vadd.f32 %v2861, %v3690
        %v3692 = vpop.f32.mrb[0].mxu0
        %v3693 = vadd.f32 %v2857, %v3692
        %v3694 = vpop.f32.mrb[0].mxu0
        %v3695 = vadd.f32 %v2861, %v3694
        %3696 = vmatprep.mubr.bf16.mxu0 %v2722
        %3697 = vmatmul.mubr.bf16.gmra.mrb[0].mxu0 %v2721
        %v3698 = vpop.f32.mrb[0].mxu0
        %v3699 = vadd.f32 %v2857, %v3698
        %v3700 = vpop.f32.mrb[0].mxu0
        %v3701 = vadd.f32 %v2861, %v3700
        %v3702 = vpop.f32.mrb[0].mxu0
        %v3703 = vadd.f32 %v2857, %v3702
        %v3704 = vpop.f32.mrb[0].mxu0
        %v3705 = vadd.f32 %v2861, %v3704
        %3706 = vdwg.mxu0
        %3707 = vmatprep.subr.bf16.mxu0 %v3323
        %3708 = vmatpush1.bf16.msra.mxu0 %v3322
        %3709 = vmatprep.subr.bf16.mxu0 %v3327
        %3710 = vmatpush1.bf16.msra.mxu0 %v3326
        %3711 = vmatprep.subr.bf16.mxu0 %v3331
        %3712 = vmatpush1.bf16.msra.mxu0 %v3330
        %3713 = vmatprep.subr.bf16.mxu0 %v3335
        %3714 = vmatpush1.bf16.msra.mxu0 %v3334
        %3715 = vmatprep.subr.bf16.mxu0 %v3339
        %3716 = vmatpush1.bf16.msra.mxu0 %v3338
        %3717 = vmatprep.subr.bf16.mxu0 %v3343
        %3718 = vmatpush1.bf16.msra.mxu0 %v3342
        %3719 = vmatprep.subr.bf16.mxu0 %v3347
        %3720 = vmatpush1.bf16.msra.mxu0 %v3346
        %3721 = vmatprep.subr.bf16.mxu0 %v3351
        %3722 = vmatpush1.bf16.msra.mxu0 %v3350
        %3723 = vmatprep.subr.bf16.mxu0 %v3355
        %3724 = vmatpush1.bf16.msra.mxu0 %v3354
        %3725 = vmatprep.subr.bf16.mxu0 %v3359
        %3726 = vmatpush1.bf16.msra.mxu0 %v3358
        %3727 = vmatprep.subr.bf16.mxu0 %v3363
        %3728 = vmatpush1.bf16.msra.mxu0 %v3362
        %3729 = vmatprep.subr.bf16.mxu0 %v3367
        %3730 = vmatpush1.bf16.msra.mxu0 %v3366
        %3731 = vmatprep.subr.bf16.mxu0 %v3371
        %3732 = vmatpush1.bf16.msra.mxu0 %v3370
        %3733 = vmatprep.subr.bf16.mxu0 %v3375
        %3734 = vmatpush1.bf16.msra.mxu0 %v3374
        %3735 = vmatprep.subr.bf16.mxu0 %v3379
        %3736 = vmatpush1.bf16.msra.mxu0 %v3378
        %3737 = vmatprep.subr.bf16.mxu0 %v3383
        %3738 = vmatpush1.bf16.msra.mxu0 %v3382
        %3739 = vmatprep.mubr.bf16.mxu0 %v2664
        %3740 = vmatmul.mubr.bf16.gmra.mrb[0].mxu0 %v2663
        %v3741 = vpop.f32.mrb[0].mxu0
        %v3742 = vadd.f32 %v3549, %v3741
        %v3743 = vpop.f32.mrb[0].mxu0
        %v3744 = vadd.f32 %v3551, %v3743
        %v3745 = vpop.f32.mrb[0].mxu0
        %v3746 = vadd.f32 %v3553, %v3745
        %v3747 = vpop.f32.mrb[0].mxu0
        %v3748 = vadd.f32 %v3555, %v3747
        %3749 = vmatprep.mubr.bf16.mxu0 %v2668
        %3750 = vmatmul.mubr.bf16.gmra.mrb[0].mxu0 %v2667
        %v3751 = vpop.f32.mrb[0].mxu0
        %v3752 = vadd.f32 %v3559, %v3751
        %v3753 = vpop.f32.mrb[0].mxu0
        %v3754 = vadd.f32 %v3561, %v3753
        %v3755 = vpop.f32.mrb[0].mxu0
        %v3756 = vadd.f32 %v3563, %v3755
        %v3757 = vpop.f32.mrb[0].mxu0
        %v3758 = vadd.f32 %v3565, %v3757
        %3759 = vmatprep.mubr.bf16.mxu0 %v2672
        %3760 = vmatmul.mubr.bf16.gmra.mrb[0].mxu0 %v2671
        %v3761 = vpop.f32.mrb[0].mxu0
        %v3762 = vadd.f32 %v3569, %v3761
        %v3763 = vpop.f32.mrb[0].mxu0
        %v3764 = vadd.f32 %v3571, %v3763
        %v3765 = vpop.f32.mrb[0].mxu0
        %v3766 = vadd.f32 %v3573, %v3765
        %v3767 = vpop.f32.mrb[0].mxu0
        %v3768 = vadd.f32 %v3575, %v3767
        %3769 = vmatprep.mubr.bf16.mxu0 %v2676
        %3770 = vmatmul.mubr.bf16.gmra.mrb[0].mxu0 %v2675
        %v3771 = vpop.f32.mrb[0].mxu0
        %v3772 = vadd.f32 %v3579, %v3771
        %v3773 = vpop.f32.mrb[0].mxu0
        %v3774 = vadd.f32 %v3581, %v3773
        %v3775 = vpop.f32.mrb[0].mxu0
        %v3776 = vadd.f32 %v3583, %v3775
        %v3777 = vpop.f32.mrb[0].mxu0
        %v3778 = vadd.f32 %v3585, %v3777
        %3779 = vmatprep.mubr.bf16.mxu0 %v2680
        %3780 = vmatmul.mubr.bf16.gmra.mrb[0].mxu0 %v2679
        %v3781 = vpop.f32.mrb[0].mxu0
        %v3782 = vadd.f32 %v3589, %v3781
        %v3783 = vpop.f32.mrb[0].mxu0
        %v3784 = vadd.f32 %v3591, %v3783
        %v3785 = vpop.f32.mrb[0].mxu0
        %v3786 = vadd.f32 %v3593, %v3785
        %v3787 = vpop.f32.mrb[0].mxu0
        %v3788 = vadd.f32 %v3595, %v3787
        %3789 = vmatprep.mubr.bf16.mxu0 %v2684
        %3790 = vmatmul.mubr.bf16.gmra.mrb[0].mxu0 %v2683
        %v3791 = vpop.f32.mrb[0].mxu0
        %v3792 = vadd.f32 %v3599, %v3791
        %v3793 = vpop.f32.mrb[0].mxu0
        %v3794 = vadd.f32 %v3601, %v3793
        %v3795 = vpop.f32.mrb[0].mxu0
        %v3796 = vadd.f32 %v3603, %v3795
        %v3797 = vpop.f32.mrb[0].mxu0
        %v3798 = vadd.f32 %v3605, %v3797
        %3799 = vmatprep.mubr.bf16.mxu0 %v2688
        %3800 = vmatmul.mubr.bf16.gmra.mrb[0].mxu0 %v2687
        %v3801 = vpop.f32.mrb[0].mxu0
        %v3802 = vadd.f32 %v3609, %v3801
        %v3803 = vpop.f32.mrb[0].mxu0
        %v3804 = vadd.f32 %v3611, %v3803
        %v3805 = vpop.f32.mrb[0].mxu0
        %v3806 = vadd.f32 %v3613, %v3805
        %v3807 = vpop.f32.mrb[0].mxu0
        %v3808 = vadd.f32 %v3615, %v3807
        %3809 = vmatprep.mubr.bf16.mxu0 %v2692
        %3810 = vmatmul.mubr.bf16.gmra.mrb[0].mxu0 %v2691
        %v3811 = vpop.f32.mrb[0].mxu0
        %v3812 = vadd.f32 %v3619, %v3811
        %v3813 = vpop.f32.mrb[0].mxu0
        %v3814 = vadd.f32 %v3621, %v3813
        %v3815 = vpop.f32.mrb[0].mxu0
        %v3816 = vadd.f32 %v3623, %v3815
        %v3817 = vpop.f32.mrb[0].mxu0
        %v3818 = vadd.f32 %v3625, %v3817
        %3819 = vmatprep.mubr.bf16.mxu0 %v2696
        %3820 = vmatmul.mubr.bf16.gmra.mrb[0].mxu0 %v2695
        %v3821 = vpop.f32.mrb[0].mxu0
        %v3822 = vadd.f32 %v3629, %v3821
        %v3823 = vpop.f32.mrb[0].mxu0
        %v3824 = vadd.f32 %v3631, %v3823
        %v3825 = vpop.f32.mrb[0].mxu0
        %v3826 = vadd.f32 %v3633, %v3825
        %v3827 = vpop.f32.mrb[0].mxu0
        %v3828 = vadd.f32 %v3635, %v3827
        %3829 = vmatprep.mubr.bf16.mxu0 %v2700
        %3830 = vmatmul.mubr.bf16.gmra.mrb[0].mxu0 %v2699
        %v3831 = vpop.f32.mrb[0].mxu0
        %v3832 = vadd.f32 %v3639, %v3831
        %v3833 = vpop.f32.mrb[0].mxu0
        %v3834 = vadd.f32 %v3641, %v3833
        %v3835 = vpop.f32.mrb[0].mxu0
        %v3836 = vadd.f32 %v3643, %v3835
        %v3837 = vpop.f32.mrb[0].mxu0
        %v3838 = vadd.f32 %v3645, %v3837
        %3839 = vmatprep.mubr.bf16.mxu0 %v2704
        %3840 = vmatmul.mubr.bf16.gmra.mrb[0].mxu0 %v2703
        %v3841 = vpop.f32.mrb[0].mxu0
        %v3842 = vadd.f32 %v3649, %v3841
        %v3843 = vpop.f32.mrb[0].mxu0
        %v3844 = vadd.f32 %v3651, %v3843
        %v3845 = vpop.f32.mrb[0].mxu0
        %v3846 = vadd.f32 %v3653, %v3845
        %v3847 = vpop.f32.mrb[0].mxu0
        %v3848 = vadd.f32 %v3655, %v3847
        %3849 = vmatprep.mubr.bf16.mxu0 %v2708
        %3850 = vmatmul.mubr.bf16.gmra.mrb[0].mxu0 %v2707
        %v3851 = vpop.f32.mrb[0].mxu0
        %v3852 = vadd.f32 %v3659, %v3851
        %v3853 = vpop.f32.mrb[0].mxu0
        %v3854 = vadd.f32 %v3661, %v3853
        %v3855 = vpop.f32.mrb[0].mxu0
        %v3856 = vadd.f32 %v3663, %v3855
        %v3857 = vpop.f32.mrb[0].mxu0
        %v3858 = vadd.f32 %v3665, %v3857
        %3859 = vmatprep.mubr.bf16.mxu0 %v2712
        %3860 = vmatmul.mubr.bf16.gmra.mrb[0].mxu0 %v2711
        %v3861 = vpop.f32.mrb[0].mxu0
        %v3862 = vadd.f32 %v3669, %v3861
        %v3863 = vpop.f32.mrb[0].mxu0
        %v3864 = vadd.f32 %v3671, %v3863
        %v3865 = vpop.f32.mrb[0].mxu0
        %v3866 = vadd.f32 %v3673, %v3865
        %v3867 = vpop.f32.mrb[0].mxu0
        %v3868 = vadd.f32 %v3675, %v3867
        %3869 = vmatprep.mubr.bf16.mxu0 %v2716
        %3870 = vmatmul.mubr.bf16.gmra.mrb[0].mxu0 %v2715
        %v3871 = vpop.f32.mrb[0].mxu0
        %v3872 = vadd.f32 %v3679, %v3871
        %v3873 = vpop.f32.mrb[0].mxu0
        %v3874 = vadd.f32 %v3681, %v3873
        %v3875 = vpop.f32.mrb[0].mxu0
        %v3876 = vadd.f32 %v3683, %v3875
        %v3877 = vpop.f32.mrb[0].mxu0
        %v3878 = vadd.f32 %v3685, %v3877
        %3879 = vmatprep.mubr.bf16.mxu0 %v2720
        %3880 = vmatmul.mubr.bf16.gmra.mrb[0].mxu0 %v2719
        %v3881 = vpop.f32.mrb[0].mxu0
        %v3882 = vadd.f32 %v3689, %v3881
        %v3883 = vpop.f32.mrb[0].mxu0
        %v3884 = vadd.f32 %v3691, %v3883
        %v3885 = vpop.f32.mrb[0].mxu0
        %v3886 = vadd.f32 %v3693, %v3885
        %v3887 = vpop.f32.mrb[0].mxu0
        %v3888 = vadd.f32 %v3695, %v3887
        %3889 = vmatprep.mubr.bf16.mxu0 %v2724
        %3890 = vmatmul.mubr.bf16.gmra.mrb[0].mxu0 %v2723
        %v3891 = vpop.f32.mrb[0].mxu0
        %v3892 = vadd.f32 %v3699, %v3891
        %v3893 = vpop.f32.mrb[0].mxu0
        %v3894 = vadd.f32 %v3701, %v3893
        %v3895 = vpop.f32.mrb[0].mxu0
        %v3896 = vadd.f32 %v3703, %v3895
        %v3897 = vpop.f32.mrb[0].mxu0
        %v3898 = vadd.f32 %v3705, %v3897
        %3899 = vdwg.mxu0
        %3900 = vmatprep.subr.bf16.mxu0 %v3261
        %3901 = vmatpush1.bf16.msra.mxu0 %v3260
        %3902 = vmatprep.subr.bf16.mxu0 %v3265
        %3903 = vmatpush1.bf16.msra.mxu0 %v3264
        %3904 = vmatprep.subr.bf16.mxu0 %v3269
        %3905 = vmatpush1.bf16.msra.mxu0 %v3268
        %3906 = vmatprep.subr.bf16.mxu0 %v3273
        %3907 = vmatpush1.bf16.msra.mxu0 %v3272
        %3908 = vmatprep.subr.bf16.mxu0 %v3277
        %3909 = vmatpush1.bf16.msra.mxu0 %v3276
        %3910 = vmatprep.subr.bf16.mxu0 %v3281
        %3911 = vmatpush1.bf16.msra.mxu0 %v3280
        %3912 = vmatprep.subr.bf16.mxu0 %v3285
        %3913 = vmatpush1.bf16.msra.mxu0 %v3284
        %3914 = vmatprep.subr.bf16.mxu0 %v3289
        %3915 = vmatpush1.bf16.msra.mxu0 %v3288
        %3916 = vmatprep.subr.bf16.mxu0 %v3293
        %3917 = vmatpush1.bf16.msra.mxu0 %v3292
        %3918 = vmatprep.subr.bf16.mxu0 %v3297
        %3919 = vmatpush1.bf16.msra.mxu0 %v3296
        %3920 = vmatprep.subr.bf16.mxu0 %v3301
        %3921 = vmatpush1.bf16.msra.mxu0 %v3300
        %3922 = vmatprep.subr.bf16.mxu0 %v3305
        %3923 = vmatpush1.bf16.msra.mxu0 %v3304
        %3924 = vmatprep.subr.bf16.mxu0 %v3309
        %3925 = vmatpush1.bf16.msra.mxu0 %v3308
        %3926 = vmatprep.subr.bf16.mxu0 %v3313
        %3927 = vmatpush1.bf16.msra.mxu0 %v3312
        %3928 = vmatprep.subr.bf16.mxu0 %v3317
        %3929 = vmatpush1.bf16.msra.mxu0 %v3316
        %3930 = vmatprep.subr.bf16.mxu0 %v3321
        %3931 = vmatpush1.bf16.msra.mxu0 %v3320
        %3932 = vmatprep.mubr.bf16.mxu0 %v2662
        %3933 = vmatmul.mubr.bf16.gmra.mrb[0].mxu0 %v2661
        %v3934 = vpop.f32.mrb[0].mxu0
        %v3935 = vadd.f32 %v2865, %v3934
        %v3936 = vpop.f32.mrb[0].mxu0
        %v3937 = vadd.f32 %v2869, %v3936
        %v3938 = vpop.f32.mrb[0].mxu0
        %v3939 = vadd.f32 %v2865, %v3938
        %v3940 = vpop.f32.mrb[0].mxu0
        %v3941 = vadd.f32 %v2869, %v3940
        %3942 = vmatprep.mubr.bf16.mxu0 %v2666
        %3943 = vmatmul.mubr.bf16.gmra.mrb[0].mxu0 %v2665
        %v3944 = vpop.f32.mrb[0].mxu0
        %v3945 = vadd.f32 %v2865, %v3944
        %v3946 = vpop.f32.mrb[0].mxu0
        %v3947 = vadd.f32 %v2869, %v3946
        %v3948 = vpop.f32.mrb[0].mxu0
        %v3949 = vadd.f32 %v2865, %v3948
        %v3950 = vpop.f32.mrb[0].mxu0
        %v3951 = vadd.f32 %v2869, %v3950
        %3952 = vmatprep.mubr.bf16.mxu0 %v2670
        %3953 = vmatmul.mubr.bf16.gmra.mrb[0].mxu0 %v2669
        %v3954 = vpop.f32.mrb[0].mxu0
        %v3955 = vadd.f32 %v2865, %v3954
        %v3956 = vpop.f32.mrb[0].mxu0
        %v3957 = vadd.f32 %v2869, %v3956
        %v3958 = vpop.f32.mrb[0].mxu0
        %v3959 = vadd.f32 %v2865, %v3958
        %v3960 = vpop.f32.mrb[0].mxu0
        %v3961 = vadd.f32 %v2869, %v3960
        %3962 = vmatprep.mubr.bf16.mxu0 %v2674
        %3963 = vmatmul.mubr.bf16.gmra.mrb[0].mxu0 %v2673
        %v3964 = vpop.f32.mrb[0].mxu0
        %v3965 = vadd.f32 %v2865, %v3964
        %v3966 = vpop.f32.mrb[0].mxu0
        %v3967 = vadd.f32 %v2869, %v3966
        %v3968 = vpop.f32.mrb[0].mxu0
        %v3969 = vadd.f32 %v2865, %v3968
        %v3970 = vpop.f32.mrb[0].mxu0
        %v3971 = vadd.f32 %v2869, %v3970
        %3972 = vmatprep.mubr.bf16.mxu0 %v2678
        %3973 = vmatmul.mubr.bf16.gmra.mrb[0].mxu0 %v2677
        %v3974 = vpop.f32.mrb[0].mxu0
        %v3975 = vadd.f32 %v2865, %v3974
        %v3976 = vpop.f32.mrb[0].mxu0
        %v3977 = vadd.f32 %v2869, %v3976
        %v3978 = vpop.f32.mrb[0].mxu0
        %v3979 = vadd.f32 %v2865, %v3978
        %v3980 = vpop.f32.mrb[0].mxu0
        %v3981 = vadd.f32 %v2869, %v3980
        %3982 = vmatprep.mubr.bf16.mxu0 %v2682
        %3983 = vmatmul.mubr.bf16.gmra.mrb[0].mxu0 %v2681
        %v3984 = vpop.f32.mrb[0].mxu0
        %v3985 = vadd.f32 %v2865, %v3984
        %v3986 = vpop.f32.mrb[0].mxu0
        %v3987 = vadd.f32 %v2869, %v3986
        %v3988 = vpop.f32.mrb[0].mxu0
        %v3989 = vadd.f32 %v2865, %v3988
        %v3990 = vpop.f32.mrb[0].mxu0
        %v3991 = vadd.f32 %v2869, %v3990
        %3992 = vmatprep.mubr.bf16.mxu0 %v2686
        %3993 = vmatmul.mubr.bf16.gmra.mrb[0].mxu0 %v2685
        %v3994 = vpop.f32.mrb[0].mxu0
        %v3995 = vadd.f32 %v2865, %v3994
        %v3996 = vpop.f32.mrb[0].mxu0
        %v3997 = vadd.f32 %v2869, %v3996
        %v3998 = vpop.f32.mrb[0].mxu0
        %v3999 = vadd.f32 %v2865, %v3998
        %v4000 = vpop.f32.mrb[0].mxu0
        %v4001 = vadd.f32 %v2869, %v4000
        %4002 = vmatprep.mubr.bf16.mxu0 %v2690
        %4003 = vmatmul.mubr.bf16.gmra.mrb[0].mxu0 %v2689
        %v4004 = vpop.f32.mrb[0].mxu0
        %v4005 = vadd.f32 %v2865, %v4004
        %v4006 = vpop.f32.mrb[0].mxu0
        %v4007 = vadd.f32 %v2869, %v4006
        %v4008 = vpop.f32.mrb[0].mxu0
        %v4009 = vadd.f32 %v2865, %v4008
        %v4010 = vpop.f32.mrb[0].mxu0
        %v4011 = vadd.f32 %v2869, %v4010
        %4012 = vmatprep.mubr.bf16.mxu0 %v2694
        %4013 = vmatmul.mubr.bf16.gmra.mrb[0].mxu0 %v2693
        %v4014 = vpop.f32.mrb[0].mxu0
        %v4015 = vadd.f32 %v2865, %v4014
        %v4016 = vpop.f32.mrb[0].mxu0
        %v4017 = vadd.f32 %v2869, %v4016
        %v4018 = vpop.f32.mrb[0].mxu0
        %v4019 = vadd.f32 %v2865, %v4018
        %v4020 = vpop.f32.mrb[0].mxu0
        %v4021 = vadd.f32 %v2869, %v4020
        %4022 = vmatprep.mubr.bf16.mxu0 %v2698
        %4023 = vmatmul.mubr.bf16.gmra.mrb[0].mxu0 %v2697
        %v4024 = vpop.f32.mrb[0].mxu0
        %v4025 = vadd.f32 %v2865, %v4024
        %v4026 = vpop.f32.mrb[0].mxu0
        %v4027 = vadd.f32 %v2869, %v4026
        %v4028 = vpop.f32.mrb[0].mxu0
        %v4029 = vadd.f32 %v2865, %v4028
        %v4030 = vpop.f32.mrb[0].mxu0
        %v4031 = vadd.f32 %v2869, %v4030
        %4032 = vmatprep.mubr.bf16.mxu0 %v2702
        %4033 = vmatmul.mubr.bf16.gmra.mrb[0].mxu0 %v2701
        %v4034 = vpop.f32.mrb[0].mxu0
        %v4035 = vadd.f32 %v2865, %v4034
        %v4036 = vpop.f32.mrb[0].mxu0
        %v4037 = vadd.f32 %v2869, %v4036
        %v4038 = vpop.f32.mrb[0].mxu0
        %v4039 = vadd.f32 %v2865, %v4038
        %v4040 = vpop.f32.mrb[0].mxu0
        %v4041 = vadd.f32 %v2869, %v4040
        %4042 = vmatprep.mubr.bf16.mxu0 %v2706
        %4043 = vmatmul.mubr.bf16.gmra.mrb[0].mxu0 %v2705
        %v4044 = vpop.f32.mrb[0].mxu0
        %v4045 = vadd.f32 %v2865, %v4044
        %v4046 = vpop.f32.mrb[0].mxu0
        %v4047 = vadd.f32 %v2869, %v4046
        %v4048 = vpop.f32.mrb[0].mxu0
        %v4049 = vadd.f32 %v2865, %v4048
        %v4050 = vpop.f32.mrb[0].mxu0
        %v4051 = vadd.f32 %v2869, %v4050
        %4052 = vmatprep.mubr.bf16.mxu0 %v2710
        %4053 = vmatmul.mubr.bf16.gmra.mrb[0].mxu0 %v2709
        %v4054 = vpop.f32.mrb[0].mxu0
        %v4055 = vadd.f32 %v2865, %v4054
        %v4056 = vpop.f32.mrb[0].mxu0
        %v4057 = vadd.f32 %v2869, %v4056
        %v4058 = vpop.f32.mrb[0].mxu0
        %v4059 = vadd.f32 %v2865, %v4058
        %v4060 = vpop.f32.mrb[0].mxu0
        %v4061 = vadd.f32 %v2869, %v4060
        %4062 = vmatprep.mubr.bf16.mxu0 %v2714
        %4063 = vmatmul.mubr.bf16.gmra.mrb[0].mxu0 %v2713
        %v4064 = vpop.f32.mrb[0].mxu0
        %v4065 = vadd.f32 %v2865, %v4064
        %v4066 = vpop.f32.mrb[0].mxu0
        %v4067 = vadd.f32 %v2869, %v4066
        %v4068 = vpop.f32.mrb[0].mxu0
        %v4069 = vadd.f32 %v2865, %v4068
        %v4070 = vpop.f32.mrb[0].mxu0
        %v4071 = vadd.f32 %v2869, %v4070
        %4072 = vmatprep.mubr.bf16.mxu0 %v2718
        %4073 = vmatmul.mubr.bf16.gmra.mrb[0].mxu0 %v2717
        %v4074 = vpop.f32.mrb[0].mxu0
        %v4075 = vadd.f32 %v2865, %v4074
        %v4076 = vpop.f32.mrb[0].mxu0
        %v4077 = vadd.f32 %v2869, %v4076
        %v4078 = vpop.f32.mrb[0].mxu0
        %v4079 = vadd.f32 %v2865, %v4078
        %v4080 = vpop.f32.mrb[0].mxu0
        %v4081 = vadd.f32 %v2869, %v4080
        %4082 = vmatprep.mubr.bf16.mxu0 %v2722
        %4083 = vmatmul.mubr.bf16.gmra.mrb[0].mxu0 %v2721
        %v4084 = vpop.f32.mrb[0].mxu0
        %v4085 = vadd.f32 %v2865, %v4084
        %v4086 = vpop.f32.mrb[0].mxu0
        %v4087 = vadd.f32 %v2869, %v4086
        %v4088 = vpop.f32.mrb[0].mxu0
        %v4089 = vadd.f32 %v2865, %v4088
        %v4090 = vpop.f32.mrb[0].mxu0
        %v4091 = vadd.f32 %v2869, %v4090
        %4092 = vdwg.mxu0
        %4093 = vmatprep.subr.bf16.mxu0 %v3325
        %4094 = vmatpush1.bf16.msra.mxu0 %v3324
        %4095 = vmatprep.subr.bf16.mxu0 %v3329
        %4096 = vmatpush1.bf16.msra.mxu0 %v3328
        %4097 = vmatprep.subr.bf16.mxu0 %v3333
        %4098 = vmatpush1.bf16.msra.mxu0 %v3332
        %4099 = vmatprep.subr.bf16.mxu0 %v3337
        %4100 = vmatpush1.bf16.msra.mxu0 %v3336
        %4101 = vmatprep.subr.bf16.mxu0 %v3341
        %4102 = vmatpush1.bf16.msra.mxu0 %v3340
        %4103 = vmatprep.subr.bf16.mxu0 %v3345
        %4104 = vmatpush1.bf16.msra.mxu0 %v3344
        %4105 = vmatprep.subr.bf16.mxu0 %v3349
        %4106 = vmatpush1.bf16.msra.mxu0 %v3348
        %4107 = vmatprep.subr.bf16.mxu0 %v3353
        %4108 = vmatpush1.bf16.msra.mxu0 %v3352
        %4109 = vmatprep.subr.bf16.mxu0 %v3357
        %4110 = vmatpush1.bf16.msra.mxu0 %v3356
        %4111 = vmatprep.subr.bf16.mxu0 %v3361
        %4112 = vmatpush1.bf16.msra.mxu0 %v3360
        %4113 = vmatprep.subr.bf16.mxu0 %v3365
        %4114 = vmatpush1.bf16.msra.mxu0 %v3364
        %4115 = vmatprep.subr.bf16.mxu0 %v3369
        %4116 = vmatpush1.bf16.msra.mxu0 %v3368
        %4117 = vmatprep.subr.bf16.mxu0 %v3373
        %4118 = vmatpush1.bf16.msra.mxu0 %v3372
        %4119 = vmatprep.subr.bf16.mxu0 %v3377
        %4120 = vmatpush1.bf16.msra.mxu0 %v3376
        %4121 = vmatprep.subr.bf16.mxu0 %v3381
        %4122 = vmatpush1.bf16.msra.mxu0 %v3380
        %4123 = vmatprep.subr.bf16.mxu0 %v3385
        %4124 = vmatpush1.bf16.msra.mxu0 %v3384
        %4125 = vmatprep.mubr.bf16.mxu0 %v2664
        %4126 = vmatmul.mubr.bf16.gmra.mrb[0].mxu0 %v2663
        %v4127 = vpop.f32.mrb[0].mxu0
        %v4128 = vadd.f32 %v3935, %v4127
        %v4129 = vpop.f32.mrb[0].mxu0
        %v4130 = vadd.f32 %v3937, %v4129
        %v4131 = vpop.f32.mrb[0].mxu0
        %v4132 = vadd.f32 %v3939, %v4131
        %v4133 = vpop.f32.mrb[0].mxu0
        %v4134 = vadd.f32 %v3941, %v4133
        %4135 = vmatprep.mubr.bf16.mxu0 %v2668
        %4136 = vmatmul.mubr.bf16.gmra.mrb[0].mxu0 %v2667
        %v4137 = vpop.f32.mrb[0].mxu0
        %v4138 = vadd.f32 %v3945, %v4137
        %v4139 = vpop.f32.mrb[0].mxu0
        %v4140 = vadd.f32 %v3947, %v4139
        %v4141 = vpop.f32.mrb[0].mxu0
        %v4142 = vadd.f32 %v3949, %v4141
        %v4143 = vpop.f32.mrb[0].mxu0
        %v4144 = vadd.f32 %v3951, %v4143
        %4145 = vmatprep.mubr.bf16.mxu0 %v2672
        %4146 = vmatmul.mubr.bf16.gmra.mrb[0].mxu0 %v2671
        %v4147 = vpop.f32.mrb[0].mxu0
        %v4148 = vadd.f32 %v3955, %v4147
        %v4149 = vpop.f32.mrb[0].mxu0
        %v4150 = vadd.f32 %v3957, %v4149
        %v4151 = vpop.f32.mrb[0].mxu0
        %v4152 = vadd.f32 %v3959, %v4151
        %v4153 = vpop.f32.mrb[0].mxu0
        %v4154 = vadd.f32 %v3961, %v4153
        %4155 = vmatprep.mubr.bf16.mxu0 %v2676
        %4156 = vmatmul.mubr.bf16.gmra.mrb[0].mxu0 %v2675
        %v4157 = vpop.f32.mrb[0].mxu0
        %v4158 = vadd.f32 %v3965, %v4157
        %v4159 = vpop.f32.mrb[0].mxu0
        %v4160 = vadd.f32 %v3967, %v4159
        %v4161 = vpop.f32.mrb[0].mxu0
        %v4162 = vadd.f32 %v3969, %v4161
        %v4163 = vpop.f32.mrb[0].mxu0
        %v4164 = vadd.f32 %v3971, %v4163
        %4165 = vmatprep.mubr.bf16.mxu0 %v2680
        %4166 = vmatmul.mubr.bf16.gmra.mrb[0].mxu0 %v2679
        %v4167 = vpop.f32.mrb[0].mxu0
        %v4168 = vadd.f32 %v3975, %v4167
        %v4169 = vpop.f32.mrb[0].mxu0
        %v4170 = vadd.f32 %v3977, %v4169
        %v4171 = vpop.f32.mrb[0].mxu0
        %v4172 = vadd.f32 %v3979, %v4171
        %v4173 = vpop.f32.mrb[0].mxu0
        %v4174 = vadd.f32 %v3981, %v4173
        %4175 = vmatprep.mubr.bf16.mxu0 %v2684
        %4176 = vmatmul.mubr.bf16.gmra.mrb[0].mxu0 %v2683
        %v4177 = vpop.f32.mrb[0].mxu0
        %v4178 = vadd.f32 %v3985, %v4177
        %v4179 = vpop.f32.mrb[0].mxu0
        %v4180 = vadd.f32 %v3987, %v4179
        %v4181 = vpop.f32.mrb[0].mxu0
        %v4182 = vadd.f32 %v3989, %v4181
        %v4183 = vpop.f32.mrb[0].mxu0
        %v4184 = vadd.f32 %v3991, %v4183
        %4185 = vmatprep.mubr.bf16.mxu0 %v2688
        %4186 = vmatmul.mubr.bf16.gmra.mrb[0].mxu0 %v2687
        %v4187 = vpop.f32.mrb[0].mxu0
        %v4188 = vadd.f32 %v3995, %v4187
        %v4189 = vpop.f32.mrb[0].mxu0
        %v4190 = vadd.f32 %v3997, %v4189
        %v4191 = vpop.f32.mrb[0].mxu0
        %v4192 = vadd.f32 %v3999, %v4191
        %v4193 = vpop.f32.mrb[0].mxu0
        %v4194 = vadd.f32 %v4001, %v4193
        %4195 = vmatprep.mubr.bf16.mxu0 %v2692
        %4196 = vmatmul.mubr.bf16.gmra.mrb[0].mxu0 %v2691
        %v4197 = vpop.f32.mrb[0].mxu0
        %v4198 = vadd.f32 %v4005, %v4197
        %v4199 = vpop.f32.mrb[0].mxu0
        %v4200 = vadd.f32 %v4007, %v4199
        %v4201 = vpop.f32.mrb[0].mxu0
        %v4202 = vadd.f32 %v4009, %v4201
        %v4203 = vpop.f32.mrb[0].mxu0
        %v4204 = vadd.f32 %v4011, %v4203
        %4205 = vmatprep.mubr.bf16.mxu0 %v2696
        %4206 = vmatmul.mubr.bf16.gmra.mrb[0].mxu0 %v2695
        %v4207 = vpop.f32.mrb[0].mxu0
        %v4208 = vadd.f32 %v4015, %v4207
        %v4209 = vpop.f32.mrb[0].mxu0
        %v4210 = vadd.f32 %v4017, %v4209
        %v4211 = vpop.f32.mrb[0].mxu0
        %v4212 = vadd.f32 %v4019, %v4211
        %v4213 = vpop.f32.mrb[0].mxu0
        %v4214 = vadd.f32 %v4021, %v4213
        %4215 = vmatprep.mubr.bf16.mxu0 %v2700
        %4216 = vmatmul.mubr.bf16.gmra.mrb[0].mxu0 %v2699
        %v4217 = vpop.f32.mrb[0].mxu0
        %v4218 = vadd.f32 %v4025, %v4217
        %v4219 = vpop.f32.mrb[0].mxu0
        %v4220 = vadd.f32 %v4027, %v4219
        %v4221 = vpop.f32.mrb[0].mxu0
        %v4222 = vadd.f32 %v4029, %v4221
        %v4223 = vpop.f32.mrb[0].mxu0
        %v4224 = vadd.f32 %v4031, %v4223
        %4225 = vmatprep.mubr.bf16.mxu0 %v2704
        %4226 = vmatmul.mubr.bf16.gmra.mrb[0].mxu0 %v2703
        %v4227 = vpop.f32.mrb[0].mxu0
        %v4228 = vadd.f32 %v4035, %v4227
        %v4229 = vpop.f32.mrb[0].mxu0
        %v4230 = vadd.f32 %v4037, %v4229
        %v4231 = vpop.f32.mrb[0].mxu0
        %v4232 = vadd.f32 %v4039, %v4231
        %v4233 = vpop.f32.mrb[0].mxu0
        %v4234 = vadd.f32 %v4041, %v4233
        %4235 = vmatprep.mubr.bf16.mxu0 %v2708
        %4236 = vmatmul.mubr.bf16.gmra.mrb[0].mxu0 %v2707
        %v4237 = vpop.f32.mrb[0].mxu0
        %v4238 = vadd.f32 %v4045, %v4237
        %v4239 = vpop.f32.mrb[0].mxu0
        %v4240 = vadd.f32 %v4047, %v4239
        %v4241 = vpop.f32.mrb[0].mxu0
        %v4242 = vadd.f32 %v4049, %v4241
        %v4243 = vpop.f32.mrb[0].mxu0
        %v4244 = vadd.f32 %v4051, %v4243
        %4245 = vmatprep.mubr.bf16.mxu0 %v2712
        %4246 = vmatmul.mubr.bf16.gmra.mrb[0].mxu0 %v2711
        %v4247 = vpop.f32.mrb[0].mxu0
        %v4248 = vadd.f32 %v4055, %v4247
        %v4249 = vpop.f32.mrb[0].mxu0
        %v4250 = vadd.f32 %v4057, %v4249
        %v4251 = vpop.f32.mrb[0].mxu0
        %v4252 = vadd.f32 %v4059, %v4251
        %v4253 = vpop.f32.mrb[0].mxu0
        %v4254 = vadd.f32 %v4061, %v4253
        %4255 = vmatprep.mubr.bf16.mxu0 %v2716
        %4256 = vmatmul.mubr.bf16.gmra.mrb[0].mxu0 %v2715
        %v4257 = vpop.f32.mrb[0].mxu0
        %v4258 = vadd.f32 %v4065, %v4257
        %v4259 = vpop.f32.mrb[0].mxu0
        %v4260 = vadd.f32 %v4067, %v4259
        %v4261 = vpop.f32.mrb[0].mxu0
        %v4262 = vadd.f32 %v4069, %v4261
        %v4263 = vpop.f32.mrb[0].mxu0
        %v4264 = vadd.f32 %v4071, %v4263
        %4265 = vmatprep.mubr.bf16.mxu0 %v2720
        %4266 = vmatmul.mubr.bf16.gmra.mrb[0].mxu0 %v2719
        %v4267 = vpop.f32.mrb[0].mxu0
        %v4268 = vadd.f32 %v4075, %v4267
        %v4269 = vpop.f32.mrb[0].mxu0
        %v4270 = vadd.f32 %v4077, %v4269
        %v4271 = vpop.f32.mrb[0].mxu0
        %v4272 = vadd.f32 %v4079, %v4271
        %v4273 = vpop.f32.mrb[0].mxu0
        %v4274 = vadd.f32 %v4081, %v4273
        %4275 = vmatprep.mubr.bf16.mxu0 %v2724
        %4276 = vmatmul.mubr.bf16.gmra.mrb[0].mxu0 %v2723
        %v4277 = vpop.f32.mrb[0].mxu0
        %v4278 = vadd.f32 %v4085, %v4277
        %v4279 = vpop.f32.mrb[0].mxu0
        %v4280 = vadd.f32 %v4087, %v4279
        %v4281 = vpop.f32.mrb[0].mxu0
        %v4282 = vadd.f32 %v4089, %v4281
        %v4283 = vpop.f32.mrb[0].mxu0
        %v4284 = vadd.f32 %v4091, %v4283
        %4285 = vdwg.mxu0
        %v4286 = vadd.f32 %v3742, %v3744
        %v4287 = vadd.f32 %v4286, %v4128
        %v4288 = vadd.f32 %v4287, %v4130
        %4289 = vadd.xlane.f32.xlu0 %v4288
        %v4290 = vpop.xlane.xlu0 %4289
        %v4291 = vadd.f32 %v3746, %v3748
        %v4292 = vadd.f32 %v4291, %v4132
        %v4293 = vadd.f32 %v4292, %v4134
        %4294 = vadd.xlane.f32.xlu0 %v4293
        %v4295 = vpop.xlane.xlu0 %4294
        %v4296 = vadd.f32 %v3752, %v3754
        %v4297 = vadd.f32 %v4296, %v4138
        %v4298 = vadd.f32 %v4297, %v4140
        %4299 = vadd.xlane.f32.xlu0 %v4298
        %v4300 = vpop.xlane.xlu0 %4299
        %v4301 = vadd.f32 %v3756, %v3758
        %v4302 = vadd.f32 %v4301, %v4142
        %v4303 = vadd.f32 %v4302, %v4144
        %4304 = vadd.xlane.f32.xlu0 %v4303
        %v4305 = vpop.xlane.xlu0 %4304
        %v4306 = vadd.f32 %v3762, %v3764
        %v4307 = vadd.f32 %v4306, %v4148
        %v4308 = vadd.f32 %v4307, %v4150
        %4309 = vadd.xlane.f32.xlu0 %v4308
        %v4310 = vpop.xlane.xlu0 %4309
        %v4311 = vadd.f32 %v3766, %v3768
        %v4312 = vadd.f32 %v4311, %v4152
        %v4313 = vadd.f32 %v4312, %v4154
        %4314 = vadd.xlane.f32.xlu0 %v4313
        %v4315 = vpop.xlane.xlu0 %4314
        %v4316 = vadd.f32 %v3772, %v3774
        %v4317 = vadd.f32 %v4316, %v4158
        %v4318 = vadd.f32 %v4317, %v4160
        %4319 = vadd.xlane.f32.xlu0 %v4318
        %v4320 = vpop.xlane.xlu0 %4319
        %v4321 = vadd.f32 %v3776, %v3778
        %v4322 = vadd.f32 %v4321, %v4162
        %v4323 = vadd.f32 %v4322, %v4164
        %4324 = vadd.xlane.f32.xlu0 %v4323
        %v4325 = vpop.xlane.xlu0 %4324
        %v4326 = vadd.f32 %v3782, %v3784
        %v4327 = vadd.f32 %v4326, %v4168
        %v4328 = vadd.f32 %v4327, %v4170
        %4329 = vadd.xlane.f32.xlu0 %v4328
        %v4330 = vpop.xlane.xlu0 %4329
        %v4331 = vadd.f32 %v3786, %v3788
        %v4332 = vadd.f32 %v4331, %v4172
        %v4333 = vadd.f32 %v4332, %v4174
        %4334 = vadd.xlane.f32.xlu0 %v4333
        %v4335 = vpop.xlane.xlu0 %4334
        %v4336 = vadd.f32 %v3792, %v3794
        %v4337 = vadd.f32 %v4336, %v4178
        %v4338 = vadd.f32 %v4337, %v4180
        %4339 = vadd.xlane.f32.xlu0 %v4338
        %v4340 = vpop.xlane.xlu0 %4339
        %v4341 = vadd.f32 %v3796, %v3798
        %v4342 = vadd.f32 %v4341, %v4182
        %v4343 = vadd.f32 %v4342, %v4184
        %4344 = vadd.xlane.f32.xlu0 %v4343
        %v4345 = vpop.xlane.xlu0 %4344
        %v4346 = vadd.f32 %v3802, %v3804
        %v4347 = vadd.f32 %v4346, %v4188
        %v4348 = vadd.f32 %v4347, %v4190
        %4349 = vadd.xlane.f32.xlu0 %v4348
        %v4350 = vpop.xlane.xlu0 %4349
        %v4351 = vadd.f32 %v3806, %v3808
        %v4352 = vadd.f32 %v4351, %v4192
        %v4353 = vadd.f32 %v4352, %v4194
        %4354 = vadd.xlane.f32.xlu0 %v4353
        %v4355 = vpop.xlane.xlu0 %4354
        %v4356 = vadd.f32 %v3812, %v3814
        %v4357 = vadd.f32 %v4356, %v4198
        %v4358 = vadd.f32 %v4357, %v4200
        %4359 = vadd.xlane.f32.xlu0 %v4358
        %v4360 = vpop.xlane.xlu0 %4359
        %v4361 = vadd.f32 %v3816, %v3818
        %v4362 = vadd.f32 %v4361, %v4202
        %v4363 = vadd.f32 %v4362, %v4204
        %4364 = vadd.xlane.f32.xlu0 %v4363
        %v4365 = vpop.xlane.xlu0 %4364
        %v4366 = vadd.f32 %v3822, %v3824
        %v4367 = vadd.f32 %v4366, %v4208
        %v4368 = vadd.f32 %v4367, %v4210
        %4369 = vadd.xlane.f32.xlu0 %v4368
        %v4370 = vpop.xlane.xlu0 %4369
        %v4371 = vadd.f32 %v3826, %v3828
        %v4372 = vadd.f32 %v4371, %v4212
        %v4373 = vadd.f32 %v4372, %v4214
        %4374 = vadd.xlane.f32.xlu0 %v4373
        %v4375 = vpop.xlane.xlu0 %4374
        %v4376 = vadd.f32 %v3832, %v3834
        %v4377 = vadd.f32 %v4376, %v4218
        %v4378 = vadd.f32 %v4377, %v4220
        %4379 = vadd.xlane.f32.xlu0 %v4378
        %v4380 = vpop.xlane.xlu0 %4379
        %v4381 = vadd.f32 %v3836, %v3838
        %v4382 = vadd.f32 %v4381, %v4222
        %v4383 = vadd.f32 %v4382, %v4224
        %4384 = vadd.xlane.f32.xlu0 %v4383
        %v4385 = vpop.xlane.xlu0 %4384
        %v4386 = vadd.f32 %v3842, %v3844
        %v4387 = vadd.f32 %v4386, %v4228
        %v4388 = vadd.f32 %v4387, %v4230
        %4389 = vadd.xlane.f32.xlu0 %v4388
        %v4390 = vpop.xlane.xlu0 %4389
        %v4391 = vadd.f32 %v3846, %v3848
        %v4392 = vadd.f32 %v4391, %v4232
        %v4393 = vadd.f32 %v4392, %v4234
        %4394 = vadd.xlane.f32.xlu0 %v4393
        %v4395 = vpop.xlane.xlu0 %4394
        %v4396 = vadd.f32 %v3852, %v3854
        %v4397 = vadd.f32 %v4396, %v4238
        %v4398 = vadd.f32 %v4397, %v4240
        %4399 = vadd.xlane.f32.xlu0 %v4398
        %v4400 = vpop.xlane.xlu0 %4399
        %v4401 = vadd.f32 %v3856, %v3858
        %v4402 = vadd.f32 %v4401, %v4242
        %v4403 = vadd.f32 %v4402, %v4244
        %4404 = vadd.xlane.f32.xlu0 %v4403
        %v4405 = vpop.xlane.xlu0 %4404
        %v4406 = vadd.f32 %v3862, %v3864
        %v4407 = vadd.f32 %v4406, %v4248
        %v4408 = vadd.f32 %v4407, %v4250
        %4409 = vadd.xlane.f32.xlu0 %v4408
        %v4410 = vpop.xlane.xlu0 %4409
        %v4411 = vadd.f32 %v3866, %v3868
        %v4412 = vadd.f32 %v4411, %v4252
        %v4413 = vadd.f32 %v4412, %v4254
        %4414 = vadd.xlane.f32.xlu0 %v4413
        %v4415 = vpop.xlane.xlu0 %4414
        %v4416 = vadd.f32 %v3872, %v3874
        %v4417 = vadd.f32 %v4416, %v4258
        %v4418 = vadd.f32 %v4417, %v4260
        %4419 = vadd.xlane.f32.xlu0 %v4418
        %v4420 = vpop.xlane.xlu0 %4419
        %v4421 = vadd.f32 %v3876, %v3878
        %v4422 = vadd.f32 %v4421, %v4262
        %v4423 = vadd.f32 %v4422, %v4264
        %4424 = vadd.xlane.f32.xlu0 %v4423
        %v4425 = vpop.xlane.xlu0 %4424
        %v4426 = vadd.f32 %v3882, %v3884
        %v4427 = vadd.f32 %v4426, %v4268
        %v4428 = vadd.f32 %v4427, %v4270
        %4429 = vadd.xlane.f32.xlu0 %v4428
        %v4430 = vpop.xlane.xlu0 %4429
        %v4431 = vadd.f32 %v3886, %v3888
        %v4432 = vadd.f32 %v4431, %v4272
        %v4433 = vadd.f32 %v4432, %v4274
        %4434 = vadd.xlane.f32.xlu0 %v4433
        %v4435 = vpop.xlane.xlu0 %4434
        %v4436 = vadd.f32 %v3892, %v3894
        %v4437 = vadd.f32 %v4436, %v4278
        %v4438 = vadd.f32 %v4437, %v4280
        %4439 = vadd.xlane.f32.xlu0 %v4438
        %v4440 = vpop.xlane.xlu0 %4439
        %v4441 = vadd.f32 %v3896, %v3898
        %v4442 = vadd.f32 %v4441, %v4282
        %v4443 = vadd.f32 %v4442, %v4284
        %4444 = vadd.xlane.f32.xlu0 %v4443
        %v4445 = vpop.xlane.xlu0 %4444
        %v4446 = vrcp.pop 512.0
        %v4447 = vmul.f32 %v4290, %v4446
        %v4448 = vmul.f32 %v4295, %v4446
        %v4449 = vmul.f32 %v4300, %v4446
        %v4450 = vmul.f32 %v4305, %v4446
        %v4451 = vmul.f32 %v4310, %v4446
        %v4452 = vmul.f32 %v4315, %v4446
        %v4453 = vmul.f32 %v4320, %v4446
        %v4454 = vmul.f32 %v4325, %v4446
        %v4455 = vmul.f32 %v4330, %v4446
        %v4456 = vmul.f32 %v4335, %v4446
        %v4457 = vmul.f32 %v4340, %v4446
        %v4458 = vmul.f32 %v4345, %v4446
        %v4459 = vmul.f32 %v4350, %v4446
        %v4460 = vmul.f32 %v4355, %v4446
        %v4461 = vmul.f32 %v4360, %v4446
        %v4462 = vmul.f32 %v4365, %v4446
        %v4463 = vmul.f32 %v4370, %v4446
        %v4464 = vmul.f32 %v4375, %v4446
        %v4465 = vmul.f32 %v4380, %v4446
        %v4466 = vmul.f32 %v4385, %v4446
        %v4467 = vmul.f32 %v4390, %v4446
        %v4468 = vmul.f32 %v4395, %v4446
        %v4469 = vmul.f32 %v4400, %v4446
        %v4470 = vmul.f32 %v4405, %v4446
        %v4471 = vmul.f32 %v4410, %v4446
        %v4472 = vmul.f32 %v4415, %v4446
        %v4473 = vmul.f32 %v4420, %v4446
        %v4474 = vmul.f32 %v4425, %v4446
        %v4475 = vmul.f32 %v4430, %v4446
        %v4476 = vmul.f32 %v4435, %v4446
        %v4477 = vmul.f32 %v4440, %v4446
        %v4478 = vmul.f32 %v4445, %v4446
        %v4479 = vsub.f32 %v3742, %v4447
        %v4480 = vsub.f32 %v3744, %v4447
        %v4481 = vsub.f32 %v4128, %v4447
        %v4482 = vsub.f32 %v4130, %v4447
        %v4483 = vsub.f32 %v3746, %v4448
        %v4484 = vsub.f32 %v3748, %v4448
        %v4485 = vsub.f32 %v4132, %v4448
        %v4486 = vsub.f32 %v4134, %v4448
        %v4487 = vsub.f32 %v3752, %v4449
        %v4488 = vsub.f32 %v3754, %v4449
        %v4489 = vsub.f32 %v4138, %v4449
        %v4490 = vsub.f32 %v4140, %v4449
        %v4491 = vsub.f32 %v3756, %v4450
        %v4492 = vsub.f32 %v3758, %v4450
        %v4493 = vsub.f32 %v4142, %v4450
        %v4494 = vsub.f32 %v4144, %v4450
        %v4495 = vsub.f32 %v3762, %v4451
        %v4496 = vsub.f32 %v3764, %v4451
        %v4497 = vsub.f32 %v4148, %v4451
        %v4498 = vsub.f32 %v4150, %v4451
        %v4499 = vsub.f32 %v3766, %v4452
        %v4500 = vsub.f32 %v3768, %v4452
        %v4501 = vsub.f32 %v4152, %v4452
        %v4502 = vsub.f32 %v4154, %v4452
        %v4503 = vsub.f32 %v3772, %v4453
        %v4504 = vsub.f32 %v3774, %v4453
        %v4505 = vsub.f32 %v4158, %v4453
        %v4506 = vsub.f32 %v4160, %v4453
        %v4507 = vsub.f32 %v3776, %v4454
        %v4508 = vsub.f32 %v3778, %v4454
        %v4509 = vsub.f32 %v4162, %v4454
        %v4510 = vsub.f32 %v4164, %v4454
        %v4511 = vsub.f32 %v3782, %v4455
        %v4512 = vsub.f32 %v3784, %v4455
        %v4513 = vsub.f32 %v4168, %v4455
        %v4514 = vsub.f32 %v4170, %v4455
        %v4515 = vsub.f32 %v3786, %v4456
        %v4516 = vsub.f32 %v3788, %v4456
        %v4517 = vsub.f32 %v4172, %v4456
        %v4518 = vsub.f32 %v4174, %v4456
        %v4519 = vsub.f32 %v3792, %v4457
        %v4520 = vsub.f32 %v3794, %v4457
        %v4521 = vsub.f32 %v4178, %v4457
        %v4522 = vsub.f32 %v4180, %v4457
        %v4523 = vsub.f32 %v3796, %v4458
        %v4524 = vsub.f32 %v3798, %v4458
        %v4525 = vsub.f32 %v4182, %v4458
        %v4526 = vsub.f32 %v4184, %v4458
        %v4527 = vsub.f32 %v3802, %v4459
        %v4528 = vsub.f32 %v3804, %v4459
        %v4529 = vsub.f32 %v4188, %v4459
        %v4530 = vsub.f32 %v4190, %v4459
        %v4531 = vsub.f32 %v3806, %v4460
        %v4532 = vsub.f32 %v3808, %v4460
        %v4533 = vsub.f32 %v4192, %v4460
        %v4534 = vsub.f32 %v4194, %v4460
        %v4535 = vsub.f32 %v3812, %v4461
        %v4536 = vsub.f32 %v3814, %v4461
        %v4537 = vsub.f32 %v4198, %v4461
        %v4538 = vsub.f32 %v4200, %v4461
        %v4539 = vsub.f32 %v3816, %v4462
        %v4540 = vsub.f32 %v3818, %v4462
        %v4541 = vsub.f32 %v4202, %v4462
        %v4542 = vsub.f32 %v4204, %v4462
        %v4543 = vsub.f32 %v3822, %v4463
        %v4544 = vsub.f32 %v3824, %v4463
        %v4545 = vsub.f32 %v4208, %v4463
        %v4546 = vsub.f32 %v4210, %v4463
        %v4547 = vsub.f32 %v3826, %v4464
        %v4548 = vsub.f32 %v3828, %v4464
        %v4549 = vsub.f32 %v4212, %v4464
        %v4550 = vsub.f32 %v4214, %v4464
        %v4551 = vsub.f32 %v3832, %v4465
        %v4552 = vsub.f32 %v3834, %v4465
        %v4553 = vsub.f32 %v4218, %v4465
        %v4554 = vsub.f32 %v4220, %v4465
        %v4555 = vsub.f32 %v3836, %v4466
        %v4556 = vsub.f32 %v3838, %v4466
        %v4557 = vsub.f32 %v4222, %v4466
        %v4558 = vsub.f32 %v4224, %v4466
        %v4559 = vsub.f32 %v3842, %v4467
        %v4560 = vsub.f32 %v3844, %v4467
        %v4561 = vsub.f32 %v4228, %v4467
        %v4562 = vsub.f32 %v4230, %v4467
        %v4563 = vsub.f32 %v3846, %v4468
        %v4564 = vsub.f32 %v3848, %v4468
        %v4565 = vsub.f32 %v4232, %v4468
        %v4566 = vsub.f32 %v4234, %v4468
        %v4567 = vsub.f32 %v3852, %v4469
        %v4568 = vsub.f32 %v3854, %v4469
        %v4569 = vsub.f32 %v4238, %v4469
        %v4570 = vsub.f32 %v4240, %v4469
        %v4571 = vsub.f32 %v3856, %v4470
        %v4572 = vsub.f32 %v3858, %v4470
        %v4573 = vsub.f32 %v4242, %v4470
        %v4574 = vsub.f32 %v4244, %v4470
        %v4575 = vsub.f32 %v3862, %v4471
        %v4576 = vsub.f32 %v3864, %v4471
        %v4577 = vsub.f32 %v4248, %v4471
        %v4578 = vsub.f32 %v4250, %v4471
        %v4579 = vsub.f32 %v3866, %v4472
        %v4580 = vsub.f32 %v3868, %v4472
        %v4581 = vsub.f32 %v4252, %v4472
        %v4582 = vsub.f32 %v4254, %v4472
        %v4583 = vsub.f32 %v3872, %v4473
        %v4584 = vsub.f32 %v3874, %v4473
        %v4585 = vsub.f32 %v4258, %v4473
        %v4586 = vsub.f32 %v4260, %v4473
        %v4587 = vsub.f32 %v3876, %v4474
        %v4588 = vsub.f32 %v3878, %v4474
        %v4589 = vsub.f32 %v4262, %v4474
        %v4590 = vsub.f32 %v4264, %v4474
        %v4591 = vsub.f32 %v3882, %v4475
        %v4592 = vsub.f32 %v3884, %v4475
        %v4593 = vsub.f32 %v4268, %v4475
        %v4594 = vsub.f32 %v4270, %v4475
        %v4595 = vsub.f32 %v3886, %v4476
        %v4596 = vsub.f32 %v3888, %v4476
        %v4597 = vsub.f32 %v4272, %v4476
        %v4598 = vsub.f32 %v4274, %v4476
        %v4599 = vsub.f32 %v3892, %v4477
        %v4600 = vsub.f32 %v3894, %v4477
        %v4601 = vsub.f32 %v4278, %v4477
        %v4602 = vsub.f32 %v4280, %v4477
        %v4603 = vsub.f32 %v3896, %v4478
        %v4604 = vsub.f32 %v3898, %v4478
        %v4605 = vsub.f32 %v4282, %v4478
        %v4606 = vsub.f32 %v4284, %v4478
        %v4607 = vmul.f32 %v4479, %v4479
        %v4608 = vmul.f32 %v4480, %v4480
        %v4609 = vmul.f32 %v4481, %v4481
        %v4610 = vmul.f32 %v4482, %v4482
        %v4611 = vmul.f32 %v4483, %v4483
        %v4612 = vmul.f32 %v4484, %v4484
        %v4613 = vmul.f32 %v4485, %v4485
        %v4614 = vmul.f32 %v4486, %v4486
        %v4615 = vmul.f32 %v4487, %v4487
        %v4616 = vmul.f32 %v4488, %v4488
        %v4617 = vmul.f32 %v4489, %v4489
        %v4618 = vmul.f32 %v4490, %v4490
        %v4619 = vmul.f32 %v4491, %v4491
        %v4620 = vmul.f32 %v4492, %v4492
        %v4621 = vmul.f32 %v4493, %v4493
        %v4622 = vmul.f32 %v4494, %v4494
        %v4623 = vmul.f32 %v4495, %v4495
        %v4624 = vmul.f32 %v4496, %v4496
        %v4625 = vmul.f32 %v4497, %v4497
        %v4626 = vmul.f32 %v4498, %v4498
        %v4627 = vmul.f32 %v4499, %v4499
        %v4628 = vmul.f32 %v4500, %v4500
        %v4629 = vmul.f32 %v4501, %v4501
        %v4630 = vmul.f32 %v4502, %v4502
        %v4631 = vmul.f32 %v4503, %v4503
        %v4632 = vmul.f32 %v4504, %v4504
        %v4633 = vmul.f32 %v4505, %v4505
        %v4634 = vmul.f32 %v4506, %v4506
        %v4635 = vmul.f32 %v4507, %v4507
        %v4636 = vmul.f32 %v4508, %v4508
        %v4637 = vmul.f32 %v4509, %v4509
        %v4638 = vmul.f32 %v4510, %v4510
        %v4639 = vmul.f32 %v4511, %v4511
        %v4640 = vmul.f32 %v4512, %v4512
        %v4641 = vmul.f32 %v4513, %v4513
        %v4642 = vmul.f32 %v4514, %v4514
        %v4643 = vmul.f32 %v4515, %v4515
        %v4644 = vmul.f32 %v4516, %v4516
        %v4645 = vmul.f32 %v4517, %v4517
        %v4646 = vmul.f32 %v4518, %v4518
        %v4647 = vmul.f32 %v4519, %v4519
        %v4648 = vmul.f32 %v4520, %v4520
        %v4649 = vmul.f32 %v4521, %v4521
        %v4650 = vmul.f32 %v4522, %v4522
        %v4651 = vmul.f32 %v4523, %v4523
        %v4652 = vmul.f32 %v4524, %v4524
        %v4653 = vmul.f32 %v4525, %v4525
        %v4654 = vmul.f32 %v4526, %v4526
        %v4655 = vmul.f32 %v4527, %v4527
        %v4656 = vmul.f32 %v4528, %v4528
        %v4657 = vmul.f32 %v4529, %v4529
        %v4658 = vmul.f32 %v4530, %v4530
        %v4659 = vmul.f32 %v4531, %v4531
        %v4660 = vmul.f32 %v4532, %v4532
        %v4661 = vmul.f32 %v4533, %v4533
        %v4662 = vmul.f32 %v4534, %v4534
        %v4663 = vmul.f32 %v4535, %v4535
        %v4664 = vmul.f32 %v4536, %v4536
        %v4665 = vmul.f32 %v4537, %v4537
        %v4666 = vmul.f32 %v4538, %v4538
        %v4667 = vmul.f32 %v4539, %v4539
        %v4668 = vmul.f32 %v4540, %v4540
        %v4669 = vmul.f32 %v4541, %v4541
        %v4670 = vmul.f32 %v4542, %v4542
        %v4671 = vmul.f32 %v4543, %v4543
        %v4672 = vmul.f32 %v4544, %v4544
        %v4673 = vmul.f32 %v4545, %v4545
        %v4674 = vmul.f32 %v4546, %v4546
        %v4675 = vmul.f32 %v4547, %v4547
        %v4676 = vmul.f32 %v4548, %v4548
        %v4677 = vmul.f32 %v4549, %v4549
        %v4678 = vmul.f32 %v4550, %v4550
        %v4679 = vmul.f32 %v4551, %v4551
        %v4680 = vmul.f32 %v4552, %v4552
        %v4681 = vmul.f32 %v4553, %v4553
        %v4682 = vmul.f32 %v4554, %v4554
        %v4683 = vmul.f32 %v4555, %v4555
        %v4684 = vmul.f32 %v4556, %v4556
        %v4685 = vmul.f32 %v4557, %v4557
        %v4686 = vmul.f32 %v4558, %v4558
        %v4687 = vmul.f32 %v4559, %v4559
        %v4688 = vmul.f32 %v4560, %v4560
        %v4689 = vmul.f32 %v4561, %v4561
        %v4690 = vmul.f32 %v4562, %v4562
        %v4691 = vmul.f32 %v4563, %v4563
        %v4692 = vmul.f32 %v4564, %v4564
        %v4693 = vmul.f32 %v4565, %v4565
        %v4694 = vmul.f32 %v4566, %v4566
        %v4695 = vmul.f32 %v4567, %v4567
        %v4696 = vmul.f32 %v4568, %v4568
        %v4697 = vmul.f32 %v4569, %v4569
        %v4698 = vmul.f32 %v4570, %v4570
        %v4699 = vmul.f32 %v4571, %v4571
        %v4700 = vmul.f32 %v4572, %v4572
        %v4701 = vmul.f32 %v4573, %v4573
        %v4702 = vmul.f32 %v4574, %v4574
        %v4703 = vmul.f32 %v4575, %v4575
        %v4704 = vmul.f32 %v4576, %v4576
        %v4705 = vmul.f32 %v4577, %v4577
        %v4706 = vmul.f32 %v4578, %v4578
        %v4707 = vmul.f32 %v4579, %v4579
        %v4708 = vmul.f32 %v4580, %v4580
        %v4709 = vmul.f32 %v4581, %v4581
        %v4710 = vmul.f32 %v4582, %v4582
        %v4711 = vmul.f32 %v4583, %v4583
        %v4712 = vmul.f32 %v4584, %v4584
        %v4713 = vmul.f32 %v4585, %v4585
        %v4714 = vmul.f32 %v4586, %v4586
        %v4715 = vmul.f32 %v4587, %v4587
        %v4716 = vmul.f32 %v4588, %v4588
        %v4717 = vmul.f32 %v4589, %v4589
        %v4718 = vmul.f32 %v4590, %v4590
        %v4719 = vmul.f32 %v4591, %v4591
        %v4720 = vmul.f32 %v4592, %v4592
        %v4721 = vmul.f32 %v4593, %v4593
        %v4722 = vmul.f32 %v4594, %v4594
        %v4723 = vmul.f32 %v4595, %v4595
        %v4724 = vmul.f32 %v4596, %v4596
        %v4725 = vmul.f32 %v4597, %v4597
        %v4726 = vmul.f32 %v4598, %v4598
        %v4727 = vmul.f32 %v4599, %v4599
        %v4728 = vmul.f32 %v4600, %v4600
        %v4729 = vmul.f32 %v4601, %v4601
        %v4730 = vmul.f32 %v4602, %v4602
        %v4731 = vmul.f32 %v4603, %v4603
        %v4732 = vmul.f32 %v4604, %v4604
        %v4733 = vmul.f32 %v4605, %v4605
        %v4734 = vmul.f32 %v4606, %v4606
        %v4735 = vadd.f32 %v4607, %v4608
        %v4736 = vadd.f32 %v4735, %v4609
        %v4737 = vadd.f32 %v4736, %v4610
        %4738 = vadd.xlane.f32.xlu0 %v4737
        %v4739 = vpop.xlane.xlu0 %4738
        %v4740 = vadd.f32 %v4611, %v4612
        %v4741 = vadd.f32 %v4740, %v4613
        %v4742 = vadd.f32 %v4741, %v4614
        %4743 = vadd.xlane.f32.xlu0 %v4742
        %v4744 = vpop.xlane.xlu0 %4743
        %v4745 = vadd.f32 %v4615, %v4616
        %v4746 = vadd.f32 %v4745, %v4617
        %v4747 = vadd.f32 %v4746, %v4618
        %4748 = vadd.xlane.f32.xlu0 %v4747
        %v4749 = vpop.xlane.xlu0 %4748
        %v4750 = vadd.f32 %v4619, %v4620
        %v4751 = vadd.f32 %v4750, %v4621
        %v4752 = vadd.f32 %v4751, %v4622
        %4753 = vadd.xlane.f32.xlu0 %v4752
        %v4754 = vpop.xlane.xlu0 %4753
        %v4755 = vadd.f32 %v4623, %v4624
        %v4756 = vadd.f32 %v4755, %v4625
        %v4757 = vadd.f32 %v4756, %v4626
        %4758 = vadd.xlane.f32.xlu0 %v4757
        %v4759 = vpop.xlane.xlu0 %4758
        %v4760 = vadd.f32 %v4627, %v4628
        %v4761 = vadd.f32 %v4760, %v4629
        %v4762 = vadd.f32 %v4761, %v4630
        %4763 = vadd.xlane.f32.xlu0 %v4762
        %v4764 = vpop.xlane.xlu0 %4763
        %v4765 = vadd.f32 %v4631, %v4632
        %v4766 = vadd.f32 %v4765, %v4633
        %v4767 = vadd.f32 %v4766, %v4634
        %4768 = vadd.xlane.f32.xlu0 %v4767
        %v4769 = vpop.xlane.xlu0 %4768
        %v4770 = vadd.f32 %v4635, %v4636
        %v4771 = vadd.f32 %v4770, %v4637
        %v4772 = vadd.f32 %v4771, %v4638
        %4773 = vadd.xlane.f32.xlu0 %v4772
        %v4774 = vpop.xlane.xlu0 %4773
        %v4775 = vadd.f32 %v4639, %v4640
        %v4776 = vadd.f32 %v4775, %v4641
        %v4777 = vadd.f32 %v4776, %v4642
        %4778 = vadd.xlane.f32.xlu0 %v4777
        %v4779 = vpop.xlane.xlu0 %4778
        %v4780 = vadd.f32 %v4643, %v4644
        %v4781 = vadd.f32 %v4780, %v4645
        %v4782 = vadd.f32 %v4781, %v4646
        %4783 = vadd.xlane.f32.xlu0 %v4782
        %v4784 = vpop.xlane.xlu0 %4783
        %v4785 = vadd.f32 %v4647, %v4648
        %v4786 = vadd.f32 %v4785, %v4649
        %v4787 = vadd.f32 %v4786, %v4650
        %4788 = vadd.xlane.f32.xlu0 %v4787
        %v4789 = vpop.xlane.xlu0 %4788
        %v4790 = vadd.f32 %v4651, %v4652
        %v4791 = vadd.f32 %v4790, %v4653
        %v4792 = vadd.f32 %v4791, %v4654
        %4793 = vadd.xlane.f32.xlu0 %v4792
        %v4794 = vpop.xlane.xlu0 %4793
        %v4795 = vadd.f32 %v4655, %v4656
        %v4796 = vadd.f32 %v4795, %v4657
        %v4797 = vadd.f32 %v4796, %v4658
        %4798 = vadd.xlane.f32.xlu0 %v4797
        %v4799 = vpop.xlane.xlu0 %4798
        %v4800 = vadd.f32 %v4659, %v4660
        %v4801 = vadd.f32 %v4800, %v4661
        %v4802 = vadd.f32 %v4801, %v4662
        %4803 = vadd.xlane.f32.xlu0 %v4802
        %v4804 = vpop.xlane.xlu0 %4803
        %v4805 = vadd.f32 %v4663, %v4664
        %v4806 = vadd.f32 %v4805, %v4665
        %v4807 = vadd.f32 %v4806, %v4666
        %4808 = vadd.xlane.f32.xlu0 %v4807
        %v4809 = vpop.xlane.xlu0 %4808
        %v4810 = vadd.f32 %v4667, %v4668
        %v4811 = vadd.f32 %v4810, %v4669
        %v4812 = vadd.f32 %v4811, %v4670
        %4813 = vadd.xlane.f32.xlu0 %v4812
        %v4814 = vpop.xlane.xlu0 %4813
        %v4815 = vadd.f32 %v4671, %v4672
        %v4816 = vadd.f32 %v4815, %v4673
        %v4817 = vadd.f32 %v4816, %v4674
        %4818 = vadd.xlane.f32.xlu0 %v4817
        %v4819 = vpop.xlane.xlu0 %4818
        %v4820 = vadd.f32 %v4675, %v4676
        %v4821 = vadd.f32 %v4820, %v4677
        %v4822 = vadd.f32 %v4821, %v4678
        %4823 = vadd.xlane.f32.xlu0 %v4822
        %v4824 = vpop.xlane.xlu0 %4823
        %v4825 = vadd.f32 %v4679, %v4680
        %v4826 = vadd.f32 %v4825, %v4681
        %v4827 = vadd.f32 %v4826, %v4682
        %4828 = vadd.xlane.f32.xlu0 %v4827
        %v4829 = vpop.xlane.xlu0 %4828
        %v4830 = vadd.f32 %v4683, %v4684
        %v4831 = vadd.f32 %v4830, %v4685
        %v4832 = vadd.f32 %v4831, %v4686
        %4833 = vadd.xlane.f32.xlu0 %v4832
        %v4834 = vpop.xlane.xlu0 %4833
        %v4835 = vadd.f32 %v4687, %v4688
        %v4836 = vadd.f32 %v4835, %v4689
        %v4837 = vadd.f32 %v4836, %v4690
        %4838 = vadd.xlane.f32.xlu0 %v4837
        %v4839 = vpop.xlane.xlu0 %4838
        %v4840 = vadd.f32 %v4691, %v4692
        %v4841 = vadd.f32 %v4840, %v4693
        %v4842 = vadd.f32 %v4841, %v4694
        %4843 = vadd.xlane.f32.xlu0 %v4842
        %v4844 = vpop.xlane.xlu0 %4843
        %v4845 = vadd.f32 %v4695, %v4696
        %v4846 = vadd.f32 %v4845, %v4697
        %v4847 = vadd.f32 %v4846, %v4698
        %4848 = vadd.xlane.f32.xlu0 %v4847
        %v4849 = vpop.xlane.xlu0 %4848
        %v4850 = vadd.f32 %v4699, %v4700
        %v4851 = vadd.f32 %v4850, %v4701
        %v4852 = vadd.f32 %v4851, %v4702
        %4853 = vadd.xlane.f32.xlu0 %v4852
        %v4854 = vpop.xlane.xlu0 %4853
        %v4855 = vadd.f32 %v4703, %v4704
        %v4856 = vadd.f32 %v4855, %v4705
        %v4857 = vadd.f32 %v4856, %v4706
        %4858 = vadd.xlane.f32.xlu0 %v4857
        %v4859 = vpop.xlane.xlu0 %4858
        %v4860 = vadd.f32 %v4707, %v4708
        %v4861 = vadd.f32 %v4860, %v4709
        %v4862 = vadd.f32 %v4861, %v4710
        %4863 = vadd.xlane.f32.xlu0 %v4862
        %v4864 = vpop.xlane.xlu0 %4863
        %v4865 = vadd.f32 %v4711, %v4712
        %v4866 = vadd.f32 %v4865, %v4713
        %v4867 = vadd.f32 %v4866, %v4714
        %4868 = vadd.xlane.f32.xlu0 %v4867
        %v4869 = vpop.xlane.xlu0 %4868
        %v4870 = vadd.f32 %v4715, %v4716
        %v4871 = vadd.f32 %v4870, %v4717
        %v4872 = vadd.f32 %v4871, %v4718
        %4873 = vadd.xlane.f32.xlu0 %v4872
        %v4874 = vpop.xlane.xlu0 %4873
        %v4875 = vadd.f32 %v4719, %v4720
        %v4876 = vadd.f32 %v4875, %v4721
        %v4877 = vadd.f32 %v4876, %v4722
        %4878 = vadd.xlane.f32.xlu0 %v4877
        %v4879 = vpop.xlane.xlu0 %4878
        %v4880 = vadd.f32 %v4723, %v4724
        %v4881 = vadd.f32 %v4880, %v4725
        %v4882 = vadd.f32 %v4881, %v4726
        %4883 = vadd.xlane.f32.xlu0 %v4882
        %v4884 = vpop.xlane.xlu0 %4883
        %v4885 = vadd.f32 %v4727, %v4728
        %v4886 = vadd.f32 %v4885, %v4729
        %v4887 = vadd.f32 %v4886, %v4730
        %4888 = vadd.xlane.f32.xlu0 %v4887
        %v4889 = vpop.xlane.xlu0 %4888
        %v4890 = vadd.f32 %v4731, %v4732
        %v4891 = vadd.f32 %v4890, %v4733
        %v4892 = vadd.f32 %v4891, %v4734
        %4893 = vadd.xlane.f32.xlu0 %v4892
        %v4894 = vpop.xlane.xlu0 %4893
        %v4895 = vmul.f32 %v4739, %v4446
        %v4896 = vmul.f32 %v4744, %v4446
        %v4897 = vmul.f32 %v4749, %v4446
        %v4898 = vmul.f32 %v4754, %v4446
        %v4899 = vmul.f32 %v4759, %v4446
        %v4900 = vmul.f32 %v4764, %v4446
        %v4901 = vmul.f32 %v4769, %v4446
        %v4902 = vmul.f32 %v4774, %v4446
        %v4903 = vmul.f32 %v4779, %v4446
        %v4904 = vmul.f32 %v4784, %v4446
        %v4905 = vmul.f32 %v4789, %v4446
        %v4906 = vmul.f32 %v4794, %v4446
        %v4907 = vmul.f32 %v4799, %v4446
        %v4908 = vmul.f32 %v4804, %v4446
        %v4909 = vmul.f32 %v4809, %v4446
        %v4910 = vmul.f32 %v4814, %v4446
        %v4911 = vmul.f32 %v4819, %v4446
        %v4912 = vmul.f32 %v4824, %v4446
        %v4913 = vmul.f32 %v4829, %v4446
        %v4914 = vmul.f32 %v4834, %v4446
        %v4915 = vmul.f32 %v4839, %v4446
        %v4916 = vmul.f32 %v4844, %v4446
        %v4917 = vmul.f32 %v4849, %v4446
        %v4918 = vmul.f32 %v4854, %v4446
        %v4919 = vmul.f32 %v4859, %v4446
        %v4920 = vmul.f32 %v4864, %v4446
        %v4921 = vmul.f32 %v4869, %v4446
        %v4922 = vmul.f32 %v4874, %v4446
        %v4923 = vmul.f32 %v4879, %v4446
        %v4924 = vmul.f32 %v4884, %v4446
        %v4925 = vmul.f32 %v4889, %v4446
        %v4926 = vmul.f32 %v4894, %v4446
        %v4927 = vadd.f32 %v4895, 1e-05
        %v4928 = vadd.f32 %v4896, 1e-05
        %v4929 = vadd.f32 %v4897, 1e-05
        %v4930 = vadd.f32 %v4898, 1e-05
        %v4931 = vadd.f32 %v4899, 1e-05
        %v4932 = vadd.f32 %v4900, 1e-05
        %v4933 = vadd.f32 %v4901, 1e-05
        %v4934 = vadd.f32 %v4902, 1e-05
        %v4935 = vadd.f32 %v4903, 1e-05
        %v4936 = vadd.f32 %v4904, 1e-05
        %v4937 = vadd.f32 %v4905, 1e-05
        %v4938 = vadd.f32 %v4906, 1e-05
        %v4939 = vadd.f32 %v4907, 1e-05
        %v4940 = vadd.f32 %v4908, 1e-05
        %v4941 = vadd.f32 %v4909, 1e-05
        %v4942 = vadd.f32 %v4910, 1e-05
        %v4943 = vadd.f32 %v4911, 1e-05
        %v4944 = vadd.f32 %v4912, 1e-05
        %v4945 = vadd.f32 %v4913, 1e-05
        %v4946 = vadd.f32 %v4914, 1e-05
        %v4947 = vadd.f32 %v4915, 1e-05
        %v4948 = vadd.f32 %v4916, 1e-05
        %v4949 = vadd.f32 %v4917, 1e-05
        %v4950 = vadd.f32 %v4918, 1e-05
        %v4951 = vadd.f32 %v4919, 1e-05
        %v4952 = vadd.f32 %v4920, 1e-05
        %v4953 = vadd.f32 %v4921, 1e-05
        %v4954 = vadd.f32 %v4922, 1e-05
        %v4955 = vadd.f32 %v4923, 1e-05
        %v4956 = vadd.f32 %v4924, 1e-05
        %v4957 = vadd.f32 %v4925, 1e-05
        %v4958 = vadd.f32 %v4926, 1e-05
        %v4959 = vrsqrt.pop %v4927
        %v4960 = vrsqrt.pop %v4928
        %v4961 = vrsqrt.pop %v4929
        %v4962 = vrsqrt.pop %v4930
        %v4963 = vrsqrt.pop %v4931
        %v4964 = vrsqrt.pop %v4932
        %v4965 = vrsqrt.pop %v4933
        %v4966 = vrsqrt.pop %v4934
        %v4967 = vrsqrt.pop %v4935
        %v4968 = vrsqrt.pop %v4936
        %v4969 = vrsqrt.pop %v4937
        %v4970 = vrsqrt.pop %v4938
        %v4971 = vrsqrt.pop %v4939
        %v4972 = vrsqrt.pop %v4940
        %v4973 = vrsqrt.pop %v4941
        %v4974 = vrsqrt.pop %v4942
        %v4975 = vrsqrt.pop %v4943
        %v4976 = vrsqrt.pop %v4944
        %v4977 = vrsqrt.pop %v4945
        %v4978 = vrsqrt.pop %v4946
        %v4979 = vrsqrt.pop %v4947
        %v4980 = vrsqrt.pop %v4948
        %v4981 = vrsqrt.pop %v4949
        %v4982 = vrsqrt.pop %v4950
        %v4983 = vrsqrt.pop %v4951
        %v4984 = vrsqrt.pop %v4952
        %v4985 = vrsqrt.pop %v4953
        %v4986 = vrsqrt.pop %v4954
        %v4987 = vrsqrt.pop %v4955
        %v4988 = vrsqrt.pop %v4956
        %v4989 = vrsqrt.pop %v4957
        %v4990 = vrsqrt.pop %v4958
        %v4991 = vmul.f32 %v4479, %v4959
        %v4992 = vmul.f32 %v4480, %v4959
        %v4993 = vmul.f32 %v4481, %v4959
        %v4994 = vmul.f32 %v4482, %v4959
        %v4995 = vmul.f32 %v4483, %v4960
        %v4996 = vmul.f32 %v4484, %v4960
        %v4997 = vmul.f32 %v4485, %v4960
        %v4998 = vmul.f32 %v4486, %v4960
        %v4999 = vmul.f32 %v4487, %v4961
        %v5000 = vmul.f32 %v4488, %v4961
        %v5001 = vmul.f32 %v4489, %v4961
        %v5002 = vmul.f32 %v4490, %v4961
        %v5003 = vmul.f32 %v4491, %v4962
        %v5004 = vmul.f32 %v4492, %v4962
        %v5005 = vmul.f32 %v4493, %v4962
        %v5006 = vmul.f32 %v4494, %v4962
        %v5007 = vmul.f32 %v4495, %v4963
        %v5008 = vmul.f32 %v4496, %v4963
        %v5009 = vmul.f32 %v4497, %v4963
        %v5010 = vmul.f32 %v4498, %v4963
        %v5011 = vmul.f32 %v4499, %v4964
        %v5012 = vmul.f32 %v4500, %v4964
        %v5013 = vmul.f32 %v4501, %v4964
        %v5014 = vmul.f32 %v4502, %v4964
        %v5015 = vmul.f32 %v4503, %v4965
        %v5016 = vmul.f32 %v4504, %v4965
        %v5017 = vmul.f32 %v4505, %v4965
        %v5018 = vmul.f32 %v4506, %v4965
        %v5019 = vmul.f32 %v4507, %v4966
        %v5020 = vmul.f32 %v4508, %v4966
        %v5021 = vmul.f32 %v4509, %v4966
        %v5022 = vmul.f32 %v4510, %v4966
        %v5023 = vmul.f32 %v4511, %v4967
        %v5024 = vmul.f32 %v4512, %v4967
        %v5025 = vmul.f32 %v4513, %v4967
        %v5026 = vmul.f32 %v4514, %v4967
        %v5027 = vmul.f32 %v4515, %v4968
        %v5028 = vmul.f32 %v4516, %v4968
        %v5029 = vmul.f32 %v4517, %v4968
        %v5030 = vmul.f32 %v4518, %v4968
        %v5031 = vmul.f32 %v4519, %v4969
        %v5032 = vmul.f32 %v4520, %v4969
        %v5033 = vmul.f32 %v4521, %v4969
        %v5034 = vmul.f32 %v4522, %v4969
        %v5035 = vmul.f32 %v4523, %v4970
        %v5036 = vmul.f32 %v4524, %v4970
        %v5037 = vmul.f32 %v4525, %v4970
        %v5038 = vmul.f32 %v4526, %v4970
        %v5039 = vmul.f32 %v4527, %v4971
        %v5040 = vmul.f32 %v4528, %v4971
        %v5041 = vmul.f32 %v4529, %v4971
        %v5042 = vmul.f32 %v4530, %v4971
        %v5043 = vmul.f32 %v4531, %v4972
        %v5044 = vmul.f32 %v4532, %v4972
        %v5045 = vmul.f32 %v4533, %v4972
        %v5046 = vmul.f32 %v4534, %v4972
        %v5047 = vmul.f32 %v4535, %v4973
        %v5048 = vmul.f32 %v4536, %v4973
        %v5049 = vmul.f32 %v4537, %v4973
        %v5050 = vmul.f32 %v4538, %v4973
        %v5051 = vmul.f32 %v4539, %v4974
        %v5052 = vmul.f32 %v4540, %v4974
        %v5053 = vmul.f32 %v4541, %v4974
        %v5054 = vmul.f32 %v4542, %v4974
        %v5055 = vmul.f32 %v4543, %v4975
        %v5056 = vmul.f32 %v4544, %v4975
        %v5057 = vmul.f32 %v4545, %v4975
        %v5058 = vmul.f32 %v4546, %v4975
        %v5059 = vmul.f32 %v4547, %v4976
        %v5060 = vmul.f32 %v4548, %v4976
        %v5061 = vmul.f32 %v4549, %v4976
        %v5062 = vmul.f32 %v4550, %v4976
        %v5063 = vmul.f32 %v4551, %v4977
        %v5064 = vmul.f32 %v4552, %v4977
        %v5065 = vmul.f32 %v4553, %v4977
        %v5066 = vmul.f32 %v4554, %v4977
        %v5067 = vmul.f32 %v4555, %v4978
        %v5068 = vmul.f32 %v4556, %v4978
        %v5069 = vmul.f32 %v4557, %v4978
        %v5070 = vmul.f32 %v4558, %v4978
        %v5071 = vmul.f32 %v4559, %v4979
        %v5072 = vmul.f32 %v4560, %v4979
        %v5073 = vmul.f32 %v4561, %v4979
        %v5074 = vmul.f32 %v4562, %v4979
        %v5075 = vmul.f32 %v4563, %v4980
        %v5076 = vmul.f32 %v4564, %v4980
        %v5077 = vmul.f32 %v4565, %v4980
        %v5078 = vmul.f32 %v4566, %v4980
        %v5079 = vmul.f32 %v4567, %v4981
        %v5080 = vmul.f32 %v4568, %v4981
        %v5081 = vmul.f32 %v4569, %v4981
        %v5082 = vmul.f32 %v4570, %v4981
        %v5083 = vmul.f32 %v4571, %v4982
        %v5084 = vmul.f32 %v4572, %v4982
        %v5085 = vmul.f32 %v4573, %v4982
        %v5086 = vmul.f32 %v4574, %v4982
        %v5087 = vmul.f32 %v4575, %v4983
        %v5088 = vmul.f32 %v4576, %v4983
        %v5089 = vmul.f32 %v4577, %v4983
        %v5090 = vmul.f32 %v4578, %v4983
        %v5091 = vmul.f32 %v4579, %v4984
        %v5092 = vmul.f32 %v4580, %v4984
        %v5093 = vmul.f32 %v4581, %v4984
        %v5094 = vmul.f32 %v4582, %v4984
        %v5095 = vmul.f32 %v4583, %v4985
        %v5096 = vmul.f32 %v4584, %v4985
        %v5097 = vmul.f32 %v4585, %v4985
        %v5098 = vmul.f32 %v4586, %v4985
        %v5099 = vmul.f32 %v4587, %v4986
        %v5100 = vmul.f32 %v4588, %v4986
        %v5101 = vmul.f32 %v4589, %v4986
        %v5102 = vmul.f32 %v4590, %v4986
        %v5103 = vmul.f32 %v4591, %v4987
        %v5104 = vmul.f32 %v4592, %v4987
        %v5105 = vmul.f32 %v4593, %v4987
        %v5106 = vmul.f32 %v4594, %v4987
        %v5107 = vmul.f32 %v4595, %v4988
        %v5108 = vmul.f32 %v4596, %v4988
        %v5109 = vmul.f32 %v4597, %v4988
        %v5110 = vmul.f32 %v4598, %v4988
        %v5111 = vmul.f32 %v4599, %v4989
        %v5112 = vmul.f32 %v4600, %v4989
        %v5113 = vmul.f32 %v4601, %v4989
        %v5114 = vmul.f32 %v4602, %v4989
        %v5115 = vmul.f32 %v4603, %v4990
        %v5116 = vmul.f32 %v4604, %v4990
        %v5117 = vmul.f32 %v4605, %v4990
        %v5118 = vmul.f32 %v4606, %v4990
        %v5120 = vlaneseq
        %v5121 = vshrl.u32 %v5120, 7
        %v5122 = vsub.s32 0, %v5121
        %v5123 = vrot.slane %v265, %v5122
        %v5124 = vlaneseq
        %v5125 = vshrl.u32 %v5124, 7
        %v5126 = vsub.s32 1, %v5125
        %v5127 = vrot.slane %v265, %v5126
        %v5128 = vlaneseq
        %v5129 = vshrl.u32 %v5128, 7
        %v5130 = vsub.s32 2, %v5129
        %v5131 = vrot.slane %v265, %v5130
        %v5132 = vlaneseq
        %v5133 = vshrl.u32 %v5132, 7
        %v5134 = vsub.s32 3, %v5133
        %v5135 = vrot.slane %v265, %v5134
        %v5140 = vmul.f32 %v4991, %v5123
        %v5141 = vmul.f32 %v4992, %v5127
        %v5142 = vmul.f32 %v4993, %v5131
        %v5143 = vmul.f32 %v4994, %v5135
        %v5144 = vmul.f32 %v4995, %v5123
        %v5145 = vmul.f32 %v4996, %v5127
        %v5146 = vmul.f32 %v4997, %v5131
        %v5147 = vmul.f32 %v4998, %v5135
        %v5148 = vmul.f32 %v4999, %v5123
        %v5149 = vmul.f32 %v5000, %v5127
        %v5150 = vmul.f32 %v5001, %v5131
        %v5151 = vmul.f32 %v5002, %v5135
        %v5152 = vmul.f32 %v5003, %v5123
        %v5153 = vmul.f32 %v5004, %v5127
        %v5154 = vmul.f32 %v5005, %v5131
        %v5155 = vmul.f32 %v5006, %v5135
        %v5156 = vmul.f32 %v5007, %v5123
        %v5157 = vmul.f32 %v5008, %v5127
        %v5158 = vmul.f32 %v5009, %v5131
        %v5159 = vmul.f32 %v5010, %v5135
        %v5160 = vmul.f32 %v5011, %v5123
        %v5161 = vmul.f32 %v5012, %v5127
        %v5162 = vmul.f32 %v5013, %v5131
        %v5163 = vmul.f32 %v5014, %v5135
        %v5164 = vmul.f32 %v5015, %v5123
        %v5165 = vmul.f32 %v5016, %v5127
        %v5166 = vmul.f32 %v5017, %v5131
        %v5167 = vmul.f32 %v5018, %v5135
        %v5168 = vmul.f32 %v5019, %v5123
        %v5169 = vmul.f32 %v5020, %v5127
        %v5170 = vmul.f32 %v5021, %v5131
        %v5171 = vmul.f32 %v5022, %v5135
        %v5172 = vmul.f32 %v5023, %v5123
        %v5173 = vmul.f32 %v5024, %v5127
        %v5174 = vmul.f32 %v5025, %v5131
        %v5175 = vmul.f32 %v5026, %v5135
        %v5176 = vmul.f32 %v5027, %v5123
        %v5177 = vmul.f32 %v5028, %v5127
        %v5178 = vmul.f32 %v5029, %v5131
        %v5179 = vmul.f32 %v5030, %v5135
        %v5180 = vmul.f32 %v5031, %v5123
        %v5181 = vmul.f32 %v5032, %v5127
        %v5182 = vmul.f32 %v5033, %v5131
        %v5183 = vmul.f32 %v5034, %v5135
        %v5184 = vmul.f32 %v5035, %v5123
        %v5185 = vmul.f32 %v5036, %v5127
        %v5186 = vmul.f32 %v5037, %v5131
        %v5187 = vmul.f32 %v5038, %v5135
        %v5188 = vmul.f32 %v5039, %v5123
        %v5189 = vmul.f32 %v5040, %v5127
        %v5190 = vmul.f32 %v5041, %v5131
        %v5191 = vmul.f32 %v5042, %v5135
        %v5192 = vmul.f32 %v5043, %v5123
        %v5193 = vmul.f32 %v5044, %v5127
        %v5194 = vmul.f32 %v5045, %v5131
        %v5195 = vmul.f32 %v5046, %v5135
        %v5196 = vmul.f32 %v5047, %v5123
        %v5197 = vmul.f32 %v5048, %v5127
        %v5198 = vmul.f32 %v5049, %v5131
        %v5199 = vmul.f32 %v5050, %v5135
        %v5200 = vmul.f32 %v5051, %v5123
        %v5201 = vmul.f32 %v5052, %v5127
        %v5202 = vmul.f32 %v5053, %v5131
        %v5203 = vmul.f32 %v5054, %v5135
        %v5204 = vmul.f32 %v5055, %v5123
        %v5205 = vmul.f32 %v5056, %v5127
        %v5206 = vmul.f32 %v5057, %v5131
        %v5207 = vmul.f32 %v5058, %v5135
        %v5208 = vmul.f32 %v5059, %v5123
        %v5209 = vmul.f32 %v5060, %v5127
        %v5210 = vmul.f32 %v5061, %v5131
        %v5211 = vmul.f32 %v5062, %v5135
        %v5212 = vmul.f32 %v5063, %v5123
        %v5213 = vmul.f32 %v5064, %v5127
        %v5214 = vmul.f32 %v5065, %v5131
        %v5215 = vmul.f32 %v5066, %v5135
        %v5216 = vmul.f32 %v5067, %v5123
        %v5217 = vmul.f32 %v5068, %v5127
        %v5218 = vmul.f32 %v5069, %v5131
        %v5219 = vmul.f32 %v5070, %v5135
        %v5220 = vmul.f32 %v5071, %v5123
        %v5221 = vmul.f32 %v5072, %v5127
        %v5222 = vmul.f32 %v5073, %v5131
        %v5223 = vmul.f32 %v5074, %v5135
        %v5224 = vmul.f32 %v5075, %v5123
        %v5225 = vmul.f32 %v5076, %v5127
        %v5226 = vmul.f32 %v5077, %v5131
        %v5227 = vmul.f32 %v5078, %v5135
        %v5228 = vmul.f32 %v5079, %v5123
        %v5229 = vmul.f32 %v5080, %v5127
        %v5230 = vmul.f32 %v5081, %v5131
        %v5231 = vmul.f32 %v5082, %v5135
        %v5232 = vmul.f32 %v5083, %v5123
        %v5233 = vmul.f32 %v5084, %v5127
        %v5234 = vmul.f32 %v5085, %v5131
        %v5235 = vmul.f32 %v5086, %v5135
        %v5236 = vmul.f32 %v5087, %v5123
        %v5237 = vmul.f32 %v5088, %v5127
        %v5238 = vmul.f32 %v5089, %v5131
        %v5239 = vmul.f32 %v5090, %v5135
        %v5240 = vmul.f32 %v5091, %v5123
        %v5241 = vmul.f32 %v5092, %v5127
        %v5242 = vmul.f32 %v5093, %v5131
        %v5243 = vmul.f32 %v5094, %v5135
        %v5244 = vmul.f32 %v5095, %v5123
        %v5245 = vmul.f32 %v5096, %v5127
        %v5246 = vmul.f32 %v5097, %v5131
        %v5247 = vmul.f32 %v5098, %v5135
        %v5248 = vmul.f32 %v5099, %v5123
        %v5249 = vmul.f32 %v5100, %v5127
        %v5250 = vmul.f32 %v5101, %v5131
        %v5251 = vmul.f32 %v5102, %v5135
        %v5252 = vmul.f32 %v5103, %v5123
        %v5253 = vmul.f32 %v5104, %v5127
        %v5254 = vmul.f32 %v5105, %v5131
        %v5255 = vmul.f32 %v5106, %v5135
        %v5256 = vmul.f32 %v5107, %v5123
        %v5257 = vmul.f32 %v5108, %v5127
        %v5258 = vmul.f32 %v5109, %v5131
        %v5259 = vmul.f32 %v5110, %v5135
        %v5260 = vmul.f32 %v5111, %v5123
        %v5261 = vmul.f32 %v5112, %v5127
        %v5262 = vmul.f32 %v5113, %v5131
        %v5263 = vmul.f32 %v5114, %v5135
        %v5264 = vmul.f32 %v5115, %v5123
        %v5265 = vmul.f32 %v5116, %v5127
        %v5266 = vmul.f32 %v5117, %v5131
        %v5267 = vmul.f32 %v5118, %v5135
        %v5269 = vlaneseq
        %v5270 = vshrl.u32 %v5269, 7
        %v5271 = vsub.s32 0, %v5270
        %v5272 = vrot.slane %v267, %v5271
        %v5273 = vlaneseq
        %v5274 = vshrl.u32 %v5273, 7
        %v5275 = vsub.s32 1, %v5274
        %v5276 = vrot.slane %v267, %v5275
        %v5277 = vlaneseq
        %v5278 = vshrl.u32 %v5277, 7
        %v5279 = vsub.s32 2, %v5278
        %v5280 = vrot.slane %v267, %v5279
        %v5281 = vlaneseq
        %v5282 = vshrl.u32 %v5281, 7
        %v5283 = vsub.s32 3, %v5282
        %v5284 = vrot.slane %v267, %v5283
        %v5289 = vadd.f32 %v5140, %v5272
        %v5290 = vadd.f32 %v5141, %v5276
        %v5291 = vadd.f32 %v5142, %v5280
        %v5292 = vadd.f32 %v5143, %v5284
        %v5293 = vadd.f32 %v5144, %v5272
        %v5294 = vadd.f32 %v5145, %v5276
        %v5295 = vadd.f32 %v5146, %v5280
        %v5296 = vadd.f32 %v5147, %v5284
        %v5297 = vadd.f32 %v5148, %v5272
        %v5298 = vadd.f32 %v5149, %v5276
        %v5299 = vadd.f32 %v5150, %v5280
        %v5300 = vadd.f32 %v5151, %v5284
        %v5301 = vadd.f32 %v5152, %v5272
        %v5302 = vadd.f32 %v5153, %v5276
        %v5303 = vadd.f32 %v5154, %v5280
        %v5304 = vadd.f32 %v5155, %v5284
        %v5305 = vadd.f32 %v5156, %v5272
        %v5306 = vadd.f32 %v5157, %v5276
        %v5307 = vadd.f32 %v5158, %v5280
        %v5308 = vadd.f32 %v5159, %v5284
        %v5309 = vadd.f32 %v5160, %v5272
        %v5310 = vadd.f32 %v5161, %v5276
        %v5311 = vadd.f32 %v5162, %v5280
        %v5312 = vadd.f32 %v5163, %v5284
        %v5313 = vadd.f32 %v5164, %v5272
        %v5314 = vadd.f32 %v5165, %v5276
        %v5315 = vadd.f32 %v5166, %v5280
        %v5316 = vadd.f32 %v5167, %v5284
        %v5317 = vadd.f32 %v5168, %v5272
        %v5318 = vadd.f32 %v5169, %v5276
        %v5319 = vadd.f32 %v5170, %v5280
        %v5320 = vadd.f32 %v5171, %v5284
        %v5321 = vadd.f32 %v5172, %v5272
        %v5322 = vadd.f32 %v5173, %v5276
        %v5323 = vadd.f32 %v5174, %v5280
        %v5324 = vadd.f32 %v5175, %v5284
        %v5325 = vadd.f32 %v5176, %v5272
        %v5326 = vadd.f32 %v5177, %v5276
        %v5327 = vadd.f32 %v5178, %v5280
        %v5328 = vadd.f32 %v5179, %v5284
        %v5329 = vadd.f32 %v5180, %v5272
        %v5330 = vadd.f32 %v5181, %v5276
        %v5331 = vadd.f32 %v5182, %v5280
        %v5332 = vadd.f32 %v5183, %v5284
        %v5333 = vadd.f32 %v5184, %v5272
        %v5334 = vadd.f32 %v5185, %v5276
        %v5335 = vadd.f32 %v5186, %v5280
        %v5336 = vadd.f32 %v5187, %v5284
        %v5337 = vadd.f32 %v5188, %v5272
        %v5338 = vadd.f32 %v5189, %v5276
        %v5339 = vadd.f32 %v5190, %v5280
        %v5340 = vadd.f32 %v5191, %v5284
        %v5341 = vadd.f32 %v5192, %v5272
        %v5342 = vadd.f32 %v5193, %v5276
        %v5343 = vadd.f32 %v5194, %v5280
        %v5344 = vadd.f32 %v5195, %v5284
        %v5345 = vadd.f32 %v5196, %v5272
        %v5346 = vadd.f32 %v5197, %v5276
        %v5347 = vadd.f32 %v5198, %v5280
        %v5348 = vadd.f32 %v5199, %v5284
        %v5349 = vadd.f32 %v5200, %v5272
        %v5350 = vadd.f32 %v5201, %v5276
        %v5351 = vadd.f32 %v5202, %v5280
        %v5352 = vadd.f32 %v5203, %v5284
        %v5353 = vadd.f32 %v5204, %v5272
        %v5354 = vadd.f32 %v5205, %v5276
        %v5355 = vadd.f32 %v5206, %v5280
        %v5356 = vadd.f32 %v5207, %v5284
        %v5357 = vadd.f32 %v5208, %v5272
        %v5358 = vadd.f32 %v5209, %v5276
        %v5359 = vadd.f32 %v5210, %v5280
        %v5360 = vadd.f32 %v5211, %v5284
        %v5361 = vadd.f32 %v5212, %v5272
        %v5362 = vadd.f32 %v5213, %v5276
        %v5363 = vadd.f32 %v5214, %v5280
        %v5364 = vadd.f32 %v5215, %v5284
        %v5365 = vadd.f32 %v5216, %v5272
        %v5366 = vadd.f32 %v5217, %v5276
        %v5367 = vadd.f32 %v5218, %v5280
        %v5368 = vadd.f32 %v5219, %v5284
        %v5369 = vadd.f32 %v5220, %v5272
        %v5370 = vadd.f32 %v5221, %v5276
        %v5371 = vadd.f32 %v5222, %v5280
        %v5372 = vadd.f32 %v5223, %v5284
        %v5373 = vadd.f32 %v5224, %v5272
        %v5374 = vadd.f32 %v5225, %v5276
        %v5375 = vadd.f32 %v5226, %v5280
        %v5376 = vadd.f32 %v5227, %v5284
        %v5377 = vadd.f32 %v5228, %v5272
        %v5378 = vadd.f32 %v5229, %v5276
        %v5379 = vadd.f32 %v5230, %v5280
        %v5380 = vadd.f32 %v5231, %v5284
        %v5381 = vadd.f32 %v5232, %v5272
        %v5382 = vadd.f32 %v5233, %v5276
        %v5383 = vadd.f32 %v5234, %v5280
        %v5384 = vadd.f32 %v5235, %v5284
        %v5385 = vadd.f32 %v5236, %v5272
        %v5386 = vadd.f32 %v5237, %v5276
        %v5387 = vadd.f32 %v5238, %v5280
        %v5388 = vadd.f32 %v5239, %v5284
        %v5389 = vadd.f32 %v5240, %v5272
        %v5390 = vadd.f32 %v5241, %v5276
        %v5391 = vadd.f32 %v5242, %v5280
        %v5392 = vadd.f32 %v5243, %v5284
        %v5393 = vadd.f32 %v5244, %v5272
        %v5394 = vadd.f32 %v5245, %v5276
        %v5395 = vadd.f32 %v5246, %v5280
        %v5396 = vadd.f32 %v5247, %v5284
        %v5397 = vadd.f32 %v5248, %v5272
        %v5398 = vadd.f32 %v5249, %v5276
        %v5399 = vadd.f32 %v5250, %v5280
        %v5400 = vadd.f32 %v5251, %v5284
        %v5401 = vadd.f32 %v5252, %v5272
        %v5402 = vadd.f32 %v5253, %v5276
        %v5403 = vadd.f32 %v5254, %v5280
        %v5404 = vadd.f32 %v5255, %v5284
        %v5405 = vadd.f32 %v5256, %v5272
        %v5406 = vadd.f32 %v5257, %v5276
        %v5407 = vadd.f32 %v5258, %v5280
        %v5408 = vadd.f32 %v5259, %v5284
        %v5409 = vadd.f32 %v5260, %v5272
        %v5410 = vadd.f32 %v5261, %v5276
        %v5411 = vadd.f32 %v5262, %v5280
        %v5412 = vadd.f32 %v5263, %v5284
        %v5413 = vadd.f32 %v5264, %v5272
        %v5414 = vadd.f32 %v5265, %v5276
        %v5415 = vadd.f32 %v5266, %v5280
        %v5416 = vadd.f32 %v5267, %v5284
        %5417 = vst [vmem:[%s258] sm:$0xff] %v5289
        %5418 = vst [vmem:[%s258 + $0x8] sm:$0xff] %v5290
        %5419 = vst [vmem:[%s258 + $0x10] sm:$0xff] %v5291
        %5420 = vst [vmem:[%s258 + $0x18] sm:$0xff] %v5292
        %5421 = vst [vmem:[%s258 + $0x20] sm:$0xff] %v5293
        %5422 = vst [vmem:[%s258 + $0x28] sm:$0xff] %v5294
        %5423 = vst [vmem:[%s258 + $0x30] sm:$0xff] %v5295
        %5424 = vst [vmem:[%s258 + $0x38] sm:$0xff] %v5296
        %5425 = vst [vmem:[%s258 + $0x40] sm:$0xff] %v5297
        %5426 = vst [vmem:[%s258 + $0x48] sm:$0xff] %v5298
        %5427 = vst [vmem:[%s258 + $0x50] sm:$0xff] %v5299
        %5428 = vst [vmem:[%s258 + $0x58] sm:$0xff] %v5300
        %5429 = vst [vmem:[%s258 + $0x60] sm:$0xff] %v5301
        %5430 = vst [vmem:[%s258 + $0x68] sm:$0xff] %v5302
        %5431 = vst [vmem:[%s258 + $0x70] sm:$0xff] %v5303
        %5432 = vst [vmem:[%s258 + $0x78] sm:$0xff] %v5304
        %5433 = vst [vmem:[%s258 + $0x80] sm:$0xff] %v5305
        %5434 = vst [vmem:[%s258 + $0x88] sm:$0xff] %v5306
        %5435 = vst [vmem:[%s258 + $0x90] sm:$0xff] %v5307
        %5436 = vst [vmem:[%s258 + $0x98] sm:$0xff] %v5308
        %5437 = vst [vmem:[%s258 + $0xa0] sm:$0xff] %v5309
        %5438 = vst [vmem:[%s258 + $0xa8] sm:$0xff] %v5310
        %5439 = vst [vmem:[%s258 + $0xb0] sm:$0xff] %v5311
        %5440 = vst [vmem:[%s258 + $0xb8] sm:$0xff] %v5312
        %5441 = vst [vmem:[%s258 + $0xc0] sm:$0xff] %v5313
        %5442 = vst [vmem:[%s258 + $0xc8] sm:$0xff] %v5314
        %5443 = vst [vmem:[%s258 + $0xd0] sm:$0xff] %v5315
        %5444 = vst [vmem:[%s258 + $0xd8] sm:$0xff] %v5316
        %5445 = vst [vmem:[%s258 + $0xe0] sm:$0xff] %v5317
        %5446 = vst [vmem:[%s258 + $0xe8] sm:$0xff] %v5318
        %5447 = vst [vmem:[%s258 + $0xf0] sm:$0xff] %v5319
        %5448 = vst [vmem:[%s258 + $0xf8] sm:$0xff] %v5320
        %5449 = vst [vmem:[%s258 + $0x100] sm:$0xff] %v5321
        %5450 = vst [vmem:[%s258 + $0x108] sm:$0xff] %v5322
        %5451 = vst [vmem:[%s258 + $0x110] sm:$0xff] %v5323
        %5452 = vst [vmem:[%s258 + $0x118] sm:$0xff] %v5324
        %5453 = vst [vmem:[%s258 + $0x120] sm:$0xff] %v5325
        %5454 = vst [vmem:[%s258 + $0x128] sm:$0xff] %v5326
        %5455 = vst [vmem:[%s258 + $0x130] sm:$0xff] %v5327
        %5456 = vst [vmem:[%s258 + $0x138] sm:$0xff] %v5328
        %5457 = vst [vmem:[%s258 + $0x140] sm:$0xff] %v5329
        %5458 = vst [vmem:[%s258 + $0x148] sm:$0xff] %v5330
        %5459 = vst [vmem:[%s258 + $0x150] sm:$0xff] %v5331
        %5460 = vst [vmem:[%s258 + $0x158] sm:$0xff] %v5332
        %5461 = vst [vmem:[%s258 + $0x160] sm:$0xff] %v5333
        %5462 = vst [vmem:[%s258 + $0x168] sm:$0xff] %v5334
        %5463 = vst [vmem:[%s258 + $0x170] sm:$0xff] %v5335
        %5464 = vst [vmem:[%s258 + $0x178] sm:$0xff] %v5336
        %5465 = vst [vmem:[%s258 + $0x180] sm:$0xff] %v5337
        %5466 = vst [vmem:[%s258 + $0x188] sm:$0xff] %v5338
        %5467 = vst [vmem:[%s258 + $0x190] sm:$0xff] %v5339
        %5468 = vst [vmem:[%s258 + $0x198] sm:$0xff] %v5340
        %5469 = vst [vmem:[%s258 + $0x1a0] sm:$0xff] %v5341
        %5470 = vst [vmem:[%s258 + $0x1a8] sm:$0xff] %v5342
        %5471 = vst [vmem:[%s258 + $0x1b0] sm:$0xff] %v5343
        %5472 = vst [vmem:[%s258 + $0x1b8] sm:$0xff] %v5344
        %5473 = vst [vmem:[%s258 + $0x1c0] sm:$0xff] %v5345
        %5474 = vst [vmem:[%s258 + $0x1c8] sm:$0xff] %v5346
        %5475 = vst [vmem:[%s258 + $0x1d0] sm:$0xff] %v5347
        %5476 = vst [vmem:[%s258 + $0x1d8] sm:$0xff] %v5348
        %5477 = vst [vmem:[%s258 + $0x1e0] sm:$0xff] %v5349
        %5478 = vst [vmem:[%s258 + $0x1e8] sm:$0xff] %v5350
        %5479 = vst [vmem:[%s258 + $0x1f0] sm:$0xff] %v5351
        %5480 = vst [vmem:[%s258 + $0x1f8] sm:$0xff] %v5352
        %5481 = vst [vmem:[%s258 + $0x200] sm:$0xff] %v5353
        %5482 = vst [vmem:[%s258 + $0x208] sm:$0xff] %v5354
        %5483 = vst [vmem:[%s258 + $0x210] sm:$0xff] %v5355
        %5484 = vst [vmem:[%s258 + $0x218] sm:$0xff] %v5356
        %5485 = vst [vmem:[%s258 + $0x220] sm:$0xff] %v5357
        %5486 = vst [vmem:[%s258 + $0x228] sm:$0xff] %v5358
        %5487 = vst [vmem:[%s258 + $0x230] sm:$0xff] %v5359
        %5488 = vst [vmem:[%s258 + $0x238] sm:$0xff] %v5360
        %5489 = vst [vmem:[%s258 + $0x240] sm:$0xff] %v5361
        %5490 = vst [vmem:[%s258 + $0x248] sm:$0xff] %v5362
        %5491 = vst [vmem:[%s258 + $0x250] sm:$0xff] %v5363
        %5492 = vst [vmem:[%s258 + $0x258] sm:$0xff] %v5364
        %5493 = vst [vmem:[%s258 + $0x260] sm:$0xff] %v5365
        %5494 = vst [vmem:[%s258 + $0x268] sm:$0xff] %v5366
        %5495 = vst [vmem:[%s258 + $0x270] sm:$0xff] %v5367
        %5496 = vst [vmem:[%s258 + $0x278] sm:$0xff] %v5368
        %5497 = vst [vmem:[%s258 + $0x280] sm:$0xff] %v5369
        %5498 = vst [vmem:[%s258 + $0x288] sm:$0xff] %v5370
        %5499 = vst [vmem:[%s258 + $0x290] sm:$0xff] %v5371
        %5500 = vst [vmem:[%s258 + $0x298] sm:$0xff] %v5372
        %5501 = vst [vmem:[%s258 + $0x2a0] sm:$0xff] %v5373
        %5502 = vst [vmem:[%s258 + $0x2a8] sm:$0xff] %v5374
        %5503 = vst [vmem:[%s258 + $0x2b0] sm:$0xff] %v5375
        %5504 = vst [vmem:[%s258 + $0x2b8] sm:$0xff] %v5376
        %5505 = vst [vmem:[%s258 + $0x2c0] sm:$0xff] %v5377
        %5506 = vst [vmem:[%s258 + $0x2c8] sm:$0xff] %v5378
        %5507 = vst [vmem:[%s258 + $0x2d0] sm:$0xff] %v5379
        %5508 = vst [vmem:[%s258 + $0x2d8] sm:$0xff] %v5380
        %5509 = vst [vmem:[%s258 + $0x2e0] sm:$0xff] %v5381
        %5510 = vst [vmem:[%s258 + $0x2e8] sm:$0xff] %v5382
        %5511 = vst [vmem:[%s258 + $0x2f0] sm:$0xff] %v5383
        %5512 = vst [vmem:[%s258 + $0x2f8] sm:$0xff] %v5384
        %5513 = vst [vmem:[%s258 + $0x300] sm:$0xff] %v5385
        %5514 = vst [vmem:[%s258 + $0x308] sm:$0xff] %v5386
        %5515 = vst [vmem:[%s258 + $0x310] sm:$0xff] %v5387
        %5516 = vst [vmem:[%s258 + $0x318] sm:$0xff] %v5388
        %5517 = vst [vmem:[%s258 + $0x320] sm:$0xff] %v5389
        %5518 = vst [vmem:[%s258 + $0x328] sm:$0xff] %v5390
        %5519 = vst [vmem:[%s258 + $0x330] sm:$0xff] %v5391
        %5520 = vst [vmem:[%s258 + $0x338] sm:$0xff] %v5392
        %5521 = vst [vmem:[%s258 + $0x340] sm:$0xff] %v5393
        %5522 = vst [vmem:[%s258 + $0x348] sm:$0xff] %v5394
        %5523 = vst [vmem:[%s258 + $0x350] sm:$0xff] %v5395
        %5524 = vst [vmem:[%s258 + $0x358] sm:$0xff] %v5396
        %5525 = vst [vmem:[%s258 + $0x360] sm:$0xff] %v5397
        %5526 = vst [vmem:[%s258 + $0x368] sm:$0xff] %v5398
        %5527 = vst [vmem:[%s258 + $0x370] sm:$0xff] %v5399
        %5528 = vst [vmem:[%s258 + $0x378] sm:$0xff] %v5400
        %5529 = vst [vmem:[%s258 + $0x380] sm:$0xff] %v5401
        %5530 = vst [vmem:[%s258 + $0x388] sm:$0xff] %v5402
        %5531 = vst [vmem:[%s258 + $0x390] sm:$0xff] %v5403
        %5532 = vst [vmem:[%s258 + $0x398] sm:$0xff] %v5404
        %5533 = vst [vmem:[%s258 + $0x3a0] sm:$0xff] %v5405
        %5534 = vst [vmem:[%s258 + $0x3a8] sm:$0xff] %v5406
        %5535 = vst [vmem:[%s258 + $0x3b0] sm:$0xff] %v5407
        %5536 = vst [vmem:[%s258 + $0x3b8] sm:$0xff] %v5408
        %5537 = vst [vmem:[%s258 + $0x3c0] sm:$0xff] %v5409
        %5538 = vst [vmem:[%s258 + $0x3c8] sm:$0xff] %v5410
        %5539 = vst [vmem:[%s258 + $0x3d0] sm:$0xff] %v5411
        %5540 = vst [vmem:[%s258 + $0x3d8] sm:$0xff] %v5412
        %5541 = vst [vmem:[%s258 + $0x3e0] sm:$0xff] %v5413
        %5542 = vst [vmem:[%s258 + $0x3e8] sm:$0xff] %v5414
        %5543 = vst [vmem:[%s258 + $0x3f0] sm:$0xff] %v5415
        %5544 = vst [vmem:[%s258 + $0x3f8] sm:$0xff] %v5416
        %s5545 = sand.u32 %s120, 1
        %s5546 = scalar_lea.sflag [#allocation4], %s5545
        %s5547 = sand.u32 %s120, 1
        %s5548 = smul.addr %s5547, 1024
        %s5549 = scalar_lea.vmem [#allocation10], %s5548
        // Predicated region
        $region53: #{tpu_custom_call.1} parent=35 // pred_check
          %p5550 = pneg %p130
        $region54: #{tpu_custom_call.1} parent=35 // pred_check_branch
          %5552 = sbr.rel (%p5550) target = $region56
        $region55: #{tpu_custom_call.1} parent=35 // pred_region
          %s5553 = smul.u32 32, %s23
          %s5555 = ssub.s32 16384, 16384
          %5556 = vsyncadd %s5546, %s5555
          %s5557 = smul.addr %s5553, 4
          %s5558 = smul.addr %s5557, 128
          %s5559 = scalar_lea.hbm %s4, %s5558
          %s5560 = sshll.u32 %s5549, 4
          %s5561 = int_to_ptr.vmem [resolvable:$true] %s5560
          %5566 = dma.vmem_to_hbm [thread:$0]  %s5561, 16384, %s5559, %s5546, 512, 512, 32
        $region56: #{tpu_custom_call.1} parent=35 // pred_fallthru
          _
      $region36: #{tpu_custom_call.1} parent=5 // pred_fallthru
        _
      %p5567 = scmp.le.s32.totalorder 2, %s18
      // Predicated region
      $region57: #{tpu_custom_call.1} parent=5 // pred_check
        %p5568 = pneg %p5567
      $region58: #{tpu_custom_call.1} parent=5 // pred_check_branch
        %5570 = sbr.rel (%p5568) target = $region60
      $region59: #{tpu_custom_call.1} parent=5 // pred_region
        %s5571 = ssub.s32 %s18, 2
        // Predicated region
        $region61: #{tpu_custom_call.1} parent=59 // pred_check
          %p5572 = pneg %p136
        $region62: #{tpu_custom_call.1} parent=59 // pred_check_branch
          %5574 = sbr.rel (%p5572) target = $region64
        $region63: #{tpu_custom_call.1} parent=59 // pred_region
          %s5575 = sand.u32 %s121, 1
          %s5576 = scalar_lea.sflag [#allocation4], %s5575
          %s5577 = sand.u32 %s121, 1
          %s5578 = smul.addr %s5577, 1024
          %s5579 = scalar_lea.vmem [#allocation10], %s5578
          %5580 = dma.done %s5576, 16384
        $region64: #{tpu_custom_call.1} parent=59 // pred_fallthru
          _
      $region60: #{tpu_custom_call.1} parent=5 // pred_fallthru
        _
    $region6: #{tpu_custom_call.1} parent=1 // loop_footer
      %s22 = sadd.s32 1, %s18
    $region7: #{tpu_custom_call.1} parent=1 // loop_footer_branch
      %17 = sbr.rel target = $region3
    $region8: #{tpu_custom_call.1} parent=1 // loop_exit
      _
    %5581 = vsyncpa [#allocation3], 1
    %s5582 = scalar_lea.sflag [#allocation3], 1
    %5583 = vsyncpa %s5582, 1
    %5584 = vsyncpa [#allocation6], 1
    %5585 = vsyncpa [#allocation9], 1
    %5586 = vsyncpa [#allocation4], 1
    %s5587 = scalar_lea.sflag [#allocation4], 1
    %5588 = vsyncpa %s5587, 1

// kernel: tpu_custom_call.1
$region0: #{tpu_custom_call.1}
  #allocation0 [shape = 'u32[]', space=smem, size = 0x4, offset = 0x4, fixed_abs, tag = 'smem constant byte address 0x4 - core index']
  #allocation1 [shape = 'u32[144,128]{1,0:T(1,128)}', space=vmem, size = 0x12000, scoped, tag = 'internal scratch']
  %s0 = inlined_call_operand.hbm [shape: f32[512,512], index: 0, kind: input, shape index: {}]
  %s1 = inlined_call_operand.hbm [shape: bf16[512,512], index: 1, kind: input, shape index: {}]
  %s2 = inlined_call_operand.hbm [shape: bf16[512,512], index: 2, kind: input, shape index: {}]
  %s3 = inlined_call_operand.hbm [shape: f32[4,512], index: 3, kind: input, shape index: {}]
  %s4 = inlined_call_operand.hbm [shape: f32[512,512], index: 4, kind: output, shape index: {}]
  %s5 = sld [smem:[#allocation0]]
  $region65: #{tpu_custom_call.1} parent=0
    _
  %s7 = ssub.s32 1, %s5
  %s8 = scalar_select 0, %s7, %s5
  $region1: #{tpu_custom_call.1} parent=0
    #allocation2 [shape = 'u8[1048576]{0}', space=vmem, size = 0x100000, scoped, tag = 'input window, operand 0']
    #allocation3 [shape = 's32[2]{0}', space=sflag, size = 0x8, scoped, tag = 'scoped memory for tpu_custom_call.1']
    #allocation4 [shape = 's32[2]{0}', space=sflag, size = 0x8, scoped, tag = 'scoped memory for tpu_custom_call.1']
    #allocation5 [shape = 'u8[524288]{0}', space=vmem, size = 0x80000, scoped, tag = 'input window, operand 1, single buffered']
    #allocation6 [shape = 's32[1]{0}', space=sflag, size = 0x4, scoped, tag = 'scoped memory for tpu_custom_call.1']
    #allocation7 [shape = 'u8[524288]{0}', space=vmem, size = 0x80000, scoped, tag = 'input window, operand 2, single buffered']
    #allocation8 [shape = 'u8[8192]{0}', space=vmem, size = 0x2000, scoped, tag = 'input window, operand 3, single buffered']
    #allocation9 [shape = 's32[1]{0}', space=sflag, size = 0x4, scoped, tag = 'scoped memory for tpu_custom_call.1']
    #allocation10 [shape = 'u8[1048576]{0}', space=vmem, size = 0x100000, scoped, tag = 'output window, operand 0']
    %9 = vsyncpa [#allocation3], 0
    %s10 = scalar_lea.sflag [#allocation3], 1
    %11 = vsyncpa %s10, 0
    %12 = vsyncpa [#allocation6], 0
    %13 = vsyncpa [#allocation9], 0
    %14 = vsyncpa [#allocation4], 0
    %s15 = scalar_lea.sflag [#allocation4], 1
    %16 = vsyncpa %s15, 0
    loop: start=0, step=1, limit=4
    $region2: #{tpu_custom_call.1} parent=1 // loop_pre_header
      _
    $region3: #{tpu_custom_call.1} parent=1 // loop_header
      %s18 = sphi 0, %s22
      %p19 = scmp.ge.s32.totalorder %s18, 4
      %s28 = sphi 0, %s30
      %s31 = sphi 0, %s28
      %s32 = sphi 0, %s31
      %s48 = sphi 0, %s32
      %s52 = sphi 0, %s52
      %s54 = sphi 0, %s52
      %s55 = sphi 0, %s54
      %s69 = sphi 0, %s55
      %s73 = sphi 0, %s73
      %s75 = sphi 0, %s73
      %s76 = sphi 0, %s75
      %s90 = sphi 0, %s76
      %s94 = sphi 0, %s94
      %s96 = sphi 0, %s94
      %s97 = sphi 0, %s96
      %s111 = sphi 0, %s97
      %s117 = sphi 0, %s119
      %s120 = sphi 0, %s117
      %s121 = sphi 0, %s120
      %s137 = sphi 0, %s121
    $region4: #{tpu_custom_call.1} parent=1 // loop_header_branch
      %21 = sbr.rel (%p19) target = $region8
    $region5: #{tpu_custom_call.1} parent=1 // loop_body
      %s23 = ssub.s32 %s18, 1
      %s24 = ssub.s32 %s18, 2
      %s25 = sadd.s32 %s18, 1
      %s26 = ssub.s32 %s18, %s25
      %p27 = scmp.eq.s32.totalorder %s26, 0
      %s29 = sadd.s32 %s28, 1
      %s30 = scalar_select %p27, %s28, %s29
      %p33 = pneg %p27
      %p34 = scmp.eq.s32.totalorder %s18, 1
      %p35 = por %p33, %p34
      %p36 = scmp.ne.s32.totalorder %s28, %s31
      %p37 = scmp.eq.s32.totalorder %s18, 0
      %p38 = por %p36, %p37
      %p39 = scmp.ne.s32.totalorder %s28, %s31
      %p40 = scmp.eq.s32.totalorder %s23, 1
      %p41 = por %p39, %p40
      %p42 = scmp.ne.s32.totalorder %s31, %s32
      %p43 = scmp.eq.s32.totalorder %s23, 0
      %p44 = por %p42, %p43
      %p45 = scmp.ne.s32.totalorder %s31, %s32
      %p46 = scmp.eq.s32.totalorder %s24, 1
      %p47 = por %p45, %p46
      %p49 = scmp.ne.s32.totalorder %s32, %s48
      %p50 = scmp.eq.s32.totalorder %s24, 0
      %p51 = por %p49, %p50
      %s53 = sadd.s32 %s52, 1
      %p56 = scmp.eq.s32.totalorder %s18, 1
      %p57 = scmp.ne.s32.totalorder %s52, %s54
      %p58 = scmp.eq.s32.totalorder %s18, 0
      %p59 = por %p57, %p58
      %p60 = scmp.ne.s32.totalorder %s52, %s54
      %p61 = scmp.eq.s32.totalorder %s23, 1
      %p62 = por %p60, %p61
      %p63 = scmp.ne.s32.totalorder %s54, %s55
      %p64 = scmp.eq.s32.totalorder %s23, 0
      %p65 = por %p63, %p64
      %p66 = scmp.ne.s32.totalorder %s54, %s55
      %p67 = scmp.eq.s32.totalorder %s24, 1
      %p68 = por %p66, %p67
      %p70 = scmp.ne.s32.totalorder %s55, %s69
      %p71 = scmp.eq.s32.totalorder %s24, 0
      %p72 = por %p70, %p71
      %s74 = sadd.s32 %s73, 1
      %p77 = scmp.eq.s32.totalorder %s18, 1
      %p78 = scmp.ne.s32.totalorder %s73, %s75
      %p79 = scmp.eq.s32.totalorder %s18, 0
      %p80 = por %p78, %p79
      %p81 = scmp.ne.s32.totalorder %s73, %s75
      %p82 = scmp.eq.s32.totalorder %s23, 1
      %p83 = por %p81, %p82
      %p84 = scmp.ne.s32.totalorder %s75, %s76
      %p85 = scmp.eq.s32.totalorder %s23, 0
      %p86 = por %p84, %p85
      %p87 = scmp.ne.s32.totalorder %s75, %s76
      %p88 = scmp.eq.s32.totalorder %s24, 1
      %p89 = por %p87, %p88
      %p91 = scmp.ne.s32.totalorder %s76, %s90
      %p92 = scmp.eq.s32.totalorder %s24, 0
      %p93 = por %p91, %p92
      %s95 = sadd.s32 %s94, 1
      %p98 = scmp.eq.s32.totalorder %s18, 1
      %p99 = scmp.ne.s32.totalorder %s94, %s96
      %p100 = scmp.eq.s32.totalorder %s18, 0
      %p101 = por %p99, %p100
      %p102 = scmp.ne.s32.totalorder %s94, %s96
      %p103 = scmp.eq.s32.totalorder %s23, 1
      %p104 = por %p102, %p103
      %p105 = scmp.ne.s32.totalorder %s96, %s97
      %p106 = scmp.eq.s32.totalorder %s23, 0
      %p107 = por %p105, %p106
      %p108 = scmp.ne.s32.totalorder %s96, %s97
      %p109 = scmp.eq.s32.totalorder %s24, 1
      %p110 = por %p108, %p109
      %p112 = scmp.ne.s32.totalorder %s97, %s111
      %p113 = scmp.eq.s32.totalorder %s24, 0
      %p114 = por %p112, %p113
      %s115 = ssub.s32 %s18, %s25
      %p116 = scmp.eq.s32.totalorder %s115, 0
      %s118 = sadd.s32 %s117, 1
      %s119 = scalar_select %p116, %s117, %s118
      %p122 = pneg %p116
      %p123 = scmp.eq.s32.totalorder %s18, 1
      %p124 = por %p122, %p123
      %p125 = scmp.ne.s32.totalorder %s117, %s120
      %p126 = scmp.eq.s32.totalorder %s18, 0
      %p127 = por %p125, %p126
      %p128 = scmp.ne.s32.totalorder %s117, %s120
      %p129 = scmp.eq.s32.totalorder %s23, 1
      %p130 = por %p128, %p129
      %p131 = scmp.ne.s32.totalorder %s120, %s121
      %p132 = scmp.eq.s32.totalorder %s23, 0
      %p133 = por %p131, %p132
      %p134 = scmp.ne.s32.totalorder %s120, %s121
      %p135 = scmp.eq.s32.totalorder %s24, 1
      %p136 = por %p134, %p135
      %p138 = scmp.ne.s32.totalorder %s121, %s137
      %p139 = scmp.eq.s32.totalorder %s24, 0
      %p140 = por %p138, %p139
      %p141 = scmp.le.s32.totalorder 1, %s18
      %p142 = scmp.lt.s32.totalorder %s18, 3
      %p143 = pnand %p141, %p142
      %p144 = pneg %p143
      // Predicated region
      $region9: #{tpu_custom_call.1} parent=5 // pred_check
        _
      $region10: #{tpu_custom_call.1} parent=5 // pred_check_branch
        %146 = sbr.rel (%p143) target = $region12
      $region11: #{tpu_custom_call.1} parent=5 // pred_region
        %s147 = ssub.s32 %s18, 1
        // Predicated region
        $region13: #{tpu_custom_call.1} parent=11 // pred_check
          %p148 = pneg %p65
        $region14: #{tpu_custom_call.1} parent=11 // pred_check_branch
          %150 = sbr.rel (%p148) target = $region16
        $region15: #{tpu_custom_call.1} parent=11 // pred_region
          %s152 = ssub.s32 16384, 16384
          %153 = vsyncadd [#allocation6], %s152
          %s154 = sshll.u32 [#allocation5], 4
          %s155 = int_to_ptr.vmem [resolvable:$true] %s154
          %160 = dma.hbm_to_vmem [thread:$0]  %s1, 16384, %s155, [#allocation6], 256, 256, 16
        $region16: #{tpu_custom_call.1} parent=11 // pred_fallthru
          _
        // Predicated region
        $region17: #{tpu_custom_call.1} parent=11 // pred_check
          %p161 = pneg %p86
        $region18: #{tpu_custom_call.1} parent=11 // pred_check_branch
          %163 = sbr.rel (%p161) target = $region20
        $region19: #{tpu_custom_call.1} parent=11 // pred_region
          %s165 = ssub.s32 16384, 16384
          %166 = vsyncadd [#allocation6], %s165
          %s167 = sshll.u32 [#allocation7], 4
          %s168 = int_to_ptr.vmem [resolvable:$true] %s167
          %173 = dma.hbm_to_vmem [thread:$0]  %s2, 16384, %s168, [#allocation6], 256, 256, 16
        $region20: #{tpu_custom_call.1} parent=11 // pred_fallthru
          _
        // Predicated region
        $region21: #{tpu_custom_call.1} parent=11 // pred_check
          %p174 = pneg %p107
        $region22: #{tpu_custom_call.1} parent=11 // pred_check_branch
          %176 = sbr.rel (%p174) target = $region24
        $region23: #{tpu_custom_call.1} parent=11 // pred_region
          %s178 = ssub.s32 256, 256
          %179 = vsyncadd [#allocation9], %s178
          %s181 = sshll.u32 [#allocation8], 4
          %s182 = int_to_ptr.vmem [resolvable:$true] %s181
          %184 = dma.hbm_to_vmem [thread:$0]  %s3, 256, %s182, [#allocation9]
        $region24: #{tpu_custom_call.1} parent=11 // pred_fallthru
          _
      $region12: #{tpu_custom_call.1} parent=5 // pred_fallthru
        _
      %p185 = scmp.lt.s32.totalorder %s18, 2
      // Predicated region
      $region25: #{tpu_custom_call.1} parent=5 // pred_check
        %p186 = pneg %p185
      $region26: #{tpu_custom_call.1} parent=5 // pred_check_branch
        %188 = sbr.rel (%p186) target = $region28
      $region27: #{tpu_custom_call.1} parent=5 // pred_region
        // Predicated region
        $region29: #{tpu_custom_call.1} parent=27 // pred_check
          %p189 = pneg %p38
        $region30: #{tpu_custom_call.1} parent=27 // pred_check_branch
          %191 = sbr.rel (%p189) target = $region32
        $region31: #{tpu_custom_call.1} parent=27 // pred_region
          %s192 = sand.u32 %s28, 1
          %s193 = scalar_lea.sflag [#allocation3], %s192
          %s194 = sand.u32 %s28, 1
          %s195 = smul.addr %s194, 1024
          %s196 = scalar_lea.vmem [#allocation2], %s195
          %s197 = smul.u32 32, %s18
          %s199 = ssub.s32 16384, 16384
          %200 = vsyncadd %s193, %s199
          %s201 = smul.addr %s197, 4
          %s202 = smul.addr %s201, 128
          %s203 = scalar_lea.hbm %s0, %s202
          %s204 = sshll.u32 %s196, 4
          %s205 = int_to_ptr.vmem [resolvable:$true] %s204
          %210 = dma.hbm_to_vmem [thread:$0]  %s203, 16384, %s205, %s193, 512, 512, 32
        $region32: #{tpu_custom_call.1} parent=27 // pred_fallthru
          _
      $region28: #{tpu_custom_call.1} parent=5 // pred_fallthru
        _
      %p211 = scmp.le.s32.totalorder 1, %s18
      %p212 = scmp.lt.s32.totalorder %s18, 3
      %p213 = pnand %p211, %p212
      %p214 = pneg %p213
      // Predicated region
      $region33: #{tpu_custom_call.1} parent=5 // pred_check
        _
      $region34: #{tpu_custom_call.1} parent=5 // pred_check_branch
        %216 = sbr.rel (%p213) target = $region36
      $region35: #{tpu_custom_call.1} parent=5 // pred_region
        %s217 = ssub.s32 %s18, 1
        %s218 = sand.u32 %s31, 1
        %s219 = scalar_lea.sflag [#allocation3], %s218
        %s220 = sand.u32 %s31, 1
        %s221 = smul.addr %s220, 1024
        %s222 = scalar_lea.vmem [#allocation2], %s221
        // Predicated region
        $region37: #{tpu_custom_call.1} parent=35 // pred_check
          %p223 = pneg %p44
        $region38: #{tpu_custom_call.1} parent=35 // pred_check_branch
          %225 = sbr.rel (%p223) target = $region40
        $region39: #{tpu_custom_call.1} parent=35 // pred_region
          %226 = dma.done %s219, 16384
        $region40: #{tpu_custom_call.1} parent=35 // pred_fallthru
          _
        // Predicated region
        $region41: #{tpu_custom_call.1} parent=35 // pred_check
          %p227 = pneg %p65
        $region42: #{tpu_custom_call.1} parent=35 // pred_check_branch
          %229 = sbr.rel (%p227) target = $region44
        $region43: #{tpu_custom_call.1} parent=35 // pred_region
          %230 = dma.done [#allocation6], 16384
        $region44: #{tpu_custom_call.1} parent=35 // pred_fallthru
          _
        // Predicated region
        $region45: #{tpu_custom_call.1} parent=35 // pred_check
          %p231 = pneg %p86
        $region46: #{tpu_custom_call.1} parent=35 // pred_check_branch
          %233 = sbr.rel (%p231) target = $region48
        $region47: #{tpu_custom_call.1} parent=35 // pred_region
          %234 = dma.done [#allocation6], 16384
        $region48: #{tpu_custom_call.1} parent=35 // pred_fallthru
          _
        // Predicated region
        $region49: #{tpu_custom_call.1} parent=35 // pred_check
          %p235 = pneg %p107
        $region50: #{tpu_custom_call.1} parent=35 // pred_check_branch
          %237 = sbr.rel (%p235) target = $region52
        $region51: #{tpu_custom_call.1} parent=35 // pred_region
          %238 = dma.done [#allocation9], 256
        $region52: #{tpu_custom_call.1} parent=35 // pred_fallthru
          _
        %s239 = sand.u32 %s31, 1
        %s240 = scalar_lea.sflag [#allocation3], %s239
        %s241 = sand.u32 %s31, 1
        %s242 = smul.addr %s241, 1024
        %s243 = scalar_lea.vmem [#allocation2], %s242
        %p244 = pneg %p44
        %p245 = pneg %p41
        %p246 = pneg %p65
        %p247 = pneg %p62
        %p248 = pneg %p86
        %p249 = pneg %p83
        %p250 = pneg %p107
        %p251 = pneg %p104
        %p252 = pneg %p133
        %p253 = pneg %p130
        %s254 = sand.u32 %s120, 1
        %s255 = scalar_lea.sflag [#allocation4], %s254
        %s256 = sand.u32 %s120, 1
        %s257 = smul.addr %s256, 1024
        %s258 = scalar_lea.vmem [#allocation10], %s257
        %s259 = smul.u32 32, %s23
        %s260 = smul.u32 32, %s23
        %v261 = vld [vmem:[#allocation8] ss:$4 sm:$0xf]
        %s262 = scalar_lea.vmem [#allocation8], 1
        %v263 = vld [vmem:[%s262] ss:$4 sm:$0xf]
        %s264 = scalar_lea.vmem [#allocation8], 2
        %v265 = vld [vmem:[%s264] ss:$4 sm:$0xf]
        %s266 = scalar_lea.vmem [#allocation8], 3
        %v267 = vld [vmem:[%s266] ss:$4 sm:$0xf]
        %v268 = vld [vmem:[%s222] sm:$0xff]
        %v269 = vld [vmem:[%s222 + $0x8] sm:$0xff]
        %v270 = vld [vmem:[%s222 + $0x10] sm:$0xff]
        %v271 = vld [vmem:[%s222 + $0x18] sm:$0xff]
        %v272 = vld [vmem:[%s222 + $0x20] sm:$0xff]
        %v273 = vld [vmem:[%s222 + $0x28] sm:$0xff]
        %v274 = vld [vmem:[%s222 + $0x30] sm:$0xff]
        %v275 = vld [vmem:[%s222 + $0x38] sm:$0xff]
        %v276 = vld [vmem:[%s222 + $0x40] sm:$0xff]
        %v277 = vld [vmem:[%s222 + $0x48] sm:$0xff]
        %v278 = vld [vmem:[%s222 + $0x50] sm:$0xff]
        %v279 = vld [vmem:[%s222 + $0x58] sm:$0xff]
        %v280 = vld [vmem:[%s222 + $0x60] sm:$0xff]
        %v281 = vld [vmem:[%s222 + $0x68] sm:$0xff]
        %v282 = vld [vmem:[%s222 + $0x70] sm:$0xff]
        %v283 = vld [vmem:[%s222 + $0x78] sm:$0xff]
        %v284 = vld [vmem:[%s222 + $0x80] sm:$0xff]
        %v285 = vld [vmem:[%s222 + $0x88] sm:$0xff]
        %v286 = vld [vmem:[%s222 + $0x90] sm:$0xff]
        %v287 = vld [vmem:[%s222 + $0x98] sm:$0xff]
        %v288 = vld [vmem:[%s222 + $0xa0] sm:$0xff]
        %v289 = vld [vmem:[%s222 + $0xa8] sm:$0xff]
        %v290 = vld [vmem:[%s222 + $0xb0] sm:$0xff]
        %v291 = vld [vmem:[%s222 + $0xb8] sm:$0xff]
        %v292 = vld [vmem:[%s222 + $0xc0] sm:$0xff]
        %v293 = vld [vmem:[%s222 + $0xc8] sm:$0xff]
        %v294 = vld [vmem:[%s222 + $0xd0] sm:$0xff]
        %v295 = vld [vmem:[%s222 + $0xd8] sm:$0xff]
        %v296 = vld [vmem:[%s222 + $0xe0] sm:$0xff]
        %v297 = vld [vmem:[%s222 + $0xe8] sm:$0xff]
        %v298 = vld [vmem:[%s222 + $0xf0] sm:$0xff]
        %v299 = vld [vmem:[%s222 + $0xf8] sm:$0xff]
        %v300 = vld [vmem:[%s222 + $0x100] sm:$0xff]
        %v301 = vld [vmem:[%s222 + $0x108] sm:$0xff]
        %v302 = vld [vmem:[%s222 + $0x110] sm:$0xff]
        %v303 = vld [vmem:[%s222 + $0x118] sm:$0xff]
        %v304 = vld [vmem:[%s222 + $0x120] sm:$0xff]
        %v305 = vld [vmem:[%s222 + $0x128] sm:$0xff]
        %v306 = vld [vmem:[%s222 + $0x130] sm:$0xff]
        %v307 = vld [vmem:[%s222 + $0x138] sm:$0xff]
        %v308 = vld [vmem:[%s222 + $0x140] sm:$0xff]
        %v309 = vld [vmem:[%s222 + $0x148] sm:$0xff]
        %v310 = vld [vmem:[%s222 + $0x150] sm:$0xff]
        %v311 = vld [vmem:[%s222 + $0x158] sm:$0xff]
        %v312 = vld [vmem:[%s222 + $0x160] sm:$0xff]
        %v313 = vld [vmem:[%s222 + $0x168] sm:$0xff]
        %v314 = vld [vmem:[%s222 + $0x170] sm:$0xff]
        %v315 = vld [vmem:[%s222 + $0x178] sm:$0xff]
        %v316 = vld [vmem:[%s222 + $0x180] sm:$0xff]
        %v317 = vld [vmem:[%s222 + $0x188] sm:$0xff]
        %v318 = vld [vmem:[%s222 + $0x190] sm:$0xff]
        %v319 = vld [vmem:[%s222 + $0x198] sm:$0xff]
        %v320 = vld [vmem:[%s222 + $0x1a0] sm:$0xff]
        %v321 = vld [vmem:[%s222 + $0x1a8] sm:$0xff]
        %v322 = vld [vmem:[%s222 + $0x1b0] sm:$0xff]
        %v323 = vld [vmem:[%s222 + $0x1b8] sm:$0xff]
        %v324 = vld [vmem:[%s222 + $0x1c0] sm:$0xff]
        %v325 = vld [vmem:[%s222 + $0x1c8] sm:$0xff]
        %v326 = vld [vmem:[%s222 + $0x1d0] sm:$0xff]
        %v327 = vld [vmem:[%s222 + $0x1d8] sm:$0xff]
        %v328 = vld [vmem:[%s222 + $0x1e0] sm:$0xff]
        %v329 = vld [vmem:[%s222 + $0x1e8] sm:$0xff]
        %v330 = vld [vmem:[%s222 + $0x1f0] sm:$0xff]
        %v331 = vld [vmem:[%s222 + $0x1f8] sm:$0xff]
        %v332 = vld [vmem:[%s222 + $0x200] sm:$0xff]
        %v333 = vld [vmem:[%s222 + $0x208] sm:$0xff]
        %v334 = vld [vmem:[%s222 + $0x210] sm:$0xff]
        %v335 = vld [vmem:[%s222 + $0x218] sm:$0xff]
        %v336 = vld [vmem:[%s222 + $0x220] sm:$0xff]
        %v337 = vld [vmem:[%s222 + $0x228] sm:$0xff]
        %v338 = vld [vmem:[%s222 + $0x230] sm:$0xff]
        %v339 = vld [vmem:[%s222 + $0x238] sm:$0xff]
        %v340 = vld [vmem:[%s222 + $0x240] sm:$0xff]
        %v341 = vld [vmem:[%s222 + $0x248] sm:$0xff]
        %v342 = vld [vmem:[%s222 + $0x250] sm:$0xff]
        %v343 = vld [vmem:[%s222 + $0x258] sm:$0xff]
        %v344 = vld [vmem:[%s222 + $0x260] sm:$0xff]
        %v345 = vld [vmem:[%s222 + $0x268] sm:$0xff]
        %v346 = vld [vmem:[%s222 + $0x270] sm:$0xff]
        %v347 = vld [vmem:[%s222 + $0x278] sm:$0xff]
        %v348 = vld [vmem:[%s222 + $0x280] sm:$0xff]
        %v349 = vld [vmem:[%s222 + $0x288] sm:$0xff]
        %v350 = vld [vmem:[%s222 + $0x290] sm:$0xff]
        %v351 = vld [vmem:[%s222 + $0x298] sm:$0xff]
        %v352 = vld [vmem:[%s222 + $0x2a0] sm:$0xff]
        %v353 = vld [vmem:[%s222 + $0x2a8] sm:$0xff]
        %v354 = vld [vmem:[%s222 + $0x2b0] sm:$0xff]
        %v355 = vld [vmem:[%s222 + $0x2b8] sm:$0xff]
        %v356 = vld [vmem:[%s222 + $0x2c0] sm:$0xff]
        %v357 = vld [vmem:[%s222 + $0x2c8] sm:$0xff]
        %v358 = vld [vmem:[%s222 + $0x2d0] sm:$0xff]
        %v359 = vld [vmem:[%s222 + $0x2d8] sm:$0xff]
        %v360 = vld [vmem:[%s222 + $0x2e0] sm:$0xff]
        %v361 = vld [vmem:[%s222 + $0x2e8] sm:$0xff]
        %v362 = vld [vmem:[%s222 + $0x2f0] sm:$0xff]
        %v363 = vld [vmem:[%s222 + $0x2f8] sm:$0xff]
        %v364 = vld [vmem:[%s222 + $0x300] sm:$0xff]
        %v365 = vld [vmem:[%s222 + $0x308] sm:$0xff]
        %v366 = vld [vmem:[%s222 + $0x310] sm:$0xff]
        %v367 = vld [vmem:[%s222 + $0x318] sm:$0xff]
        %v368 = vld [vmem:[%s222 + $0x320] sm:$0xff]
        %v369 = vld [vmem:[%s222 + $0x328] sm:$0xff]
        %v370 = vld [vmem:[%s222 + $0x330] sm:$0xff]
        %v371 = vld [vmem:[%s222 + $0x338] sm:$0xff]
        %v372 = vld [vmem:[%s222 + $0x340] sm:$0xff]
        %v373 = vld [vmem:[%s222 + $0x348] sm:$0xff]
        %v374 = vld [vmem:[%s222 + $0x350] sm:$0xff]
        %v375 = vld [vmem:[%s222 + $0x358] sm:$0xff]
        %v376 = vld [vmem:[%s222 + $0x360] sm:$0xff]
        %v377 = vld [vmem:[%s222 + $0x368] sm:$0xff]
        %v378 = vld [vmem:[%s222 + $0x370] sm:$0xff]
        %v379 = vld [vmem:[%s222 + $0x378] sm:$0xff]
        %v380 = vld [vmem:[%s222 + $0x380] sm:$0xff]
        %v381 = vld [vmem:[%s222 + $0x388] sm:$0xff]
        %v382 = vld [vmem:[%s222 + $0x390] sm:$0xff]
        %v383 = vld [vmem:[%s222 + $0x398] sm:$0xff]
        %v384 = vld [vmem:[%s222 + $0x3a0] sm:$0xff]
        %v385 = vld [vmem:[%s222 + $0x3a8] sm:$0xff]
        %v386 = vld [vmem:[%s222 + $0x3b0] sm:$0xff]
        %v387 = vld [vmem:[%s222 + $0x3b8] sm:$0xff]
        %v388 = vld [vmem:[%s222 + $0x3c0] sm:$0xff]
        %v389 = vld [vmem:[%s222 + $0x3c8] sm:$0xff]
        %v390 = vld [vmem:[%s222 + $0x3d0] sm:$0xff]
        %v391 = vld [vmem:[%s222 + $0x3d8] sm:$0xff]
        %v392 = vld [vmem:[%s222 + $0x3e0] sm:$0xff]
        %v393 = vld [vmem:[%s222 + $0x3e8] sm:$0xff]
        %v394 = vld [vmem:[%s222 + $0x3f0] sm:$0xff]
        %v395 = vld [vmem:[%s222 + $0x3f8] sm:$0xff]
        %v396 = vpack.c.bf16 %v272, %v268
        %v397 = vpack.c.bf16 %v273, %v269
        %v398 = vpack.c.bf16 %v274, %v270
        %v399 = vpack.c.bf16 %v275, %v271
        %v400 = vpack.c.bf16 %v280, %v276
        %v401 = vpack.c.bf16 %v281, %v277
        %v402 = vpack.c.bf16 %v282, %v278
        %v403 = vpack.c.bf16 %v283, %v279
        %v404 = vpack.c.bf16 %v288, %v284
        %v405 = vpack.c.bf16 %v289, %v285
        %v406 = vpack.c.bf16 %v290, %v286
        %v407 = vpack.c.bf16 %v291, %v287
        %v408 = vpack.c.bf16 %v296, %v292
        %v409 = vpack.c.bf16 %v297, %v293
        %v410 = vpack.c.bf16 %v298, %v294
        %v411 = vpack.c.bf16 %v299, %v295
        %v412 = vpack.c.bf16 %v304, %v300
        %v413 = vpack.c.bf16 %v305, %v301
        %v414 = vpack.c.bf16 %v306, %v302
        %v415 = vpack.c.bf16 %v307, %v303
        %v416 = vpack.c.bf16 %v312, %v308
        %v417 = vpack.c.bf16 %v313, %v309
        %v418 = vpack.c.bf16 %v314, %v310
        %v419 = vpack.c.bf16 %v315, %v311
        %v420 = vpack.c.bf16 %v320, %v316
        %v421 = vpack.c.bf16 %v321, %v317
        %v422 = vpack.c.bf16 %v322, %v318
        %v423 = vpack.c.bf16 %v323, %v319
        %v424 = vpack.c.bf16 %v328, %v324
        %v425 = vpack.c.bf16 %v329, %v325
        %v426 = vpack.c.bf16 %v330, %v326
        %v427 = vpack.c.bf16 %v331, %v327
        %v428 = vpack.c.bf16 %v336, %v332
        %v429 = vpack.c.bf16 %v337, %v333
        %v430 = vpack.c.bf16 %v338, %v334
        %v431 = vpack.c.bf16 %v339, %v335
        %v432 = vpack.c.bf16 %v344, %v340
        %v433 = vpack.c.bf16 %v345, %v341
        %v434 = vpack.c.bf16 %v346, %v342
        %v435 = vpack.c.bf16 %v347, %v343
        %v436 = vpack.c.bf16 %v352, %v348
        %v437 = vpack.c.bf16 %v353, %v349
        %v438 = vpack.c.bf16 %v354, %v350
        %v439 = vpack.c.bf16 %v355, %v351
        %v440 = vpack.c.bf16 %v360, %v356
        %v441 = vpack.c.bf16 %v361, %v357
        %v442 = vpack.c.bf16 %v362, %v358
        %v443 = vpack.c.bf16 %v363, %v359
        %v444 = vpack.c.bf16 %v368, %v364
        %v445 = vpack.c.bf16 %v369, %v365
        %v446 = vpack.c.bf16 %v370, %v366
        %v447 = vpack.c.bf16 %v371, %v367
        %v448 = vpack.c.bf16 %v376, %v372
        %v449 = vpack.c.bf16 %v377, %v373
        %v450 = vpack.c.bf16 %v378, %v374
        %v451 = vpack.c.bf16 %v379, %v375
        %v452 = vpack.c.bf16 %v384, %v380
        %v453 = vpack.c.bf16 %v385, %v381
        %v454 = vpack.c.bf16 %v386, %v382
        %v455 = vpack.c.bf16 %v387, %v383
        %v456 = vpack.c.bf16 %v392, %v388
        %v457 = vpack.c.bf16 %v393, %v389
        %v458 = vpack.c.bf16 %v394, %v390
        %v459 = vpack.c.bf16 %v395, %v391
        %v460 = vld [vmem:[#allocation5] sm:$0xff]
        %v461 = vld [vmem:[#allocation5 + $0x8] sm:$0xff]
        %v462 = vld [vmem:[#allocation5 + $0x10] sm:$0xff]
        %v463 = vld [vmem:[#allocation5 + $0x18] sm:$0xff]
        %v464 = vld [vmem:[#allocation5 + $0x20] sm:$0xff]
        %v465 = vld [vmem:[#allocation5 + $0x28] sm:$0xff]
        %v466 = vld [vmem:[#allocation5 + $0x30] sm:$0xff]
        %v467 = vld [vmem:[#allocation5 + $0x38] sm:$0xff]
        %v468 = vld [vmem:[#allocation5 + $0x40] sm:$0xff]
        %v469 = vld [vmem:[#allocation5 + $0x48] sm:$0xff]
        %v470 = vld [vmem:[#allocation5 + $0x50] sm:$0xff]
        %v471 = vld [vmem:[#allocation5 + $0x58] sm:$0xff]
        %v472 = vld [vmem:[#allocation5 + $0x60] sm:$0xff]
        %v473 = vld [vmem:[#allocation5 + $0x68] sm:$0xff]
        %v474 = vld [vmem:[#allocation5 + $0x70] sm:$0xff]
        %v475 = vld [vmem:[#allocation5 + $0x78] sm:$0xff]
        %v476 = vld [vmem:[#allocation5 + $0x80] sm:$0xff]
        %v477 = vld [vmem:[#allocation5 + $0x88] sm:$0xff]
        %v478 = vld [vmem:[#allocation5 + $0x90] sm:$0xff]
        %v479 = vld [vmem:[#allocation5 + $0x98] sm:$0xff]
        %v480 = vld [vmem:[#allocation5 + $0xa0] sm:$0xff]
        %v481 = vld [vmem:[#allocation5 + $0xa8] sm:$0xff]
        %v482 = vld [vmem:[#allocation5 + $0xb0] sm:$0xff]
        %v483 = vld [vmem:[#allocation5 + $0xb8] sm:$0xff]
        %v484 = vld [vmem:[#allocation5 + $0xc0] sm:$0xff]
        %v485 = vld [vmem:[#allocation5 + $0xc8] sm:$0xff]
        %v486 = vld [vmem:[#allocation5 + $0xd0] sm:$0xff]
        %v487 = vld [vmem:[#allocation5 + $0xd8] sm:$0xff]
        %v488 = vld [vmem:[#allocation5 + $0xe0] sm:$0xff]
        %v489 = vld [vmem:[#allocation5 + $0xe8] sm:$0xff]
        %v490 = vld [vmem:[#allocation5 + $0xf0] sm:$0xff]
        %v491 = vld [vmem:[#allocation5 + $0xf8] sm:$0xff]
        %v492 = vld [vmem:[#allocation5 + $0x100] sm:$0xff]
        %v493 = vld [vmem:[#allocation5 + $0x108] sm:$0xff]
        %v494 = vld [vmem:[#allocation5 + $0x110] sm:$0xff]
        %v495 = vld [vmem:[#allocation5 + $0x118] sm:$0xff]
        %v496 = vld [vmem:[#allocation5 + $0x120] sm:$0xff]
        %v497 = vld [vmem:[#allocation5 + $0x128] sm:$0xff]
        %v498 = vld [vmem:[#allocation5 + $0x130] sm:$0xff]
        %v499 = vld [vmem:[#allocation5 + $0x138] sm:$0xff]
        %v500 = vld [vmem:[#allocation5 + $0x140] sm:$0xff]
        %v501 = vld [vmem:[#allocation5 + $0x148] sm:$0xff]
        %v502 = vld [vmem:[#allocation5 + $0x150] sm:$0xff]
        %v503 = vld [vmem:[#allocation5 + $0x158] sm:$0xff]
        %v504 = vld [vmem:[#allocation5 + $0x160] sm:$0xff]
        %v505 = vld [vmem:[#allocation5 + $0x168] sm:$0xff]
        %v506 = vld [vmem:[#allocation5 + $0x170] sm:$0xff]
        %v507 = vld [vmem:[#allocation5 + $0x178] sm:$0xff]
        %v508 = vld [vmem:[#allocation5 + $0x180] sm:$0xff]
        %v509 = vld [vmem:[#allocation5 + $0x188] sm:$0xff]
        %v510 = vld [vmem:[#allocation5 + $0x190] sm:$0xff]
        %v511 = vld [vmem:[#allocation5 + $0x198] sm:$0xff]
        %v512 = vld [vmem:[#allocation5 + $0x1a0] sm:$0xff]
        %v513 = vld [vmem:[#allocation5 + $0x1a8] sm:$0xff]
        %v514 = vld [vmem:[#allocation5 + $0x1b0] sm:$0xff]
        %v515 = vld [vmem:[#allocation5 + $0x1b8] sm:$0xff]
        %v516 = vld [vmem:[#allocation5 + $0x1c0] sm:$0xff]
        %v517 = vld [vmem:[#allocation5 + $0x1c8] sm:$0xff]
        %v518 = vld [vmem:[#allocation5 + $0x1d0] sm:$0xff]
        %v519 = vld [vmem:[#allocation5 + $0x1d8] sm:$0xff]
        %v520 = vld [vmem:[#allocation5 + $0x1e0] sm:$0xff]
        %v521 = vld [vmem:[#allocation5 + $0x1e8] sm:$0xff]
        %v522 = vld [vmem:[#allocation5 + $0x1f0] sm:$0xff]
        %v523 = vld [vmem:[#allocation5 + $0x1f8] sm:$0xff]
        %v524 = vld [vmem:[#allocation5 + $0x200] sm:$0xff]
        %v525 = vld [vmem:[#allocation5 + $0x208] sm:$0xff]
        %v526 = vld [vmem:[#allocation5 + $0x210] sm:$0xff]
        %v527 = vld [vmem:[#allocation5 + $0x218] sm:$0xff]
        %v528 = vld [vmem:[#allocation5 + $0x220] sm:$0xff]
        %v529 = vld [vmem:[#allocation5 + $0x228] sm:$0xff]
        %v530 = vld [vmem:[#allocation5 + $0x230] sm:$0xff]
        %v531 = vld [vmem:[#allocation5 + $0x238] sm:$0xff]
        %v532 = vld [vmem:[#allocation5 + $0x240] sm:$0xff]
        %v533 = vld [vmem:[#allocation5 + $0x248] sm:$0xff]
        %v534 = vld [vmem:[#allocation5 + $0x250] sm:$0xff]
        %v535 = vld [vmem:[#allocation5 + $0x258] sm:$0xff]
        %v536 = vld [vmem:[#allocation5 + $0x260] sm:$0xff]
        %v537 = vld [vmem:[#allocation5 + $0x268] sm:$0xff]
        %v538 = vld [vmem:[#allocation5 + $0x270] sm:$0xff]
        %v539 = vld [vmem:[#allocation5 + $0x278] sm:$0xff]
        %v540 = vld [vmem:[#allocation5 + $0x280] sm:$0xff]
        %v541 = vld [vmem:[#allocation5 + $0x288] sm:$0xff]
        %v542 = vld [vmem:[#allocation5 + $0x290] sm:$0xff]
        %v543 = vld [vmem:[#allocation5 + $0x298] sm:$0xff]
        %v544 = vld [vmem:[#allocation5 + $0x2a0] sm:$0xff]
        %v545 = vld [vmem:[#allocation5 + $0x2a8] sm:$0xff]
        %v546 = vld [vmem:[#allocation5 + $0x2b0] sm:$0xff]
        %v547 = vld [vmem:[#allocation5 + $0x2b8] sm:$0xff]
        %v548 = vld [vmem:[#allocation5 + $0x2c0] sm:$0xff]
        %v549 = vld [vmem:[#allocation5 + $0x2c8] sm:$0xff]
        %v550 = vld [vmem:[#allocation5 + $0x2d0] sm:$0xff]
        %v551 = vld [vmem:[#allocation5 + $0x2d8] sm:$0xff]
        %v552 = vld [vmem:[#allocation5 + $0x2e0] sm:$0xff]
        %v553 = vld [vmem:[#allocation5 + $0x2e8] sm:$0xff]
        %v554 = vld [vmem:[#allocation5 + $0x2f0] sm:$0xff]
        %v555 = vld [vmem:[#allocation5 + $0x2f8] sm:$0xff]
        %v556 = vld [vmem:[#allocation5 + $0x300] sm:$0xff]
        %v557 = vld [vmem:[#allocation5 + $0x308] sm:$0xff]
        %v558 = vld [vmem:[#allocation5 + $0x310] sm:$0xff]
        %v559 = vld [vmem:[#allocation5 + $0x318] sm:$0xff]
        %v560 = vld [vmem:[#allocation5 + $0x320] sm:$0xff]
        %v561 = vld [vmem:[#allocation5 + $0x328] sm:$0xff]
        %v562 = vld [vmem:[#allocation5 + $0x330] sm:$0xff]
        %v563 = vld [vmem:[#allocation5 + $0x338] sm:$0xff]
        %v564 = vld [vmem:[#allocation5 + $0x340] sm:$0xff]
        %v565 = vld [vmem:[#allocation5 + $0x348] sm:$0xff]
        %v566 = vld [vmem:[#allocation5 + $0x350] sm:$0xff]
        %v567 = vld [vmem:[#allocation5 + $0x358] sm:$0xff]
        %v568 = vld [vmem:[#allocation5 + $0x360] sm:$0xff]
        %v569 = vld [vmem:[#allocation5 + $0x368] sm:$0xff]
        %v570 = vld [vmem:[#allocation5 + $0x370] sm:$0xff]
        %v571 = vld [vmem:[#allocation5 + $0x378] sm:$0xff]
        %v572 = vld [vmem:[#allocation5 + $0x380] sm:$0xff]
        %v573 = vld [vmem:[#allocation5 + $0x388] sm:$0xff]
        %v574 = vld [vmem:[#allocation5 + $0x390] sm:$0xff]
        %v575 = vld [vmem:[#allocation5 + $0x398] sm:$0xff]
        %v576 = vld [vmem:[#allocation5 + $0x3a0] sm:$0xff]
        %v577 = vld [vmem:[#allocation5 + $0x3a8] sm:$0xff]
        %v578 = vld [vmem:[#allocation5 + $0x3b0] sm:$0xff]
        %v579 = vld [vmem:[#allocation5 + $0x3b8] sm:$0xff]
        %v580 = vld [vmem:[#allocation5 + $0x3c0] sm:$0xff]
        %v581 = vld [vmem:[#allocation5 + $0x3c8] sm:$0xff]
        %v582 = vld [vmem:[#allocation5 + $0x3d0] sm:$0xff]
        %v583 = vld [vmem:[#allocation5 + $0x3d8] sm:$0xff]
        %v584 = vld [vmem:[#allocation5 + $0x3e0] sm:$0xff]
        %v585 = vld [vmem:[#allocation5 + $0x3e8] sm:$0xff]
        %v586 = vld [vmem:[#allocation5 + $0x3f0] sm:$0xff]
        %v587 = vld [vmem:[#allocation5 + $0x3f8] sm:$0xff]
        %v589 = vlaneseq
        %v590 = vshrl.u32 %v589, 7
        %v591 = vsub.s32 0, %v590
        %v592 = vrot.slane %v261, %v591
        %v593 = vlaneseq
        %v594 = vshrl.u32 %v593, 7
        %v595 = vsub.s32 1, %v594
        %v596 = vrot.slane %v261, %v595
        %v597 = vlaneseq
        %v598 = vshrl.u32 %v597, 7
        %v599 = vsub.s32 2, %v598
        %v600 = vrot.slane %v261, %v599
        %v601 = vlaneseq
        %v602 = vshrl.u32 %v601, 7
        %v603 = vsub.s32 3, %v602
        %v604 = vrot.slane %v261, %v603
        %v737 = vunpack.c.l.b16 %v460
        %v738 = vunpack.c.h.b16 %v460
        %v739 = vunpack.c.l.b16 %v461
        %v740 = vunpack.c.h.b16 %v461
        %v741 = vunpack.c.l.b16 %v462
        %v742 = vunpack.c.h.b16 %v462
        %v743 = vunpack.c.l.b16 %v463
        %v744 = vunpack.c.h.b16 %v463
        %v745 = vunpack.c.l.b16 %v464
        %v746 = vunpack.c.h.b16 %v464
        %v747 = vunpack.c.l.b16 %v465
        %v748 = vunpack.c.h.b16 %v465
        %v749 = vunpack.c.l.b16 %v466
        %v750 = vunpack.c.h.b16 %v466
        %v751 = vunpack.c.l.b16 %v467
        %v752 = vunpack.c.h.b16 %v467
        %v753 = vunpack.c.l.b16 %v468
        %v754 = vunpack.c.h.b16 %v468
        %v755 = vunpack.c.l.b16 %v469
        %v756 = vunpack.c.h.b16 %v469
        %v757 = vunpack.c.l.b16 %v470
        %v758 = vunpack.c.h.b16 %v470
        %v759 = vunpack.c.l.b16 %v471
        %v760 = vunpack.c.h.b16 %v471
        %v761 = vunpack.c.l.b16 %v472
        %v762 = vunpack.c.h.b16 %v472
        %v763 = vunpack.c.l.b16 %v473
        %v764 = vunpack.c.h.b16 %v473
        %v765 = vunpack.c.l.b16 %v474
        %v766 = vunpack.c.h.b16 %v474
        %v767 = vunpack.c.l.b16 %v475
        %v768 = vunpack.c.h.b16 %v475
        %v769 = vunpack.c.l.b16 %v476
        %v770 = vunpack.c.h.b16 %v476
        %v771 = vunpack.c.l.b16 %v477
        %v772 = vunpack.c.h.b16 %v477
        %v773 = vunpack.c.l.b16 %v478
        %v774 = vunpack.c.h.b16 %v478
        %v775 = vunpack.c.l.b16 %v479
        %v776 = vunpack.c.h.b16 %v479
        %v777 = vunpack.c.l.b16 %v480
        %v778 = vunpack.c.h.b16 %v480
        %v779 = vunpack.c.l.b16 %v481
        %v780 = vunpack.c.h.b16 %v481
        %v781 = vunpack.c.l.b16 %v482
        %v782 = vunpack.c.h.b16 %v482
        %v783 = vunpack.c.l.b16 %v483
        %v784 = vunpack.c.h.b16 %v483
        %v785 = vunpack.c.l.b16 %v484
        %v786 = vunpack.c.h.b16 %v484
        %v787 = vunpack.c.l.b16 %v485
        %v788 = vunpack.c.h.b16 %v485
        %v789 = vunpack.c.l.b16 %v486
        %v790 = vunpack.c.h.b16 %v486
        %v791 = vunpack.c.l.b16 %v487
        %v792 = vunpack.c.h.b16 %v487
        %v793 = vunpack.c.l.b16 %v488
        %v794 = vunpack.c.h.b16 %v488
        %v795 = vunpack.c.l.b16 %v489
        %v796 = vunpack.c.h.b16 %v489
        %v797 = vunpack.c.l.b16 %v490
        %v798 = vunpack.c.h.b16 %v490
        %v799 = vunpack.c.l.b16 %v491
        %v800 = vunpack.c.h.b16 %v491
        %v801 = vunpack.c.l.b16 %v492
        %v802 = vunpack.c.h.b16 %v492
        %v803 = vunpack.c.l.b16 %v493
        %v804 = vunpack.c.h.b16 %v493
        %v805 = vunpack.c.l.b16 %v494
        %v806 = vunpack.c.h.b16 %v494
        %v807 = vunpack.c.l.b16 %v495
        %v808 = vunpack.c.h.b16 %v495
        %v809 = vunpack.c.l.b16 %v496
        %v810 = vunpack.c.h.b16 %v496
        %v811 = vunpack.c.l.b16 %v497
        %v812 = vunpack.c.h.b16 %v497
        %v813 = vunpack.c.l.b16 %v498
        %v814 = vunpack.c.h.b16 %v498
        %v815 = vunpack.c.l.b16 %v499
        %v816 = vunpack.c.h.b16 %v499
        %v817 = vunpack.c.l.b16 %v500
        %v818 = vunpack.c.h.b16 %v500
        %v819 = vunpack.c.l.b16 %v501
        %v820 = vunpack.c.h.b16 %v501
        %v821 = vunpack.c.l.b16 %v502
        %v822 = vunpack.c.h.b16 %v502
        %v823 = vunpack.c.l.b16 %v503
        %v824 = vunpack.c.h.b16 %v503
        %v825 = vunpack.c.l.b16 %v504
        %v826 = vunpack.c.h.b16 %v504
        %v827 = vunpack.c.l.b16 %v505
        %v828 = vunpack.c.h.b16 %v505
        %v829 = vunpack.c.l.b16 %v506
        %v830 = vunpack.c.h.b16 %v506
        %v831 = vunpack.c.l.b16 %v507
        %v832 = vunpack.c.h.b16 %v507
        %v833 = vunpack.c.l.b16 %v508
        %v834 = vunpack.c.h.b16 %v508
        %v835 = vunpack.c.l.b16 %v509
        %v836 = vunpack.c.h.b16 %v509
        %v837 = vunpack.c.l.b16 %v510
        %v838 = vunpack.c.h.b16 %v510
        %v839 = vunpack.c.l.b16 %v511
        %v840 = vunpack.c.h.b16 %v511
        %v841 = vunpack.c.l.b16 %v512
        %v842 = vunpack.c.h.b16 %v512
        %v843 = vunpack.c.l.b16 %v513
        %v844 = vunpack.c.h.b16 %v513
        %v845 = vunpack.c.l.b16 %v514
        %v846 = vunpack.c.h.b16 %v514
        %v847 = vunpack.c.l.b16 %v515
        %v848 = vunpack.c.h.b16 %v515
        %v849 = vunpack.c.l.b16 %v516
        %v850 = vunpack.c.h.b16 %v516
        %v851 = vunpack.c.l.b16 %v517
        %v852 = vunpack.c.h.b16 %v517
        %v853 = vunpack.c.l.b16 %v518
        %v854 = vunpack.c.h.b16 %v518
        %v855 = vunpack.c.l.b16 %v519
        %v856 = vunpack.c.h.b16 %v519
        %v857 = vunpack.c.l.b16 %v520
        %v858 = vunpack.c.h.b16 %v520
        %v859 = vunpack.c.l.b16 %v521
        %v860 = vunpack.c.h.b16 %v521
        %v861 = vunpack.c.l.b16 %v522
        %v862 = vunpack.c.h.b16 %v522
        %v863 = vunpack.c.l.b16 %v523
        %v864 = vunpack.c.h.b16 %v523
        %v865 = vunpack.c.l.b16 %v524
        %v866 = vunpack.c.h.b16 %v524
        %v867 = vunpack.c.l.b16 %v525
        %v868 = vunpack.c.h.b16 %v525
        %v869 = vunpack.c.l.b16 %v526
        %v870 = vunpack.c.h.b16 %v526
        %v871 = vunpack.c.l.b16 %v527
        %v872 = vunpack.c.h.b16 %v527
        %v873 = vunpack.c.l.b16 %v528
        %v874 = vunpack.c.h.b16 %v528
        %v875 = vunpack.c.l.b16 %v529
        %v876 = vunpack.c.h.b16 %v529
        %v877 = vunpack.c.l.b16 %v530
        %v878 = vunpack.c.h.b16 %v530
        %v879 = vunpack.c.l.b16 %v531
        %v880 = vunpack.c.h.b16 %v531
        %v881 = vunpack.c.l.b16 %v532
        %v882 = vunpack.c.h.b16 %v532
        %v883 = vunpack.c.l.b16 %v533
        %v884 = vunpack.c.h.b16 %v533
        %v885 = vunpack.c.l.b16 %v534
        %v886 = vunpack.c.h.b16 %v534
        %v887 = vunpack.c.l.b16 %v535
        %v888 = vunpack.c.h.b16 %v535
        %v889 = vunpack.c.l.b16 %v536
        %v890 = vunpack.c.h.b16 %v536
        %v891 = vunpack.c.l.b16 %v537
        %v892 = vunpack.c.h.b16 %v537
        %v893 = vunpack.c.l.b16 %v538
        %v894 = vunpack.c.h.b16 %v538
        %v895 = vunpack.c.l.b16 %v539
        %v896 = vunpack.c.h.b16 %v539
        %v897 = vunpack.c.l.b16 %v540
        %v898 = vunpack.c.h.b16 %v540
        %v899 = vunpack.c.l.b16 %v541
        %v900 = vunpack.c.h.b16 %v541
        %v901 = vunpack.c.l.b16 %v542
        %v902 = vunpack.c.h.b16 %v542
        %v903 = vunpack.c.l.b16 %v543
        %v904 = vunpack.c.h.b16 %v543
        %v905 = vunpack.c.l.b16 %v544
        %v906 = vunpack.c.h.b16 %v544
        %v907 = vunpack.c.l.b16 %v545
        %v908 = vunpack.c.h.b16 %v545
        %v909 = vunpack.c.l.b16 %v546
        %v910 = vunpack.c.h.b16 %v546
        %v911 = vunpack.c.l.b16 %v547
        %v912 = vunpack.c.h.b16 %v547
        %v913 = vunpack.c.l.b16 %v548
        %v914 = vunpack.c.h.b16 %v548
        %v915 = vunpack.c.l.b16 %v549
        %v916 = vunpack.c.h.b16 %v549
        %v917 = vunpack.c.l.b16 %v550
        %v918 = vunpack.c.h.b16 %v550
        %v919 = vunpack.c.l.b16 %v551
        %v920 = vunpack.c.h.b16 %v551
        %v921 = vunpack.c.l.b16 %v552
        %v922 = vunpack.c.h.b16 %v552
        %v923 = vunpack.c.l.b16 %v553
        %v924 = vunpack.c.h.b16 %v553
        %v925 = vunpack.c.l.b16 %v554
        %v926 = vunpack.c.h.b16 %v554
        %v927 = vunpack.c.l.b16 %v555
        %v928 = vunpack.c.h.b16 %v555
        %v929 = vunpack.c.l.b16 %v556
        %v930 = vunpack.c.h.b16 %v556
        %v931 = vunpack.c.l.b16 %v557
        %v932 = vunpack.c.h.b16 %v557
        %v933 = vunpack.c.l.b16 %v558
        %v934 = vunpack.c.h.b16 %v558
        %v935 = vunpack.c.l.b16 %v559
        %v936 = vunpack.c.h.b16 %v559
        %v937 = vunpack.c.l.b16 %v560
        %v938 = vunpack.c.h.b16 %v560
        %v939 = vunpack.c.l.b16 %v561
        %v940 = vunpack.c.h.b16 %v561
        %v941 = vunpack.c.l.b16 %v562
        %v942 = vunpack.c.h.b16 %v562
        %v943 = vunpack.c.l.b16 %v563
        %v944 = vunpack.c.h.b16 %v563
        %v945 = vunpack.c.l.b16 %v564
        %v946 = vunpack.c.h.b16 %v564
        %v947 = vunpack.c.l.b16 %v565
        %v948 = vunpack.c.h.b16 %v565
        %v949 = vunpack.c.l.b16 %v566
        %v950 = vunpack.c.h.b16 %v566
        %v951 = vunpack.c.l.b16 %v567
        %v952 = vunpack.c.h.b16 %v567
        %v953 = vunpack.c.l.b16 %v568
        %v954 = vunpack.c.h.b16 %v568
        %v955 = vunpack.c.l.b16 %v569
        %v956 = vunpack.c.h.b16 %v569
        %v957 = vunpack.c.l.b16 %v570
        %v958 = vunpack.c.h.b16 %v570
        %v959 = vunpack.c.l.b16 %v571
        %v960 = vunpack.c.h.b16 %v571
        %v961 = vunpack.c.l.b16 %v572
        %v962 = vunpack.c.h.b16 %v572
        %v963 = vunpack.c.l.b16 %v573
        %v964 = vunpack.c.h.b16 %v573
        %v965 = vunpack.c.l.b16 %v574
        %v966 = vunpack.c.h.b16 %v574
        %v967 = vunpack.c.l.b16 %v575
        %v968 = vunpack.c.h.b16 %v575
        %v969 = vunpack.c.l.b16 %v576
        %v970 = vunpack.c.h.b16 %v576
        %v971 = vunpack.c.l.b16 %v577
        %v972 = vunpack.c.h.b16 %v577
        %v973 = vunpack.c.l.b16 %v578
        %v974 = vunpack.c.h.b16 %v578
        %v975 = vunpack.c.l.b16 %v579
        %v976 = vunpack.c.h.b16 %v579
        %v977 = vunpack.c.l.b16 %v580
        %v978 = vunpack.c.h.b16 %v580
        %v979 = vunpack.c.l.b16 %v581
        %v980 = vunpack.c.h.b16 %v581
        %v981 = vunpack.c.l.b16 %v582
        %v982 = vunpack.c.h.b16 %v582
        %v983 = vunpack.c.l.b16 %v583
        %v984 = vunpack.c.h.b16 %v583
        %v985 = vunpack.c.l.b16 %v584
        %v986 = vunpack.c.h.b16 %v584
        %v987 = vunpack.c.l.b16 %v585
        %v988 = vunpack.c.h.b16 %v585
        %v989 = vunpack.c.l.b16 %v586
        %v990 = vunpack.c.h.b16 %v586
        %v991 = vunpack.c.l.b16 %v587
        %v992 = vunpack.c.h.b16 %v587
        %v993 = vpack.c.b16 %v741, %v737
        %v994 = vpack.c.b16 %v742, %v738
        %v995 = vpack.c.b16 %v743, %v739
        %v996 = vpack.c.b16 %v744, %v740
        %v997 = vpack.c.b16 %v749, %v745
        %v998 = vpack.c.b16 %v750, %v746
        %v999 = vpack.c.b16 %v751, %v747
        %v1000 = vpack.c.b16 %v752, %v748
        %v1001 = vpack.c.b16 %v757, %v753
        %v1002 = vpack.c.b16 %v758, %v754
        %v1003 = vpack.c.b16 %v759, %v755
        %v1004 = vpack.c.b16 %v760, %v756
        %v1005 = vpack.c.b16 %v765, %v761
        %v1006 = vpack.c.b16 %v766, %v762
        %v1007 = vpack.c.b16 %v767, %v763
        %v1008 = vpack.c.b16 %v768, %v764
        %v1009 = vpack.c.b16 %v773, %v769
        %v1010 = vpack.c.b16 %v774, %v770
        %v1011 = vpack.c.b16 %v775, %v771
        %v1012 = vpack.c.b16 %v776, %v772
        %v1013 = vpack.c.b16 %v781, %v777
        %v1014 = vpack.c.b16 %v782, %v778
        %v1015 = vpack.c.b16 %v783, %v779
        %v1016 = vpack.c.b16 %v784, %v780
        %v1017 = vpack.c.b16 %v789, %v785
        %v1018 = vpack.c.b16 %v790, %v786
        %v1019 = vpack.c.b16 %v791, %v787
        %v1020 = vpack.c.b16 %v792, %v788
        %v1021 = vpack.c.b16 %v797, %v793
        %v1022 = vpack.c.b16 %v798, %v794
        %v1023 = vpack.c.b16 %v799, %v795
        %v1024 = vpack.c.b16 %v800, %v796
        %v1025 = vpack.c.b16 %v805, %v801
        %v1026 = vpack.c.b16 %v806, %v802
        %v1027 = vpack.c.b16 %v807, %v803
        %v1028 = vpack.c.b16 %v808, %v804
        %v1029 = vpack.c.b16 %v813, %v809
        %v1030 = vpack.c.b16 %v814, %v810
        %v1031 = vpack.c.b16 %v815, %v811
        %v1032 = vpack.c.b16 %v816, %v812
        %v1033 = vpack.c.b16 %v821, %v817
        %v1034 = vpack.c.b16 %v822, %v818
        %v1035 = vpack.c.b16 %v823, %v819
        %v1036 = vpack.c.b16 %v824, %v820
        %v1037 = vpack.c.b16 %v829, %v825
        %v1038 = vpack.c.b16 %v830, %v826
        %v1039 = vpack.c.b16 %v831, %v827
        %v1040 = vpack.c.b16 %v832, %v828
        %v1041 = vpack.c.b16 %v837, %v833
        %v1042 = vpack.c.b16 %v838, %v834
        %v1043 = vpack.c.b16 %v839, %v835
        %v1044 = vpack.c.b16 %v840, %v836
        %v1045 = vpack.c.b16 %v845, %v841
        %v1046 = vpack.c.b16 %v846, %v842
        %v1047 = vpack.c.b16 %v847, %v843
        %v1048 = vpack.c.b16 %v848, %v844
        %v1049 = vpack.c.b16 %v853, %v849
        %v1050 = vpack.c.b16 %v854, %v850
        %v1051 = vpack.c.b16 %v855, %v851
        %v1052 = vpack.c.b16 %v856, %v852
        %v1053 = vpack.c.b16 %v861, %v857
        %v1054 = vpack.c.b16 %v862, %v858
        %v1055 = vpack.c.b16 %v863, %v859
        %v1056 = vpack.c.b16 %v864, %v860
        %v1057 = vpack.c.b16 %v869, %v865
        %v1058 = vpack.c.b16 %v870, %v866
        %v1059 = vpack.c.b16 %v871, %v867
        %v1060 = vpack.c.b16 %v872, %v868
        %v1061 = vpack.c.b16 %v877, %v873
        %v1062 = vpack.c.b16 %v878, %v874
        %v1063 = vpack.c.b16 %v879, %v875
        %v1064 = vpack.c.b16 %v880, %v876
        %v1065 = vpack.c.b16 %v885, %v881
        %v1066 = vpack.c.b16 %v886, %v882
        %v1067 = vpack.c.b16 %v887, %v883
        %v1068 = vpack.c.b16 %v888, %v884
        %v1069 = vpack.c.b16 %v893, %v889
        %v1070 = vpack.c.b16 %v894, %v890
        %v1071 = vpack.c.b16 %v895, %v891
        %v1072 = vpack.c.b16 %v896, %v892
        %v1073 = vpack.c.b16 %v901, %v897
        %v1074 = vpack.c.b16 %v902, %v898
        %v1075 = vpack.c.b16 %v903, %v899
        %v1076 = vpack.c.b16 %v904, %v900
        %v1077 = vpack.c.b16 %v909, %v905
        %v1078 = vpack.c.b16 %v910, %v906
        %v1079 = vpack.c.b16 %v911, %v907
        %v1080 = vpack.c.b16 %v912, %v908
        %v1081 = vpack.c.b16 %v917, %v913
        %v1082 = vpack.c.b16 %v918, %v914
        %v1083 = vpack.c.b16 %v919, %v915
        %v1084 = vpack.c.b16 %v920, %v916
        %v1085 = vpack.c.b16 %v925, %v921
        %v1086 = vpack.c.b16 %v926, %v922
        %v1087 = vpack.c.b16 %v927, %v923
        %v1088 = vpack.c.b16 %v928, %v924
        %v1089 = vpack.c.b16 %v933, %v929
        %v1090 = vpack.c.b16 %v934, %v930
        %v1091 = vpack.c.b16 %v935, %v931
        %v1092 = vpack.c.b16 %v936, %v932
        %v1093 = vpack.c.b16 %v941, %v937
        %v1094 = vpack.c.b16 %v942, %v938
        %v1095 = vpack.c.b16 %v943, %v939
        %v1096 = vpack.c.b16 %v944, %v940
        %v1097 = vpack.c.b16 %v949, %v945
        %v1098 = vpack.c.b16 %v950, %v946
        %v1099 = vpack.c.b16 %v951, %v947
        %v1100 = vpack.c.b16 %v952, %v948
        %v1101 = vpack.c.b16 %v957, %v953
        %v1102 = vpack.c.b16 %v958, %v954
        %v1103 = vpack.c.b16 %v959, %v955
        %v1104 = vpack.c.b16 %v960, %v956
        %v1105 = vpack.c.b16 %v965, %v961
        %v1106 = vpack.c.b16 %v966, %v962
        %v1107 = vpack.c.b16 %v967, %v963
        %v1108 = vpack.c.b16 %v968, %v964
        %v1109 = vpack.c.b16 %v973, %v969
        %v1110 = vpack.c.b16 %v974, %v970
        %v1111 = vpack.c.b16 %v975, %v971
        %v1112 = vpack.c.b16 %v976, %v972
        %v1113 = vpack.c.b16 %v981, %v977
        %v1114 = vpack.c.b16 %v982, %v978
        %v1115 = vpack.c.b16 %v983, %v979
        %v1116 = vpack.c.b16 %v984, %v980
        %v1117 = vpack.c.b16 %v989, %v985
        %v1118 = vpack.c.b16 %v990, %v986
        %v1119 = vpack.c.b16 %v991, %v987
        %v1120 = vpack.c.b16 %v992, %v988
        %1249 = vmatprep.subr.bf16.mxu0 %v994
        %1250 = vmatpush1.bf16.msra.mxu0 %v993
        %1251 = vmatprep.subr.bf16.mxu0 %v998
        %1252 = vmatpush1.bf16.msra.mxu0 %v997
        %1253 = vmatprep.subr.bf16.mxu0 %v1002
        %1254 = vmatpush1.bf16.msra.mxu0 %v1001
        %1255 = vmatprep.subr.bf16.mxu0 %v1006
        %1256 = vmatpush1.bf16.msra.mxu0 %v1005
        %1257 = vmatprep.subr.bf16.mxu0 %v1010
        %1258 = vmatpush1.bf16.msra.mxu0 %v1009
        %1259 = vmatprep.subr.bf16.mxu0 %v1014
        %1260 = vmatpush1.bf16.msra.mxu0 %v1013
        %1261 = vmatprep.subr.bf16.mxu0 %v1018
        %1262 = vmatpush1.bf16.msra.mxu0 %v1017
        %1263 = vmatprep.subr.bf16.mxu0 %v1022
        %1264 = vmatpush1.bf16.msra.mxu0 %v1021
        %1265 = vmatprep.subr.bf16.mxu0 %v1026
        %1266 = vmatpush1.bf16.msra.mxu0 %v1025
        %1267 = vmatprep.subr.bf16.mxu0 %v1030
        %1268 = vmatpush1.bf16.msra.mxu0 %v1029
        %1269 = vmatprep.subr.bf16.mxu0 %v1034
        %1270 = vmatpush1.bf16.msra.mxu0 %v1033
        %1271 = vmatprep.subr.bf16.mxu0 %v1038
        %1272 = vmatpush1.bf16.msra.mxu0 %v1037
        %1273 = vmatprep.subr.bf16.mxu0 %v1042
        %1274 = vmatpush1.bf16.msra.mxu0 %v1041
        %1275 = vmatprep.subr.bf16.mxu0 %v1046
        %1276 = vmatpush1.bf16.msra.mxu0 %v1045
        %1277 = vmatprep.subr.bf16.mxu0 %v1050
        %1278 = vmatpush1.bf16.msra.mxu0 %v1049
        %1279 = vmatprep.subr.bf16.mxu0 %v1054
        %1280 = vmatpush1.bf16.msra.mxu0 %v1053
        %1281 = vmatprep.mubr.bf16.mxu0 %v397
        %1282 = vmatmul.mubr.bf16.gmra.mrb[0].mxu0 %v396
        %v1283 = vpop.f32.mrb[0].mxu0
        %v1284 = vadd.f32 %v592, %v1283
        %v1285 = vpop.f32.mrb[0].mxu0
        %v1286 = vadd.f32 %v596, %v1285
        %v1287 = vpop.f32.mrb[0].mxu0
        %v1288 = vadd.f32 %v592, %v1287
        %v1289 = vpop.f32.mrb[0].mxu0
        %v1290 = vadd.f32 %v596, %v1289
        %1291 = vmatprep.mubr.bf16.mxu0 %v401
        %1292 = vmatmul.mubr.bf16.gmra.mrb[0].mxu0 %v400
        %v1293 = vpop.f32.mrb[0].mxu0
        %v1294 = vadd.f32 %v592, %v1293
        %v1295 = vpop.f32.mrb[0].mxu0
        %v1296 = vadd.f32 %v596, %v1295
        %v1297 = vpop.f32.mrb[0].mxu0
        %v1298 = vadd.f32 %v592, %v1297
        %v1299 = vpop.f32.mrb[0].mxu0
        %v1300 = vadd.f32 %v596, %v1299
        %1301 = vmatprep.mubr.bf16.mxu0 %v405
        %1302 = vmatmul.mubr.bf16.gmra.mrb[0].mxu0 %v404
        %v1303 = vpop.f32.mrb[0].mxu0
        %v1304 = vadd.f32 %v592, %v1303
        %v1305 = vpop.f32.mrb[0].mxu0
        %v1306 = vadd.f32 %v596, %v1305
        %v1307 = vpop.f32.mrb[0].mxu0
        %v1308 = vadd.f32 %v592, %v1307
        %v1309 = vpop.f32.mrb[0].mxu0
        %v1310 = vadd.f32 %v596, %v1309
        %1311 = vmatprep.mubr.bf16.mxu0 %v409
        %1312 = vmatmul.mubr.bf16.gmra.mrb[0].mxu0 %v408
        %v1313 = vpop.f32.mrb[0].mxu0
        %v1314 = vadd.f32 %v592, %v1313
        %v1315 = vpop.f32.mrb[0].mxu0
        %v1316 = vadd.f32 %v596, %v1315
        %v1317 = vpop.f32.mrb[0].mxu0
        %v1318 = vadd.f32 %v592, %v1317
        %v1319 = vpop.f32.mrb[0].mxu0
        %v1320 = vadd.f32 %v596, %v1319
        %1321 = vmatprep.mubr.bf16.mxu0 %v413
        %1322 = vmatmul.mubr.bf16.gmra.mrb[0].mxu0 %v412
        %v1323 = vpop.f32.mrb[0].mxu0
        %v1324 = vadd.f32 %v592, %v1323
        %v1325 = vpop.f32.mrb[0].mxu0
        %v1326 = vadd.f32 %v596, %v1325
        %v1327 = vpop.f32.mrb[0].mxu0
        %v1328 = vadd.f32 %v592, %v1327
        %v1329 = vpop.f32.mrb[0].mxu0
        %v1330 = vadd.f32 %v596, %v1329
        %1331 = vmatprep.mubr.bf16.mxu0 %v417
        %1332 = vmatmul.mubr.bf16.gmra.mrb[0].mxu0 %v416
        %v1333 = vpop.f32.mrb[0].mxu0
        %v1334 = vadd.f32 %v592, %v1333
        %v1335 = vpop.f32.mrb[0].mxu0
        %v1336 = vadd.f32 %v596, %v1335
        %v1337 = vpop.f32.mrb[0].mxu0
        %v1338 = vadd.f32 %v592, %v1337
        %v1339 = vpop.f32.mrb[0].mxu0
        %v1340 = vadd.f32 %v596, %v1339
        %1341 = vmatprep.mubr.bf16.mxu0 %v421
        %1342 = vmatmul.mubr.bf16.gmra.mrb[0].mxu0 %v420
        %v1343 = vpop.f32.mrb[0].mxu0
        %v1344 = vadd.f32 %v592, %v1343
        %v1345 = vpop.f32.mrb[0].mxu0
        %v1346 = vadd.f32 %v596, %v1345
        %v1347 = vpop.f32.mrb[0].mxu0
        %v1348 = vadd.f32 %v592, %v1347
        %v1349 = vpop.f32.mrb[0].mxu0
        %v1350 = vadd.f32 %v596, %v1349
        %1351 = vmatprep.mubr.bf16.mxu0 %v425
        %1352 = vmatmul.mubr.bf16.gmra.mrb[0].mxu0 %v424
        %v1353 = vpop.f32.mrb[0].mxu0
        %v1354 = vadd.f32 %v592, %v1353
        %v1355 = vpop.f32.mrb[0].mxu0
        %v1356 = vadd.f32 %v596, %v1355
        %v1357 = vpop.f32.mrb[0].mxu0
        %v1358 = vadd.f32 %v592, %v1357
        %v1359 = vpop.f32.mrb[0].mxu0
        %v1360 = vadd.f32 %v596, %v1359
        %1361 = vmatprep.mubr.bf16.mxu0 %v429
        %1362 = vmatmul.mubr.bf16.gmra.mrb[0].mxu0 %v428
        %v1363 = vpop.f32.mrb[0].mxu0
        %v1364 = vadd.f32 %v592, %v1363
        %v1365 = vpop.f32.mrb[0].mxu0
        %v1366 = vadd.f32 %v596, %v1365
        %v1367 = vpop.f32.mrb[0].mxu0
        %v1368 = vadd.f32 %v592, %v1367
        %v1369 = vpop.f32.mrb[0].mxu0
        %v1370 = vadd.f32 %v596, %v1369
        %1371 = vmatprep.mubr.bf16.mxu0 %v433
        %1372 = vmatmul.mubr.bf16.gmra.mrb[0].mxu0 %v432
        %v1373 = vpop.f32.mrb[0].mxu0
        %v1374 = vadd.f32 %v592, %v1373
        %v1375 = vpop.f32.mrb[0].mxu0
        %v1376 = vadd.f32 %v596, %v1375
        %v1377 = vpop.f32.mrb[0].mxu0
        %v1378 = vadd.f32 %v592, %v1377
        %v1379 = vpop.f32.mrb[0].mxu0
        %v1380 = vadd.f32 %v596, %v1379
        %1381 = vmatprep.mubr.bf16.mxu0 %v437
        %1382 = vmatmul.mubr.bf16.gmra.mrb[0].mxu0 %v436
        %v1383 = vpop.f32.mrb[0].mxu0
        %v1384 = vadd.f32 %v592, %v1383
        %v1385 = vpop.f32.mrb[0].mxu0
        %v1386 = vadd.f32 %v596, %v1385
        %v1387 = vpop.f32.mrb[0].mxu0
        %v1388 = vadd.f32 %v592, %v1387
        %v1389 = vpop.f32.mrb[0].mxu0
        %v1390 = vadd.f32 %v596, %v1389
        %1391 = vmatprep.mubr.bf16.mxu0 %v441
        %1392 = vmatmul.mubr.bf16.gmra.mrb[0].mxu0 %v440
        %v1393 = vpop.f32.mrb[0].mxu0
        %v1394 = vadd.f32 %v592, %v1393
        %v1395 = vpop.f32.mrb[0].mxu0
        %v1396 = vadd.f32 %v596, %v1395
        %v1397 = vpop.f32.mrb[0].mxu0
        %v1398 = vadd.f32 %v592, %v1397
        %v1399 = vpop.f32.mrb[0].mxu0
        %v1400 = vadd.f32 %v596, %v1399
        %1401 = vmatprep.mubr.bf16.mxu0 %v445
        %1402 = vmatmul.mubr.bf16.gmra.mrb[0].mxu0 %v444
        %v1403 = vpop.f32.mrb[0].mxu0
        %v1404 = vadd.f32 %v592, %v1403
        %v1405 = vpop.f32.mrb[0].mxu0
        %v1406 = vadd.f32 %v596, %v1405
        %v1407 = vpop.f32.mrb[0].mxu0
        %v1408 = vadd.f32 %v592, %v1407
        %v1409 = vpop.f32.mrb[0].mxu0
        %v1410 = vadd.f32 %v596, %v1409
        %1411 = vmatprep.mubr.bf16.mxu0 %v449
        %1412 = vmatmul.mubr.bf16.gmra.mrb[0].mxu0 %v448
        %v1413 = vpop.f32.mrb[0].mxu0
        %v1414 = vadd.f32 %v592, %v1413
        %v1415 = vpop.f32.mrb[0].mxu0
        %v1416 = vadd.f32 %v596, %v1415
        %v1417 = vpop.f32.mrb[0].mxu0
        %v1418 = vadd.f32 %v592, %v1417
        %v1419 = vpop.f32.mrb[0].mxu0
        %v1420 = vadd.f32 %v596, %v1419
        %1421 = vmatprep.mubr.bf16.mxu0 %v453
        %1422 = vmatmul.mubr.bf16.gmra.mrb[0].mxu0 %v452
        %v1423 = vpop.f32.mrb[0].mxu0
        %v1424 = vadd.f32 %v592, %v1423
        %v1425 = vpop.f32.mrb[0].mxu0
        %v1426 = vadd.f32 %v596, %v1425
        %v1427 = vpop.f32.mrb[0].mxu0
        %v1428 = vadd.f32 %v592, %v1427
        %v1429 = vpop.f32.mrb[0].mxu0
        %v1430 = vadd.f32 %v596, %v1429
        %1431 = vmatprep.mubr.bf16.mxu0 %v457
        %1432 = vmatmul.mubr.bf16.gmra.mrb[0].mxu0 %v456
        %v1433 = vpop.f32.mrb[0].mxu0
        %v1434 = vadd.f32 %v592, %v1433
        %v1435 = vpop.f32.mrb[0].mxu0
        %v1436 = vadd.f32 %v596, %v1435
        %v1437 = vpop.f32.mrb[0].mxu0
        %v1438 = vadd.f32 %v592, %v1437
        %v1439 = vpop.f32.mrb[0].mxu0
        %v1440 = vadd.f32 %v596, %v1439
        %1441 = vdwg.mxu0
        %1442 = vmatprep.subr.bf16.mxu0 %v1058
        %1443 = vmatpush1.bf16.msra.mxu0 %v1057
        %1444 = vmatprep.subr.bf16.mxu0 %v1062
        %1445 = vmatpush1.bf16.msra.mxu0 %v1061
        %1446 = vmatprep.subr.bf16.mxu0 %v1066
        %1447 = vmatpush1.bf16.msra.mxu0 %v1065
        %1448 = vmatprep.subr.bf16.mxu0 %v1070
        %1449 = vmatpush1.bf16.msra.mxu0 %v1069
        %1450 = vmatprep.subr.bf16.mxu0 %v1074
        %1451 = vmatpush1.bf16.msra.mxu0 %v1073
        %1452 = vmatprep.subr.bf16.mxu0 %v1078
        %1453 = vmatpush1.bf16.msra.mxu0 %v1077
        %1454 = vmatprep.subr.bf16.mxu0 %v1082
        %1455 = vmatpush1.bf16.msra.mxu0 %v1081
        %1456 = vmatprep.subr.bf16.mxu0 %v1086
        %1457 = vmatpush1.bf16.msra.mxu0 %v1085
        %1458 = vmatprep.subr.bf16.mxu0 %v1090
        %1459 = vmatpush1.bf16.msra.mxu0 %v1089
        %1460 = vmatprep.subr.bf16.mxu0 %v1094
        %1461 = vmatpush1.bf16.msra.mxu0 %v1093
        %1462 = vmatprep.subr.bf16.mxu0 %v1098
        %1463 = vmatpush1.bf16.msra.mxu0 %v1097
        %1464 = vmatprep.subr.bf16.mxu0 %v1102
        %1465 = vmatpush1.bf16.msra.mxu0 %v1101
        %1466 = vmatprep.subr.bf16.mxu0 %v1106
        %1467 = vmatpush1.bf16.msra.mxu0 %v1105
        %1468 = vmatprep.subr.bf16.mxu0 %v1110
        %1469 = vmatpush1.bf16.msra.mxu0 %v1109
        %1470 = vmatprep.subr.bf16.mxu0 %v1114
        %1471 = vmatpush1.bf16.msra.mxu0 %v1113
        %1472 = vmatprep.subr.bf16.mxu0 %v1118
        %1473 = vmatpush1.bf16.msra.mxu0 %v1117
        %1474 = vmatprep.mubr.bf16.mxu0 %v399
        %1475 = vmatmul.mubr.bf16.gmra.mrb[0].mxu0 %v398
        %v1476 = vpop.f32.mrb[0].mxu0
        %v1477 = vadd.f32 %v1284, %v1476
        %v1478 = vpop.f32.mrb[0].mxu0
        %v1479 = vadd.f32 %v1286, %v1478
        %v1480 = vpop.f32.mrb[0].mxu0
        %v1481 = vadd.f32 %v1288, %v1480
        %v1482 = vpop.f32.mrb[0].mxu0
        %v1483 = vadd.f32 %v1290, %v1482
        %1484 = vmatprep.mubr.bf16.mxu0 %v403
        %1485 = vmatmul.mubr.bf16.gmra.mrb[0].mxu0 %v402
        %v1486 = vpop.f32.mrb[0].mxu0
        %v1487 = vadd.f32 %v1294, %v1486
        %v1488 = vpop.f32.mrb[0].mxu0
        %v1489 = vadd.f32 %v1296, %v1488
        %v1490 = vpop.f32.mrb[0].mxu0
        %v1491 = vadd.f32 %v1298, %v1490
        %v1492 = vpop.f32.mrb[0].mxu0
        %v1493 = vadd.f32 %v1300, %v1492
        %1494 = vmatprep.mubr.bf16.mxu0 %v407
        %1495 = vmatmul.mubr.bf16.gmra.mrb[0].mxu0 %v406
        %v1496 = vpop.f32.mrb[0].mxu0
        %v1497 = vadd.f32 %v1304, %v1496
        %v1498 = vpop.f32.mrb[0].mxu0
        %v1499 = vadd.f32 %v1306, %v1498
        %v1500 = vpop.f32.mrb[0].mxu0
        %v1501 = vadd.f32 %v1308, %v1500
        %v1502 = vpop.f32.mrb[0].mxu0
        %v1503 = vadd.f32 %v1310, %v1502
        %1504 = vmatprep.mubr.bf16.mxu0 %v411
        %1505 = vmatmul.mubr.bf16.gmra.mrb[0].mxu0 %v410
        %v1506 = vpop.f32.mrb[0].mxu0
        %v1507 = vadd.f32 %v1314, %v1506
        %v1508 = vpop.f32.mrb[0].mxu0
        %v1509 = vadd.f32 %v1316, %v1508
        %v1510 = vpop.f32.mrb[0].mxu0
        %v1511 = vadd.f32 %v1318, %v1510
        %v1512 = vpop.f32.mrb[0].mxu0
        %v1513 = vadd.f32 %v1320, %v1512
        %1514 = vmatprep.mubr.bf16.mxu0 %v415
        %1515 = vmatmul.mubr.bf16.gmra.mrb[0].mxu0 %v414
        %v1516 = vpop.f32.mrb[0].mxu0
        %v1517 = vadd.f32 %v1324, %v1516
        %v1518 = vpop.f32.mrb[0].mxu0
        %v1519 = vadd.f32 %v1326, %v1518
        %v1520 = vpop.f32.mrb[0].mxu0
        %v1521 = vadd.f32 %v1328, %v1520
        %v1522 = vpop.f32.mrb[0].mxu0
        %v1523 = vadd.f32 %v1330, %v1522
        %1524 = vmatprep.mubr.bf16.mxu0 %v419
        %1525 = vmatmul.mubr.bf16.gmra.mrb[0].mxu0 %v418
        %v1526 = vpop.f32.mrb[0].mxu0
        %v1527 = vadd.f32 %v1334, %v1526
        %v1528 = vpop.f32.mrb[0].mxu0
        %v1529 = vadd.f32 %v1336, %v1528
        %v1530 = vpop.f32.mrb[0].mxu0
        %v1531 = vadd.f32 %v1338, %v1530
        %v1532 = vpop.f32.mrb[0].mxu0
        %v1533 = vadd.f32 %v1340, %v1532
        %1534 = vmatprep.mubr.bf16.mxu0 %v423
        %1535 = vmatmul.mubr.bf16.gmra.mrb[0].mxu0 %v422
        %v1536 = vpop.f32.mrb[0].mxu0
        %v1537 = vadd.f32 %v1344, %v1536
        %v1538 = vpop.f32.mrb[0].mxu0
        %v1539 = vadd.f32 %v1346, %v1538
        %v1540 = vpop.f32.mrb[0].mxu0
        %v1541 = vadd.f32 %v1348, %v1540
        %v1542 = vpop.f32.mrb[0].mxu0
        %v1543 = vadd.f32 %v1350, %v1542
        %1544 = vmatprep.mubr.bf16.mxu0 %v427
        %1545 = vmatmul.mubr.bf16.gmra.mrb[0].mxu0 %v426
        %v1546 = vpop.f32.mrb[0].mxu0
        %v1547 = vadd.f32 %v1354, %v1546
        %v1548 = vpop.f32.mrb[0].mxu0
        %v1549 = vadd.f32 %v1356, %v1548
        %v1550 = vpop.f32.mrb[0].mxu0
        %v1551 = vadd.f32 %v1358, %v1550
        %v1552 = vpop.f32.mrb[0].mxu0
        %v1553 = vadd.f32 %v1360, %v1552
        %1554 = vmatprep.mubr.bf16.mxu0 %v431
        %1555 = vmatmul.mubr.bf16.gmra.mrb[0].mxu0 %v430
        %v1556 = vpop.f32.mrb[0].mxu0
        %v1557 = vadd.f32 %v1364, %v1556
        %v1558 = vpop.f32.mrb[0].mxu0
        %v1559 = vadd.f32 %v1366, %v1558
        %v1560 = vpop.f32.mrb[0].mxu0
        %v1561 = vadd.f32 %v1368, %v1560
        %v1562 = vpop.f32.mrb[0].mxu0
        %v1563 = vadd.f32 %v1370, %v1562
        %1564 = vmatprep.mubr.bf16.mxu0 %v435
        %1565 = vmatmul.mubr.bf16.gmra.mrb[0].mxu0 %v434
        %v1566 = vpop.f32.mrb[0].mxu0
        %v1567 = vadd.f32 %v1374, %v1566
        %v1568 = vpop.f32.mrb[0].mxu0
        %v1569 = vadd.f32 %v1376, %v1568
        %v1570 = vpop.f32.mrb[0].mxu0
        %v1571 = vadd.f32 %v1378, %v1570
        %v1572 = vpop.f32.mrb[0].mxu0
        %v1573 = vadd.f32 %v1380, %v1572
        %1574 = vmatprep.mubr.bf16.mxu0 %v439
        %1575 = vmatmul.mubr.bf16.gmra.mrb[0].mxu0 %v438
        %v1576 = vpop.f32.mrb[0].mxu0
        %v1577 = vadd.f32 %v1384, %v1576
        %v1578 = vpop.f32.mrb[0].mxu0
        %v1579 = vadd.f32 %v1386, %v1578
        %v1580 = vpop.f32.mrb[0].mxu0
        %v1581 = vadd.f32 %v1388, %v1580
        %v1582 = vpop.f32.mrb[0].mxu0
        %v1583 = vadd.f32 %v1390, %v1582
        %1584 = vmatprep.mubr.bf16.mxu0 %v443
        %1585 = vmatmul.mubr.bf16.gmra.mrb[0].mxu0 %v442
        %v1586 = vpop.f32.mrb[0].mxu0
        %v1587 = vadd.f32 %v1394, %v1586
        %v1588 = vpop.f32.mrb[0].mxu0
        %v1589 = vadd.f32 %v1396, %v1588
        %v1590 = vpop.f32.mrb[0].mxu0
        %v1591 = vadd.f32 %v1398, %v1590
        %v1592 = vpop.f32.mrb[0].mxu0
        %v1593 = vadd.f32 %v1400, %v1592
        %1594 = vmatprep.mubr.bf16.mxu0 %v447
        %1595 = vmatmul.mubr.bf16.gmra.mrb[0].mxu0 %v446
        %v1596 = vpop.f32.mrb[0].mxu0
        %v1597 = vadd.f32 %v1404, %v1596
        %v1598 = vpop.f32.mrb[0].mxu0
        %v1599 = vadd.f32 %v1406, %v1598
        %v1600 = vpop.f32.mrb[0].mxu0
        %v1601 = vadd.f32 %v1408, %v1600
        %v1602 = vpop.f32.mrb[0].mxu0
        %v1603 = vadd.f32 %v1410, %v1602
        %1604 = vmatprep.mubr.bf16.mxu0 %v451
        %1605 = vmatmul.mubr.bf16.gmra.mrb[0].mxu0 %v450
        %v1606 = vpop.f32.mrb[0].mxu0
        %v1607 = vadd.f32 %v1414, %v1606
        %v1608 = vpop.f32.mrb[0].mxu0
        %v1609 = vadd.f32 %v1416, %v1608
        %v1610 = vpop.f32.mrb[0].mxu0
        %v1611 = vadd.f32 %v1418, %v1610
        %v1612 = vpop.f32.mrb[0].mxu0
        %v1613 = vadd.f32 %v1420, %v1612
        %1614 = vmatprep.mubr.bf16.mxu0 %v455
        %1615 = vmatmul.mubr.bf16.gmra.mrb[0].mxu0 %v454
        %v1616 = vpop.f32.mrb[0].mxu0
        %v1617 = vadd.f32 %v1424, %v1616
        %v1618 = vpop.f32.mrb[0].mxu0
        %v1619 = vadd.f32 %v1426, %v1618
        %v1620 = vpop.f32.mrb[0].mxu0
        %v1621 = vadd.f32 %v1428, %v1620
        %v1622 = vpop.f32.mrb[0].mxu0
        %v1623 = vadd.f32 %v1430, %v1622
        %1624 = vmatprep.mubr.bf16.mxu0 %v459
        %1625 = vmatmul.mubr.bf16.gmra.mrb[0].mxu0 %v458
        %v1626 = vpop.f32.mrb[0].mxu0
        %v1627 = vadd.f32 %v1434, %v1626
        %v1628 = vpop.f32.mrb[0].mxu0
        %v1629 = vadd.f32 %v1436, %v1628
        %v1630 = vpop.f32.mrb[0].mxu0
        %v1631 = vadd.f32 %v1438, %v1630
        %v1632 = vpop.f32.mrb[0].mxu0
        %v1633 = vadd.f32 %v1440, %v1632
        %1634 = vdwg.mxu0
        %1635 = vmatprep.subr.bf16.mxu0 %v996
        %1636 = vmatpush1.bf16.msra.mxu0 %v995
        %1637 = vmatprep.subr.bf16.mxu0 %v1000
        %1638 = vmatpush1.bf16.msra.mxu0 %v999
        %1639 = vmatprep.subr.bf16.mxu0 %v1004
        %1640 = vmatpush1.bf16.msra.mxu0 %v1003
        %1641 = vmatprep.subr.bf16.mxu0 %v1008
        %1642 = vmatpush1.bf16.msra.mxu0 %v1007
        %1643 = vmatprep.subr.bf16.mxu0 %v1012
        %1644 = vmatpush1.bf16.msra.mxu0 %v1011
        %1645 = vmatprep.subr.bf16.mxu0 %v1016
        %1646 = vmatpush1.bf16.msra.mxu0 %v1015
        %1647 = vmatprep.subr.bf16.mxu0 %v1020
        %1648 = vmatpush1.bf16.msra.mxu0 %v1019
        %1649 = vmatprep.subr.bf16.mxu0 %v1024
        %1650 = vmatpush1.bf16.msra.mxu0 %v1023
        %1651 = vmatprep.subr.bf16.mxu0 %v1028
        %1652 = vmatpush1.bf16.msra.mxu0 %v1027
        %1653 = vmatprep.subr.bf16.mxu0 %v1032
        %1654 = vmatpush1.bf16.msra.mxu0 %v1031
        %1655 = vmatprep.subr.bf16.mxu0 %v1036
        %1656 = vmatpush1.bf16.msra.mxu0 %v1035
        %1657 = vmatprep.subr.bf16.mxu0 %v1040
        %1658 = vmatpush1.bf16.msra.mxu0 %v1039
        %1659 = vmatprep.subr.bf16.mxu0 %v1044
        %1660 = vmatpush1.bf16.msra.mxu0 %v1043
        %1661 = vmatprep.subr.bf16.mxu0 %v1048
        %1662 = vmatpush1.bf16.msra.mxu0 %v1047
        %1663 = vmatprep.subr.bf16.mxu0 %v1052
        %1664 = vmatpush1.bf16.msra.mxu0 %v1051
        %1665 = vmatprep.subr.bf16.mxu0 %v1056
        %1666 = vmatpush1.bf16.msra.mxu0 %v1055
        %1667 = vmatprep.mubr.bf16.mxu0 %v397
        %1668 = vmatmul.mubr.bf16.gmra.mrb[0].mxu0 %v396
        %v1669 = vpop.f32.mrb[0].mxu0
        %v1670 = vadd.f32 %v600, %v1669
        %v1671 = vpop.f32.mrb[0].mxu0
        %v1672 = vadd.f32 %v604, %v1671
        %v1673 = vpop.f32.mrb[0].mxu0
        %v1674 = vadd.f32 %v600, %v1673
        %v1675 = vpop.f32.mrb[0].mxu0
        %v1676 = vadd.f32 %v604, %v1675
        %1677 = vmatprep.mubr.bf16.mxu0 %v401
        %1678 = vmatmul.mubr.bf16.gmra.mrb[0].mxu0 %v400
        %v1679 = vpop.f32.mrb[0].mxu0
        %v1680 = vadd.f32 %v600, %v1679
        %v1681 = vpop.f32.mrb[0].mxu0
        %v1682 = vadd.f32 %v604, %v1681
        %v1683 = vpop.f32.mrb[0].mxu0
        %v1684 = vadd.f32 %v600, %v1683
        %v1685 = vpop.f32.mrb[0].mxu0
        %v1686 = vadd.f32 %v604, %v1685
        %1687 = vmatprep.mubr.bf16.mxu0 %v405
        %1688 = vmatmul.mubr.bf16.gmra.mrb[0].mxu0 %v404
        %v1689 = vpop.f32.mrb[0].mxu0
        %v1690 = vadd.f32 %v600, %v1689
        %v1691 = vpop.f32.mrb[0].mxu0
        %v1692 = vadd.f32 %v604, %v1691
        %v1693 = vpop.f32.mrb[0].mxu0
        %v1694 = vadd.f32 %v600, %v1693
        %v1695 = vpop.f32.mrb[0].mxu0
        %v1696 = vadd.f32 %v604, %v1695
        %1697 = vmatprep.mubr.bf16.mxu0 %v409
        %1698 = vmatmul.mubr.bf16.gmra.mrb[0].mxu0 %v408
        %v1699 = vpop.f32.mrb[0].mxu0
        %v1700 = vadd.f32 %v600, %v1699
        %v1701 = vpop.f32.mrb[0].mxu0
        %v1702 = vadd.f32 %v604, %v1701
        %v1703 = vpop.f32.mrb[0].mxu0
        %v1704 = vadd.f32 %v600, %v1703
        %v1705 = vpop.f32.mrb[0].mxu0
        %v1706 = vadd.f32 %v604, %v1705
        %1707 = vmatprep.mubr.bf16.mxu0 %v413
        %1708 = vmatmul.mubr.bf16.gmra.mrb[0].mxu0 %v412
        %v1709 = vpop.f32.mrb[0].mxu0
        %v1710 = vadd.f32 %v600, %v1709
        %v1711 = vpop.f32.mrb[0].mxu0
        %v1712 = vadd.f32 %v604, %v1711
        %v1713 = vpop.f32.mrb[0].mxu0
        %v1714 = vadd.f32 %v600, %v1713
        %v1715 = vpop.f32.mrb[0].mxu0
        %v1716 = vadd.f32 %v604, %v1715
        %1717 = vmatprep.mubr.bf16.mxu0 %v417
        %1718 = vmatmul.mubr.bf16.gmra.mrb[0].mxu0 %v416
        %v1719 = vpop.f32.mrb[0].mxu0
        %v1720 = vadd.f32 %v600, %v1719
        %v1721 = vpop.f32.mrb[0].mxu0
        %v1722 = vadd.f32 %v604, %v1721
        %v1723 = vpop.f32.mrb[0].mxu0
        %v1724 = vadd.f32 %v600, %v1723
        %v1725 = vpop.f32.mrb[0].mxu0
        %v1726 = vadd.f32 %v604, %v1725
        %1727 = vmatprep.mubr.bf16.mxu0 %v421
        %1728 = vmatmul.mubr.bf16.gmra.mrb[0].mxu0 %v420
        %v1729 = vpop.f32.mrb[0].mxu0
        %v1730 = vadd.f32 %v600, %v1729
        %v1731 = vpop.f32.mrb[0].mxu0
        %v1732 = vadd.f32 %v604, %v1731
        %v1733 = vpop.f32.mrb[0].mxu0
        %v1734 = vadd.f32 %v600, %v1733
        %v1735 = vpop.f32.mrb[0].mxu0
        %v1736 = vadd.f32 %v604, %v1735
        %1737 = vmatprep.mubr.bf16.mxu0 %v425
        %1738 = vmatmul.mubr.bf16.gmra.mrb[0].mxu0 %v424
        %v1739 = vpop.f32.mrb[0].mxu0
        %v1740 = vadd.f32 %v600, %v1739
        %v1741 = vpop.f32.mrb[0].mxu0
        %v1742 = vadd.f32 %v604, %v1741
        %v1743 = vpop.f32.mrb[0].mxu0
        %v1744 = vadd.f32 %v600, %v1743
        %v1745 = vpop.f32.mrb[0].mxu0
        %v1746 = vadd.f32 %v604, %v1745
        %1747 = vmatprep.mubr.bf16.mxu0 %v429
        %1748 = vmatmul.mubr.bf16.gmra.mrb[0].mxu0 %v428
        %v1749 = vpop.f32.mrb[0].mxu0
        %v1750 = vadd.f32 %v600, %v1749
        %v1751 = vpop.f32.mrb[0].mxu0
        %v1752 = vadd.f32 %v604, %v1751
        %v1753 = vpop.f32.mrb[0].mxu0
        %v1754 = vadd.f32 %v600, %v1753
        %v1755 = vpop.f32.mrb[0].mxu0
        %v1756 = vadd.f32 %v604, %v1755
        %1757 = vmatprep.mubr.bf16.mxu0 %v433
        %1758 = vmatmul.mubr.bf16.gmra.mrb[0].mxu0 %v432
        %v1759 = vpop.f32.mrb[0].mxu0
        %v1760 = vadd.f32 %v600, %v1759
        %v1761 = vpop.f32.mrb[0].mxu0
        %v1762 = vadd.f32 %v604, %v1761
        %v1763 = vpop.f32.mrb[0].mxu0
        %v1764 = vadd.f32 %v600, %v1763
        %v1765 = vpop.f32.mrb[0].mxu0
        %v1766 = vadd.f32 %v604, %v1765
        %1767 = vmatprep.mubr.bf16.mxu0 %v437
        %1768 = vmatmul.mubr.bf16.gmra.mrb[0].mxu0 %v436
        %v1769 = vpop.f32.mrb[0].mxu0
        %v1770 = vadd.f32 %v600, %v1769
        %v1771 = vpop.f32.mrb[0].mxu0
        %v1772 = vadd.f32 %v604, %v1771
        %v1773 = vpop.f32.mrb[0].mxu0
        %v1774 = vadd.f32 %v600, %v1773
        %v1775 = vpop.f32.mrb[0].mxu0
        %v1776 = vadd.f32 %v604, %v1775
        %1777 = vmatprep.mubr.bf16.mxu0 %v441
        %1778 = vmatmul.mubr.bf16.gmra.mrb[0].mxu0 %v440
        %v1779 = vpop.f32.mrb[0].mxu0
        %v1780 = vadd.f32 %v600, %v1779
        %v1781 = vpop.f32.mrb[0].mxu0
        %v1782 = vadd.f32 %v604, %v1781
        %v1783 = vpop.f32.mrb[0].mxu0
        %v1784 = vadd.f32 %v600, %v1783
        %v1785 = vpop.f32.mrb[0].mxu0
        %v1786 = vadd.f32 %v604, %v1785
        %1787 = vmatprep.mubr.bf16.mxu0 %v445
        %1788 = vmatmul.mubr.bf16.gmra.mrb[0].mxu0 %v444
        %v1789 = vpop.f32.mrb[0].mxu0
        %v1790 = vadd.f32 %v600, %v1789
        %v1791 = vpop.f32.mrb[0].mxu0
        %v1792 = vadd.f32 %v604, %v1791
        %v1793 = vpop.f32.mrb[0].mxu0
        %v1794 = vadd.f32 %v600, %v1793
        %v1795 = vpop.f32.mrb[0].mxu0
        %v1796 = vadd.f32 %v604, %v1795
        %1797 = vmatprep.mubr.bf16.mxu0 %v449
        %1798 = vmatmul.mubr.bf16.gmra.mrb[0].mxu0 %v448
        %v1799 = vpop.f32.mrb[0].mxu0
        %v1800 = vadd.f32 %v600, %v1799
        %v1801 = vpop.f32.mrb[0].mxu0
        %v1802 = vadd.f32 %v604, %v1801
        %v1803 = vpop.f32.mrb[0].mxu0
        %v1804 = vadd.f32 %v600, %v1803
        %v1805 = vpop.f32.mrb[0].mxu0
        %v1806 = vadd.f32 %v604, %v1805
        %1807 = vmatprep.mubr.bf16.mxu0 %v453
        %1808 = vmatmul.mubr.bf16.gmra.mrb[0].mxu0 %v452
        %v1809 = vpop.f32.mrb[0].mxu0
        %v1810 = vadd.f32 %v600, %v1809
        %v1811 = vpop.f32.mrb[0].mxu0
        %v1812 = vadd.f32 %v604, %v1811
        %v1813 = vpop.f32.mrb[0].mxu0
        %v1814 = vadd.f32 %v600, %v1813
        %v1815 = vpop.f32.mrb[0].mxu0
        %v1816 = vadd.f32 %v604, %v1815
        %1817 = vmatprep.mubr.bf16.mxu0 %v457
        %1818 = vmatmul.mubr.bf16.gmra.mrb[0].mxu0 %v456
        %v1819 = vpop.f32.mrb[0].mxu0
        %v1820 = vadd.f32 %v600, %v1819
        %v1821 = vpop.f32.mrb[0].mxu0
        %v1822 = vadd.f32 %v604, %v1821
        %v1823 = vpop.f32.mrb[0].mxu0
        %v1824 = vadd.f32 %v600, %v1823
        %v1825 = vpop.f32.mrb[0].mxu0
        %v1826 = vadd.f32 %v604, %v1825
        %1827 = vdwg.mxu0
        %1828 = vmatprep.subr.bf16.mxu0 %v1060
        %1829 = vmatpush1.bf16.msra.mxu0 %v1059
        %1830 = vmatprep.subr.bf16.mxu0 %v1064
        %1831 = vmatpush1.bf16.msra.mxu0 %v1063
        %1832 = vmatprep.subr.bf16.mxu0 %v1068
        %1833 = vmatpush1.bf16.msra.mxu0 %v1067
        %1834 = vmatprep.subr.bf16.mxu0 %v1072
        %1835 = vmatpush1.bf16.msra.mxu0 %v1071
        %1836 = vmatprep.subr.bf16.mxu0 %v1076
        %1837 = vmatpush1.bf16.msra.mxu0 %v1075
        %1838 = vmatprep.subr.bf16.mxu0 %v1080
        %1839 = vmatpush1.bf16.msra.mxu0 %v1079
        %1840 = vmatprep.subr.bf16.mxu0 %v1084
        %1841 = vmatpush1.bf16.msra.mxu0 %v1083
        %1842 = vmatprep.subr.bf16.mxu0 %v1088
        %1843 = vmatpush1.bf16.msra.mxu0 %v1087
        %1844 = vmatprep.subr.bf16.mxu0 %v1092
        %1845 = vmatpush1.bf16.msra.mxu0 %v1091
        %1846 = vmatprep.subr.bf16.mxu0 %v1096
        %1847 = vmatpush1.bf16.msra.mxu0 %v1095
        %1848 = vmatprep.subr.bf16.mxu0 %v1100
        %1849 = vmatpush1.bf16.msra.mxu0 %v1099
        %1850 = vmatprep.subr.bf16.mxu0 %v1104
        %1851 = vmatpush1.bf16.msra.mxu0 %v1103
        %1852 = vmatprep.subr.bf16.mxu0 %v1108
        %1853 = vmatpush1.bf16.msra.mxu0 %v1107
        %1854 = vmatprep.subr.bf16.mxu0 %v1112
        %1855 = vmatpush1.bf16.msra.mxu0 %v1111
        %1856 = vmatprep.subr.bf16.mxu0 %v1116
        %1857 = vmatpush1.bf16.msra.mxu0 %v1115
        %1858 = vmatprep.subr.bf16.mxu0 %v1120
        %1859 = vmatpush1.bf16.msra.mxu0 %v1119
        %1860 = vmatprep.mubr.bf16.mxu0 %v399
        %1861 = vmatmul.mubr.bf16.gmra.mrb[0].mxu0 %v398
        %v1862 = vpop.f32.mrb[0].mxu0
        %v1863 = vadd.f32 %v1670, %v1862
        %v1864 = vpop.f32.mrb[0].mxu0
        %v1865 = vadd.f32 %v1672, %v1864
        %v1866 = vpop.f32.mrb[0].mxu0
        %v1867 = vadd.f32 %v1674, %v1866
        %v1868 = vpop.f32.mrb[0].mxu0
        %v1869 = vadd.f32 %v1676, %v1868
        %1870 = vmatprep.mubr.bf16.mxu0 %v403
        %1871 = vmatmul.mubr.bf16.gmra.mrb[0].mxu0 %v402
        %v1872 = vpop.f32.mrb[0].mxu0
        %v1873 = vadd.f32 %v1680, %v1872
        %v1874 = vpop.f32.mrb[0].mxu0
        %v1875 = vadd.f32 %v1682, %v1874
        %v1876 = vpop.f32.mrb[0].mxu0
        %v1877 = vadd.f32 %v1684, %v1876
        %v1878 = vpop.f32.mrb[0].mxu0
        %v1879 = vadd.f32 %v1686, %v1878
        %1880 = vmatprep.mubr.bf16.mxu0 %v407
        %1881 = vmatmul.mubr.bf16.gmra.mrb[0].mxu0 %v406
        %v1882 = vpop.f32.mrb[0].mxu0
        %v1883 = vadd.f32 %v1690, %v1882
        %v1884 = vpop.f32.mrb[0].mxu0
        %v1885 = vadd.f32 %v1692, %v1884
        %v1886 = vpop.f32.mrb[0].mxu0
        %v1887 = vadd.f32 %v1694, %v1886
        %v1888 = vpop.f32.mrb[0].mxu0
        %v1889 = vadd.f32 %v1696, %v1888
        %1890 = vmatprep.mubr.bf16.mxu0 %v411
        %1891 = vmatmul.mubr.bf16.gmra.mrb[0].mxu0 %v410
        %v1892 = vpop.f32.mrb[0].mxu0
        %v1893 = vadd.f32 %v1700, %v1892
        %v1894 = vpop.f32.mrb[0].mxu0
        %v1895 = vadd.f32 %v1702, %v1894
        %v1896 = vpop.f32.mrb[0].mxu0
        %v1897 = vadd.f32 %v1704, %v1896
        %v1898 = vpop.f32.mrb[0].mxu0
        %v1899 = vadd.f32 %v1706, %v1898
        %1900 = vmatprep.mubr.bf16.mxu0 %v415
        %1901 = vmatmul.mubr.bf16.gmra.mrb[0].mxu0 %v414
        %v1902 = vpop.f32.mrb[0].mxu0
        %v1903 = vadd.f32 %v1710, %v1902
        %v1904 = vpop.f32.mrb[0].mxu0
        %v1905 = vadd.f32 %v1712, %v1904
        %v1906 = vpop.f32.mrb[0].mxu0
        %v1907 = vadd.f32 %v1714, %v1906
        %v1908 = vpop.f32.mrb[0].mxu0
        %v1909 = vadd.f32 %v1716, %v1908
        %1910 = vmatprep.mubr.bf16.mxu0 %v419
        %1911 = vmatmul.mubr.bf16.gmra.mrb[0].mxu0 %v418
        %v1912 = vpop.f32.mrb[0].mxu0
        %v1913 = vadd.f32 %v1720, %v1912
        %v1914 = vpop.f32.mrb[0].mxu0
        %v1915 = vadd.f32 %v1722, %v1914
        %v1916 = vpop.f32.mrb[0].mxu0
        %v1917 = vadd.f32 %v1724, %v1916
        %v1918 = vpop.f32.mrb[0].mxu0
        %v1919 = vadd.f32 %v1726, %v1918
        %1920 = vmatprep.mubr.bf16.mxu0 %v423
        %1921 = vmatmul.mubr.bf16.gmra.mrb[0].mxu0 %v422
        %v1922 = vpop.f32.mrb[0].mxu0
        %v1923 = vadd.f32 %v1730, %v1922
        %v1924 = vpop.f32.mrb[0].mxu0
        %v1925 = vadd.f32 %v1732, %v1924
        %v1926 = vpop.f32.mrb[0].mxu0
        %v1927 = vadd.f32 %v1734, %v1926
        %v1928 = vpop.f32.mrb[0].mxu0
        %v1929 = vadd.f32 %v1736, %v1928
        %1930 = vmatprep.mubr.bf16.mxu0 %v427
        %1931 = vmatmul.mubr.bf16.gmra.mrb[0].mxu0 %v426
        %v1932 = vpop.f32.mrb[0].mxu0
        %v1933 = vadd.f32 %v1740, %v1932
        %v1934 = vpop.f32.mrb[0].mxu0
        %v1935 = vadd.f32 %v1742, %v1934
        %v1936 = vpop.f32.mrb[0].mxu0
        %v1937 = vadd.f32 %v1744, %v1936
        %v1938 = vpop.f32.mrb[0].mxu0
        %v1939 = vadd.f32 %v1746, %v1938
        %1940 = vmatprep.mubr.bf16.mxu0 %v431
        %1941 = vmatmul.mubr.bf16.gmra.mrb[0].mxu0 %v430
        %v1942 = vpop.f32.mrb[0].mxu0
        %v1943 = vadd.f32 %v1750, %v1942
        %v1944 = vpop.f32.mrb[0].mxu0
        %v1945 = vadd.f32 %v1752, %v1944
        %v1946 = vpop.f32.mrb[0].mxu0
        %v1947 = vadd.f32 %v1754, %v1946
        %v1948 = vpop.f32.mrb[0].mxu0
        %v1949 = vadd.f32 %v1756, %v1948
        %1950 = vmatprep.mubr.bf16.mxu0 %v435
        %1951 = vmatmul.mubr.bf16.gmra.mrb[0].mxu0 %v434
        %v1952 = vpop.f32.mrb[0].mxu0
        %v1953 = vadd.f32 %v1760, %v1952
        %v1954 = vpop.f32.mrb[0].mxu0
        %v1955 = vadd.f32 %v1762, %v1954
        %v1956 = vpop.f32.mrb[0].mxu0
        %v1957 = vadd.f32 %v1764, %v1956
        %v1958 = vpop.f32.mrb[0].mxu0
        %v1959 = vadd.f32 %v1766, %v1958
        %1960 = vmatprep.mubr.bf16.mxu0 %v439
        %1961 = vmatmul.mubr.bf16.gmra.mrb[0].mxu0 %v438
        %v1962 = vpop.f32.mrb[0].mxu0
        %v1963 = vadd.f32 %v1770, %v1962
        %v1964 = vpop.f32.mrb[0].mxu0
        %v1965 = vadd.f32 %v1772, %v1964
        %v1966 = vpop.f32.mrb[0].mxu0
        %v1967 = vadd.f32 %v1774, %v1966
        %v1968 = vpop.f32.mrb[0].mxu0
        %v1969 = vadd.f32 %v1776, %v1968
        %1970 = vmatprep.mubr.bf16.mxu0 %v443
        %1971 = vmatmul.mubr.bf16.gmra.mrb[0].mxu0 %v442
        %v1972 = vpop.f32.mrb[0].mxu0
        %v1973 = vadd.f32 %v1780, %v1972
        %v1974 = vpop.f32.mrb[0].mxu0
        %v1975 = vadd.f32 %v1782, %v1974
        %v1976 = vpop.f32.mrb[0].mxu0
        %v1977 = vadd.f32 %v1784, %v1976
        %v1978 = vpop.f32.mrb[0].mxu0
        %v1979 = vadd.f32 %v1786, %v1978
        %1980 = vmatprep.mubr.bf16.mxu0 %v447
        %1981 = vmatmul.mubr.bf16.gmra.mrb[0].mxu0 %v446
        %v1982 = vpop.f32.mrb[0].mxu0
        %v1983 = vadd.f32 %v1790, %v1982
        %v1984 = vpop.f32.mrb[0].mxu0
        %v1985 = vadd.f32 %v1792, %v1984
        %v1986 = vpop.f32.mrb[0].mxu0
        %v1987 = vadd.f32 %v1794, %v1986
        %v1988 = vpop.f32.mrb[0].mxu0
        %v1989 = vadd.f32 %v1796, %v1988
        %1990 = vmatprep.mubr.bf16.mxu0 %v451
        %1991 = vmatmul.mubr.bf16.gmra.mrb[0].mxu0 %v450
        %v1992 = vpop.f32.mrb[0].mxu0
        %v1993 = vadd.f32 %v1800, %v1992
        %v1994 = vpop.f32.mrb[0].mxu0
        %v1995 = vadd.f32 %v1802, %v1994
        %v1996 = vpop.f32.mrb[0].mxu0
        %v1997 = vadd.f32 %v1804, %v1996
        %v1998 = vpop.f32.mrb[0].mxu0
        %v1999 = vadd.f32 %v1806, %v1998
        %2000 = vmatprep.mubr.bf16.mxu0 %v455
        %2001 = vmatmul.mubr.bf16.gmra.mrb[0].mxu0 %v454
        %v2002 = vpop.f32.mrb[0].mxu0
        %v2003 = vadd.f32 %v1810, %v2002
        %v2004 = vpop.f32.mrb[0].mxu0
        %v2005 = vadd.f32 %v1812, %v2004
        %v2006 = vpop.f32.mrb[0].mxu0
        %v2007 = vadd.f32 %v1814, %v2006
        %v2008 = vpop.f32.mrb[0].mxu0
        %v2009 = vadd.f32 %v1816, %v2008
        %2010 = vmatprep.mubr.bf16.mxu0 %v459
        %2011 = vmatmul.mubr.bf16.gmra.mrb[0].mxu0 %v458
        %v2012 = vpop.f32.mrb[0].mxu0
        %v2013 = vadd.f32 %v1820, %v2012
        %v2014 = vpop.f32.mrb[0].mxu0
        %v2015 = vadd.f32 %v1822, %v2014
        %v2016 = vpop.f32.mrb[0].mxu0
        %v2017 = vadd.f32 %v1824, %v2016
        %v2018 = vpop.f32.mrb[0].mxu0
        %v2019 = vadd.f32 %v1826, %v2018
        %2020 = vdwg.mxu0
        %v2021 = vmul.f32 %v1477, 0.5
        %v2022 = vmul.f32 %v1479, 0.5
        %v2023 = vmul.f32 %v1863, 0.5
        %v2024 = vmul.f32 %v1865, 0.5
        %v2025 = vmul.f32 %v1481, 0.5
        %v2026 = vmul.f32 %v1483, 0.5
        %v2027 = vmul.f32 %v1867, 0.5
        %v2028 = vmul.f32 %v1869, 0.5
        %v2029 = vmul.f32 %v1487, 0.5
        %v2030 = vmul.f32 %v1489, 0.5
        %v2031 = vmul.f32 %v1873, 0.5
        %v2032 = vmul.f32 %v1875, 0.5
        %v2033 = vmul.f32 %v1491, 0.5
        %v2034 = vmul.f32 %v1493, 0.5
        %v2035 = vmul.f32 %v1877, 0.5
        %v2036 = vmul.f32 %v1879, 0.5
        %v2037 = vmul.f32 %v1497, 0.5
        %v2038 = vmul.f32 %v1499, 0.5
        %v2039 = vmul.f32 %v1883, 0.5
        %v2040 = vmul.f32 %v1885, 0.5
        %v2041 = vmul.f32 %v1501, 0.5
        %v2042 = vmul.f32 %v1503, 0.5
        %v2043 = vmul.f32 %v1887, 0.5
        %v2044 = vmul.f32 %v1889, 0.5
        %v2045 = vmul.f32 %v1507, 0.5
        %v2046 = vmul.f32 %v1509, 0.5
        %v2047 = vmul.f32 %v1893, 0.5
        %v2048 = vmul.f32 %v1895, 0.5
        %v2049 = vmul.f32 %v1511, 0.5
        %v2050 = vmul.f32 %v1513, 0.5
        %v2051 = vmul.f32 %v1897, 0.5
        %v2052 = vmul.f32 %v1899, 0.5
        %v2053 = vmul.f32 %v1517, 0.5
        %v2054 = vmul.f32 %v1519, 0.5
        %v2055 = vmul.f32 %v1903, 0.5
        %v2056 = vmul.f32 %v1905, 0.5
        %v2057 = vmul.f32 %v1521, 0.5
        %v2058 = vmul.f32 %v1523, 0.5
        %v2059 = vmul.f32 %v1907, 0.5
        %v2060 = vmul.f32 %v1909, 0.5
        %v2061 = vmul.f32 %v1527, 0.5
        %v2062 = vmul.f32 %v1529, 0.5
        %v2063 = vmul.f32 %v1913, 0.5
        %v2064 = vmul.f32 %v1915, 0.5
        %v2065 = vmul.f32 %v1531, 0.5
        %v2066 = vmul.f32 %v1533, 0.5
        %v2067 = vmul.f32 %v1917, 0.5
        %v2068 = vmul.f32 %v1919, 0.5
        %v2069 = vmul.f32 %v1537, 0.5
        %v2070 = vmul.f32 %v1539, 0.5
        %v2071 = vmul.f32 %v1923, 0.5
        %v2072 = vmul.f32 %v1925, 0.5
        %v2073 = vmul.f32 %v1541, 0.5
        %v2074 = vmul.f32 %v1543, 0.5
        %v2075 = vmul.f32 %v1927, 0.5
        %v2076 = vmul.f32 %v1929, 0.5
        %v2077 = vmul.f32 %v1547, 0.5
        %v2078 = vmul.f32 %v1549, 0.5
        %v2079 = vmul.f32 %v1933, 0.5
        %v2080 = vmul.f32 %v1935, 0.5
        %v2081 = vmul.f32 %v1551, 0.5
        %v2082 = vmul.f32 %v1553, 0.5
        %v2083 = vmul.f32 %v1937, 0.5
        %v2084 = vmul.f32 %v1939, 0.5
        %v2085 = vmul.f32 %v1557, 0.5
        %v2086 = vmul.f32 %v1559, 0.5
        %v2087 = vmul.f32 %v1943, 0.5
        %v2088 = vmul.f32 %v1945, 0.5
        %v2089 = vmul.f32 %v1561, 0.5
        %v2090 = vmul.f32 %v1563, 0.5
        %v2091 = vmul.f32 %v1947, 0.5
        %v2092 = vmul.f32 %v1949, 0.5
        %v2093 = vmul.f32 %v1567, 0.5
        %v2094 = vmul.f32 %v1569, 0.5
        %v2095 = vmul.f32 %v1953, 0.5
        %v2096 = vmul.f32 %v1955, 0.5
        %v2097 = vmul.f32 %v1571, 0.5
        %v2098 = vmul.f32 %v1573, 0.5
        %v2099 = vmul.f32 %v1957, 0.5
        %v2100 = vmul.f32 %v1959, 0.5
        %v2101 = vmul.f32 %v1577, 0.5
        %v2102 = vmul.f32 %v1579, 0.5
        %v2103 = vmul.f32 %v1963, 0.5
        %v2104 = vmul.f32 %v1965, 0.5
        %v2105 = vmul.f32 %v1581, 0.5
        %v2106 = vmul.f32 %v1583, 0.5
        %v2107 = vmul.f32 %v1967, 0.5
        %v2108 = vmul.f32 %v1969, 0.5
        %v2109 = vmul.f32 %v1587, 0.5
        %v2110 = vmul.f32 %v1589, 0.5
        %v2111 = vmul.f32 %v1973, 0.5
        %v2112 = vmul.f32 %v1975, 0.5
        %v2113 = vmul.f32 %v1591, 0.5
        %v2114 = vmul.f32 %v1593, 0.5
        %v2115 = vmul.f32 %v1977, 0.5
        %v2116 = vmul.f32 %v1979, 0.5
        %v2117 = vmul.f32 %v1597, 0.5
        %v2118 = vmul.f32 %v1599, 0.5
        %v2119 = vmul.f32 %v1983, 0.5
        %v2120 = vmul.f32 %v1985, 0.5
        %v2121 = vmul.f32 %v1601, 0.5
        %v2122 = vmul.f32 %v1603, 0.5
        %v2123 = vmul.f32 %v1987, 0.5
        %v2124 = vmul.f32 %v1989, 0.5
        %v2125 = vmul.f32 %v1607, 0.5
        %v2126 = vmul.f32 %v1609, 0.5
        %v2127 = vmul.f32 %v1993, 0.5
        %v2128 = vmul.f32 %v1995, 0.5
        %v2129 = vmul.f32 %v1611, 0.5
        %v2130 = vmul.f32 %v1613, 0.5
        %v2131 = vmul.f32 %v1997, 0.5
        %v2132 = vmul.f32 %v1999, 0.5
        %v2133 = vmul.f32 %v1617, 0.5
        %v2134 = vmul.f32 %v1619, 0.5
        %v2135 = vmul.f32 %v2003, 0.5
        %v2136 = vmul.f32 %v2005, 0.5
        %v2137 = vmul.f32 %v1621, 0.5
        %v2138 = vmul.f32 %v1623, 0.5
        %v2139 = vmul.f32 %v2007, 0.5
        %v2140 = vmul.f32 %v2009, 0.5
        %v2141 = vmul.f32 %v1627, 0.5
        %v2142 = vmul.f32 %v1629, 0.5
        %v2143 = vmul.f32 %v2013, 0.5
        %v2144 = vmul.f32 %v2015, 0.5
        %v2145 = vmul.f32 %v1631, 0.5
        %v2146 = vmul.f32 %v1633, 0.5
        %v2147 = vmul.f32 %v2017, 0.5
        %v2148 = vmul.f32 %v2019, 0.5
        %v2149 = vmul.f32 %v1477, 0.70710677
        %v2150 = vmul.f32 %v1479, 0.70710677
        %v2151 = vmul.f32 %v1863, 0.70710677
        %v2152 = vmul.f32 %v1865, 0.70710677
        %v2153 = vmul.f32 %v1481, 0.70710677
        %v2154 = vmul.f32 %v1483, 0.70710677
        %v2155 = vmul.f32 %v1867, 0.70710677
        %v2156 = vmul.f32 %v1869, 0.70710677
        %v2157 = vmul.f32 %v1487, 0.70710677
        %v2158 = vmul.f32 %v1489, 0.70710677
        %v2159 = vmul.f32 %v1873, 0.70710677
        %v2160 = vmul.f32 %v1875, 0.70710677
        %v2161 = vmul.f32 %v1491, 0.70710677
        %v2162 = vmul.f32 %v1493, 0.70710677
        %v2163 = vmul.f32 %v1877, 0.70710677
        %v2164 = vmul.f32 %v1879, 0.70710677
        %v2165 = vmul.f32 %v1497, 0.70710677
        %v2166 = vmul.f32 %v1499, 0.70710677
        %v2167 = vmul.f32 %v1883, 0.70710677
        %v2168 = vmul.f32 %v1885, 0.70710677
        %v2169 = vmul.f32 %v1501, 0.70710677
        %v2170 = vmul.f32 %v1503, 0.70710677
        %v2171 = vmul.f32 %v1887, 0.70710677
        %v2172 = vmul.f32 %v1889, 0.70710677
        %v2173 = vmul.f32 %v1507, 0.70710677
        %v2174 = vmul.f32 %v1509, 0.70710677
        %v2175 = vmul.f32 %v1893, 0.70710677
        %v2176 = vmul.f32 %v1895, 0.70710677
        %v2177 = vmul.f32 %v1511, 0.70710677
        %v2178 = vmul.f32 %v1513, 0.70710677
        %v2179 = vmul.f32 %v1897, 0.70710677
        %v2180 = vmul.f32 %v1899, 0.70710677
        %v2181 = vmul.f32 %v1517, 0.70710677
        %v2182 = vmul.f32 %v1519, 0.70710677
        %v2183 = vmul.f32 %v1903, 0.70710677
        %v2184 = vmul.f32 %v1905, 0.70710677
        %v2185 = vmul.f32 %v1521, 0.70710677
        %v2186 = vmul.f32 %v1523, 0.70710677
        %v2187 = vmul.f32 %v1907, 0.70710677
        %v2188 = vmul.f32 %v1909, 0.70710677
        %v2189 = vmul.f32 %v1527, 0.70710677
        %v2190 = vmul.f32 %v1529, 0.70710677
        %v2191 = vmul.f32 %v1913, 0.70710677
        %v2192 = vmul.f32 %v1915, 0.70710677
        %v2193 = vmul.f32 %v1531, 0.70710677
        %v2194 = vmul.f32 %v1533, 0.70710677
        %v2195 = vmul.f32 %v1917, 0.70710677
        %v2196 = vmul.f32 %v1919, 0.70710677
        %v2197 = vmul.f32 %v1537, 0.70710677
        %v2198 = vmul.f32 %v1539, 0.70710677
        %v2199 = vmul.f32 %v1923, 0.70710677
        %v2200 = vmul.f32 %v1925, 0.70710677
        %v2201 = vmul.f32 %v1541, 0.70710677
        %v2202 = vmul.f32 %v1543, 0.70710677
        %v2203 = vmul.f32 %v1927, 0.70710677
        %v2204 = vmul.f32 %v1929, 0.70710677
        %v2205 = vmul.f32 %v1547, 0.70710677
        %v2206 = vmul.f32 %v1549, 0.70710677
        %v2207 = vmul.f32 %v1933, 0.70710677
        %v2208 = vmul.f32 %v1935, 0.70710677
        %v2209 = vmul.f32 %v1551, 0.70710677
        %v2210 = vmul.f32 %v1553, 0.70710677
        %v2211 = vmul.f32 %v1937, 0.70710677
        %v2212 = vmul.f32 %v1939, 0.70710677
        %v2213 = vmul.f32 %v1557, 0.70710677
        %v2214 = vmul.f32 %v1559, 0.70710677
        %v2215 = vmul.f32 %v1943, 0.70710677
        %v2216 = vmul.f32 %v1945, 0.70710677
        %v2217 = vmul.f32 %v1561, 0.70710677
        %v2218 = vmul.f32 %v1563, 0.70710677
        %v2219 = vmul.f32 %v1947, 0.70710677
        %v2220 = vmul.f32 %v1949, 0.70710677
        %v2221 = vmul.f32 %v1567, 0.70710677
        %v2222 = vmul.f32 %v1569, 0.70710677
        %v2223 = vmul.f32 %v1953, 0.70710677
        %v2224 = vmul.f32 %v1955, 0.70710677
        %v2225 = vmul.f32 %v1571, 0.70710677
        %v2226 = vmul.f32 %v1573, 0.70710677
        %v2227 = vmul.f32 %v1957, 0.70710677
        %v2228 = vmul.f32 %v1959, 0.70710677
        %v2229 = vmul.f32 %v1577, 0.70710677
        %v2230 = vmul.f32 %v1579, 0.70710677
        %v2231 = vmul.f32 %v1963, 0.70710677
        %v2232 = vmul.f32 %v1965, 0.70710677
        %v2233 = vmul.f32 %v1581, 0.70710677
        %v2234 = vmul.f32 %v1583, 0.70710677
        %v2235 = vmul.f32 %v1967, 0.70710677
        %v2236 = vmul.f32 %v1969, 0.70710677
        %v2237 = vmul.f32 %v1587, 0.70710677
        %v2238 = vmul.f32 %v1589, 0.70710677
        %v2239 = vmul.f32 %v1973, 0.70710677
        %v2240 = vmul.f32 %v1975, 0.70710677
        %v2241 = vmul.f32 %v1591, 0.70710677
        %v2242 = vmul.f32 %v1593, 0.70710677
        %v2243 = vmul.f32 %v1977, 0.70710677
        %v2244 = vmul.f32 %v1979, 0.70710677
        %v2245 = vmul.f32 %v1597, 0.70710677
        %v2246 = vmul.f32 %v1599, 0.70710677
        %v2247 = vmul.f32 %v1983, 0.70710677
        %v2248 = vmul.f32 %v1985, 0.70710677
        %v2249 = vmul.f32 %v1601, 0.70710677
        %v2250 = vmul.f32 %v1603, 0.70710677
        %v2251 = vmul.f32 %v1987, 0.70710677
        %v2252 = vmul.f32 %v1989, 0.70710677
        %v2253 = vmul.f32 %v1607, 0.70710677
        %v2254 = vmul.f32 %v1609, 0.70710677
        %v2255 = vmul.f32 %v1993, 0.70710677
        %v2256 = vmul.f32 %v1995, 0.70710677
        %v2257 = vmul.f32 %v1611, 0.70710677
        %v2258 = vmul.f32 %v1613, 0.70710677
        %v2259 = vmul.f32 %v1997, 0.70710677
        %v2260 = vmul.f32 %v1999, 0.70710677
        %v2261 = vmul.f32 %v1617, 0.70710677
        %v2262 = vmul.f32 %v1619, 0.70710677
        %v2263 = vmul.f32 %v2003, 0.70710677
        %v2264 = vmul.f32 %v2005, 0.70710677
        %v2265 = vmul.f32 %v1621, 0.70710677
        %v2266 = vmul.f32 %v1623, 0.70710677
        %v2267 = vmul.f32 %v2007, 0.70710677
        %v2268 = vmul.f32 %v2009, 0.70710677
        %v2269 = vmul.f32 %v1627, 0.70710677
        %v2270 = vmul.f32 %v1629, 0.70710677
        %v2271 = vmul.f32 %v2013, 0.70710677
        %v2272 = vmul.f32 %v2015, 0.70710677
        %v2273 = vmul.f32 %v1631, 0.70710677
        %v2274 = vmul.f32 %v1633, 0.70710677
        %v2275 = vmul.f32 %v2017, 0.70710677
        %v2276 = vmul.f32 %v2019, 0.70710677
        %v2277 = verf.f32.pop %v2149
        %v2278 = verf.f32.pop %v2150
        %v2279 = verf.f32.pop %v2151
        %v2280 = verf.f32.pop %v2152
        %v2281 = verf.f32.pop %v2153
        %v2282 = verf.f32.pop %v2154
        %v2283 = verf.f32.pop %v2155
        %v2284 = verf.f32.pop %v2156
        %v2285 = verf.f32.pop %v2157
        %v2286 = verf.f32.pop %v2158
        %v2287 = verf.f32.pop %v2159
        %v2288 = verf.f32.pop %v2160
        %v2289 = verf.f32.pop %v2161
        %v2290 = verf.f32.pop %v2162
        %v2291 = verf.f32.pop %v2163
        %v2292 = verf.f32.pop %v2164
        %v2293 = verf.f32.pop %v2165
        %v2294 = verf.f32.pop %v2166
        %v2295 = verf.f32.pop %v2167
        %v2296 = verf.f32.pop %v2168
        %v2297 = verf.f32.pop %v2169
        %v2298 = verf.f32.pop %v2170
        %v2299 = verf.f32.pop %v2171
        %v2300 = verf.f32.pop %v2172
        %v2301 = verf.f32.pop %v2173
        %v2302 = verf.f32.pop %v2174
        %v2303 = verf.f32.pop %v2175
        %v2304 = verf.f32.pop %v2176
        %v2305 = verf.f32.pop %v2177
        %v2306 = verf.f32.pop %v2178
        %v2307 = verf.f32.pop %v2179
        %v2308 = verf.f32.pop %v2180
        %v2309 = verf.f32.pop %v2181
        %v2310 = verf.f32.pop %v2182
        %v2311 = verf.f32.pop %v2183
        %v2312 = verf.f32.pop %v2184
        %v2313 = verf.f32.pop %v2185
        %v2314 = verf.f32.pop %v2186
        %v2315 = verf.f32.pop %v2187
        %v2316 = verf.f32.pop %v2188
        %v2317 = verf.f32.pop %v2189
        %v2318 = verf.f32.pop %v2190
        %v2319 = verf.f32.pop %v2191
        %v2320 = verf.f32.pop %v2192
        %v2321 = verf.f32.pop %v2193
        %v2322 = verf.f32.pop %v2194
        %v2323 = verf.f32.pop %v2195
        %v2324 = verf.f32.pop %v2196
        %v2325 = verf.f32.pop %v2197
        %v2326 = verf.f32.pop %v2198
        %v2327 = verf.f32.pop %v2199
        %v2328 = verf.f32.pop %v2200
        %v2329 = verf.f32.pop %v2201
        %v2330 = verf.f32.pop %v2202
        %v2331 = verf.f32.pop %v2203
        %v2332 = verf.f32.pop %v2204
        %v2333 = verf.f32.pop %v2205
        %v2334 = verf.f32.pop %v2206
        %v2335 = verf.f32.pop %v2207
        %v2336 = verf.f32.pop %v2208
        %v2337 = verf.f32.pop %v2209
        %v2338 = verf.f32.pop %v2210
        %v2339 = verf.f32.pop %v2211
        %v2340 = verf.f32.pop %v2212
        %v2341 = verf.f32.pop %v2213
        %v2342 = verf.f32.pop %v2214
        %v2343 = verf.f32.pop %v2215
        %v2344 = verf.f32.pop %v2216
        %v2345 = verf.f32.pop %v2217
        %v2346 = verf.f32.pop %v2218
        %v2347 = verf.f32.pop %v2219
        %v2348 = verf.f32.pop %v2220
        %v2349 = verf.f32.pop %v2221
        %v2350 = verf.f32.pop %v2222
        %v2351 = verf.f32.pop %v2223
        %v2352 = verf.f32.pop %v2224
        %v2353 = verf.f32.pop %v2225
        %v2354 = verf.f32.pop %v2226
        %v2355 = verf.f32.pop %v2227
        %v2356 = verf.f32.pop %v2228
        %v2357 = verf.f32.pop %v2229
        %v2358 = verf.f32.pop %v2230
        %v2359 = verf.f32.pop %v2231
        %v2360 = verf.f32.pop %v2232
        %v2361 = verf.f32.pop %v2233
        %v2362 = verf.f32.pop %v2234
        %v2363 = verf.f32.pop %v2235
        %v2364 = verf.f32.pop %v2236
        %v2365 = verf.f32.pop %v2237
        %v2366 = verf.f32.pop %v2238
        %v2367 = verf.f32.pop %v2239
        %v2368 = verf.f32.pop %v2240
        %v2369 = verf.f32.pop %v2241
        %v2370 = verf.f32.pop %v2242
        %v2371 = verf.f32.pop %v2243
        %v2372 = verf.f32.pop %v2244
        %v2373 = verf.f32.pop %v2245
        %v2374 = verf.f32.pop %v2246
        %v2375 = verf.f32.pop %v2247
        %v2376 = verf.f32.pop %v2248
        %v2377 = verf.f32.pop %v2249
        %v2378 = verf.f32.pop %v2250
        %v2379 = verf.f32.pop %v2251
        %v2380 = verf.f32.pop %v2252
        %v2381 = verf.f32.pop %v2253
        %v2382 = verf.f32.pop %v2254
        %v2383 = verf.f32.pop %v2255
        %v2384 = verf.f32.pop %v2256
        %v2385 = verf.f32.pop %v2257
        %v2386 = verf.f32.pop %v2258
        %v2387 = verf.f32.pop %v2259
        %v2388 = verf.f32.pop %v2260
        %v2389 = verf.f32.pop %v2261
        %v2390 = verf.f32.pop %v2262
        %v2391 = verf.f32.pop %v2263
        %v2392 = verf.f32.pop %v2264
        %v2393 = verf.f32.pop %v2265
        %v2394 = verf.f32.pop %v2266
        %v2395 = verf.f32.pop %v2267
        %v2396 = verf.f32.pop %v2268
        %v2397 = verf.f32.pop %v2269
        %v2398 = verf.f32.pop %v2270
        %v2399 = verf.f32.pop %v2271
        %v2400 = verf.f32.pop %v2272
        %v2401 = verf.f32.pop %v2273
        %v2402 = verf.f32.pop %v2274
        %v2403 = verf.f32.pop %v2275
        %v2404 = verf.f32.pop %v2276
        %v2405 = vadd.f32 %v2277, 1.0
        %v2406 = vadd.f32 %v2278, 1.0
        %v2407 = vadd.f32 %v2279, 1.0
        %v2408 = vadd.f32 %v2280, 1.0
        %v2409 = vadd.f32 %v2281, 1.0
        %v2410 = vadd.f32 %v2282, 1.0
        %v2411 = vadd.f32 %v2283, 1.0
        %v2412 = vadd.f32 %v2284, 1.0
        %v2413 = vadd.f32 %v2285, 1.0
        %v2414 = vadd.f32 %v2286, 1.0
        %v2415 = vadd.f32 %v2287, 1.0
        %v2416 = vadd.f32 %v2288, 1.0
        %v2417 = vadd.f32 %v2289, 1.0
        %v2418 = vadd.f32 %v2290, 1.0
        %v2419 = vadd.f32 %v2291, 1.0
        %v2420 = vadd.f32 %v2292, 1.0
        %v2421 = vadd.f32 %v2293, 1.0
        %v2422 = vadd.f32 %v2294, 1.0
        %v2423 = vadd.f32 %v2295, 1.0
        %v2424 = vadd.f32 %v2296, 1.0
        %v2425 = vadd.f32 %v2297, 1.0
        %v2426 = vadd.f32 %v2298, 1.0
        %v2427 = vadd.f32 %v2299, 1.0
        %v2428 = vadd.f32 %v2300, 1.0
        %v2429 = vadd.f32 %v2301, 1.0
        %v2430 = vadd.f32 %v2302, 1.0
        %v2431 = vadd.f32 %v2303, 1.0
        %v2432 = vadd.f32 %v2304, 1.0
        %v2433 = vadd.f32 %v2305, 1.0
        %v2434 = vadd.f32 %v2306, 1.0
        %v2435 = vadd.f32 %v2307, 1.0
        %v2436 = vadd.f32 %v2308, 1.0
        %v2437 = vadd.f32 %v2309, 1.0
        %v2438 = vadd.f32 %v2310, 1.0
        %v2439 = vadd.f32 %v2311, 1.0
        %v2440 = vadd.f32 %v2312, 1.0
        %v2441 = vadd.f32 %v2313, 1.0
        %v2442 = vadd.f32 %v2314, 1.0
        %v2443 = vadd.f32 %v2315, 1.0
        %v2444 = vadd.f32 %v2316, 1.0
        %v2445 = vadd.f32 %v2317, 1.0
        %v2446 = vadd.f32 %v2318, 1.0
        %v2447 = vadd.f32 %v2319, 1.0
        %v2448 = vadd.f32 %v2320, 1.0
        %v2449 = vadd.f32 %v2321, 1.0
        %v2450 = vadd.f32 %v2322, 1.0
        %v2451 = vadd.f32 %v2323, 1.0
        %v2452 = vadd.f32 %v2324, 1.0
        %v2453 = vadd.f32 %v2325, 1.0
        %v2454 = vadd.f32 %v2326, 1.0
        %v2455 = vadd.f32 %v2327, 1.0
        %v2456 = vadd.f32 %v2328, 1.0
        %v2457 = vadd.f32 %v2329, 1.0
        %v2458 = vadd.f32 %v2330, 1.0
        %v2459 = vadd.f32 %v2331, 1.0
        %v2460 = vadd.f32 %v2332, 1.0
        %v2461 = vadd.f32 %v2333, 1.0
        %v2462 = vadd.f32 %v2334, 1.0
        %v2463 = vadd.f32 %v2335, 1.0
        %v2464 = vadd.f32 %v2336, 1.0
        %v2465 = vadd.f32 %v2337, 1.0
        %v2466 = vadd.f32 %v2338, 1.0
        %v2467 = vadd.f32 %v2339, 1.0
        %v2468 = vadd.f32 %v2340, 1.0
        %v2469 = vadd.f32 %v2341, 1.0
        %v2470 = vadd.f32 %v2342, 1.0
        %v2471 = vadd.f32 %v2343, 1.0
        %v2472 = vadd.f32 %v2344, 1.0
        %v2473 = vadd.f32 %v2345, 1.0
        %v2474 = vadd.f32 %v2346, 1.0
        %v2475 = vadd.f32 %v2347, 1.0
        %v2476 = vadd.f32 %v2348, 1.0
        %v2477 = vadd.f32 %v2349, 1.0
        %v2478 = vadd.f32 %v2350, 1.0
        %v2479 = vadd.f32 %v2351, 1.0
        %v2480 = vadd.f32 %v2352, 1.0
        %v2481 = vadd.f32 %v2353, 1.0
        %v2482 = vadd.f32 %v2354, 1.0
        %v2483 = vadd.f32 %v2355, 1.0
        %v2484 = vadd.f32 %v2356, 1.0
        %v2485 = vadd.f32 %v2357, 1.0
        %v2486 = vadd.f32 %v2358, 1.0
        %v2487 = vadd.f32 %v2359, 1.0
        %v2488 = vadd.f32 %v2360, 1.0
        %v2489 = vadd.f32 %v2361, 1.0
        %v2490 = vadd.f32 %v2362, 1.0
        %v2491 = vadd.f32 %v2363, 1.0
        %v2492 = vadd.f32 %v2364, 1.0
        %v2493 = vadd.f32 %v2365, 1.0
        %v2494 = vadd.f32 %v2366, 1.0
        %v2495 = vadd.f32 %v2367, 1.0
        %v2496 = vadd.f32 %v2368, 1.0
        %v2497 = vadd.f32 %v2369, 1.0
        %v2498 = vadd.f32 %v2370, 1.0
        %v2499 = vadd.f32 %v2371, 1.0
        %v2500 = vadd.f32 %v2372, 1.0
        %v2501 = vadd.f32 %v2373, 1.0
        %v2502 = vadd.f32 %v2374, 1.0
        %v2503 = vadd.f32 %v2375, 1.0
        %v2504 = vadd.f32 %v2376, 1.0
        %v2505 = vadd.f32 %v2377, 1.0
        %v2506 = vadd.f32 %v2378, 1.0
        %v2507 = vadd.f32 %v2379, 1.0
        %v2508 = vadd.f32 %v2380, 1.0
        %v2509 = vadd.f32 %v2381, 1.0
        %v2510 = vadd.f32 %v2382, 1.0
        %v2511 = vadd.f32 %v2383, 1.0
        %v2512 = vadd.f32 %v2384, 1.0
        %v2513 = vadd.f32 %v2385, 1.0
        %v2514 = vadd.f32 %v2386, 1.0
        %v2515 = vadd.f32 %v2387, 1.0
        %v2516 = vadd.f32 %v2388, 1.0
        %v2517 = vadd.f32 %v2389, 1.0
        %v2518 = vadd.f32 %v2390, 1.0
        %v2519 = vadd.f32 %v2391, 1.0
        %v2520 = vadd.f32 %v2392, 1.0
        %v2521 = vadd.f32 %v2393, 1.0
        %v2522 = vadd.f32 %v2394, 1.0
        %v2523 = vadd.f32 %v2395, 1.0
        %v2524 = vadd.f32 %v2396, 1.0
        %v2525 = vadd.f32 %v2397, 1.0
        %v2526 = vadd.f32 %v2398, 1.0
        %v2527 = vadd.f32 %v2399, 1.0
        %v2528 = vadd.f32 %v2400, 1.0
        %v2529 = vadd.f32 %v2401, 1.0
        %v2530 = vadd.f32 %v2402, 1.0
        %v2531 = vadd.f32 %v2403, 1.0
        %v2532 = vadd.f32 %v2404, 1.0
        %v2533 = vmul.f32 %v2021, %v2405
        %v2534 = vmul.f32 %v2022, %v2406
        %v2535 = vmul.f32 %v2023, %v2407
        %v2536 = vmul.f32 %v2024, %v2408
        %v2537 = vmul.f32 %v2025, %v2409
        %v2538 = vmul.f32 %v2026, %v2410
        %v2539 = vmul.f32 %v2027, %v2411
        %v2540 = vmul.f32 %v2028, %v2412
        %v2541 = vmul.f32 %v2029, %v2413
        %v2542 = vmul.f32 %v2030, %v2414
        %v2543 = vmul.f32 %v2031, %v2415
        %v2544 = vmul.f32 %v2032, %v2416
        %v2545 = vmul.f32 %v2033, %v2417
        %v2546 = vmul.f32 %v2034, %v2418
        %v2547 = vmul.f32 %v2035, %v2419
        %v2548 = vmul.f32 %v2036, %v2420
        %v2549 = vmul.f32 %v2037, %v2421
        %v2550 = vmul.f32 %v2038, %v2422
        %v2551 = vmul.f32 %v2039, %v2423
        %v2552 = vmul.f32 %v2040, %v2424
        %v2553 = vmul.f32 %v2041, %v2425
        %v2554 = vmul.f32 %v2042, %v2426
        %v2555 = vmul.f32 %v2043, %v2427
        %v2556 = vmul.f32 %v2044, %v2428
        %v2557 = vmul.f32 %v2045, %v2429
        %v2558 = vmul.f32 %v2046, %v2430
        %v2559 = vmul.f32 %v2047, %v2431
        %v2560 = vmul.f32 %v2048, %v2432
        %v2561 = vmul.f32 %v2049, %v2433
        %v2562 = vmul.f32 %v2050, %v2434
        %v2563 = vmul.f32 %v2051, %v2435
        %v2564 = vmul.f32 %v2052, %v2436
        %v2565 = vmul.f32 %v2053, %v2437
        %v2566 = vmul.f32 %v2054, %v2438
        %v2567 = vmul.f32 %v2055, %v2439
        %v2568 = vmul.f32 %v2056, %v2440
        %v2569 = vmul.f32 %v2057, %v2441
        %v2570 = vmul.f32 %v2058, %v2442
        %v2571 = vmul.f32 %v2059, %v2443
        %v2572 = vmul.f32 %v2060, %v2444
        %v2573 = vmul.f32 %v2061, %v2445
        %v2574 = vmul.f32 %v2062, %v2446
        %v2575 = vmul.f32 %v2063, %v2447
        %v2576 = vmul.f32 %v2064, %v2448
        %v2577 = vmul.f32 %v2065, %v2449
        %v2578 = vmul.f32 %v2066, %v2450
        %v2579 = vmul.f32 %v2067, %v2451
        %v2580 = vmul.f32 %v2068, %v2452
        %v2581 = vmul.f32 %v2069, %v2453
        %v2582 = vmul.f32 %v2070, %v2454
        %v2583 = vmul.f32 %v2071, %v2455
        %v2584 = vmul.f32 %v2072, %v2456
        %v2585 = vmul.f32 %v2073, %v2457
        %v2586 = vmul.f32 %v2074, %v2458
        %v2587 = vmul.f32 %v2075, %v2459
        %v2588 = vmul.f32 %v2076, %v2460
        %v2589 = vmul.f32 %v2077, %v2461
        %v2590 = vmul.f32 %v2078, %v2462
        %v2591 = vmul.f32 %v2079, %v2463
        %v2592 = vmul.f32 %v2080, %v2464
        %v2593 = vmul.f32 %v2081, %v2465
        %v2594 = vmul.f32 %v2082, %v2466
        %v2595 = vmul.f32 %v2083, %v2467
        %v2596 = vmul.f32 %v2084, %v2468
        %v2597 = vmul.f32 %v2085, %v2469
        %v2598 = vmul.f32 %v2086, %v2470
        %v2599 = vmul.f32 %v2087, %v2471
        %v2600 = vmul.f32 %v2088, %v2472
        %v2601 = vmul.f32 %v2089, %v2473
        %v2602 = vmul.f32 %v2090, %v2474
        %v2603 = vmul.f32 %v2091, %v2475
        %v2604 = vmul.f32 %v2092, %v2476
        %v2605 = vmul.f32 %v2093, %v2477
        %v2606 = vmul.f32 %v2094, %v2478
        %v2607 = vmul.f32 %v2095, %v2479
        %v2608 = vmul.f32 %v2096, %v2480
        %v2609 = vmul.f32 %v2097, %v2481
        %v2610 = vmul.f32 %v2098, %v2482
        %v2611 = vmul.f32 %v2099, %v2483
        %v2612 = vmul.f32 %v2100, %v2484
        %v2613 = vmul.f32 %v2101, %v2485
        %v2614 = vmul.f32 %v2102, %v2486
        %v2615 = vmul.f32 %v2103, %v2487
        %v2616 = vmul.f32 %v2104, %v2488
        %v2617 = vmul.f32 %v2105, %v2489
        %v2618 = vmul.f32 %v2106, %v2490
        %v2619 = vmul.f32 %v2107, %v2491
        %v2620 = vmul.f32 %v2108, %v2492
        %v2621 = vmul.f32 %v2109, %v2493
        %v2622 = vmul.f32 %v2110, %v2494
        %v2623 = vmul.f32 %v2111, %v2495
        %v2624 = vmul.f32 %v2112, %v2496
        %v2625 = vmul.f32 %v2113, %v2497
        %v2626 = vmul.f32 %v2114, %v2498
        %v2627 = vmul.f32 %v2115, %v2499
        %v2628 = vmul.f32 %v2116, %v2500
        %v2629 = vmul.f32 %v2117, %v2501
        %v2630 = vmul.f32 %v2118, %v2502
        %v2631 = vmul.f32 %v2119, %v2503
        %v2632 = vmul.f32 %v2120, %v2504
        %v2633 = vmul.f32 %v2121, %v2505
        %v2634 = vmul.f32 %v2122, %v2506
        %v2635 = vmul.f32 %v2123, %v2507
        %v2636 = vmul.f32 %v2124, %v2508
        %v2637 = vmul.f32 %v2125, %v2509
        %v2638 = vmul.f32 %v2126, %v2510
        %v2639 = vmul.f32 %v2127, %v2511
        %v2640 = vmul.f32 %v2128, %v2512
        %v2641 = vmul.f32 %v2129, %v2513
        %v2642 = vmul.f32 %v2130, %v2514
        %v2643 = vmul.f32 %v2131, %v2515
        %v2644 = vmul.f32 %v2132, %v2516
        %v2645 = vmul.f32 %v2133, %v2517
        %v2646 = vmul.f32 %v2134, %v2518
        %v2647 = vmul.f32 %v2135, %v2519
        %v2648 = vmul.f32 %v2136, %v2520
        %v2649 = vmul.f32 %v2137, %v2521
        %v2650 = vmul.f32 %v2138, %v2522
        %v2651 = vmul.f32 %v2139, %v2523
        %v2652 = vmul.f32 %v2140, %v2524
        %v2653 = vmul.f32 %v2141, %v2525
        %v2654 = vmul.f32 %v2142, %v2526
        %v2655 = vmul.f32 %v2143, %v2527
        %v2656 = vmul.f32 %v2144, %v2528
        %v2657 = vmul.f32 %v2145, %v2529
        %v2658 = vmul.f32 %v2146, %v2530
        %v2659 = vmul.f32 %v2147, %v2531
        %v2660 = vmul.f32 %v2148, %v2532
        %v2661 = vpack.c.bf16 %v2537, %v2533
        %v2662 = vpack.c.bf16 %v2538, %v2534
        %v2663 = vpack.c.bf16 %v2539, %v2535
        %v2664 = vpack.c.bf16 %v2540, %v2536
        %v2665 = vpack.c.bf16 %v2545, %v2541
        %v2666 = vpack.c.bf16 %v2546, %v2542
        %v2667 = vpack.c.bf16 %v2547, %v2543
        %v2668 = vpack.c.bf16 %v2548, %v2544
        %v2669 = vpack.c.bf16 %v2553, %v2549
        %v2670 = vpack.c.bf16 %v2554, %v2550
        %v2671 = vpack.c.bf16 %v2555, %v2551
        %v2672 = vpack.c.bf16 %v2556, %v2552
        %v2673 = vpack.c.bf16 %v2561, %v2557
        %v2674 = vpack.c.bf16 %v2562, %v2558
        %v2675 = vpack.c.bf16 %v2563, %v2559
        %v2676 = vpack.c.bf16 %v2564, %v2560
        %v2677 = vpack.c.bf16 %v2569, %v2565
        %v2678 = vpack.c.bf16 %v2570, %v2566
        %v2679 = vpack.c.bf16 %v2571, %v2567
        %v2680 = vpack.c.bf16 %v2572, %v2568
        %v2681 = vpack.c.bf16 %v2577, %v2573
        %v2682 = vpack.c.bf16 %v2578, %v2574
        %v2683 = vpack.c.bf16 %v2579, %v2575
        %v2684 = vpack.c.bf16 %v2580, %v2576
        %v2685 = vpack.c.bf16 %v2585, %v2581
        %v2686 = vpack.c.bf16 %v2586, %v2582
        %v2687 = vpack.c.bf16 %v2587, %v2583
        %v2688 = vpack.c.bf16 %v2588, %v2584
        %v2689 = vpack.c.bf16 %v2593, %v2589
        %v2690 = vpack.c.bf16 %v2594, %v2590
        %v2691 = vpack.c.bf16 %v2595, %v2591
        %v2692 = vpack.c.bf16 %v2596, %v2592
        %v2693 = vpack.c.bf16 %v2601, %v2597
        %v2694 = vpack.c.bf16 %v2602, %v2598
        %v2695 = vpack.c.bf16 %v2603, %v2599
        %v2696 = vpack.c.bf16 %v2604, %v2600
        %v2697 = vpack.c.bf16 %v2609, %v2605
        %v2698 = vpack.c.bf16 %v2610, %v2606
        %v2699 = vpack.c.bf16 %v2611, %v2607
        %v2700 = vpack.c.bf16 %v2612, %v2608
        %v2701 = vpack.c.bf16 %v2617, %v2613
        %v2702 = vpack.c.bf16 %v2618, %v2614
        %v2703 = vpack.c.bf16 %v2619, %v2615
        %v2704 = vpack.c.bf16 %v2620, %v2616
        %v2705 = vpack.c.bf16 %v2625, %v2621
        %v2706 = vpack.c.bf16 %v2626, %v2622
        %v2707 = vpack.c.bf16 %v2627, %v2623
        %v2708 = vpack.c.bf16 %v2628, %v2624
        %v2709 = vpack.c.bf16 %v2633, %v2629
        %v2710 = vpack.c.bf16 %v2634, %v2630
        %v2711 = vpack.c.bf16 %v2635, %v2631
        %v2712 = vpack.c.bf16 %v2636, %v2632
        %v2713 = vpack.c.bf16 %v2641, %v2637
        %v2714 = vpack.c.bf16 %v2642, %v2638
        %v2715 = vpack.c.bf16 %v2643, %v2639
        %v2716 = vpack.c.bf16 %v2644, %v2640
        %v2717 = vpack.c.bf16 %v2649, %v2645
        %v2718 = vpack.c.bf16 %v2650, %v2646
        %v2719 = vpack.c.bf16 %v2651, %v2647
        %v2720 = vpack.c.bf16 %v2652, %v2648
        %v2721 = vpack.c.bf16 %v2657, %v2653
        %v2722 = vpack.c.bf16 %v2658, %v2654
        %v2723 = vpack.c.bf16 %v2659, %v2655
        %v2724 = vpack.c.bf16 %v2660, %v2656
        %v2725 = vld [vmem:[#allocation7] sm:$0xff]
        %v2726 = vld [vmem:[#allocation7 + $0x8] sm:$0xff]
        %v2727 = vld [vmem:[#allocation7 + $0x10] sm:$0xff]
        %v2728 = vld [vmem:[#allocation7 + $0x18] sm:$0xff]
        %v2729 = vld [vmem:[#allocation7 + $0x20] sm:$0xff]
        %v2730 = vld [vmem:[#allocation7 + $0x28] sm:$0xff]
        %v2731 = vld [vmem:[#allocation7 + $0x30] sm:$0xff]
        %v2732 = vld [vmem:[#allocation7 + $0x38] sm:$0xff]
        %v2733 = vld [vmem:[#allocation7 + $0x40] sm:$0xff]
        %v2734 = vld [vmem:[#allocation7 + $0x48] sm:$0xff]
        %v2735 = vld [vmem:[#allocation7 + $0x50] sm:$0xff]
        %v2736 = vld [vmem:[#allocation7 + $0x58] sm:$0xff]
        %v2737 = vld [vmem:[#allocation7 + $0x60] sm:$0xff]
        %v2738 = vld [vmem:[#allocation7 + $0x68] sm:$0xff]
        %v2739 = vld [vmem:[#allocation7 + $0x70] sm:$0xff]
        %v2740 = vld [vmem:[#allocation7 + $0x78] sm:$0xff]
        %v2741 = vld [vmem:[#allocation7 + $0x80] sm:$0xff]
        %v2742 = vld [vmem:[#allocation7 + $0x88] sm:$0xff]
        %v2743 = vld [vmem:[#allocation7 + $0x90] sm:$0xff]
        %v2744 = vld [vmem:[#allocation7 + $0x98] sm:$0xff]
        %v2745 = vld [vmem:[#allocation7 + $0xa0] sm:$0xff]
        %v2746 = vld [vmem:[#allocation7 + $0xa8] sm:$0xff]
        %v2747 = vld [vmem:[#allocation7 + $0xb0] sm:$0xff]
        %v2748 = vld [vmem:[#allocation7 + $0xb8] sm:$0xff]
        %v2749 = vld [vmem:[#allocation7 + $0xc0] sm:$0xff]
        %v2750 = vld [vmem:[#allocation7 + $0xc8] sm:$0xff]
        %v2751 = vld [vmem:[#allocation7 + $0xd0] sm:$0xff]
        %v2752 = vld [vmem:[#allocation7 + $0xd8] sm:$0xff]
        %v2753 = vld [vmem:[#allocation7 + $0xe0] sm:$0xff]
        %v2754 = vld [vmem:[#allocation7 + $0xe8] sm:$0xff]
        %v2755 = vld [vmem:[#allocation7 + $0xf0] sm:$0xff]
        %v2756 = vld [vmem:[#allocation7 + $0xf8] sm:$0xff]
        %v2757 = vld [vmem:[#allocation7 + $0x100] sm:$0xff]
        %v2758 = vld [vmem:[#allocation7 + $0x108] sm:$0xff]
        %v2759 = vld [vmem:[#allocation7 + $0x110] sm:$0xff]
        %v2760 = vld [vmem:[#allocation7 + $0x118] sm:$0xff]
        %v2761 = vld [vmem:[#allocation7 + $0x120] sm:$0xff]
        %v2762 = vld [vmem:[#allocation7 + $0x128] sm:$0xff]
        %v2763 = vld [vmem:[#allocation7 + $0x130] sm:$0xff]
        %v2764 = vld [vmem:[#allocation7 + $0x138] sm:$0xff]
        %v2765 = vld [vmem:[#allocation7 + $0x140] sm:$0xff]
        %v2766 = vld [vmem:[#allocation7 + $0x148] sm:$0xff]
        %v2767 = vld [vmem:[#allocation7 + $0x150] sm:$0xff]
        %v2768 = vld [vmem:[#allocation7 + $0x158] sm:$0xff]
        %v2769 = vld [vmem:[#allocation7 + $0x160] sm:$0xff]
        %v2770 = vld [vmem:[#allocation7 + $0x168] sm:$0xff]
        %v2771 = vld [vmem:[#allocation7 + $0x170] sm:$0xff]
        %v2772 = vld [vmem:[#allocation7 + $0x178] sm:$0xff]
        %v2773 = vld [vmem:[#allocation7 + $0x180] sm:$0xff]
        %v2774 = vld [vmem:[#allocation7 + $0x188] sm:$0xff]
        %v2775 = vld [vmem:[#allocation7 + $0x190] sm:$0xff]
        %v2776 = vld [vmem:[#allocation7 + $0x198] sm:$0xff]
        %v2777 = vld [vmem:[#allocation7 + $0x1a0] sm:$0xff]
        %v2778 = vld [vmem:[#allocation7 + $0x1a8] sm:$0xff]
        %v2779 = vld [vmem:[#allocation7 + $0x1b0] sm:$0xff]
        %v2780 = vld [vmem:[#allocation7 + $0x1b8] sm:$0xff]
        %v2781 = vld [vmem:[#allocation7 + $0x1c0] sm:$0xff]
        %v2782 = vld [vmem:[#allocation7 + $0x1c8] sm:$0xff]
        %v2783 = vld [vmem:[#allocation7 + $0x1d0] sm:$0xff]
        %v2784 = vld [vmem:[#allocation7 + $0x1d8] sm:$0xff]
        %v2785 = vld [vmem:[#allocation7 + $0x1e0] sm:$0xff]
        %v2786 = vld [vmem:[#allocation7 + $0x1e8] sm:$0xff]
        %v2787 = vld [vmem:[#allocation7 + $0x1f0] sm:$0xff]
        %v2788 = vld [vmem:[#allocation7 + $0x1f8] sm:$0xff]
        %v2789 = vld [vmem:[#allocation7 + $0x200] sm:$0xff]
        %v2790 = vld [vmem:[#allocation7 + $0x208] sm:$0xff]
        %v2791 = vld [vmem:[#allocation7 + $0x210] sm:$0xff]
        %v2792 = vld [vmem:[#allocation7 + $0x218] sm:$0xff]
        %v2793 = vld [vmem:[#allocation7 + $0x220] sm:$0xff]
        %v2794 = vld [vmem:[#allocation7 + $0x228] sm:$0xff]
        %v2795 = vld [vmem:[#allocation7 + $0x230] sm:$0xff]
        %v2796 = vld [vmem:[#allocation7 + $0x238] sm:$0xff]
        %v2797 = vld [vmem:[#allocation7 + $0x240] sm:$0xff]
        %v2798 = vld [vmem:[#allocation7 + $0x248] sm:$0xff]
        %v2799 = vld [vmem:[#allocation7 + $0x250] sm:$0xff]
        %v2800 = vld [vmem:[#allocation7 + $0x258] sm:$0xff]
        %v2801 = vld [vmem:[#allocation7 + $0x260] sm:$0xff]
        %v2802 = vld [vmem:[#allocation7 + $0x268] sm:$0xff]
        %v2803 = vld [vmem:[#allocation7 + $0x270] sm:$0xff]
        %v2804 = vld [vmem:[#allocation7 + $0x278] sm:$0xff]
        %v2805 = vld [vmem:[#allocation7 + $0x280] sm:$0xff]
        %v2806 = vld [vmem:[#allocation7 + $0x288] sm:$0xff]
        %v2807 = vld [vmem:[#allocation7 + $0x290] sm:$0xff]
        %v2808 = vld [vmem:[#allocation7 + $0x298] sm:$0xff]
        %v2809 = vld [vmem:[#allocation7 + $0x2a0] sm:$0xff]
        %v2810 = vld [vmem:[#allocation7 + $0x2a8] sm:$0xff]
        %v2811 = vld [vmem:[#allocation7 + $0x2b0] sm:$0xff]
        %v2812 = vld [vmem:[#allocation7 + $0x2b8] sm:$0xff]
        %v2813 = vld [vmem:[#allocation7 + $0x2c0] sm:$0xff]
        %v2814 = vld [vmem:[#allocation7 + $0x2c8] sm:$0xff]
        %v2815 = vld [vmem:[#allocation7 + $0x2d0] sm:$0xff]
        %v2816 = vld [vmem:[#allocation7 + $0x2d8] sm:$0xff]
        %v2817 = vld [vmem:[#allocation7 + $0x2e0] sm:$0xff]
        %v2818 = vld [vmem:[#allocation7 + $0x2e8] sm:$0xff]
        %v2819 = vld [vmem:[#allocation7 + $0x2f0] sm:$0xff]
        %v2820 = vld [vmem:[#allocation7 + $0x2f8] sm:$0xff]
        %v2821 = vld [vmem:[#allocation7 + $0x300] sm:$0xff]
        %v2822 = vld [vmem:[#allocation7 + $0x308] sm:$0xff]
        %v2823 = vld [vmem:[#allocation7 + $0x310] sm:$0xff]
        %v2824 = vld [vmem:[#allocation7 + $0x318] sm:$0xff]
        %v2825 = vld [vmem:[#allocation7 + $0x320] sm:$0xff]
        %v2826 = vld [vmem:[#allocation7 + $0x328] sm:$0xff]
        %v2827 = vld [vmem:[#allocation7 + $0x330] sm:$0xff]
        %v2828 = vld [vmem:[#allocation7 + $0x338] sm:$0xff]
        %v2829 = vld [vmem:[#allocation7 + $0x340] sm:$0xff]
        %v2830 = vld [vmem:[#allocation7 + $0x348] sm:$0xff]
        %v2831 = vld [vmem:[#allocation7 + $0x350] sm:$0xff]
        %v2832 = vld [vmem:[#allocation7 + $0x358] sm:$0xff]
        %v2833 = vld [vmem:[#allocation7 + $0x360] sm:$0xff]
        %v2834 = vld [vmem:[#allocation7 + $0x368] sm:$0xff]
        %v2835 = vld [vmem:[#allocation7 + $0x370] sm:$0xff]
        %v2836 = vld [vmem:[#allocation7 + $0x378] sm:$0xff]
        %v2837 = vld [vmem:[#allocation7 + $0x380] sm:$0xff]
        %v2838 = vld [vmem:[#allocation7 + $0x388] sm:$0xff]
        %v2839 = vld [vmem:[#allocation7 + $0x390] sm:$0xff]
        %v2840 = vld [vmem:[#allocation7 + $0x398] sm:$0xff]
        %v2841 = vld [vmem:[#allocation7 + $0x3a0] sm:$0xff]
        %v2842 = vld [vmem:[#allocation7 + $0x3a8] sm:$0xff]
        %v2843 = vld [vmem:[#allocation7 + $0x3b0] sm:$0xff]
        %v2844 = vld [vmem:[#allocation7 + $0x3b8] sm:$0xff]
        %v2845 = vld [vmem:[#allocation7 + $0x3c0] sm:$0xff]
        %v2846 = vld [vmem:[#allocation7 + $0x3c8] sm:$0xff]
        %v2847 = vld [vmem:[#allocation7 + $0x3d0] sm:$0xff]
        %v2848 = vld [vmem:[#allocation7 + $0x3d8] sm:$0xff]
        %v2849 = vld [vmem:[#allocation7 + $0x3e0] sm:$0xff]
        %v2850 = vld [vmem:[#allocation7 + $0x3e8] sm:$0xff]
        %v2851 = vld [vmem:[#allocation7 + $0x3f0] sm:$0xff]
        %v2852 = vld [vmem:[#allocation7 + $0x3f8] sm:$0xff]
        %v2854 = vlaneseq
        %v2855 = vshrl.u32 %v2854, 7
        %v2856 = vsub.s32 0, %v2855
        %v2857 = vrot.slane %v263, %v2856
        %v2858 = vlaneseq
        %v2859 = vshrl.u32 %v2858, 7
        %v2860 = vsub.s32 1, %v2859
        %v2861 = vrot.slane %v263, %v2860
        %v2862 = vlaneseq
        %v2863 = vshrl.u32 %v2862, 7
        %v2864 = vsub.s32 2, %v2863
        %v2865 = vrot.slane %v263, %v2864
        %v2866 = vlaneseq
        %v2867 = vshrl.u32 %v2866, 7
        %v2868 = vsub.s32 3, %v2867
        %v2869 = vrot.slane %v263, %v2868
        %v3002 = vunpack.c.l.b16 %v2725
        %v3003 = vunpack.c.h.b16 %v2725
        %v3004 = vunpack.c.l.b16 %v2726
        %v3005 = vunpack.c.h.b16 %v2726
        %v3006 = vunpack.c.l.b16 %v2727
        %v3007 = vunpack.c.h.b16 %v2727
        %v3008 = vunpack.c.l.b16 %v2728
        %v3009 = vunpack.c.h.b16 %v2728
        %v3010 = vunpack.c.l.b16 %v2729
        %v3011 = vunpack.c.h.b16 %v2729
        %v3012 = vunpack.c.l.b16 %v2730
        %v3013 = vunpack.c.h.b16 %v2730
        %v3014 = vunpack.c.l.b16 %v2731
        %v3015 = vunpack.c.h.b16 %v2731
        %v3016 = vunpack.c.l.b16 %v2732
        %v3017 = vunpack.c.h.b16 %v2732
        %v3018 = vunpack.c.l.b16 %v2733
        %v3019 = vunpack.c.h.b16 %v2733
        %v3020 = vunpack.c.l.b16 %v2734
        %v3021 = vunpack.c.h.b16 %v2734
        %v3022 = vunpack.c.l.b16 %v2735
        %v3023 = vunpack.c.h.b16 %v2735
        %v3024 = vunpack.c.l.b16 %v2736
        %v3025 = vunpack.c.h.b16 %v2736
        %v3026 = vunpack.c.l.b16 %v2737
        %v3027 = vunpack.c.h.b16 %v2737
        %v3028 = vunpack.c.l.b16 %v2738
        %v3029 = vunpack.c.h.b16 %v2738
        %v3030 = vunpack.c.l.b16 %v2739
        %v3031 = vunpack.c.h.b16 %v2739
        %v3032 = vunpack.c.l.b16 %v2740
        %v3033 = vunpack.c.h.b16 %v2740
        %v3034 = vunpack.c.l.b16 %v2741
        %v3035 = vunpack.c.h.b16 %v2741
        %v3036 = vunpack.c.l.b16 %v2742
        %v3037 = vunpack.c.h.b16 %v2742
        %v3038 = vunpack.c.l.b16 %v2743
        %v3039 = vunpack.c.h.b16 %v2743
        %v3040 = vunpack.c.l.b16 %v2744
        %v3041 = vunpack.c.h.b16 %v2744
        %v3042 = vunpack.c.l.b16 %v2745
        %v3043 = vunpack.c.h.b16 %v2745
        %v3044 = vunpack.c.l.b16 %v2746
        %v3045 = vunpack.c.h.b16 %v2746
        %v3046 = vunpack.c.l.b16 %v2747
        %v3047 = vunpack.c.h.b16 %v2747
        %v3048 = vunpack.c.l.b16 %v2748
        %v3049 = vunpack.c.h.b16 %v2748
        %v3050 = vunpack.c.l.b16 %v2749
        %v3051 = vunpack.c.h.b16 %v2749
        %v3052 = vunpack.c.l.b16 %v2750
        %v3053 = vunpack.c.h.b16 %v2750
        %v3054 = vunpack.c.l.b16 %v2751
        %v3055 = vunpack.c.h.b16 %v2751
        %v3056 = vunpack.c.l.b16 %v2752
        %v3057 = vunpack.c.h.b16 %v2752
        %v3058 = vunpack.c.l.b16 %v2753
        %v3059 = vunpack.c.h.b16 %v2753
        %v3060 = vunpack.c.l.b16 %v2754
        %v3061 = vunpack.c.h.b16 %v2754
        %v3062 = vunpack.c.l.b16 %v2755
        %v3063 = vunpack.c.h.b16 %v2755
        %v3064 = vunpack.c.l.b16 %v2756
        %v3065 = vunpack.c.h.b16 %v2756
        %v3066 = vunpack.c.l.b16 %v2757
        %v3067 = vunpack.c.h.b16 %v2757
        %v3068 = vunpack.c.l.b16 %v2758
        %v3069 = vunpack.c.h.b16 %v2758
        %v3070 = vunpack.c.l.b16 %v2759
        %v3071 = vunpack.c.h.b16 %v2759
        %v3072 = vunpack.c.l.b16 %v2760
        %v3073 = vunpack.c.h.b16 %v2760
        %v3074 = vunpack.c.l.b16 %v2761
        %v3075 = vunpack.c.h.b16 %v2761
        %v3076 = vunpack.c.l.b16 %v2762
        %v3077 = vunpack.c.h.b16 %v2762
        %v3078 = vunpack.c.l.b16 %v2763
        %v3079 = vunpack.c.h.b16 %v2763
        %v3080 = vunpack.c.l.b16 %v2764
        %v3081 = vunpack.c.h.b16 %v2764
        %v3082 = vunpack.c.l.b16 %v2765
        %v3083 = vunpack.c.h.b16 %v2765
        %v3084 = vunpack.c.l.b16 %v2766
        %v3085 = vunpack.c.h.b16 %v2766
        %v3086 = vunpack.c.l.b16 %v2767
        %v3087 = vunpack.c.h.b16 %v2767
        %v3088 = vunpack.c.l.b16 %v2768
        %v3089 = vunpack.c.h.b16 %v2768
        %v3090 = vunpack.c.l.b16 %v2769
        %v3091 = vunpack.c.h.b16 %v2769
        %v3092 = vunpack.c.l.b16 %v2770
        %v3093 = vunpack.c.h.b16 %v2770
        %v3094 = vunpack.c.l.b16 %v2771
        %v3095 = vunpack.c.h.b16 %v2771
        %v3096 = vunpack.c.l.b16 %v2772
        %v3097 = vunpack.c.h.b16 %v2772
        %v3098 = vunpack.c.l.b16 %v2773
        %v3099 = vunpack.c.h.b16 %v2773
        %v3100 = vunpack.c.l.b16 %v2774
        %v3101 = vunpack.c.h.b16 %v2774
        %v3102 = vunpack.c.l.b16 %v2775
        %v3103 = vunpack.c.h.b16 %v2775
        %v3104 = vunpack.c.l.b16 %v2776
        %v3105 = vunpack.c.h.b16 %v2776
        %v3106 = vunpack.c.l.b16 %v2777
        %v3107 = vunpack.c.h.b16 %v2777
        %v3108 = vunpack.c.l.b16 %v2778
        %v3109 = vunpack.c.h.b16 %v2778
        %v3110 = vunpack.c.l.b16 %v2779
        %v3111 = vunpack.c.h.b16 %v2779
        %v3112 = vunpack.c.l.b16 %v2780
        %v3113 = vunpack.c.h.b16 %v2780
        %v3114 = vunpack.c.l.b16 %v2781
        %v3115 = vunpack.c.h.b16 %v2781
        %v3116 = vunpack.c.l.b16 %v2782
        %v3117 = vunpack.c.h.b16 %v2782
        %v3118 = vunpack.c.l.b16 %v2783
        %v3119 = vunpack.c.h.b16 %v2783
        %v3120 = vunpack.c.l.b16 %v2784
        %v3121 = vunpack.c.h.b16 %v2784
        %v3122 = vunpack.c.l.b16 %v2785
        %v3123 = vunpack.c.h.b16 %v2785
        %v3124 = vunpack.c.l.b16 %v2786
        %v3125 = vunpack.c.h.b16 %v2786
        %v3126 = vunpack.c.l.b16 %v2787
        %v3127 = vunpack.c.h.b16 %v2787
        %v3128 = vunpack.c.l.b16 %v2788
        %v3129 = vunpack.c.h.b16 %v2788
        %v3130 = vunpack.c.l.b16 %v2789
        %v3131 = vunpack.c.h.b16 %v2789
        %v3132 = vunpack.c.l.b16 %v2790
        %v3133 = vunpack.c.h.b16 %v2790
        %v3134 = vunpack.c.l.b16 %v2791
        %v3135 = vunpack.c.h.b16 %v2791
        %v3136 = vunpack.c.l.b16 %v2792
        %v3137 = vunpack.c.h.b16 %v2792
        %v3138 = vunpack.c.l.b16 %v2793
        %v3139 = vunpack.c.h.b16 %v2793
        %v3140 = vunpack.c.l.b16 %v2794
        %v3141 = vunpack.c.h.b16 %v2794
        %v3142 = vunpack.c.l.b16 %v2795
        %v3143 = vunpack.c.h.b16 %v2795
        %v3144 = vunpack.c.l.b16 %v2796
        %v3145 = vunpack.c.h.b16 %v2796
        %v3146 = vunpack.c.l.b16 %v2797
        %v3147 = vunpack.c.h.b16 %v2797
        %v3148 = vunpack.c.l.b16 %v2798
        %v3149 = vunpack.c.h.b16 %v2798
        %v3150 = vunpack.c.l.b16 %v2799
        %v3151 = vunpack.c.h.b16 %v2799
        %v3152 = vunpack.c.l.b16 %v2800
        %v3153 = vunpack.c.h.b16 %v2800
        %v3154 = vunpack.c.l.b16 %v2801
        %v3155 = vunpack.c.h.b16 %v2801
        %v3156 = vunpack.c.l.b16 %v2802
        %v3157 = vunpack.c.h.b16 %v2802
        %v3158 = vunpack.c.l.b16 %v2803
        %v3159 = vunpack.c.h.b16 %v2803
        %v3160 = vunpack.c.l.b16 %v2804
        %v3161 = vunpack.c.h.b16 %v2804
        %v3162 = vunpack.c.l.b16 %v2805
        %v3163 = vunpack.c.h.b16 %v2805
        %v3164 = vunpack.c.l.b16 %v2806
        %v3165 = vunpack.c.h.b16 %v2806
        %v3166 = vunpack.c.l.b16 %v2807
        %v3167 = vunpack.c.h.b16 %v2807
        %v3168 = vunpack.c.l.b16 %v2808
        %v3169 = vunpack.c.h.b16 %v2808
        %v3170 = vunpack.c.l.b16 %v2809
        %v3171 = vunpack.c.h.b16 %v2809
        %v3172 = vunpack.c.l.b16 %v2810
        %v3173 = vunpack.c.h.b16 %v2810
        %v3174 = vunpack.c.l.b16 %v2811
        %v3175 = vunpack.c.h.b16 %v2811
        %v3176 = vunpack.c.l.b16 %v2812
        %v3177 = vunpack.c.h.b16 %v2812
        %v3178 = vunpack.c.l.b16 %v2813
        %v3179 = vunpack.c.h.b16 %v2813
        %v3180 = vunpack.c.l.b16 %v2814
        %v3181 = vunpack.c.h.b16 %v2814
        %v3182 = vunpack.c.l.b16 %v2815
        %v3183 = vunpack.c.h.b16 %v2815
        %v3184 = vunpack.c.l.b16 %v2816
        %v3185 = vunpack.c.h.b16 %v2816
        %v3186 = vunpack.c.l.b16 %v2817
        %v3187 = vunpack.c.h.b16 %v2817
        %v3188 = vunpack.c.l.b16 %v2818
        %v3189 = vunpack.c.h.b16 %v2818
        %v3190 = vunpack.c.l.b16 %v2819
        %v3191 = vunpack.c.h.b16 %v2819
        %v3192 = vunpack.c.l.b16 %v2820
        %v3193 = vunpack.c.h.b16 %v2820
        %v3194 = vunpack.c.l.b16 %v2821
        %v3195 = vunpack.c.h.b16 %v2821
        %v3196 = vunpack.c.l.b16 %v2822
        %v3197 = vunpack.c.h.b16 %v2822
        %v3198 = vunpack.c.l.b16 %v2823
        %v3199 = vunpack.c.h.b16 %v2823
        %v3200 = vunpack.c.l.b16 %v2824
        %v3201 = vunpack.c.h.b16 %v2824
        %v3202 = vunpack.c.l.b16 %v2825
        %v3203 = vunpack.c.h.b16 %v2825
        %v3204 = vunpack.c.l.b16 %v2826
        %v3205 = vunpack.c.h.b16 %v2826
        %v3206 = vunpack.c.l.b16 %v2827
        %v3207 = vunpack.c.h.b16 %v2827
        %v3208 = vunpack.c.l.b16 %v2828
        %v3209 = vunpack.c.h.b16 %v2828
        %v3210 = vunpack.c.l.b16 %v2829
        %v3211 = vunpack.c.h.b16 %v2829
        %v3212 = vunpack.c.l.b16 %v2830
        %v3213 = vunpack.c.h.b16 %v2830
        %v3214 = vunpack.c.l.b16 %v2831
        %v3215 = vunpack.c.h.b16 %v2831
        %v3216 = vunpack.c.l.b16 %v2832
        %v3217 = vunpack.c.h.b16 %v2832
        %v3218 = vunpack.c.l.b16 %v2833
        %v3219 = vunpack.c.h.b16 %v2833
        %v3220 = vunpack.c.l.b16 %v2834
        %v3221 = vunpack.c.h.b16 %v2834
        %v3222 = vunpack.c.l.b16 %v2835
        %v3223 = vunpack.c.h.b16 %v2835
        %v3224 = vunpack.c.l.b16 %v2836
        %v3225 = vunpack.c.h.b16 %v2836
        %v3226 = vunpack.c.l.b16 %v2837
        %v3227 = vunpack.c.h.b16 %v2837
        %v3228 = vunpack.c.l.b16 %v2838
        %v3229 = vunpack.c.h.b16 %v2838
        %v3230 = vunpack.c.l.b16 %v2839
        %v3231 = vunpack.c.h.b16 %v2839
        %v3232 = vunpack.c.l.b16 %v2840
        %v3233 = vunpack.c.h.b16 %v2840
        %v3234 = vunpack.c.l.b16 %v2841
        %v3235 = vunpack.c.h.b16 %v2841
        %v3236 = vunpack.c.l.b16 %v2842
        %v3237 = vunpack.c.h.b16 %v2842
        %v3238 = vunpack.c.l.b16 %v2843
        %v3239 = vunpack.c.h.b16 %v2843
        %v3240 = vunpack.c.l.b16 %v2844
        %v3241 = vunpack.c.h.b16 %v2844
        %v3242 = vunpack.c.l.b16 %v2845
        %v3243 = vunpack.c.h.b16 %v2845
        %v3244 = vunpack.c.l.b16 %v2846
        %v3245 = vunpack.c.h.b16 %v2846
        %v3246 = vunpack.c.l.b16 %v2847
        %v3247 = vunpack.c.h.b16 %v2847
        %v3248 = vunpack.c.l.b16 %v2848
        %v3249 = vunpack.c.h.b16 %v2848
        %v3250 = vunpack.c.l.b16 %v2849
        %v3251 = vunpack.c.h.b16 %v2849
        %v3252 = vunpack.c.l.b16 %v2850
        %v3253 = vunpack.c.h.b16 %v2850
        %v3254 = vunpack.c.l.b16 %v2851
        %v3255 = vunpack.c.h.b16 %v2851
        %v3256 = vunpack.c.l.b16 %v2852
        %v3257 = vunpack.c.h.b16 %v2852
        %v3258 = vpack.c.b16 %v3006, %v3002
        %v3259 = vpack.c.b16 %v3007, %v3003
        %v3260 = vpack.c.b16 %v3008, %v3004
        %v3261 = vpack.c.b16 %v3009, %v3005
        %v3262 = vpack.c.b16 %v3014, %v3010
        %v3263 = vpack.c.b16 %v3015, %v3011
        %v3264 = vpack.c.b16 %v3016, %v3012
        %v3265 = vpack.c.b16 %v3017, %v3013
        %v3266 = vpack.c.b16 %v3022, %v3018
        %v3267 = vpack.c.b16 %v3023, %v3019
        %v3268 = vpack.c.b16 %v3024, %v3020
        %v3269 = vpack.c.b16 %v3025, %v3021
        %v3270 = vpack.c.b16 %v3030, %v3026
        %v3271 = vpack.c.b16 %v3031, %v3027
        %v3272 = vpack.c.b16 %v3032, %v3028
        %v3273 = vpack.c.b16 %v3033, %v3029
        %v3274 = vpack.c.b16 %v3038, %v3034
        %v3275 = vpack.c.b16 %v3039, %v3035
        %v3276 = vpack.c.b16 %v3040, %v3036
        %v3277 = vpack.c.b16 %v3041, %v3037
        %v3278 = vpack.c.b16 %v3046, %v3042
        %v3279 = vpack.c.b16 %v3047, %v3043
        %v3280 = vpack.c.b16 %v3048, %v3044
        %v3281 = vpack.c.b16 %v3049, %v3045
        %v3282 = vpack.c.b16 %v3054, %v3050
        %v3283 = vpack.c.b16 %v3055, %v3051
        %v3284 = vpack.c.b16 %v3056, %v3052
        %v3285 = vpack.c.b16 %v3057, %v3053
        %v3286 = vpack.c.b16 %v3062, %v3058
        %v3287 = vpack.c.b16 %v3063, %v3059
        %v3288 = vpack.c.b16 %v3064, %v3060
        %v3289 = vpack.c.b16 %v3065, %v3061
        %v3290 = vpack.c.b16 %v3070, %v3066
        %v3291 = vpack.c.b16 %v3071, %v3067
        %v3292 = vpack.c.b16 %v3072, %v3068
        %v3293 = vpack.c.b16 %v3073, %v3069
        %v3294 = vpack.c.b16 %v3078, %v3074
        %v3295 = vpack.c.b16 %v3079, %v3075
        %v3296 = vpack.c.b16 %v3080, %v3076
        %v3297 = vpack.c.b16 %v3081, %v3077
        %v3298 = vpack.c.b16 %v3086, %v3082
        %v3299 = vpack.c.b16 %v3087, %v3083
        %v3300 = vpack.c.b16 %v3088, %v3084
        %v3301 = vpack.c.b16 %v3089, %v3085
        %v3302 = vpack.c.b16 %v3094, %v3090
        %v3303 = vpack.c.b16 %v3095, %v3091
        %v3304 = vpack.c.b16 %v3096, %v3092
        %v3305 = vpack.c.b16 %v3097, %v3093
        %v3306 = vpack.c.b16 %v3102, %v3098
        %v3307 = vpack.c.b16 %v3103, %v3099
        %v3308 = vpack.c.b16 %v3104, %v3100
        %v3309 = vpack.c.b16 %v3105, %v3101
        %v3310 = vpack.c.b16 %v3110, %v3106
        %v3311 = vpack.c.b16 %v3111, %v3107
        %v3312 = vpack.c.b16 %v3112, %v3108
        %v3313 = vpack.c.b16 %v3113, %v3109
        %v3314 = vpack.c.b16 %v3118, %v3114
        %v3315 = vpack.c.b16 %v3119, %v3115
        %v3316 = vpack.c.b16 %v3120, %v3116
        %v3317 = vpack.c.b16 %v3121, %v3117
        %v3318 = vpack.c.b16 %v3126, %v3122
        %v3319 = vpack.c.b16 %v3127, %v3123
        %v3320 = vpack.c.b16 %v3128, %v3124
        %v3321 = vpack.c.b16 %v3129, %v3125
        %v3322 = vpack.c.b16 %v3134, %v3130
        %v3323 = vpack.c.b16 %v3135, %v3131
        %v3324 = vpack.c.b16 %v3136, %v3132
        %v3325 = vpack.c.b16 %v3137, %v3133
        %v3326 = vpack.c.b16 %v3142, %v3138
        %v3327 = vpack.c.b16 %v3143, %v3139
        %v3328 = vpack.c.b16 %v3144, %v3140
        %v3329 = vpack.c.b16 %v3145, %v3141
        %v3330 = vpack.c.b16 %v3150, %v3146
        %v3331 = vpack.c.b16 %v3151, %v3147
        %v3332 = vpack.c.b16 %v3152, %v3148
        %v3333 = vpack.c.b16 %v3153, %v3149
        %v3334 = vpack.c.b16 %v3158, %v3154
        %v3335 = vpack.c.b16 %v3159, %v3155
        %v3336 = vpack.c.b16 %v3160, %v3156
        %v3337 = vpack.c.b16 %v3161, %v3157
        %v3338 = vpack.c.b16 %v3166, %v3162
        %v3339 = vpack.c.b16 %v3167, %v3163
        %v3340 = vpack.c.b16 %v3168, %v3164
        %v3341 = vpack.c.b16 %v3169, %v3165
        %v3342 = vpack.c.b16 %v3174, %v3170
        %v3343 = vpack.c.b16 %v3175, %v3171
        %v3344 = vpack.c.b16 %v3176, %v3172
        %v3345 = vpack.c.b16 %v3177, %v3173
        %v3346 = vpack.c.b16 %v3182, %v3178
        %v3347 = vpack.c.b16 %v3183, %v3179
        %v3348 = vpack.c.b16 %v3184, %v3180
        %v3349 = vpack.c.b16 %v3185, %v3181
        %v3350 = vpack.c.b16 %v3190, %v3186
        %v3351 = vpack.c.b16 %v3191, %v3187
        %v3352 = vpack.c.b16 %v3192, %v3188
        %v3353 = vpack.c.b16 %v3193, %v3189
        %v3354 = vpack.c.b16 %v3198, %v3194
        %v3355 = vpack.c.b16 %v3199, %v3195
        %v3356 = vpack.c.b16 %v3200, %v3196
        %v3357 = vpack.c.b16 %v3201, %v3197
        %v3358 = vpack.c.b16 %v3206, %v3202
        %v3359 = vpack.c.b16 %v3207, %v3203
        %v3360 = vpack.c.b16 %v3208, %v3204
        %v3361 = vpack.c.b16 %v3209, %v3205
        %v3362 = vpack.c.b16 %v3214, %v3210
        %v3363 = vpack.c.b16 %v3215, %v3211
        %v3364 = vpack.c.b16 %v3216, %v3212
        %v3365 = vpack.c.b16 %v3217, %v3213
        %v3366 = vpack.c.b16 %v3222, %v3218
        %v3367 = vpack.c.b16 %v3223, %v3219
        %v3368 = vpack.c.b16 %v3224, %v3220
        %v3369 = vpack.c.b16 %v3225, %v3221
        %v3370 = vpack.c.b16 %v3230, %v3226
        %v3371 = vpack.c.b16 %v3231, %v3227
        %v3372 = vpack.c.b16 %v3232, %v3228
        %v3373 = vpack.c.b16 %v3233, %v3229
        %v3374 = vpack.c.b16 %v3238, %v3234
        %v3375 = vpack.c.b16 %v3239, %v3235
        %v3376 = vpack.c.b16 %v3240, %v3236
        %v3377 = vpack.c.b16 %v3241, %v3237
        %v3378 = vpack.c.b16 %v3246, %v3242
        %v3379 = vpack.c.b16 %v3247, %v3243
        %v3380 = vpack.c.b16 %v3248, %v3244
        %v3381 = vpack.c.b16 %v3249, %v3245
        %v3382 = vpack.c.b16 %v3254, %v3250
        %v3383 = vpack.c.b16 %v3255, %v3251
        %v3384 = vpack.c.b16 %v3256, %v3252
        %v3385 = vpack.c.b16 %v3257, %v3253
        %3514 = vmatprep.subr.bf16.mxu0 %v3259
        %3515 = vmatpush1.bf16.msra.mxu0 %v3258
        %3516 = vmatprep.subr.bf16.mxu0 %v3263
        %3517 = vmatpush1.bf16.msra.mxu0 %v3262
        %3518 = vmatprep.subr.bf16.mxu0 %v3267
        %3519 = vmatpush1.bf16.msra.mxu0 %v3266
        %3520 = vmatprep.subr.bf16.mxu0 %v3271
        %3521 = vmatpush1.bf16.msra.mxu0 %v3270
        %3522 = vmatprep.subr.bf16.mxu0 %v3275
        %3523 = vmatpush1.bf16.msra.mxu0 %v3274
        %3524 = vmatprep.subr.bf16.mxu0 %v3279
        %3525 = vmatpush1.bf16.msra.mxu0 %v3278
        %3526 = vmatprep.subr.bf16.mxu0 %v3283
        %3527 = vmatpush1.bf16.msra.mxu0 %v3282
        %3528 = vmatprep.subr.bf16.mxu0 %v3287
        %3529 = vmatpush1.bf16.msra.mxu0 %v3286
        %3530 = vmatprep.subr.bf16.mxu0 %v3291
        %3531 = vmatpush1.bf16.msra.mxu0 %v3290
        %3532 = vmatprep.subr.bf16.mxu0 %v3295
        %3533 = vmatpush1.bf16.msra.mxu0 %v3294
        %3534 = vmatprep.subr.bf16.mxu0 %v3299
        %3535 = vmatpush1.bf16.msra.mxu0 %v3298
        %3536 = vmatprep.subr.bf16.mxu0 %v3303
        %3537 = vmatpush1.bf16.msra.mxu0 %v3302
        %3538 = vmatprep.subr.bf16.mxu0 %v3307
        %3539 = vmatpush1.bf16.msra.mxu0 %v3306
        %3540 = vmatprep.subr.bf16.mxu0 %v3311
        %3541 = vmatpush1.bf16.msra.mxu0 %v3310
        %3542 = vmatprep.subr.bf16.mxu0 %v3315
        %3543 = vmatpush1.bf16.msra.mxu0 %v3314
        %3544 = vmatprep.subr.bf16.mxu0 %v3319
        %3545 = vmatpush1.bf16.msra.mxu0 %v3318
        %3546 = vmatprep.mubr.bf16.mxu0 %v2662
        %3547 = vmatmul.mubr.bf16.gmra.mrb[0].mxu0 %v2661
        %v3548 = vpop.f32.mrb[0].mxu0
        %v3549 = vadd.f32 %v2857, %v3548
        %v3550 = vpop.f32.mrb[0].mxu0
        %v3551 = vadd.f32 %v2861, %v3550
        %v3552 = vpop.f32.mrb[0].mxu0
        %v3553 = vadd.f32 %v2857, %v3552
        %v3554 = vpop.f32.mrb[0].mxu0
        %v3555 = vadd.f32 %v2861, %v3554
        %3556 = vmatprep.mubr.bf16.mxu0 %v2666
        %3557 = vmatmul.mubr.bf16.gmra.mrb[0].mxu0 %v2665
        %v3558 = vpop.f32.mrb[0].mxu0
        %v3559 = vadd.f32 %v2857, %v3558
        %v3560 = vpop.f32.mrb[0].mxu0
        %v3561 = vadd.f32 %v2861, %v3560
        %v3562 = vpop.f32.mrb[0].mxu0
        %v3563 = vadd.f32 %v2857, %v3562
        %v3564 = vpop.f32.mrb[0].mxu0
        %v3565 = vadd.f32 %v2861, %v3564
        %3566 = vmatprep.mubr.bf16.mxu0 %v2670
        %3567 = vmatmul.mubr.bf16.gmra.mrb[0].mxu0 %v2669
        %v3568 = vpop.f32.mrb[0].mxu0
        %v3569 = vadd.f32 %v2857, %v3568
        %v3570 = vpop.f32.mrb[0].mxu0
        %v3571 = vadd.f32 %v2861, %v3570
        %v3572 = vpop.f32.mrb[0].mxu0
        %v3573 = vadd.f32 %v2857, %v3572
        %v3574 = vpop.f32.mrb[0].mxu0
        %v3575 = vadd.f32 %v2861, %v3574
        %3576 = vmatprep.mubr.bf16.mxu0 %v2674
        %3577 = vmatmul.mubr.bf16.gmra.mrb[0].mxu0 %v2673
        %v3578 = vpop.f32.mrb[0].mxu0
        %v3579 = vadd.f32 %v2857, %v3578
        %v3580 = vpop.f32.mrb[0].mxu0
        %v3581 = vadd.f32 %v2861, %v3580
        %v3582 = vpop.f32.mrb[0].mxu0
        %v3583 = vadd.f32 %v2857, %v3582
        %v3584 = vpop.f32.mrb[0].mxu0
        %v3585 = vadd.f32 %v2861, %v3584
        %3586 = vmatprep.mubr.bf16.mxu0 %v2678
        %3587 = vmatmul.mubr.bf16.gmra.mrb[0].mxu0 %v2677
        %v3588 = vpop.f32.mrb[0].mxu0
        %v3589 = vadd.f32 %v2857, %v3588
        %v3590 = vpop.f32.mrb[0].mxu0
        %v3591 = vadd.f32 %v2861, %v3590
        %v3592 = vpop.f32.mrb[0].mxu0
        %v3593 = vadd.f32 %v2857, %v3592
        %v3594 = vpop.f32.mrb[0].mxu0
        %v3595 = vadd.f32 %v2861, %v3594
        %3596 = vmatprep.mubr.bf16.mxu0 %v2682
        %3597 = vmatmul.mubr.bf16.gmra.mrb[0].mxu0 %v2681
        %v3598 = vpop.f32.mrb[0].mxu0
        %v3599 = vadd.f32 %v2857, %v3598
        %v3600 = vpop.f32.mrb[0].mxu0
        %v3601 = vadd.f32 %v2861, %v3600
        %v3602 = vpop.f32.mrb[0].mxu0
        %v3603 = vadd.f32 %v2857, %v3602
        %v3604 = vpop.f32.mrb[0].mxu0
        %v3605 = vadd.f32 %v2861, %v3604
        %3606 = vmatprep.mubr.bf16.mxu0 %v2686
        %3607 = vmatmul.mubr.bf16.gmra.mrb[0].mxu0 %v2685
        %v3608 = vpop.f32.mrb[0].mxu0
        %v3609 = vadd.f32 %v2857, %v3608
        %v3610 = vpop.f32.mrb[0].mxu0
        %v3611 = vadd.f32 %v2861, %v3610
        %v3612 = vpop.f32.mrb[0].mxu0
        %v3613 = vadd.f32 %v2857, %v3612
        %v3614 = vpop.f32.mrb[0].mxu0
        %v3615 = vadd.f32 %v2861, %v3614
        %3616 = vmatprep.mubr.bf16.mxu0 %v2690
        %3617 = vmatmul.mubr.bf16.gmra.mrb[0].mxu0 %v2689
        %v3618 = vpop.f32.mrb[0].mxu0
        %v3619 = vadd.f32 %v2857, %v3618
        %v3620 = vpop.f32.mrb[0].mxu0
        %v3621 = vadd.f32 %v2861, %v3620
        %v3622 = vpop.f32.mrb[0].mxu0
        %v3623 = vadd.f32 %v2857, %v3622
        %v3624 = vpop.f32.mrb[0].mxu0
        %v3625 = vadd.f32 %v2861, %v3624
        %3626 = vmatprep.mubr.bf16.mxu0 %v2694
        %3627 = vmatmul.mubr.bf16.gmra.mrb[0].mxu0 %v2693
        %v3628 = vpop.f32.mrb[0].mxu0
        %v3629 = vadd.f32 %v2857, %v3628
        %v3630 = vpop.f32.mrb[0].mxu0
        %v3631 = vadd.f32 %v2861, %v3630
        %v3632 = vpop.f32.mrb[0].mxu0
        %v3633 = vadd.f32 %v2857, %v3632
        %v3634 = vpop.f32.mrb[0].mxu0
        %v3635 = vadd.f32 %v2861, %v3634
        %3636 = vmatprep.mubr.bf16.mxu0 %v2698
        %3637 = vmatmul.mubr.bf16.gmra.mrb[0].mxu0 %v2697
        %v3638 = vpop.f32.mrb[0].mxu0
        %v3639 = vadd.f32 %v2857, %v3638
        %v3640 = vpop.f32.mrb[0].mxu0
        %v3641 = vadd.f32 %v2861, %v3640
        %v3642 = vpop.f32.mrb[0].mxu0
        %v3643 = vadd.f32 %v2857, %v3642
        %v3644 = vpop.f32.mrb[0].mxu0
        %v3645 = vadd.f32 %v2861, %v3644
        %3646 = vmatprep.mubr.bf16.mxu0 %v2702
        %3647 = vmatmul.mubr.bf16.gmra.mrb[0].mxu0 %v2701
        %v3648 = vpop.f32.mrb[0].mxu0
        %v3649 = vadd.f32 %v2857, %v3648
        %v3650 = vpop.f32.mrb[0].mxu0
        %v3651 = vadd.f32 %v2861, %v3650
        %v3652 = vpop.f32.mrb[0].mxu0
        %v3653 = vadd.f32 %v2857, %v3652
        %v3654 = vpop.f32.mrb[0].mxu0
        %v3655 = vadd.f32 %v2861, %v3654
        %3656 = vmatprep.mubr.bf16.mxu0 %v2706
        %3657 = vmatmul.mubr.bf16.gmra.mrb[0].mxu0 %v2705
        %v3658 = vpop.f32.mrb[0].mxu0
        %v3659 = vadd.f32 %v2857, %v3658
        %v3660 = vpop.f32.mrb[0].mxu0
        %v3661 = vadd.f32 %v2861, %v3660
        %v3662 = vpop.f32.mrb[0].mxu0
        %v3663 = vadd.f32 %v2857, %v3662
        %v3664 = vpop.f32.mrb[0].mxu0
        %v3665 = vadd.f32 %v2861, %v3664
        %3666 = vmatprep.mubr.bf16.mxu0 %v2710
        %3667 = vmatmul.mubr.bf16.gmra.mrb[0].mxu0 %v2709
        %v3668 = vpop.f32.mrb[0].mxu0
        %v3669 = vadd.f32 %v2857, %v3668
        %v3670 = vpop.f32.mrb[0].mxu0
        %v3671 = vadd.f32 %v2861, %v3670
        %v3672 = vpop.f32.mrb[0].mxu0
        %v3673 = vadd.f32 %v2857, %v3672
        %v3674 = vpop.f32.mrb[0].mxu0
        %v3675 = vadd.f32 %v2861, %v3674
        %3676 = vmatprep.mubr.bf16.mxu0 %v2714
        %3677 = vmatmul.mubr.bf16.gmra.mrb[0].mxu0 %v2713
        %v3678 = vpop.f32.mrb[0].mxu0
        %v3679 = vadd.f32 %v2857, %v3678
        %v3680 = vpop.f32.mrb[0].mxu0
        %v3681 = vadd.f32 %v2861, %v3680
        %v3682 = vpop.f32.mrb[0].mxu0
        %v3683 = vadd.f32 %v2857, %v3682
        %v3684 = vpop.f32.mrb[0].mxu0
        %v3685 = vadd.f32 %v2861, %v3684
        %3686 = vmatprep.mubr.bf16.mxu0 %v2718
        %3687 = vmatmul.mubr.bf16.gmra.mrb[0].mxu0 %v2717
        %v3688 = vpop.f32.mrb[0].mxu0
        %v3689 = vadd.f32 %v2857, %v3688
        %v3690 = vpop.f32.mrb[0].mxu0
        %v3691 = vadd.f32 %v2861, %v3690
        %v3692 = vpop.f32.mrb[0].mxu0
        %v3693 = vadd.f32 %v2857, %v3692
        %v3694 = vpop.f32.mrb[0].mxu0
        %v3695 = vadd.f32 %v2861, %v3694
        %3696 = vmatprep.mubr.bf16.mxu0 %v2722
        %3697 = vmatmul.mubr.bf16.gmra.mrb[0].mxu0 %v2721
        %v3698 = vpop.f32.mrb[0].mxu0
        %v3699 = vadd.f32 %v2857, %v3698
        %v3700 = vpop.f32.mrb[0].mxu0
        %v3701 = vadd.f32 %v2861, %v3700
        %v3702 = vpop.f32.mrb[0].mxu0
        %v3703 = vadd.f32 %v2857, %v3702
        %v3704 = vpop.f32.mrb[0].mxu0
        %v3705 = vadd.f32 %v2861, %v3704
        %3706 = vdwg.mxu0
        %3707 = vmatprep.subr.bf16.mxu0 %v3323
        %3708 = vmatpush1.bf16.msra.mxu0 %v3322
        %3709 = vmatprep.subr.bf16.mxu0 %v3327
        %3710 = vmatpush1.bf16.msra.mxu0 %v3326
        %3711 = vmatprep.subr.bf16.mxu0 %v3331
        %3712 = vmatpush1.bf16.msra.mxu0 %v3330
        %3713 = vmatprep.subr.bf16.mxu0 %v3335
        %3714 = vmatpush1.bf16.msra.mxu0 %v3334
        %3715 = vmatprep.subr.bf16.mxu0 %v3339
        %3716 = vmatpush1.bf16.msra.mxu0 %v3338
        %3717 = vmatprep.subr.bf16.mxu0 %v3343
        %3718 = vmatpush1.bf16.msra.mxu0 %v3342
        %3719 = vmatprep.subr.bf16.mxu0 %v3347
        %3720 = vmatpush1.bf16.msra.mxu0 %v3346
        %3721 = vmatprep.subr.bf16.mxu0 %v3351
        %3722 = vmatpush1.bf16.msra.mxu0 %v3350
        %3723 = vmatprep.subr.bf16.mxu0 %v3355
        %3724 = vmatpush1.bf16.msra.mxu0 %v3354
        %3725 = vmatprep.subr.bf16.mxu0 %v3359
        %3726 = vmatpush1.bf16.msra.mxu0 %v3358
        %3727 = vmatprep.subr.bf16.mxu0 %v3363
        %3728 = vmatpush1.bf16.msra.mxu0 %v3362
        %3729 = vmatprep.subr.bf16.mxu0 %v3367
        %3730 = vmatpush1.bf16.msra.mxu0 %v3366
        %3731 = vmatprep.subr.bf16.mxu0 %v3371
        %3732 = vmatpush1.bf16.msra.mxu0 %v3370
        %3733 = vmatprep.subr.bf16.mxu0 %v3375
        %3734 = vmatpush1.bf16.msra.mxu0 %v3374
        %3735 = vmatprep.subr.bf16.mxu0 %v3379
        %3736 = vmatpush1.bf16.msra.mxu0 %v3378
        %3737 = vmatprep.subr.bf16.mxu0 %v3383
        %3738 = vmatpush1.bf16.msra.mxu0 %v3382
        %3739 = vmatprep.mubr.bf16.mxu0 %v2664
        %3740 = vmatmul.mubr.bf16.gmra.mrb[0].mxu0 %v2663
        %v3741 = vpop.f32.mrb[0].mxu0
        %v3742 = vadd.f32 %v3549, %v3741
        %v3743 = vpop.f32.mrb[0].mxu0
        %v3744 = vadd.f32 %v3551, %v3743
        %v3745 = vpop.f32.mrb[0].mxu0
        %v3746 = vadd.f32 %v3553, %v3745
        %v3747 = vpop.f32.mrb[0].mxu0
        %v3748 = vadd.f32 %v3555, %v3747
        %3749 = vmatprep.mubr.bf16.mxu0 %v2668
        %3750 = vmatmul.mubr.bf16.gmra.mrb[0].mxu0 %v2667
        %v3751 = vpop.f32.mrb[0].mxu0
        %v3752 = vadd.f32 %v3559, %v3751
        %v3753 = vpop.f32.mrb[0].mxu0
        %v3754 = vadd.f32 %v3561, %v3753
        %v3755 = vpop.f32.mrb[0].mxu0
        %v3756 = vadd.f32 %v3563, %v3755
        %v3757 = vpop.f32.mrb[0].mxu0
        %v3758 = vadd.f32 %v3565, %v3757
        %3759 = vmatprep.mubr.bf16.mxu0 %v2672
        %3760 = vmatmul.mubr.bf16.gmra.mrb[0].mxu0 %v2671
        %v3761 = vpop.f32.mrb[0].mxu0
        %v3762 = vadd.f32 %v3569, %v3761
        %v3763 = vpop.f32.mrb[0].mxu0
        %v3764 = vadd.f32 %v3571, %v3763
        %v3765 = vpop.f32.mrb[0].mxu0
        %v3766 = vadd.f32 %v3573, %v3765
        %v3767 = vpop.f32.mrb[0].mxu0
        %v3768 = vadd.f32 %v3575, %v3767
        %3769 = vmatprep.mubr.bf16.mxu0 %v2676
        %3770 = vmatmul.mubr.bf16.gmra.mrb[0].mxu0 %v2675
        %v3771 = vpop.f32.mrb[0].mxu0
        %v3772 = vadd.f32 %v3579, %v3771
        %v3773 = vpop.f32.mrb[0].mxu0
        %v3774 = vadd.f32 %v3581, %v3773
        %v3775 = vpop.f32.mrb[0].mxu0
        %v3776 = vadd.f32 %v3583, %v3775
        %v3777 = vpop.f32.mrb[0].mxu0
        %v3778 = vadd.f32 %v3585, %v3777
        %3779 = vmatprep.mubr.bf16.mxu0 %v2680
        %3780 = vmatmul.mubr.bf16.gmra.mrb[0].mxu0 %v2679
        %v3781 = vpop.f32.mrb[0].mxu0
        %v3782 = vadd.f32 %v3589, %v3781
        %v3783 = vpop.f32.mrb[0].mxu0
        %v3784 = vadd.f32 %v3591, %v3783
        %v3785 = vpop.f32.mrb[0].mxu0
        %v3786 = vadd.f32 %v3593, %v3785
        %v3787 = vpop.f32.mrb[0].mxu0
        %v3788 = vadd.f32 %v3595, %v3787
        %3789 = vmatprep.mubr.bf16.mxu0 %v2684
        %3790 = vmatmul.mubr.bf16.gmra.mrb[0].mxu0 %v2683
        %v3791 = vpop.f32.mrb[0].mxu0
        %v3792 = vadd.f32 %v3599, %v3791
        %v3793 = vpop.f32.mrb[0].mxu0
        %v3794 = vadd.f32 %v3601, %v3793
        %v3795 = vpop.f32.mrb[0].mxu0
        %v3796 = vadd.f32 %v3603, %v3795
        %v3797 = vpop.f32.mrb[0].mxu0
        %v3798 = vadd.f32 %v3605, %v3797
        %3799 = vmatprep.mubr.bf16.mxu0 %v2688
        %3800 = vmatmul.mubr.bf16.gmra.mrb[0].mxu0 %v2687
        %v3801 = vpop.f32.mrb[0].mxu0
        %v3802 = vadd.f32 %v3609, %v3801
        %v3803 = vpop.f32.mrb[0].mxu0
        %v3804 = vadd.f32 %v3611, %v3803
        %v3805 = vpop.f32.mrb[0].mxu0
        %v3806 = vadd.f32 %v3613, %v3805
        %v3807 = vpop.f32.mrb[0].mxu0
        %v3808 = vadd.f32 %v3615, %v3807
        %3809 = vmatprep.mubr.bf16.mxu0 %v2692
        %3810 = vmatmul.mubr.bf16.gmra.mrb[0].mxu0 %v2691
        %v3811 = vpop.f32.mrb[0].mxu0
        %v3812 = vadd.f32 %v3619, %v3811
        %v3813 = vpop.f32.mrb[0].mxu0
        %v3814 = vadd.f32 %v3621, %v3813
        %v3815 = vpop.f32.mrb[0].mxu0
        %v3816 = vadd.f32 %v3623, %v3815
        %v3817 = vpop.f32.mrb[0].mxu0
        %v3818 = vadd.f32 %v3625, %v3817
        %3819 = vmatprep.mubr.bf16.mxu0 %v2696
        %3820 = vmatmul.mubr.bf16.gmra.mrb[0].mxu0 %v2695
        %v3821 = vpop.f32.mrb[0].mxu0
        %v3822 = vadd.f32 %v3629, %v3821
        %v3823 = vpop.f32.mrb[0].mxu0
        %v3824 = vadd.f32 %v3631, %v3823
        %v3825 = vpop.f32.mrb[0].mxu0
        %v3826 = vadd.f32 %v3633, %v3825
        %v3827 = vpop.f32.mrb[0].mxu0
        %v3828 = vadd.f32 %v3635, %v3827
        %3829 = vmatprep.mubr.bf16.mxu0 %v2700
        %3830 = vmatmul.mubr.bf16.gmra.mrb[0].mxu0 %v2699
        %v3831 = vpop.f32.mrb[0].mxu0
        %v3832 = vadd.f32 %v3639, %v3831
        %v3833 = vpop.f32.mrb[0].mxu0
        %v3834 = vadd.f32 %v3641, %v3833
        %v3835 = vpop.f32.mrb[0].mxu0
        %v3836 = vadd.f32 %v3643, %v3835
        %v3837 = vpop.f32.mrb[0].mxu0
        %v3838 = vadd.f32 %v3645, %v3837
        %3839 = vmatprep.mubr.bf16.mxu0 %v2704
        %3840 = vmatmul.mubr.bf16.gmra.mrb[0].mxu0 %v2703
        %v3841 = vpop.f32.mrb[0].mxu0
        %v3842 = vadd.f32 %v3649, %v3841
        %v3843 = vpop.f32.mrb[0].mxu0
        %v3844 = vadd.f32 %v3651, %v3843
        %v3845 = vpop.f32.mrb[0].mxu0
        %v3846 = vadd.f32 %v3653, %v3845
        %v3847 = vpop.f32.mrb[0].mxu0
        %v3848 = vadd.f32 %v3655, %v3847
        %3849 = vmatprep.mubr.bf16.mxu0 %v2708
        %3850 = vmatmul.mubr.bf16.gmra.mrb[0].mxu0 %v2707
        %v3851 = vpop.f32.mrb[0].mxu0
        %v3852 = vadd.f32 %v3659, %v3851
        %v3853 = vpop.f32.mrb[0].mxu0
        %v3854 = vadd.f32 %v3661, %v3853
        %v3855 = vpop.f32.mrb[0].mxu0
        %v3856 = vadd.f32 %v3663, %v3855
        %v3857 = vpop.f32.mrb[0].mxu0
        %v3858 = vadd.f32 %v3665, %v3857
        %3859 = vmatprep.mubr.bf16.mxu0 %v2712
        %3860 = vmatmul.mubr.bf16.gmra.mrb[0].mxu0 %v2711
        %v3861 = vpop.f32.mrb[0].mxu0
        %v3862 = vadd.f32 %v3669, %v3861
        %v3863 = vpop.f32.mrb[0].mxu0
        %v3864 = vadd.f32 %v3671, %v3863
        %v3865 = vpop.f32.mrb[0].mxu0
        %v3866 = vadd.f32 %v3673, %v3865
        %v3867 = vpop.f32.mrb[0].mxu0
        %v3868 = vadd.f32 %v3675, %v3867
        %3869 = vmatprep.mubr.bf16.mxu0 %v2716
        %3870 = vmatmul.mubr.bf16.gmra.mrb[0].mxu0 %v2715
        %v3871 = vpop.f32.mrb[0].mxu0
        %v3872 = vadd.f32 %v3679, %v3871
        %v3873 = vpop.f32.mrb[0].mxu0
        %v3874 = vadd.f32 %v3681, %v3873
        %v3875 = vpop.f32.mrb[0].mxu0
        %v3876 = vadd.f32 %v3683, %v3875
        %v3877 = vpop.f32.mrb[0].mxu0
        %v3878 = vadd.f32 %v3685, %v3877
        %3879 = vmatprep.mubr.bf16.mxu0 %v2720
        %3880 = vmatmul.mubr.bf16.gmra.mrb[0].mxu0 %v2719
        %v3881 = vpop.f32.mrb[0].mxu0
        %v3882 = vadd.f32 %v3689, %v3881
        %v3883 = vpop.f32.mrb[0].mxu0
        %v3884 = vadd.f32 %v3691, %v3883
        %v3885 = vpop.f32.mrb[0].mxu0
        %v3886 = vadd.f32 %v3693, %v3885
        %v3887 = vpop.f32.mrb[0].mxu0
        %v3888 = vadd.f32 %v3695, %v3887
        %3889 = vmatprep.mubr.bf16.mxu0 %v2724
        %3890 = vmatmul.mubr.bf16.gmra.mrb[0].mxu0 %v2723
        %v3891 = vpop.f32.mrb[0].mxu0
        %v3892 = vadd.f32 %v3699, %v3891
        %v3893 = vpop.f32.mrb[0].mxu0
        %v3894 = vadd.f32 %v3701, %v3893
        %v3895 = vpop.f32.mrb[0].mxu0
        %v3896 = vadd.f32 %v3703, %v3895
        %v3897 = vpop.f32.mrb[0].mxu0
        %v3898 = vadd.f32 %v3705, %v3897
        %3899 = vdwg.mxu0
        %3900 = vmatprep.subr.bf16.mxu0 %v3261
        %3901 = vmatpush1.bf16.msra.mxu0 %v3260
        %3902 = vmatprep.subr.bf16.mxu0 %v3265
        %3903 = vmatpush1.bf16.msra.mxu0 %v3264
        %3904 = vmatprep.subr.bf16.mxu0 %v3269
        %3905 = vmatpush1.bf16.msra.mxu0 %v3268
        %3906 = vmatprep.subr.bf16.mxu0 %v3273
        %3907 = vmatpush1.bf16.msra.mxu0 %v3272
        %3908 = vmatprep.subr.bf16.mxu0 %v3277
        %3909 = vmatpush1.bf16.msra.mxu0 %v3276
        %3910 = vmatprep.subr.bf16.mxu0 %v3281
        %3911 = vmatpush1.bf16.msra.mxu0 %v3280
        %3912 = vmatprep.subr.bf16.mxu0 %v3285
        %3913 = vmatpush1.bf16.msra.mxu0 %v3284
        %3914 = vmatprep.subr.bf16.mxu0 %v3289
        %3915 = vmatpush1.bf16.msra.mxu0 %v3288
        %3916 = vmatprep.subr.bf16.mxu0 %v3293
        %3917 = vmatpush1.bf16.msra.mxu0 %v3292
        %3918 = vmatprep.subr.bf16.mxu0 %v3297
        %3919 = vmatpush1.bf16.msra.mxu0 %v3296
        %3920 = vmatprep.subr.bf16.mxu0 %v3301
        %3921 = vmatpush1.bf16.msra.mxu0 %v3300
        %3922 = vmatprep.subr.bf16.mxu0 %v3305
        %3923 = vmatpush1.bf16.msra.mxu0 %v3304
        %3924 = vmatprep.subr.bf16.mxu0 %v3309
        %3925 = vmatpush1.bf16.msra.mxu0 %v3308
        %3926 = vmatprep.subr.bf16.mxu0 %v3313
        %3927 = vmatpush1.bf16.msra.mxu0 %v3312
        %3928 = vmatprep.subr.bf16.mxu0 %v3317
        %3929 = vmatpush1.bf16.msra.mxu0 %v3316
        %3930 = vmatprep.subr.bf16.mxu0 %v3321
        %3931 = vmatpush1.bf16.msra.mxu0 %v3320
        %3932 = vmatprep.mubr.bf16.mxu0 %v2662
        %3933 = vmatmul.mubr.bf16.gmra.mrb[0].mxu0 %v2661
        %v3934 = vpop.f32.mrb[0].mxu0
        %v3935 = vadd.f32 %v2865, %v3934
        %v3936 = vpop.f32.mrb[0].mxu0
        %v3937 = vadd.f32 %v2869, %v3936
        %v3938 = vpop.f32.mrb[0].mxu0
        %v3939 = vadd.f32 %v2865, %v3938
        %v3940 = vpop.f32.mrb[0].mxu0
        %v3941 = vadd.f32 %v2869, %v3940
        %3942 = vmatprep.mubr.bf16.mxu0 %v2666
        %3943 = vmatmul.mubr.bf16.gmra.mrb[0].mxu0 %v2665
        %v3944 = vpop.f32.mrb[0].mxu0
        %v3945 = vadd.f32 %v2865, %v3944
        %v3946 = vpop.f32.mrb[0].mxu0
        %v3947 = vadd.f32 %v2869, %v3946
        %v3948 = vpop.f32.mrb[0].mxu0
        %v3949 = vadd.f32 %v2865, %v3948
        %v3950 = vpop.f32.mrb[0].mxu0
        %v3951 = vadd.f32 %v2869, %v3950
        %3952 = vmatprep.mubr.bf16.mxu0 %v2670
        %3953 = vmatmul.mubr.bf16.gmra.mrb[0].mxu0 %v2669
        %v3954 = vpop.f32.mrb[0].mxu0
        %v3955 = vadd.f32 %v2865, %v3954
        %v3956 = vpop.f32.mrb[0].mxu0
        %v3957 = vadd.f32 %v2869, %v3956
        %v3958 = vpop.f32.mrb[0].mxu0
        %v3959 = vadd.f32 %v2865, %v3958
        %v3960 = vpop.f32.mrb[0].mxu0
        %v3961 = vadd.f32 %v2869, %v3960
        %3962 = vmatprep.mubr.bf16.mxu0 %v2674
        %3963 = vmatmul.mubr.bf16.gmra.mrb[0].mxu0 %v2673
        %v3964 = vpop.f32.mrb[0].mxu0
        %v3965 = vadd.f32 %v2865, %v3964
        %v3966 = vpop.f32.mrb[0].mxu0
        %v3967 = vadd.f32 %v2869, %v3966
        %v3968 = vpop.f32.mrb[0].mxu0
        %v3969 = vadd.f32 %v2865, %v3968
        %v3970 = vpop.f32.mrb[0].mxu0
        %v3971 = vadd.f32 %v2869, %v3970
        %3972 = vmatprep.mubr.bf16.mxu0 %v2678
        %3973 = vmatmul.mubr.bf16.gmra.mrb[0].mxu0 %v2677
        %v3974 = vpop.f32.mrb[0].mxu0
        %v3975 = vadd.f32 %v2865, %v3974
        %v3976 = vpop.f32.mrb[0].mxu0
        %v3977 = vadd.f32 %v2869, %v3976
        %v3978 = vpop.f32.mrb[0].mxu0
        %v3979 = vadd.f32 %v2865, %v3978
        %v3980 = vpop.f32.mrb[0].mxu0
        %v3981 = vadd.f32 %v2869, %v3980
        %3982 = vmatprep.mubr.bf16.mxu0 %v2682
        %3983 = vmatmul.mubr.bf16.gmra.mrb[0].mxu0 %v2681
        %v3984 = vpop.f32.mrb[0].mxu0
        %v3985 = vadd.f32 %v2865, %v3984
        %v3986 = vpop.f32.mrb[0].mxu0
        %v3987 = vadd.f32 %v2869, %v3986
        %v3988 = vpop.f32.mrb[0].mxu0
        %v3989 = vadd.f32 %v2865, %v3988
        %v3990 = vpop.f32.mrb[0].mxu0
        %v3991 = vadd.f32 %v2869, %v3990
        %3992 = vmatprep.mubr.bf16.mxu0 %v2686
        %3993 = vmatmul.mubr.bf16.gmra.mrb[0].mxu0 %v2685
        %v3994 = vpop.f32.mrb[0].mxu0
        %v3995 = vadd.f32 %v2865, %v3994
        %v3996 = vpop.f32.mrb[0].mxu0
        %v3997 = vadd.f32 %v2869, %v3996
        %v3998 = vpop.f32.mrb[0].mxu0
        %v3999 = vadd.f32 %v2865, %v3998
        %v4000 = vpop.f32.mrb[0].mxu0
        %v4001 = vadd.f32 %v2869, %v4000
        %4002 = vmatprep.mubr.bf16.mxu0 %v2690
        %4003 = vmatmul.mubr.bf16.gmra.mrb[0].mxu0 %v2689
        %v4004 = vpop.f32.mrb[0].mxu0
        %v4005 = vadd.f32 %v2865, %v4004
        %v4006 = vpop.f32.mrb[0].mxu0
        %v4007 = vadd.f32 %v2869, %v4006
        %v4008 = vpop.f32.mrb[0].mxu0
        %v4009 = vadd.f32 %v2865, %v4008
        %v4010 = vpop.f32.mrb[0].mxu0
        %v4011 = vadd.f32 %v2869, %v4010
        %4012 = vmatprep.mubr.bf16.mxu0 %v2694
        %4013 = vmatmul.mubr.bf16.gmra.mrb[0].mxu0 %v2693
        %v4014 = vpop.f32.mrb[0].mxu0
        %v4015 = vadd.f32 %v2865, %v4014
        %v4016 = vpop.f32.mrb[0].mxu0
        %v4017 = vadd.f32 %v2869, %v4016
        %v4018 = vpop.f32.mrb[0].mxu0
        %v4019 = vadd.f32 %v2865, %v4018
        %v4020 = vpop.f32.mrb[0].mxu0
        %v4021 = vadd.f32 %v2869, %v4020
        %4022 = vmatprep.mubr.bf16.mxu0 %v2698
        %4023 = vmatmul.mubr.bf16.gmra.mrb[0].mxu0 %v2697
        %v4024 = vpop.f32.mrb[0].mxu0
        %v4025 = vadd.f32 %v2865, %v4024
        %v4026 = vpop.f32.mrb[0].mxu0
        %v4027 = vadd.f32 %v2869, %v4026
        %v4028 = vpop.f32.mrb[0].mxu0
        %v4029 = vadd.f32 %v2865, %v4028
        %v4030 = vpop.f32.mrb[0].mxu0
        %v4031 = vadd.f32 %v2869, %v4030
        %4032 = vmatprep.mubr.bf16.mxu0 %v2702
        %4033 = vmatmul.mubr.bf16.gmra.mrb[0].mxu0 %v2701
        %v4034 = vpop.f32.mrb[0].mxu0
        %v4035 = vadd.f32 %v2865, %v4034
        %v4036 = vpop.f32.mrb[0].mxu0
        %v4037 = vadd.f32 %v2869, %v4036
        %v4038 = vpop.f32.mrb[0].mxu0
        %v4039 = vadd.f32 %v2865, %v4038
        %v4040 = vpop.f32.mrb[0].mxu0
        %v4041 = vadd.f32 %v2869, %v4040
        %4042 = vmatprep.mubr.bf16.mxu0 %v2706
        %4043 = vmatmul.mubr.bf16.gmra.mrb[0].mxu0 %v2705
        %v4044 = vpop.f32.mrb[0].mxu0
        %v4045 = vadd.f32 %v2865, %v4044
        %v4046 = vpop.f32.mrb[0].mxu0
        %v4047 = vadd.f32 %v2869, %v4046
        %v4048 = vpop.f32.mrb[0].mxu0
        %v4049 = vadd.f32 %v2865, %v4048
        %v4050 = vpop.f32.mrb[0].mxu0
        %v4051 = vadd.f32 %v2869, %v4050
        %4052 = vmatprep.mubr.bf16.mxu0 %v2710
        %4053 = vmatmul.mubr.bf16.gmra.mrb[0].mxu0 %v2709
        %v4054 = vpop.f32.mrb[0].mxu0
        %v4055 = vadd.f32 %v2865, %v4054
        %v4056 = vpop.f32.mrb[0].mxu0
        %v4057 = vadd.f32 %v2869, %v4056
        %v4058 = vpop.f32.mrb[0].mxu0
        %v4059 = vadd.f32 %v2865, %v4058
        %v4060 = vpop.f32.mrb[0].mxu0
        %v4061 = vadd.f32 %v2869, %v4060
        %4062 = vmatprep.mubr.bf16.mxu0 %v2714
        %4063 = vmatmul.mubr.bf16.gmra.mrb[0].mxu0 %v2713
        %v4064 = vpop.f32.mrb[0].mxu0
        %v4065 = vadd.f32 %v2865, %v4064
        %v4066 = vpop.f32.mrb[0].mxu0
        %v4067 = vadd.f32 %v2869, %v4066
        %v4068 = vpop.f32.mrb[0].mxu0
        %v4069 = vadd.f32 %v2865, %v4068
        %v4070 = vpop.f32.mrb[0].mxu0
        %v4071 = vadd.f32 %v2869, %v4070
        %4072 = vmatprep.mubr.bf16.mxu0 %v2718
        %4073 = vmatmul.mubr.bf16.gmra.mrb[0].mxu0 %v2717
        %v4074 = vpop.f32.mrb[0].mxu0
        %v4075 = vadd.f32 %v2865, %v4074
        %v4076 = vpop.f32.mrb[0].mxu0
        %v4077 = vadd.f32 %v2869, %v4076
        %v4078 = vpop.f32.mrb[0].mxu0
        %v4079 = vadd.f32 %v2865, %v4078
        %v4080 = vpop.f32.mrb[0].mxu0
        %v4081 = vadd.f32 %v2869, %v4080
        %4082 = vmatprep.mubr.bf16.mxu0 %v2722
        %4083 = vmatmul.mubr.bf16.gmra.mrb[0].mxu0 %v2721
        %v4084 = vpop.f32.mrb[0].mxu0
        %v4085 = vadd.f32 %v2865, %v4084
        %v4086 = vpop.f32.mrb[0].mxu0
        %v4087 = vadd.f32 %v2869, %v4086
        %v4088 = vpop.f32.mrb[0].mxu0
        %v4089 = vadd.f32 %v2865, %v4088
        %v4090 = vpop.f32.mrb[0].mxu0
        %v4091 = vadd.f32 %v2869, %v4090
        %4092 = vdwg.mxu0
        %4093 = vmatprep.subr.bf16.mxu0 %v3325
        %4094 = vmatpush1.bf16.msra.mxu0 %v3324
        %4095 = vmatprep.subr.bf16.mxu0 %v3329
        %4096 = vmatpush1.bf16.msra.mxu0 %v3328
        %4097 = vmatprep.subr.bf16.mxu0 %v3333
        %4098 = vmatpush1.bf16.msra.mxu0 %v3332
        %4099 = vmatprep.subr.bf16.mxu0 %v3337
        %4100 = vmatpush1.bf16.msra.mxu0 %v3336
        %4101 = vmatprep.subr.bf16.mxu0 %v3341
        %4102 = vmatpush1.bf16.msra.mxu0 %v3340
        %4103 = vmatprep.subr.bf16.mxu0 %v3345
        %4104 = vmatpush1.bf16.msra.mxu0 %v3344
        %4105 = vmatprep.subr.bf16.mxu0 %v3349
        %4106 = vmatpush1.bf16.msra.mxu0 %v3348
        %4107 = vmatprep.subr.bf16.mxu0 %v3353
        %4108 = vmatpush1.bf16.msra.mxu0 %v3352
        %4109 = vmatprep.subr.bf16.mxu0 %v3357
        %4110 = vmatpush1.bf16.msra.mxu0 %v3356
        %4111 = vmatprep.subr.bf16.mxu0 %v3361
        %4112 = vmatpush1.bf16.msra.mxu0 %v3360
        %4113 = vmatprep.subr.bf16.mxu0 %v3365
        %4114 = vmatpush1.bf16.msra.mxu0 %v3364
        %4115 = vmatprep.subr.bf16.mxu0 %v3369
        %4116 = vmatpush1.bf16.msra.mxu0 %v3368
        %4117 = vmatprep.subr.bf16.mxu0 %v3373
        %4118 = vmatpush1.bf16.msra.mxu0 %v3372
        %4119 = vmatprep.subr.bf16.mxu0 %v3377
        %4120 = vmatpush1.bf16.msra.mxu0 %v3376
        %4121 = vmatprep.subr.bf16.mxu0 %v3381
        %4122 = vmatpush1.bf16.msra.mxu0 %v3380
        %4123 = vmatprep.subr.bf16.mxu0 %v3385
        %4124 = vmatpush1.bf16.msra.mxu0 %v3384
        %4125 = vmatprep.mubr.bf16.mxu0 %v2664
        %4126 = vmatmul.mubr.bf16.gmra.mrb[0].mxu0 %v2663
        %v4127 = vpop.f32.mrb[0].mxu0
        %v4128 = vadd.f32 %v3935, %v4127
        %v4129 = vpop.f32.mrb[0].mxu0
        %v4130 = vadd.f32 %v3937, %v4129
        %v4131 = vpop.f32.mrb[0].mxu0
        %v4132 = vadd.f32 %v3939, %v4131
        %v4133 = vpop.f32.mrb[0].mxu0
        %v4134 = vadd.f32 %v3941, %v4133
        %4135 = vmatprep.mubr.bf16.mxu0 %v2668
        %4136 = vmatmul.mubr.bf16.gmra.mrb[0].mxu0 %v2667
        %v4137 = vpop.f32.mrb[0].mxu0
        %v4138 = vadd.f32 %v3945, %v4137
        %v4139 = vpop.f32.mrb[0].mxu0
        %v4140 = vadd.f32 %v3947, %v4139
        %v4141 = vpop.f32.mrb[0].mxu0
        %v4142 = vadd.f32 %v3949, %v4141
        %v4143 = vpop.f32.mrb[0].mxu0
        %v4144 = vadd.f32 %v3951, %v4143
        %4145 = vmatprep.mubr.bf16.mxu0 %v2672
        %4146 = vmatmul.mubr.bf16.gmra.mrb[0].mxu0 %v2671
        %v4147 = vpop.f32.mrb[0].mxu0
        %v4148 = vadd.f32 %v3955, %v4147
        %v4149 = vpop.f32.mrb[0].mxu0
        %v4150 = vadd.f32 %v3957, %v4149
        %v4151 = vpop.f32.mrb[0].mxu0
        %v4152 = vadd.f32 %v3959, %v4151
        %v4153 = vpop.f32.mrb[0].mxu0
        %v4154 = vadd.f32 %v3961, %v4153
        %4155 = vmatprep.mubr.bf16.mxu0 %v2676
        %4156 = vmatmul.mubr.bf16.gmra.mrb[0].mxu0 %v2675
        %v4157 = vpop.f32.mrb[0].mxu0
        %v4158 = vadd.f32 %v3965, %v4157
        %v4159 = vpop.f32.mrb[0].mxu0
        %v4160 = vadd.f32 %v3967, %v4159
        %v4161 = vpop.f32.mrb[0].mxu0
        %v4162 = vadd.f32 %v3969, %v4161
        %v4163 = vpop.f32.mrb[0].mxu0
        %v4164 = vadd.f32 %v3971, %v4163
        %4165 = vmatprep.mubr.bf16.mxu0 %v2680
        %4166 = vmatmul.mubr.bf16.gmra.mrb[0].mxu0 %v2679
        %v4167 = vpop.f32.mrb[0].mxu0
        %v4168 = vadd.f32 %v3975, %v4167
        %v4169 = vpop.f32.mrb[0].mxu0
        %v4170 = vadd.f32 %v3977, %v4169
        %v4171 = vpop.f32.mrb[0].mxu0
        %v4172 = vadd.f32 %v3979, %v4171
        %v4173 = vpop.f32.mrb[0].mxu0
        %v4174 = vadd.f32 %v3981, %v4173
        %4175 = vmatprep.mubr.bf16.mxu0 %v2684
        %4176 = vmatmul.mubr.bf16.gmra.mrb[0].mxu0 %v2683
        %v4177 = vpop.f32.mrb[0].mxu0
        %v4178 = vadd.f32 %v3985, %v4177
        %v4179 = vpop.f32.mrb[0].mxu0
        %v4180 = vadd.f32 %v3987, %v4179
        %v4181 = vpop.f32.mrb[0].mxu0
        %v4182 = vadd.f32 %v3989, %v4181
        %v4183 = vpop.f32.mrb[0].mxu0
        %v4184 = vadd.f32 %v3991, %v4183
        %4185 = vmatprep.mubr.bf16.mxu0 %v2688
        %4186 = vmatmul.mubr.bf16.gmra.mrb[0].mxu0 %v2687
        %v4187 = vpop.f32.mrb[0].mxu0
        %v4188 = vadd.f32 %v3995, %v4187
        %v4189 = vpop.f32.mrb[0].mxu0
        %v4190 = vadd.f32 %v3997, %v4189
        %v4191 = vpop.f32.mrb[0].mxu0
        %v4192 = vadd.f32 %v3999, %v4191
        %v4193 = vpop.f32.mrb[0].mxu0
        %v4194 = vadd.f32 %v4001, %v4193
        %4195 = vmatprep.mubr.bf16.mxu0 %v2692
        %4196 = vmatmul.mubr.bf16.gmra.mrb[0].mxu0 %v2691
        %v4197 = vpop.f32.mrb[0].mxu0
        %v4198 = vadd.f32 %v4005, %v4197
        %v4199 = vpop.f32.mrb[0].mxu0
        %v4200 = vadd.f32 %v4007, %v4199
        %v4201 = vpop.f32.mrb[0].mxu0
        %v4202 = vadd.f32 %v4009, %v4201
        %v4203 = vpop.f32.mrb[0].mxu0
        %v4204 = vadd.f32 %v4011, %v4203
        %4205 = vmatprep.mubr.bf16.mxu0 %v2696
        %4206 = vmatmul.mubr.bf16.gmra.mrb[0].mxu0 %v2695
        %v4207 = vpop.f32.mrb[0].mxu0
        %v4208 = vadd.f32 %v4015, %v4207
        %v4209 = vpop.f32.mrb[0].mxu0
        %v4210 = vadd.f32 %v4017, %v4209
        %v4211 = vpop.f32.mrb[0].mxu0
        %v4212 = vadd.f32 %v4019, %v4211
        %v4213 = vpop.f32.mrb[0].mxu0
        %v4214 = vadd.f32 %v4021, %v4213
        %4215 = vmatprep.mubr.bf16.mxu0 %v2700
        %4216 = vmatmul.mubr.bf16.gmra.mrb[0].mxu0 %v2699
        %v4217 = vpop.f32.mrb[0].mxu0
        %v4218 = vadd.f32 %v4025, %v4217
        %v4219 = vpop.f32.mrb[0].mxu0
        %v4220 = vadd.f32 %v4027, %v4219
        %v4221 = vpop.f32.mrb[0].mxu0
        %v4222 = vadd.f32 %v4029, %v4221
        %v4223 = vpop.f32.mrb[0].mxu0
        %v4224 = vadd.f32 %v4031, %v4223
        %4225 = vmatprep.mubr.bf16.mxu0 %v2704
        %4226 = vmatmul.mubr.bf16.gmra.mrb[0].mxu0 %v2703
        %v4227 = vpop.f32.mrb[0].mxu0
        %v4228 = vadd.f32 %v4035, %v4227
        %v4229 = vpop.f32.mrb[0].mxu0
        %v4230 = vadd.f32 %v4037, %v4229
        %v4231 = vpop.f32.mrb[0].mxu0
        %v4232 = vadd.f32 %v4039, %v4231
        %v4233 = vpop.f32.mrb[0].mxu0
        %v4234 = vadd.f32 %v4041, %v4233
        %4235 = vmatprep.mubr.bf16.mxu0 %v2708
        %4236 = vmatmul.mubr.bf16.gmra.mrb[0].mxu0 %v2707
        %v4237 = vpop.f32.mrb[0].mxu0
        %v4238 = vadd.f32 %v4045, %v4237
        %v4239 = vpop.f32.mrb[0].mxu0
        %v4240 = vadd.f32 %v4047, %v4239
        %v4241 = vpop.f32.mrb[0].mxu0
        %v4242 = vadd.f32 %v4049, %v4241
        %v4243 = vpop.f32.mrb[0].mxu0
        %v4244 = vadd.f32 %v4051, %v4243
        %4245 = vmatprep.mubr.bf16.mxu0 %v2712
        %4246 = vmatmul.mubr.bf16.gmra.mrb[0].mxu0 %v2711
        %v4247 = vpop.f32.mrb[0].mxu0
        %v4248 = vadd.f32 %v4055, %v4247
        %v4249 = vpop.f32.mrb[0].mxu0
        %v4250 = vadd.f32 %v4057, %v4249
        %v4251 = vpop.f32.mrb[0].mxu0
        %v4252 = vadd.f32 %v4059, %v4251
        %v4253 = vpop.f32.mrb[0].mxu0
        %v4254 = vadd.f32 %v4061, %v4253
        %4255 = vmatprep.mubr.bf16.mxu0 %v2716
        %4256 = vmatmul.mubr.bf16.gmra.mrb[0].mxu0 %v2715
        %v4257 = vpop.f32.mrb[0].mxu0
        %v4258 = vadd.f32 %v4065, %v4257
        %v4259 = vpop.f32.mrb[0].mxu0
        %v4260 = vadd.f32 %v4067, %v4259
        %v4261 = vpop.f32.mrb[0].mxu0
        %v4262 = vadd.f32 %v4069, %v4261
        %v4263 = vpop.f32.mrb[0].mxu0
        %v4264 = vadd.f32 %v4071, %v4263
        %4265 = vmatprep.mubr.bf16.mxu0 %v2720
        %4266 = vmatmul.mubr.bf16.gmra.mrb[0].mxu0 %v2719
        %v4267 = vpop.f32.mrb[0].mxu0
        %v4268 = vadd.f32 %v4075, %v4267
        %v4269 = vpop.f32.mrb[0].mxu0
        %v4270 = vadd.f32 %v4077, %v4269
        %v4271 = vpop.f32.mrb[0].mxu0
        %v4272 = vadd.f32 %v4079, %v4271
        %v4273 = vpop.f32.mrb[0].mxu0
        %v4274 = vadd.f32 %v4081, %v4273
        %4275 = vmatprep.mubr.bf16.mxu0 %v2724
        %4276 = vmatmul.mubr.bf16.gmra.mrb[0].mxu0 %v2723
        %v4277 = vpop.f32.mrb[0].mxu0
        %v4278 = vadd.f32 %v4085, %v4277
        %v4279 = vpop.f32.mrb[0].mxu0
        %v4280 = vadd.f32 %v4087, %v4279
        %v4281 = vpop.f32.mrb[0].mxu0
        %v4282 = vadd.f32 %v4089, %v4281
        %v4283 = vpop.f32.mrb[0].mxu0
        %v4284 = vadd.f32 %v4091, %v4283
        %4285 = vdwg.mxu0
        %v4286 = vadd.f32 %v3742, %v3744
        %v4287 = vadd.f32 %v4286, %v4128
        %v4288 = vadd.f32 %v4287, %v4130
        %4289 = vadd.xlane.f32.xlu0 %v4288
        %v4290 = vpop.xlane.xlu0 %4289
        %v4291 = vadd.f32 %v3746, %v3748
        %v4292 = vadd.f32 %v4291, %v4132
        %v4293 = vadd.f32 %v4292, %v4134
        %4294 = vadd.xlane.f32.xlu0 %v4293
        %v4295 = vpop.xlane.xlu0 %4294
        %v4296 = vadd.f32 %v3752, %v3754
        %v4297 = vadd.f32 %v4296, %v4138
        %v4298 = vadd.f32 %v4297, %v4140
        %4299 = vadd.xlane.f32.xlu0 %v4298
        %v4300 = vpop.xlane.xlu0 %4299
        %v4301 = vadd.f32 %v3756, %v3758
        %v4302 = vadd.f32 %v4301, %v4142
        %v4303 = vadd.f32 %v4302, %v4144
        %4304 = vadd.xlane.f32.xlu0 %v4303
        %v4305 = vpop.xlane.xlu0 %4304
        %v4306 = vadd.f32 %v3762, %v3764
        %v4307 = vadd.f32 %v4306, %v4148
        %v4308 = vadd.f32 %v4307, %v4150
        %4309 = vadd.xlane.f32.xlu0 %v4308
        %v4310 = vpop.xlane.xlu0 %4309
        %v4311 = vadd.f32 %v3766, %v3768
        %v4312 = vadd.f32 %v4311, %v4152
        %v4313 = vadd.f32 %v4312, %v4154
        %4314 = vadd.xlane.f32.xlu0 %v4313
        %v4315 = vpop.xlane.xlu0 %4314
        %v4316 = vadd.f32 %v3772, %v3774
        %v4317 = vadd.f32 %v4316, %v4158
        %v4318 = vadd.f32 %v4317, %v4160
        %4319 = vadd.xlane.f32.xlu0 %v4318
        %v4320 = vpop.xlane.xlu0 %4319
        %v4321 = vadd.f32 %v3776, %v3778
        %v4322 = vadd.f32 %v4321, %v4162
        %v4323 = vadd.f32 %v4322, %v4164
        %4324 = vadd.xlane.f32.xlu0 %v4323
        %v4325 = vpop.xlane.xlu0 %4324
        %v4326 = vadd.f32 %v3782, %v3784
        %v4327 = vadd.f32 %v4326, %v4168
        %v4328 = vadd.f32 %v4327, %v4170
        %4329 = vadd.xlane.f32.xlu0 %v4328
        %v4330 = vpop.xlane.xlu0 %4329
        %v4331 = vadd.f32 %v3786, %v3788
        %v4332 = vadd.f32 %v4331, %v4172
        %v4333 = vadd.f32 %v4332, %v4174
        %4334 = vadd.xlane.f32.xlu0 %v4333
        %v4335 = vpop.xlane.xlu0 %4334
        %v4336 = vadd.f32 %v3792, %v3794
        %v4337 = vadd.f32 %v4336, %v4178
        %v4338 = vadd.f32 %v4337, %v4180
        %4339 = vadd.xlane.f32.xlu0 %v4338
        %v4340 = vpop.xlane.xlu0 %4339
        %v4341 = vadd.f32 %v3796, %v3798
        %v4342 = vadd.f32 %v4341, %v4182
        %v4343 = vadd.f32 %v4342, %v4184
        %4344 = vadd.xlane.f32.xlu0 %v4343
        %v4345 = vpop.xlane.xlu0 %4344
        %v4346 = vadd.f32 %v3802, %v3804
        %v4347 = vadd.f32 %v4346, %v4188
        %v4348 = vadd.f32 %v4347, %v4190
        %4349 = vadd.xlane.f32.xlu0 %v4348
        %v4350 = vpop.xlane.xlu0 %4349
        %v4351 = vadd.f32 %v3806, %v3808
        %v4352 = vadd.f32 %v4351, %v4192
        %v4353 = vadd.f32 %v4352, %v4194
        %4354 = vadd.xlane.f32.xlu0 %v4353
        %v4355 = vpop.xlane.xlu0 %4354
        %v4356 = vadd.f32 %v3812, %v3814
        %v4357 = vadd.f32 %v4356, %v4198
        %v4358 = vadd.f32 %v4357, %v4200
        %4359 = vadd.xlane.f32.xlu0 %v4358
        %v4360 = vpop.xlane.xlu0 %4359
        %v4361 = vadd.f32 %v3816, %v3818
        %v4362 = vadd.f32 %v4361, %v4202
        %v4363 = vadd.f32 %v4362, %v4204
        %4364 = vadd.xlane.f32.xlu0 %v4363
        %v4365 = vpop.xlane.xlu0 %4364
        %v4366 = vadd.f32 %v3822, %v3824
        %v4367 = vadd.f32 %v4366, %v4208
        %v4368 = vadd.f32 %v4367, %v4210
        %4369 = vadd.xlane.f32.xlu0 %v4368
        %v4370 = vpop.xlane.xlu0 %4369
        %v4371 = vadd.f32 %v3826, %v3828
        %v4372 = vadd.f32 %v4371, %v4212
        %v4373 = vadd.f32 %v4372, %v4214
        %4374 = vadd.xlane.f32.xlu0 %v4373
        %v4375 = vpop.xlane.xlu0 %4374
        %v4376 = vadd.f32 %v3832, %v3834
        %v4377 = vadd.f32 %v4376, %v4218
        %v4378 = vadd.f32 %v4377, %v4220
        %4379 = vadd.xlane.f32.xlu0 %v4378
        %v4380 = vpop.xlane.xlu0 %4379
        %v4381 = vadd.f32 %v3836, %v3838
        %v4382 = vadd.f32 %v4381, %v4222
        %v4383 = vadd.f32 %v4382, %v4224
        %4384 = vadd.xlane.f32.xlu0 %v4383
        %v4385 = vpop.xlane.xlu0 %4384
        %v4386 = vadd.f32 %v3842, %v3844
        %v4387 = vadd.f32 %v4386, %v4228
        %v4388 = vadd.f32 %v4387, %v4230
        %4389 = vadd.xlane.f32.xlu0 %v4388
        %v4390 = vpop.xlane.xlu0 %4389
        %v4391 = vadd.f32 %v3846, %v3848
        %v4392 = vadd.f32 %v4391, %v4232
        %v4393 = vadd.f32 %v4392, %v4234
        %4394 = vadd.xlane.f32.xlu0 %v4393
        %v4395 = vpop.xlane.xlu0 %4394
        %v4396 = vadd.f32 %v3852, %v3854
        %v4397 = vadd.f32 %v4396, %v4238
        %v4398 = vadd.f32 %v4397, %v4240
        %4399 = vadd.xlane.f32.xlu0 %v4398
        %v4400 = vpop.xlane.xlu0 %4399
        %v4401 = vadd.f32 %v3856, %v3858
        %v4402 = vadd.f32 %v4401, %v4242
        %v4403 = vadd.f32 %v4402, %v4244
        %4404 = vadd.xlane.f32.xlu0 %v4403
        %v4405 = vpop.xlane.xlu0 %4404
        %v4406 = vadd.f32 %v3862, %v3864
        %v4407 = vadd.f32 %v4406, %v4248
        %v4408 = vadd.f32 %v4407, %v4250
        %4409 = vadd.xlane.f32.xlu0 %v4408
        %v4410 = vpop.xlane.xlu0 %4409
        %v4411 = vadd.f32 %v3866, %v3868
        %v4412 = vadd.f32 %v4411, %v4252
        %v4413 = vadd.f32 %v4412, %v4254
        %4414 = vadd.xlane.f32.xlu0 %v4413
        %v4415 = vpop.xlane.xlu0 %4414
        %v4416 = vadd.f32 %v3872, %v3874
        %v4417 = vadd.f32 %v4416, %v4258
        %v4418 = vadd.f32 %v4417, %v4260
        %4419 = vadd.xlane.f32.xlu0 %v4418
        %v4420 = vpop.xlane.xlu0 %4419
        %v4421 = vadd.f32 %v3876, %v3878
        %v4422 = vadd.f32 %v4421, %v4262
        %v4423 = vadd.f32 %v4422, %v4264
        %4424 = vadd.xlane.f32.xlu0 %v4423
        %v4425 = vpop.xlane.xlu0 %4424
        %v4426 = vadd.f32 %v3882, %v3884
        %v4427 = vadd.f32 %v4426, %v4268
        %v4428 = vadd.f32 %v4427, %v4270
        %4429 = vadd.xlane.f32.xlu0 %v4428
        %v4430 = vpop.xlane.xlu0 %4429
        %v4431 = vadd.f32 %v3886, %v3888
        %v4432 = vadd.f32 %v4431, %v4272
        %v4433 = vadd.f32 %v4432, %v4274
        %4434 = vadd.xlane.f32.xlu0 %v4433
        %v4435 = vpop.xlane.xlu0 %4434
        %v4436 = vadd.f32 %v3892, %v3894
        %v4437 = vadd.f32 %v4436, %v4278
        %v4438 = vadd.f32 %v4437, %v4280
        %4439 = vadd.xlane.f32.xlu0 %v4438
        %v4440 = vpop.xlane.xlu0 %4439
        %v4441 = vadd.f32 %v3896, %v3898
        %v4442 = vadd.f32 %v4441, %v4282
        %v4443 = vadd.f32 %v4442, %v4284
        %4444 = vadd.xlane.f32.xlu0 %v4443
        %v4445 = vpop.xlane.xlu0 %4444
        %v4446 = vrcp.pop 512.0
        %v4447 = vmul.f32 %v4290, %v4446
        %v4448 = vmul.f32 %v4295, %v4446
        %v4449 = vmul.f32 %v4300, %v4446
        %v4450 = vmul.f32 %v4305, %v4446
        %v4451 = vmul.f32 %v4310, %v4446
        %v4452 = vmul.f32 %v4315, %v4446
        %v4453 = vmul.f32 %v4320, %v4446
        %v4454 = vmul.f32 %v4325, %v4446
        %v4455 = vmul.f32 %v4330, %v4446
        %v4456 = vmul.f32 %v4335, %v4446
        %v4457 = vmul.f32 %v4340, %v4446
        %v4458 = vmul.f32 %v4345, %v4446
        %v4459 = vmul.f32 %v4350, %v4446
        %v4460 = vmul.f32 %v4355, %v4446
        %v4461 = vmul.f32 %v4360, %v4446
        %v4462 = vmul.f32 %v4365, %v4446
        %v4463 = vmul.f32 %v4370, %v4446
        %v4464 = vmul.f32 %v4375, %v4446
        %v4465 = vmul.f32 %v4380, %v4446
        %v4466 = vmul.f32 %v4385, %v4446
        %v4467 = vmul.f32 %v4390, %v4446
        %v4468 = vmul.f32 %v4395, %v4446
        %v4469 = vmul.f32 %v4400, %v4446
        %v4470 = vmul.f32 %v4405, %v4446
        %v4471 = vmul.f32 %v4410, %v4446
        %v4472 = vmul.f32 %v4415, %v4446
        %v4473 = vmul.f32 %v4420, %v4446
        %v4474 = vmul.f32 %v4425, %v4446
        %v4475 = vmul.f32 %v4430, %v4446
        %v4476 = vmul.f32 %v4435, %v4446
        %v4477 = vmul.f32 %v4440, %v4446
        %v4478 = vmul.f32 %v4445, %v4446
        %v4479 = vsub.f32 %v3742, %v4447
        %v4480 = vsub.f32 %v3744, %v4447
        %v4481 = vsub.f32 %v4128, %v4447
        %v4482 = vsub.f32 %v4130, %v4447
        %v4483 = vsub.f32 %v3746, %v4448
        %v4484 = vsub.f32 %v3748, %v4448
        %v4485 = vsub.f32 %v4132, %v4448
        %v4486 = vsub.f32 %v4134, %v4448
        %v4487 = vsub.f32 %v3752, %v4449
        %v4488 = vsub.f32 %v3754, %v4449
        %v4489 = vsub.f32 %v4138, %v4449
        %v4490 = vsub.f32 %v4140, %v4449
        %v4491 = vsub.f32 %v3756, %v4450
        %v4492 = vsub.f32 %v3758, %v4450
        %v4493 = vsub.f32 %v4142, %v4450
        %v4494 = vsub.f32 %v4144, %v4450
        %v4495 = vsub.f32 %v3762, %v4451
        %v4496 = vsub.f32 %v3764, %v4451
        %v4497 = vsub.f32 %v4148, %v4451
        %v4498 = vsub.f32 %v4150, %v4451
        %v4499 = vsub.f32 %v3766, %v4452
        %v4500 = vsub.f32 %v3768, %v4452
        %v4501 = vsub.f32 %v4152, %v4452
        %v4502 = vsub.f32 %v4154, %v4452
        %v4503 = vsub.f32 %v3772, %v4453
        %v4504 = vsub.f32 %v3774, %v4453
        %v4505 = vsub.f32 %v4158, %v4453
        %v4506 = vsub.f32 %v4160, %v4453
        %v4507 = vsub.f32 %v3776, %v4454
        %v4508 = vsub.f32 %v3778, %v4454
        %v4509 = vsub.f32 %v4162, %v4454
        %v4510 = vsub.f32 %v4164, %v4454
        %v4511 = vsub.f32 %v3782, %v4455
        %v4512 = vsub.f32 %v3784, %v4455
        %v4513 = vsub.f32 %v4168, %v4455
        %v4514 = vsub.f32 %v4170, %v4455
        %v4515 = vsub.f32 %v3786, %v4456
        %v4516 = vsub.f32 %v3788, %v4456
        %v4517 = vsub.f32 %v4172, %v4456
        %v4518 = vsub.f32 %v4174, %v4456
        %v4519 = vsub.f32 %v3792, %v4457
        %v4520 = vsub.f32 %v3794, %v4457
        %v4521 = vsub.f32 %v4178, %v4457
        %v4522 = vsub.f32 %v4180, %v4457
        %v4523 = vsub.f32 %v3796, %v4458
        %v4524 = vsub.f32 %v3798, %v4458
        %v4525 = vsub.f32 %v4182, %v4458
        %v4526 = vsub.f32 %v4184, %v4458
        %v4527 = vsub.f32 %v3802, %v4459
        %v4528 = vsub.f32 %v3804, %v4459
        %v4529 = vsub.f32 %v4188, %v4459
        %v4530 = vsub.f32 %v4190, %v4459
        %v4531 = vsub.f32 %v3806, %v4460
        %v4532 = vsub.f32 %v3808, %v4460
        %v4533 = vsub.f32 %v4192, %v4460
        %v4534 = vsub.f32 %v4194, %v4460
        %v4535 = vsub.f32 %v3812, %v4461
        %v4536 = vsub.f32 %v3814, %v4461
        %v4537 = vsub.f32 %v4198, %v4461
        %v4538 = vsub.f32 %v4200, %v4461
        %v4539 = vsub.f32 %v3816, %v4462
        %v4540 = vsub.f32 %v3818, %v4462
        %v4541 = vsub.f32 %v4202, %v4462
        %v4542 = vsub.f32 %v4204, %v4462
        %v4543 = vsub.f32 %v3822, %v4463
        %v4544 = vsub.f32 %v3824, %v4463
        %v4545 = vsub.f32 %v4208, %v4463
        %v4546 = vsub.f32 %v4210, %v4463
        %v4547 = vsub.f32 %v3826, %v4464
        %v4548 = vsub.f32 %v3828, %v4464
        %v4549 = vsub.f32 %v4212, %v4464
        %v4550 = vsub.f32 %v4214, %v4464
        %v4551 = vsub.f32 %v3832, %v4465
        %v4552 = vsub.f32 %v3834, %v4465
        %v4553 = vsub.f32 %v4218, %v4465
        %v4554 = vsub.f32 %v4220, %v4465
        %v4555 = vsub.f32 %v3836, %v4466
        %v4556 = vsub.f32 %v3838, %v4466
        %v4557 = vsub.f32 %v4222, %v4466
        %v4558 = vsub.f32 %v4224, %v4466
        %v4559 = vsub.f32 %v3842, %v4467
        %v4560 = vsub.f32 %v3844, %v4467
        %v4561 = vsub.f32 %v4228, %v4467
        %v4562 = vsub.f32 %v4230, %v4467
        %v4563 = vsub.f32 %v3846, %v4468
        %v4564 = vsub.f32 %v3848, %v4468
        %v4565 = vsub.f32 %v4232, %v4468
        %v4566 = vsub.f32 %v4234, %v4468
        %v4567 = vsub.f32 %v3852, %v4469
        %v4568 = vsub.f32 %v3854, %v4469
        %v4569 = vsub.f32 %v4238, %v4469
        %v4570 = vsub.f32 %v4240, %v4469
        %v4571 = vsub.f32 %v3856, %v4470
        %v4572 = vsub.f32 %v3858, %v4470
        %v4573 = vsub.f32 %v4242, %v4470
        %v4574 = vsub.f32 %v4244, %v4470
        %v4575 = vsub.f32 %v3862, %v4471
        %v4576 = vsub.f32 %v3864, %v4471
        %v4577 = vsub.f32 %v4248, %v4471
        %v4578 = vsub.f32 %v4250, %v4471
        %v4579 = vsub.f32 %v3866, %v4472
        %v4580 = vsub.f32 %v3868, %v4472
        %v4581 = vsub.f32 %v4252, %v4472
        %v4582 = vsub.f32 %v4254, %v4472
        %v4583 = vsub.f32 %v3872, %v4473
        %v4584 = vsub.f32 %v3874, %v4473
        %v4585 = vsub.f32 %v4258, %v4473
        %v4586 = vsub.f32 %v4260, %v4473
        %v4587 = vsub.f32 %v3876, %v4474
        %v4588 = vsub.f32 %v3878, %v4474
        %v4589 = vsub.f32 %v4262, %v4474
        %v4590 = vsub.f32 %v4264, %v4474
        %v4591 = vsub.f32 %v3882, %v4475
        %v4592 = vsub.f32 %v3884, %v4475
        %v4593 = vsub.f32 %v4268, %v4475
        %v4594 = vsub.f32 %v4270, %v4475
        %v4595 = vsub.f32 %v3886, %v4476
        %v4596 = vsub.f32 %v3888, %v4476
        %v4597 = vsub.f32 %v4272, %v4476
        %v4598 = vsub.f32 %v4274, %v4476
        %v4599 = vsub.f32 %v3892, %v4477
        %v4600 = vsub.f32 %v3894, %v4477
        %v4601 = vsub.f32 %v4278, %v4477
        %v4602 = vsub.f32 %v4280, %v4477
        %v4603 = vsub.f32 %v3896, %v4478
        %v4604 = vsub.f32 %v3898, %v4478
        %v4605 = vsub.f32 %v4282, %v4478
        %v4606 = vsub.f32 %v4284, %v4478
        %v4607 = vmul.f32 %v4479, %v4479
        %v4608 = vmul.f32 %v4480, %v4480
        %v4609 = vmul.f32 %v4481, %v4481
        %v4610 = vmul.f32 %v4482, %v4482
        %v4611 = vmul.f32 %v4483, %v4483
        %v4612 = vmul.f32 %v4484, %v4484
        %v4613 = vmul.f32 %v4485, %v4485
        %v4614 = vmul.f32 %v4486, %v4486
        %v4615 = vmul.f32 %v4487, %v4487
        %v4616 = vmul.f32 %v4488, %v4488
        %v4617 = vmul.f32 %v4489, %v4489
        %v4618 = vmul.f32 %v4490, %v4490
        %v4619 = vmul.f32 %v4491, %v4491
        %v4620 = vmul.f32 %v4492, %v4492
        %v4621 = vmul.f32 %v4493, %v4493
        %v4622 = vmul.f32 %v4494, %v4494
        %v4623 = vmul.f32 %v4495, %v4495
        %v4624 = vmul.f32 %v4496, %v4496
        %v4625 = vmul.f32 %v4497, %v4497
        %v4626 = vmul.f32 %v4498, %v4498
        %v4627 = vmul.f32 %v4499, %v4499
        %v4628 = vmul.f32 %v4500, %v4500
        %v4629 = vmul.f32 %v4501, %v4501
        %v4630 = vmul.f32 %v4502, %v4502
        %v4631 = vmul.f32 %v4503, %v4503
        %v4632 = vmul.f32 %v4504, %v4504
        %v4633 = vmul.f32 %v4505, %v4505
        %v4634 = vmul.f32 %v4506, %v4506
        %v4635 = vmul.f32 %v4507, %v4507
        %v4636 = vmul.f32 %v4508, %v4508
        %v4637 = vmul.f32 %v4509, %v4509
        %v4638 = vmul.f32 %v4510, %v4510
        %v4639 = vmul.f32 %v4511, %v4511
        %v4640 = vmul.f32 %v4512, %v4512
        %v4641 = vmul.f32 %v4513, %v4513
        %v4642 = vmul.f32 %v4514, %v4514
        %v4643 = vmul.f32 %v4515, %v4515
        %v4644 = vmul.f32 %v4516, %v4516
        %v4645 = vmul.f32 %v4517, %v4517
        %v4646 = vmul.f32 %v4518, %v4518
        %v4647 = vmul.f32 %v4519, %v4519
        %v4648 = vmul.f32 %v4520, %v4520
        %v4649 = vmul.f32 %v4521, %v4521
        %v4650 = vmul.f32 %v4522, %v4522
        %v4651 = vmul.f32 %v4523, %v4523
        %v4652 = vmul.f32 %v4524, %v4524
        %v4653 = vmul.f32 %v4525, %v4525
        %v4654 = vmul.f32 %v4526, %v4526
        %v4655 = vmul.f32 %v4527, %v4527
        %v4656 = vmul.f32 %v4528, %v4528
        %v4657 = vmul.f32 %v4529, %v4529
        %v4658 = vmul.f32 %v4530, %v4530
        %v4659 = vmul.f32 %v4531, %v4531
        %v4660 = vmul.f32 %v4532, %v4532
        %v4661 = vmul.f32 %v4533, %v4533
        %v4662 = vmul.f32 %v4534, %v4534
        %v4663 = vmul.f32 %v4535, %v4535
        %v4664 = vmul.f32 %v4536, %v4536
        %v4665 = vmul.f32 %v4537, %v4537
        %v4666 = vmul.f32 %v4538, %v4538
        %v4667 = vmul.f32 %v4539, %v4539
        %v4668 = vmul.f32 %v4540, %v4540
        %v4669 = vmul.f32 %v4541, %v4541
        %v4670 = vmul.f32 %v4542, %v4542
        %v4671 = vmul.f32 %v4543, %v4543
        %v4672 = vmul.f32 %v4544, %v4544
        %v4673 = vmul.f32 %v4545, %v4545
        %v4674 = vmul.f32 %v4546, %v4546
        %v4675 = vmul.f32 %v4547, %v4547
        %v4676 = vmul.f32 %v4548, %v4548
        %v4677 = vmul.f32 %v4549, %v4549
        %v4678 = vmul.f32 %v4550, %v4550
        %v4679 = vmul.f32 %v4551, %v4551
        %v4680 = vmul.f32 %v4552, %v4552
        %v4681 = vmul.f32 %v4553, %v4553
        %v4682 = vmul.f32 %v4554, %v4554
        %v4683 = vmul.f32 %v4555, %v4555
        %v4684 = vmul.f32 %v4556, %v4556
        %v4685 = vmul.f32 %v4557, %v4557
        %v4686 = vmul.f32 %v4558, %v4558
        %v4687 = vmul.f32 %v4559, %v4559
        %v4688 = vmul.f32 %v4560, %v4560
        %v4689 = vmul.f32 %v4561, %v4561
        %v4690 = vmul.f32 %v4562, %v4562
        %v4691 = vmul.f32 %v4563, %v4563
        %v4692 = vmul.f32 %v4564, %v4564
        %v4693 = vmul.f32 %v4565, %v4565
        %v4694 = vmul.f32 %v4566, %v4566
        %v4695 = vmul.f32 %v4567, %v4567
        %v4696 = vmul.f32 %v4568, %v4568
        %v4697 = vmul.f32 %v4569, %v4569
        %v4698 = vmul.f32 %v4570, %v4570
        %v4699 = vmul.f32 %v4571, %v4571
        %v4700 = vmul.f32 %v4572, %v4572
        %v4701 = vmul.f32 %v4573, %v4573
        %v4702 = vmul.f32 %v4574, %v4574
        %v4703 = vmul.f32 %v4575, %v4575
        %v4704 = vmul.f32 %v4576, %v4576
        %v4705 = vmul.f32 %v4577, %v4577
        %v4706 = vmul.f32 %v4578, %v4578
        %v4707 = vmul.f32 %v4579, %v4579
        %v4708 = vmul.f32 %v4580, %v4580
        %v4709 = vmul.f32 %v4581, %v4581
        %v4710 = vmul.f32 %v4582, %v4582
        %v4711 = vmul.f32 %v4583, %v4583
        %v4712 = vmul.f32 %v4584, %v4584
        %v4713 = vmul.f32 %v4585, %v4585
        %v4714 = vmul.f32 %v4586, %v4586
        %v4715 = vmul.f32 %v4587, %v4587
        %v4716 = vmul.f32 %v4588, %v4588
        %v4717 = vmul.f32 %v4589, %v4589
        %v4718 = vmul.f32 %v4590, %v4590
        %v4719 = vmul.f32 %v4591, %v4591
        %v4720 = vmul.f32 %v4592, %v4592
        %v4721 = vmul.f32 %v4593, %v4593
        %v4722 = vmul.f32 %v4594, %v4594
        %v4723 = vmul.f32 %v4595, %v4595
        %v4724 = vmul.f32 %v4596, %v4596
        %v4725 = vmul.f32 %v4597, %v4597
        %v4726 = vmul.f32 %v4598, %v4598
        %v4727 = vmul.f32 %v4599, %v4599
        %v4728 = vmul.f32 %v4600, %v4600
        %v4729 = vmul.f32 %v4601, %v4601
        %v4730 = vmul.f32 %v4602, %v4602
        %v4731 = vmul.f32 %v4603, %v4603
        %v4732 = vmul.f32 %v4604, %v4604
        %v4733 = vmul.f32 %v4605, %v4605
        %v4734 = vmul.f32 %v4606, %v4606
        %v4735 = vadd.f32 %v4607, %v4608
        %v4736 = vadd.f32 %v4735, %v4609
        %v4737 = vadd.f32 %v4736, %v4610
        %4738 = vadd.xlane.f32.xlu0 %v4737
        %v4739 = vpop.xlane.xlu0 %4738
        %v4740 = vadd.f32 %v4611, %v4612
        %v4741 = vadd.f32 %v4740, %v4613
        %v4742 = vadd.f32 %v4741, %v4614
        %4743 = vadd.xlane.f32.xlu0 %v4742
        %v4744 = vpop.xlane.xlu0 %4743
        %v4745 = vadd.f32 %v4615, %v4616
        %v4746 = vadd.f32 %v4745, %v4617
        %v4747 = vadd.f32 %v4746, %v4618
        %4748 = vadd.xlane.f32.xlu0 %v4747
        %v4749 = vpop.xlane.xlu0 %4748
        %v4750 = vadd.f32 %v4619, %v4620
        %v4751 = vadd.f32 %v4750, %v4621
        %v4752 = vadd.f32 %v4751, %v4622
        %4753 = vadd.xlane.f32.xlu0 %v4752
        %v4754 = vpop.xlane.xlu0 %4753
        %v4755 = vadd.f32 %v4623, %v4624
        %v4756 = vadd.f32 %v4755, %v4625
        %v4757 = vadd.f32 %v4756, %v4626
        %4758 = vadd.xlane.f32.xlu0 %v4757
        %v4759 = vpop.xlane.xlu0 %4758
        %v4760 = vadd.f32 %v4627, %v4628
        %v4761 = vadd.f32 %v4760, %v4629
        %v4762 = vadd.f32 %v4761, %v4630
        %4763 = vadd.xlane.f32.xlu0 %v4762
        %v4764 = vpop.xlane.xlu0 %4763
        %v4765 = vadd.f32 %v4631, %v4632
        %v4766 = vadd.f32 %v4765, %v4633
        %v4767 = vadd.f32 %v4766, %v4634
        %4768 = vadd.xlane.f32.xlu0 %v4767
        %v4769 = vpop.xlane.xlu0 %4768
        %v4770 = vadd.f32 %v4635, %v4636
        %v4771 = vadd.f32 %v4770, %v4637
        %v4772 = vadd.f32 %v4771, %v4638
        %4773 = vadd.xlane.f32.xlu0 %v4772
        %v4774 = vpop.xlane.xlu0 %4773
        %v4775 = vadd.f32 %v4639, %v4640
        %v4776 = vadd.f32 %v4775, %v4641
        %v4777 = vadd.f32 %v4776, %v4642
        %4778 = vadd.xlane.f32.xlu0 %v4777
        %v4779 = vpop.xlane.xlu0 %4778
        %v4780 = vadd.f32 %v4643, %v4644
        %v4781 = vadd.f32 %v4780, %v4645
        %v4782 = vadd.f32 %v4781, %v4646
        %4783 = vadd.xlane.f32.xlu0 %v4782
        %v4784 = vpop.xlane.xlu0 %4783
        %v4785 = vadd.f32 %v4647, %v4648
        %v4786 = vadd.f32 %v4785, %v4649
        %v4787 = vadd.f32 %v4786, %v4650
        %4788 = vadd.xlane.f32.xlu0 %v4787
        %v4789 = vpop.xlane.xlu0 %4788
        %v4790 = vadd.f32 %v4651, %v4652
        %v4791 = vadd.f32 %v4790, %v4653
        %v4792 = vadd.f32 %v4791, %v4654
        %4793 = vadd.xlane.f32.xlu0 %v4792
        %v4794 = vpop.xlane.xlu0 %4793
        %v4795 = vadd.f32 %v4655, %v4656
        %v4796 = vadd.f32 %v4795, %v4657
        %v4797 = vadd.f32 %v4796, %v4658
        %4798 = vadd.xlane.f32.xlu0 %v4797
        %v4799 = vpop.xlane.xlu0 %4798
        %v4800 = vadd.f32 %v4659, %v4660
        %v4801 = vadd.f32 %v4800, %v4661
        %v4802 = vadd.f32 %v4801, %v4662
        %4803 = vadd.xlane.f32.xlu0 %v4802
        %v4804 = vpop.xlane.xlu0 %4803
        %v4805 = vadd.f32 %v4663, %v4664
        %v4806 = vadd.f32 %v4805, %v4665
        %v4807 = vadd.f32 %v4806, %v4666
        %4808 = vadd.xlane.f32.xlu0 %v4807
        %v4809 = vpop.xlane.xlu0 %4808
        %v4810 = vadd.f32 %v4667, %v4668
        %v4811 = vadd.f32 %v4810, %v4669
        %v4812 = vadd.f32 %v4811, %v4670
        %4813 = vadd.xlane.f32.xlu0 %v4812
        %v4814 = vpop.xlane.xlu0 %4813
        %v4815 = vadd.f32 %v4671, %v4672
        %v4816 = vadd.f32 %v4815, %v4673
        %v4817 = vadd.f32 %v4816, %v4674
        %4818 = vadd.xlane.f32.xlu0 %v4817
        %v4819 = vpop.xlane.xlu0 %4818
        %v4820 = vadd.f32 %v4675, %v4676
        %v4821 = vadd.f32 %v4820, %v4677
        %v4822 = vadd.f32 %v4821, %v4678
        %4823 = vadd.xlane.f32.xlu0 %v4822
        %v4824 = vpop.xlane.xlu0 %4823
        %v4825 = vadd.f32 %v4679, %v4680
        %v4826 = vadd.f32 %v4825, %v4681
        %v4827 = vadd.f32 %v4826, %v4682
        %4828 = vadd.xlane.f32.xlu0 %v4827
        %v4829 = vpop.xlane.xlu0 %4828
        %v4830 = vadd.f32 %v4683, %v4684
        %v4831 = vadd.f32 %v4830, %v4685
        %v4832 = vadd.f32 %v4831, %v4686
        %4833 = vadd.xlane.f32.xlu0 %v4832
        %v4834 = vpop.xlane.xlu0 %4833
        %v4835 = vadd.f32 %v4687, %v4688
        %v4836 = vadd.f32 %v4835, %v4689
        %v4837 = vadd.f32 %v4836, %v4690
        %4838 = vadd.xlane.f32.xlu0 %v4837
        %v4839 = vpop.xlane.xlu0 %4838
        %v4840 = vadd.f32 %v4691, %v4692
        %v4841 = vadd.f32 %v4840, %v4693
        %v4842 = vadd.f32 %v4841, %v4694
        %4843 = vadd.xlane.f32.xlu0 %v4842
        %v4844 = vpop.xlane.xlu0 %4843
        %v4845 = vadd.f32 %v4695, %v4696
        %v4846 = vadd.f32 %v4845, %v4697
        %v4847 = vadd.f32 %v4846, %v4698
        %4848 = vadd.xlane.f32.xlu0 %v4847
        %v4849 = vpop.xlane.xlu0 %4848
        %v4850 = vadd.f32 %v4699, %v4700
        %v4851 = vadd.f32 %v4850, %v4701
        %v4852 = vadd.f32 %v4851, %v4702
        %4853 = vadd.xlane.f32.xlu0 %v4852
        %v4854 = vpop.xlane.xlu0 %4853
        %v4855 = vadd.f32 %v4703, %v4704
        %v4856 = vadd.f32 %v4855, %v4705
        %v4857 = vadd.f32 %v4856, %v4706
        %4858 = vadd.xlane.f32.xlu0 %v4857
        %v4859 = vpop.xlane.xlu0 %4858
        %v4860 = vadd.f32 %v4707, %v4708
        %v4861 = vadd.f32 %v4860, %v4709
        %v4862 = vadd.f32 %v4861, %v4710
        %4863 = vadd.xlane.f32.xlu0 %v4862
        %v4864 = vpop.xlane.xlu0 %4863
        %v4865 = vadd.f32 %v4711, %v4712
        %v4866 = vadd.f32 %v4865, %v4713
        %v4867 = vadd.f32 %v4866, %v4714
        %4868 = vadd.xlane.f32.xlu0 %v4867
        %v4869 = vpop.xlane.xlu0 %4868
        %v4870 = vadd.f32 %v4715, %v4716
        %v4871 = vadd.f32 %v4870, %v4717
        %v4872 = vadd.f32 %v4871, %v4718
        %4873 = vadd.xlane.f32.xlu0 %v4872
        %v4874 = vpop.xlane.xlu0 %4873
        %v4875 = vadd.f32 %v4719, %v4720
        %v4876 = vadd.f32 %v4875, %v4721
        %v4877 = vadd.f32 %v4876, %v4722
        %4878 = vadd.xlane.f32.xlu0 %v4877
        %v4879 = vpop.xlane.xlu0 %4878
        %v4880 = vadd.f32 %v4723, %v4724
        %v4881 = vadd.f32 %v4880, %v4725
        %v4882 = vadd.f32 %v4881, %v4726
        %4883 = vadd.xlane.f32.xlu0 %v4882
        %v4884 = vpop.xlane.xlu0 %4883
        %v4885 = vadd.f32 %v4727, %v4728
        %v4886 = vadd.f32 %v4885, %v4729
        %v4887 = vadd.f32 %v4886, %v4730
        %4888 = vadd.xlane.f32.xlu0 %v4887
        %v4889 = vpop.xlane.xlu0 %4888
        %v4890 = vadd.f32 %v4731, %v4732
        %v4891 = vadd.f32 %v4890, %v4733
        %v4892 = vadd.f32 %v4891, %v4734
        %4893 = vadd.xlane.f32.xlu0 %v4892
        %v4894 = vpop.xlane.xlu0 %4893
        %v4895 = vmul.f32 %v4739, %v4446
        %v4896 = vmul.f32 %v4744, %v4446
        %v4897 = vmul.f32 %v4749, %v4446
        %v4898 = vmul.f32 %v4754, %v4446
        %v4899 = vmul.f32 %v4759, %v4446
        %v4900 = vmul.f32 %v4764, %v4446
        %v4901 = vmul.f32 %v4769, %v4446
        %v4902 = vmul.f32 %v4774, %v4446
        %v4903 = vmul.f32 %v4779, %v4446
        %v4904 = vmul.f32 %v4784, %v4446
        %v4905 = vmul.f32 %v4789, %v4446
        %v4906 = vmul.f32 %v4794, %v4446
        %v4907 = vmul.f32 %v4799, %v4446
        %v4908 = vmul.f32 %v4804, %v4446
        %v4909 = vmul.f32 %v4809, %v4446
        %v4910 = vmul.f32 %v4814, %v4446
        %v4911 = vmul.f32 %v4819, %v4446
        %v4912 = vmul.f32 %v4824, %v4446
        %v4913 = vmul.f32 %v4829, %v4446
        %v4914 = vmul.f32 %v4834, %v4446
        %v4915 = vmul.f32 %v4839, %v4446
        %v4916 = vmul.f32 %v4844, %v4446
        %v4917 = vmul.f32 %v4849, %v4446
        %v4918 = vmul.f32 %v4854, %v4446
        %v4919 = vmul.f32 %v4859, %v4446
        %v4920 = vmul.f32 %v4864, %v4446
        %v4921 = vmul.f32 %v4869, %v4446
        %v4922 = vmul.f32 %v4874, %v4446
        %v4923 = vmul.f32 %v4879, %v4446
        %v4924 = vmul.f32 %v4884, %v4446
        %v4925 = vmul.f32 %v4889, %v4446
        %v4926 = vmul.f32 %v4894, %v4446
        %v4927 = vadd.f32 %v4895, 1e-05
        %v4928 = vadd.f32 %v4896, 1e-05
        %v4929 = vadd.f32 %v4897, 1e-05
        %v4930 = vadd.f32 %v4898, 1e-05
        %v4931 = vadd.f32 %v4899, 1e-05
        %v4932 = vadd.f32 %v4900, 1e-05
        %v4933 = vadd.f32 %v4901, 1e-05
        %v4934 = vadd.f32 %v4902, 1e-05
        %v4935 = vadd.f32 %v4903, 1e-05
        %v4936 = vadd.f32 %v4904, 1e-05
        %v4937 = vadd.f32 %v4905, 1e-05
        %v4938 = vadd.f32 %v4906, 1e-05
        %v4939 = vadd.f32 %v4907, 1e-05
        %v4940 = vadd.f32 %v4908, 1e-05
        %v4941 = vadd.f32 %v4909, 1e-05
        %v4942 = vadd.f32 %v4910, 1e-05
        %v4943 = vadd.f32 %v4911, 1e-05
        %v4944 = vadd.f32 %v4912, 1e-05
        %v4945 = vadd.f32 %v4913, 1e-05
        %v4946 = vadd.f32 %v4914, 1e-05
        %v4947 = vadd.f32 %v4915, 1e-05
        %v4948 = vadd.f32 %v4916, 1e-05
        %v4949 = vadd.f32 %v4917, 1e-05
        %v4950 = vadd.f32 %v4918, 1e-05
        %v4951 = vadd.f32 %v4919, 1e-05
        %v4952 = vadd.f32 %v4920, 1e-05
        %v4953 = vadd.f32 %v4921, 1e-05
        %v4954 = vadd.f32 %v4922, 1e-05
        %v4955 = vadd.f32 %v4923, 1e-05
        %v4956 = vadd.f32 %v4924, 1e-05
        %v4957 = vadd.f32 %v4925, 1e-05
        %v4958 = vadd.f32 %v4926, 1e-05
        %v4959 = vrsqrt.pop %v4927
        %v4960 = vrsqrt.pop %v4928
        %v4961 = vrsqrt.pop %v4929
        %v4962 = vrsqrt.pop %v4930
        %v4963 = vrsqrt.pop %v4931
        %v4964 = vrsqrt.pop %v4932
        %v4965 = vrsqrt.pop %v4933
        %v4966 = vrsqrt.pop %v4934
        %v4967 = vrsqrt.pop %v4935
        %v4968 = vrsqrt.pop %v4936
        %v4969 = vrsqrt.pop %v4937
        %v4970 = vrsqrt.pop %v4938
        %v4971 = vrsqrt.pop %v4939
        %v4972 = vrsqrt.pop %v4940
        %v4973 = vrsqrt.pop %v4941
        %v4974 = vrsqrt.pop %v4942
        %v4975 = vrsqrt.pop %v4943
        %v4976 = vrsqrt.pop %v4944
        %v4977 = vrsqrt.pop %v4945
        %v4978 = vrsqrt.pop %v4946
        %v4979 = vrsqrt.pop %v4947
        %v4980 = vrsqrt.pop %v4948
        %v4981 = vrsqrt.pop %v4949
        %v4982 = vrsqrt.pop %v4950
        %v4983 = vrsqrt.pop %v4951
        %v4984 = vrsqrt.pop %v4952
        %v4985 = vrsqrt.pop %v4953
        %v4986 = vrsqrt.pop %v4954
        %v4987 = vrsqrt.pop %v4955
        %v4988 = vrsqrt.pop %v4956
        %v4989 = vrsqrt.pop %v4957
        %v4990 = vrsqrt.pop %v4958
        %v4991 = vmul.f32 %v4479, %v4959
        %v4992 = vmul.f32 %v4480, %v4959
        %v4993 = vmul.f32 %v4481, %v4959
        %v4994 = vmul.f32 %v4482, %v4959
        %v4995 = vmul.f32 %v4483, %v4960
        %v4996 = vmul.f32 %v4484, %v4960
        %v4997 = vmul.f32 %v4485, %v4960
        %v4998 = vmul.f32 %v4486, %v4960
        %v4999 = vmul.f32 %v4487, %v4961
        %v5000 = vmul.f32 %v4488, %v4961
        %v5001 = vmul.f32 %v4489, %v4961
        %v5002 = vmul.f32 %v4490, %v4961
        %v5003 = vmul.f32 %v4491, %v4962
        %v5004 = vmul.f32 %v4492, %v4962
        %v5005 = vmul.f32 %v4493, %v4962
        %v5006 = vmul.f32 %v4494, %v4962
        %v5007 = vmul.f32 %v4495, %v4963
        %v5008 = vmul.f32 %v4496, %v4963
        %v5009 = vmul.f32 %v4497, %v4963
        %v5010 = vmul.f32 %v4498, %v4963
        %v5011 = vmul.f32 %v4499, %v4964
        %v5012 = vmul.f32 %v4500, %v4964
        %v5013 = vmul.f32 %v4501, %v4964
        %v5014 = vmul.f32 %v4502, %v4964
        %v5015 = vmul.f32 %v4503, %v4965
        %v5016 = vmul.f32 %v4504, %v4965
        %v5017 = vmul.f32 %v4505, %v4965
        %v5018 = vmul.f32 %v4506, %v4965
        %v5019 = vmul.f32 %v4507, %v4966
        %v5020 = vmul.f32 %v4508, %v4966
        %v5021 = vmul.f32 %v4509, %v4966
        %v5022 = vmul.f32 %v4510, %v4966
        %v5023 = vmul.f32 %v4511, %v4967
        %v5024 = vmul.f32 %v4512, %v4967
        %v5025 = vmul.f32 %v4513, %v4967
        %v5026 = vmul.f32 %v4514, %v4967
        %v5027 = vmul.f32 %v4515, %v4968
        %v5028 = vmul.f32 %v4516, %v4968
        %v5029 = vmul.f32 %v4517, %v4968
        %v5030 = vmul.f32 %v4518, %v4968
        %v5031 = vmul.f32 %v4519, %v4969
        %v5032 = vmul.f32 %v4520, %v4969
        %v5033 = vmul.f32 %v4521, %v4969
        %v5034 = vmul.f32 %v4522, %v4969
        %v5035 = vmul.f32 %v4523, %v4970
        %v5036 = vmul.f32 %v4524, %v4970
        %v5037 = vmul.f32 %v4525, %v4970
        %v5038 = vmul.f32 %v4526, %v4970
        %v5039 = vmul.f32 %v4527, %v4971
        %v5040 = vmul.f32 %v4528, %v4971
        %v5041 = vmul.f32 %v4529, %v4971
        %v5042 = vmul.f32 %v4530, %v4971
        %v5043 = vmul.f32 %v4531, %v4972
        %v5044 = vmul.f32 %v4532, %v4972
        %v5045 = vmul.f32 %v4533, %v4972
        %v5046 = vmul.f32 %v4534, %v4972
        %v5047 = vmul.f32 %v4535, %v4973
        %v5048 = vmul.f32 %v4536, %v4973
        %v5049 = vmul.f32 %v4537, %v4973
        %v5050 = vmul.f32 %v4538, %v4973
        %v5051 = vmul.f32 %v4539, %v4974
        %v5052 = vmul.f32 %v4540, %v4974
        %v5053 = vmul.f32 %v4541, %v4974
        %v5054 = vmul.f32 %v4542, %v4974
        %v5055 = vmul.f32 %v4543, %v4975
        %v5056 = vmul.f32 %v4544, %v4975
        %v5057 = vmul.f32 %v4545, %v4975
        %v5058 = vmul.f32 %v4546, %v4975
        %v5059 = vmul.f32 %v4547, %v4976
        %v5060 = vmul.f32 %v4548, %v4976
        %v5061 = vmul.f32 %v4549, %v4976
        %v5062 = vmul.f32 %v4550, %v4976
        %v5063 = vmul.f32 %v4551, %v4977
        %v5064 = vmul.f32 %v4552, %v4977
        %v5065 = vmul.f32 %v4553, %v4977
        %v5066 = vmul.f32 %v4554, %v4977
        %v5067 = vmul.f32 %v4555, %v4978
        %v5068 = vmul.f32 %v4556, %v4978
        %v5069 = vmul.f32 %v4557, %v4978
        %v5070 = vmul.f32 %v4558, %v4978
        %v5071 = vmul.f32 %v4559, %v4979
        %v5072 = vmul.f32 %v4560, %v4979
        %v5073 = vmul.f32 %v4561, %v4979
        %v5074 = vmul.f32 %v4562, %v4979
        %v5075 = vmul.f32 %v4563, %v4980
        %v5076 = vmul.f32 %v4564, %v4980
        %v5077 = vmul.f32 %v4565, %v4980
        %v5078 = vmul.f32 %v4566, %v4980
        %v5079 = vmul.f32 %v4567, %v4981
        %v5080 = vmul.f32 %v4568, %v4981
        %v5081 = vmul.f32 %v4569, %v4981
        %v5082 = vmul.f32 %v4570, %v4981
        %v5083 = vmul.f32 %v4571, %v4982
        %v5084 = vmul.f32 %v4572, %v4982
        %v5085 = vmul.f32 %v4573, %v4982
        %v5086 = vmul.f32 %v4574, %v4982
        %v5087 = vmul.f32 %v4575, %v4983
        %v5088 = vmul.f32 %v4576, %v4983
        %v5089 = vmul.f32 %v4577, %v4983
        %v5090 = vmul.f32 %v4578, %v4983
        %v5091 = vmul.f32 %v4579, %v4984
        %v5092 = vmul.f32 %v4580, %v4984
        %v5093 = vmul.f32 %v4581, %v4984
        %v5094 = vmul.f32 %v4582, %v4984
        %v5095 = vmul.f32 %v4583, %v4985
        %v5096 = vmul.f32 %v4584, %v4985
        %v5097 = vmul.f32 %v4585, %v4985
        %v5098 = vmul.f32 %v4586, %v4985
        %v5099 = vmul.f32 %v4587, %v4986
        %v5100 = vmul.f32 %v4588, %v4986
        %v5101 = vmul.f32 %v4589, %v4986
        %v5102 = vmul.f32 %v4590, %v4986
        %v5103 = vmul.f32 %v4591, %v4987
        %v5104 = vmul.f32 %v4592, %v4987
        %v5105 = vmul.f32 %v4593, %v4987
        %v5106 = vmul.f32 %v4594, %v4987
        %v5107 = vmul.f32 %v4595, %v4988
        %v5108 = vmul.f32 %v4596, %v4988
        %v5109 = vmul.f32 %v4597, %v4988
        %v5110 = vmul.f32 %v4598, %v4988
        %v5111 = vmul.f32 %v4599, %v4989
        %v5112 = vmul.f32 %v4600, %v4989
        %v5113 = vmul.f32 %v4601, %v4989
        %v5114 = vmul.f32 %v4602, %v4989
        %v5115 = vmul.f32 %v4603, %v4990
        %v5116 = vmul.f32 %v4604, %v4990
        %v5117 = vmul.f32 %v4605, %v4990
        %v5118 = vmul.f32 %v4606, %v4990
        %v5120 = vlaneseq
        %v5121 = vshrl.u32 %v5120, 7
        %v5122 = vsub.s32 0, %v5121
        %v5123 = vrot.slane %v265, %v5122
        %v5124 = vlaneseq
        %v5125 = vshrl.u32 %v5124, 7
        %v5126 = vsub.s32 1, %v5125
        %v5127 = vrot.slane %v265, %v5126
        %v5128 = vlaneseq
        %v5129 = vshrl.u32 %v5128, 7
        %v5130 = vsub.s32 2, %v5129
        %v5131 = vrot.slane %v265, %v5130
        %v5132 = vlaneseq
        %v5133 = vshrl.u32 %v5132, 7
        %v5134 = vsub.s32 3, %v5133
        %v5135 = vrot.slane %v265, %v5134
        %v5140 = vmul.f32 %v4991, %v5123
        %v5141 = vmul.f32 %v4992, %v5127
        %v5142 = vmul.f32 %v4993, %v5131
        %v5143 = vmul.f32 %v4994, %v5135
        %v5144 = vmul.f32 %v4995, %v5123
        %v5145 = vmul.f32 %v4996, %v5127
        %v5146 = vmul.f32 %v4997, %v5131
        %v5147 = vmul.f32 %v4998, %v5135
        %v5148 = vmul.f32 %v4999, %v5123
        %v5149 = vmul.f32 %v5000, %v5127
        %v5150 = vmul.f32 %v5001, %v5131
        %v5151 = vmul.f32 %v5002, %v5135
        %v5152 = vmul.f32 %v5003, %v5123
        %v5153 = vmul.f32 %v5004, %v5127
        %v5154 = vmul.f32 %v5005, %v5131
        %v5155 = vmul.f32 %v5006, %v5135
        %v5156 = vmul.f32 %v5007, %v5123
        %v5157 = vmul.f32 %v5008, %v5127
        %v5158 = vmul.f32 %v5009, %v5131
        %v5159 = vmul.f32 %v5010, %v5135
        %v5160 = vmul.f32 %v5011, %v5123
        %v5161 = vmul.f32 %v5012, %v5127
        %v5162 = vmul.f32 %v5013, %v5131
        %v5163 = vmul.f32 %v5014, %v5135
        %v5164 = vmul.f32 %v5015, %v5123
        %v5165 = vmul.f32 %v5016, %v5127
        %v5166 = vmul.f32 %v5017, %v5131
        %v5167 = vmul.f32 %v5018, %v5135
        %v5168 = vmul.f32 %v5019, %v5123
        %v5169 = vmul.f32 %v5020, %v5127
        %v5170 = vmul.f32 %v5021, %v5131
        %v5171 = vmul.f32 %v5022, %v5135
        %v5172 = vmul.f32 %v5023, %v5123
        %v5173 = vmul.f32 %v5024, %v5127
        %v5174 = vmul.f32 %v5025, %v5131
        %v5175 = vmul.f32 %v5026, %v5135
        %v5176 = vmul.f32 %v5027, %v5123
        %v5177 = vmul.f32 %v5028, %v5127
        %v5178 = vmul.f32 %v5029, %v5131
        %v5179 = vmul.f32 %v5030, %v5135
        %v5180 = vmul.f32 %v5031, %v5123
        %v5181 = vmul.f32 %v5032, %v5127
        %v5182 = vmul.f32 %v5033, %v5131
        %v5183 = vmul.f32 %v5034, %v5135
        %v5184 = vmul.f32 %v5035, %v5123
        %v5185 = vmul.f32 %v5036, %v5127
        %v5186 = vmul.f32 %v5037, %v5131
        %v5187 = vmul.f32 %v5038, %v5135
        %v5188 = vmul.f32 %v5039, %v5123
        %v5189 = vmul.f32 %v5040, %v5127
        %v5190 = vmul.f32 %v5041, %v5131
        %v5191 = vmul.f32 %v5042, %v5135
        %v5192 = vmul.f32 %v5043, %v5123
        %v5193 = vmul.f32 %v5044, %v5127
        %v5194 = vmul.f32 %v5045, %v5131
        %v5195 = vmul.f32 %v5046, %v5135
        %v5196 = vmul.f32 %v5047, %v5123
        %v5197 = vmul.f32 %v5048, %v5127
        %v5198 = vmul.f32 %v5049, %v5131
        %v5199 = vmul.f32 %v5050, %v5135
        %v5200 = vmul.f32 %v5051, %v5123
        %v5201 = vmul.f32 %v5052, %v5127
        %v5202 = vmul.f32 %v5053, %v5131
        %v5203 = vmul.f32 %v5054, %v5135
        %v5204 = vmul.f32 %v5055, %v5123
        %v5205 = vmul.f32 %v5056, %v5127
        %v5206 = vmul.f32 %v5057, %v5131
        %v5207 = vmul.f32 %v5058, %v5135
        %v5208 = vmul.f32 %v5059, %v5123
        %v5209 = vmul.f32 %v5060, %v5127
        %v5210 = vmul.f32 %v5061, %v5131
        %v5211 = vmul.f32 %v5062, %v5135
        %v5212 = vmul.f32 %v5063, %v5123
        %v5213 = vmul.f32 %v5064, %v5127
        %v5214 = vmul.f32 %v5065, %v5131
        %v5215 = vmul.f32 %v5066, %v5135
        %v5216 = vmul.f32 %v5067, %v5123
        %v5217 = vmul.f32 %v5068, %v5127
        %v5218 = vmul.f32 %v5069, %v5131
        %v5219 = vmul.f32 %v5070, %v5135
        %v5220 = vmul.f32 %v5071, %v5123
        %v5221 = vmul.f32 %v5072, %v5127
        %v5222 = vmul.f32 %v5073, %v5131
        %v5223 = vmul.f32 %v5074, %v5135
        %v5224 = vmul.f32 %v5075, %v5123
        %v5225 = vmul.f32 %v5076, %v5127
        %v5226 = vmul.f32 %v5077, %v5131
        %v5227 = vmul.f32 %v5078, %v5135
        %v5228 = vmul.f32 %v5079, %v5123
        %v5229 = vmul.f32 %v5080, %v5127
        %v5230 = vmul.f32 %v5081, %v5131
        %v5231 = vmul.f32 %v5082, %v5135
        %v5232 = vmul.f32 %v5083, %v5123
        %v5233 = vmul.f32 %v5084, %v5127
        %v5234 = vmul.f32 %v5085, %v5131
        %v5235 = vmul.f32 %v5086, %v5135
        %v5236 = vmul.f32 %v5087, %v5123
        %v5237 = vmul.f32 %v5088, %v5127
        %v5238 = vmul.f32 %v5089, %v5131
        %v5239 = vmul.f32 %v5090, %v5135
        %v5240 = vmul.f32 %v5091, %v5123
        %v5241 = vmul.f32 %v5092, %v5127
        %v5242 = vmul.f32 %v5093, %v5131
        %v5243 = vmul.f32 %v5094, %v5135
        %v5244 = vmul.f32 %v5095, %v5123
        %v5245 = vmul.f32 %v5096, %v5127
        %v5246 = vmul.f32 %v5097, %v5131
        %v5247 = vmul.f32 %v5098, %v5135
        %v5248 = vmul.f32 %v5099, %v5123
        %v5249 = vmul.f32 %v5100, %v5127
        %v5250 = vmul.f32 %v5101, %v5131
        %v5251 = vmul.f32 %v5102, %v5135
        %v5252 = vmul.f32 %v5103, %v5123
        %v5253 = vmul.f32 %v5104, %v5127
        %v5254 = vmul.f32 %v5105, %v5131
        %v5255 = vmul.f32 %v5106, %v5135
        %v5256 = vmul.f32 %v5107, %v5123
        %v5257 = vmul.f32 %v5108, %v5127
        %v5258 = vmul.f32 %v5109, %v5131
        %v5259 = vmul.f32 %v5110, %v5135
        %v5260 = vmul.f32 %v5111, %v5123
        %v5261 = vmul.f32 %v5112, %v5127
        %v5262 = vmul.f32 %v5113, %v5131
        %v5263 = vmul.f32 %v5114, %v5135
        %v5264 = vmul.f32 %v5115, %v5123
        %v5265 = vmul.f32 %v5116, %v5127
        %v5266 = vmul.f32 %v5117, %v5131
        %v5267 = vmul.f32 %v5118, %v5135
        %v5269 = vlaneseq
        %v5270 = vshrl.u32 %v5269, 7
        %v5271 = vsub.s32 0, %v5270
        %v5272 = vrot.slane %v267, %v5271
        %v5273 = vlaneseq
        %v5274 = vshrl.u32 %v5273, 7
        %v5275 = vsub.s32 1, %v5274
        %v5276 = vrot.slane %v267, %v5275
        %v5277 = vlaneseq
        %v5278 = vshrl.u32 %v5277, 7
        %v5279 = vsub.s32 2, %v5278
        %v5280 = vrot.slane %v267, %v5279
        %v5281 = vlaneseq
        %v5282 = vshrl.u32 %v5281, 7
        %v5283 = vsub.s32 3, %v5282
        %v5284 = vrot.slane %v267, %v5283
        %v5289 = vadd.f32 %v5140, %v5272
        %v5290 = vadd.f32 %v5141, %v5276
        %v5291 = vadd.f32 %v5142, %v5280
        %v5292 = vadd.f32 %v5143, %v5284
        %v5293 = vadd.f32 %v5144, %v5272
        %v5294 = vadd.f32 %v5145, %v5276
        %v5295 = vadd.f32 %v5146, %v5280
        %v5296 = vadd.f32 %v5147, %v5284
        %v5297 = vadd.f32 %v5148, %v5272
        %v5298 = vadd.f32 %v5149, %v5276
        %v5299 = vadd.f32 %v5150, %v5280
        %v5300 = vadd.f32 %v5151, %v5284
        %v5301 = vadd.f32 %v5152, %v5272
        %v5302 = vadd.f32 %v5153, %v5276
        %v5303 = vadd.f32 %v5154, %v5280
        %v5304 = vadd.f32 %v5155, %v5284
        %v5305 = vadd.f32 %v5156, %v5272
        %v5306 = vadd.f32 %v5157, %v5276
        %v5307 = vadd.f32 %v5158, %v5280
        %v5308 = vadd.f32 %v5159, %v5284
        %v5309 = vadd.f32 %v5160, %v5272
        %v5310 = vadd.f32 %v5161, %v5276
        %v5311 = vadd.f32 %v5162, %v5280
        %v5312 = vadd.f32 %v5163, %v5284
        %v5313 = vadd.f32 %v5164, %v5272
        %v5314 = vadd.f32 %v5165, %v5276
        %v5315 = vadd.f32 %v5166, %v5280
        %v5316 = vadd.f32 %v5167, %v5284
        %v5317 = vadd.f32 %v5168, %v5272
        %v5318 = vadd.f32 %v5169, %v5276
        %v5319 = vadd.f32 %v5170, %v5280
        %v5320 = vadd.f32 %v5171, %v5284
        %v5321 = vadd.f32 %v5172, %v5272
        %v5322 = vadd.f32 %v5173, %v5276
        %v5323 = vadd.f32 %v5174, %v5280
        %v5324 = vadd.f32 %v5175, %v5284
        %v5325 = vadd.f32 %v5176, %v5272
        %v5326 = vadd.f32 %v5177, %v5276
        %v5327 = vadd.f32 %v5178, %v5280
        %v5328 = vadd.f32 %v5179, %v5284
        %v5329 = vadd.f32 %v5180, %v5272
        %v5330 = vadd.f32 %v5181, %v5276
        %v5331 = vadd.f32 %v5182, %v5280
        %v5332 = vadd.f32 %v5183, %v5284
        %v5333 = vadd.f32 %v5184, %v5272
        %v5334 = vadd.f32 %v5185, %v5276
        %v5335 = vadd.f32 %v5186, %v5280
        %v5336 = vadd.f32 %v5187, %v5284
        %v5337 = vadd.f32 %v5188, %v5272
        %v5338 = vadd.f32 %v5189, %v5276
        %v5339 = vadd.f32 %v5190, %v5280
        %v5340 = vadd.f32 %v5191, %v5284
        %v5341 = vadd.f32 %v5192, %v5272
        %v5342 = vadd.f32 %v5193, %v5276
        %v5343 = vadd.f32 %v5194, %v5280
        %v5344 = vadd.f32 %v5195, %v5284
        %v5345 = vadd.f32 %v5196, %v5272
        %v5346 = vadd.f32 %v5197, %v5276
        %v5347 = vadd.f32 %v5198, %v5280
        %v5348 = vadd.f32 %v5199, %v5284
        %v5349 = vadd.f32 %v5200, %v5272
        %v5350 = vadd.f32 %v5201, %v5276
        %v5351 = vadd.f32 %v5202, %v5280
        %v5352 = vadd.f32 %v5203, %v5284
        %v5353 = vadd.f32 %v5204, %v5272
        %v5354 = vadd.f32 %v5205, %v5276
        %v5355 = vadd.f32 %v5206, %v5280
        %v5356 = vadd.f32 %v5207, %v5284
        %v5357 = vadd.f32 %v5208, %v5272
        %v5358 = vadd.f32 %v5209, %v5276
        %v5359 = vadd.f32 %v5210, %v5280
        %v5360 = vadd.f32 %v5211, %v5284
        %v5361 = vadd.f32 %v5212, %v5272
        %v5362 = vadd.f32 %v5213, %v5276
        %v5363 = vadd.f32 %v5214, %v5280
        %v5364 = vadd.f32 %v5215, %v5284
        %v5365 = vadd.f32 %v5216, %v5272
        %v5366 = vadd.f32 %v5217, %v5276
        %v5367 = vadd.f32 %v5218, %v5280
        %v5368 = vadd.f32 %v5219, %v5284
        %v5369 = vadd.f32 %v5220, %v5272
        %v5370 = vadd.f32 %v5221, %v5276
        %v5371 = vadd.f32 %v5222, %v5280
        %v5372 = vadd.f32 %v5223, %v5284
        %v5373 = vadd.f32 %v5224, %v5272
        %v5374 = vadd.f32 %v5225, %v5276
        %v5375 = vadd.f32 %v5226, %v5280
        %v5376 = vadd.f32 %v5227, %v5284
        %v5377 = vadd.f32 %v5228, %v5272
        %v5378 = vadd.f32 %v5229, %v5276
        %v5379 = vadd.f32 %v5230, %v5280
        %v5380 = vadd.f32 %v5231, %v5284
        %v5381 = vadd.f32 %v5232, %v5272
        %v5382 = vadd.f32 %v5233, %v5276
        %v5383 = vadd.f32 %v5234, %v5280
        %v5384 = vadd.f32 %v5235, %v5284
        %v5385 = vadd.f32 %v5236, %v5272
        %v5386 = vadd.f32 %v5237, %v5276
        %v5387 = vadd.f32 %v5238, %v5280
        %v5388 = vadd.f32 %v5239, %v5284
        %v5389 = vadd.f32 %v5240, %v5272
        %v5390 = vadd.f32 %v5241, %v5276
        %v5391 = vadd.f32 %v5242, %v5280
        %v5392 = vadd.f32 %v5243, %v5284
        %v5393 = vadd.f32 %v5244, %v5272
        %v5394 = vadd.f32 %v5245, %v5276
        %v5395 = vadd.f32 %v5246, %v5280
        %v5396 = vadd.f32 %v5247, %v5284
        %v5397 = vadd.f32 %v5248, %v5272
        %v5398 = vadd.f32 %v5249, %v5276
        %v5399 = vadd.f32 %v5250, %v5280
        %v5400 = vadd.f32 %v5251, %v5284
        %v5401 = vadd.f32 %v5252, %v5272
        %v5402 = vadd.f32 %v5253, %v5276
        %v5403 = vadd.f32 %v5254, %v5280
        %v5404 = vadd.f32 %v5255, %v5284
        %v5405 = vadd.f32 %v5256, %v5272
        %v5406 = vadd.f32 %v5257, %v5276
        %v5407 = vadd.f32 %v5258, %v5280
        %v5408 = vadd.f32 %v5259, %v5284
        %v5409 = vadd.f32 %v5260, %v5272
        %v5410 = vadd.f32 %v5261, %v5276
        %v5411 = vadd.f32 %v5262, %v5280
        %v5412 = vadd.f32 %v5263, %v5284
        %v5413 = vadd.f32 %v5264, %v5272
        %v5414 = vadd.f32 %v5265, %v5276
        %v5415 = vadd.f32 %v5266, %v5280
        %v5416 = vadd.f32 %v5267, %v5284
        %5417 = vst [vmem:[%s258] sm:$0xff] %v5289
        %5418 = vst [vmem:[%s258 + $0x8] sm:$0xff] %v5290
        %5419 = vst [vmem:[%s258 + $0x10] sm:$0xff] %v5291
        %5420 = vst [vmem:[%s258 + $0x18] sm:$0xff] %v5292
        %5421 = vst [vmem:[%s258 + $0x20] sm:$0xff] %v5293
        %5422 = vst [vmem:[%s258 + $0x28] sm:$0xff] %v5294
        %5423 = vst [vmem:[%s258 + $0x30] sm:$0xff] %v5295
        %5424 = vst [vmem:[%s258 + $0x38] sm:$0xff] %v5296
        %5425 = vst [vmem:[%s258 + $0x40] sm:$0xff] %v5297
        %5426 = vst [vmem:[%s258 + $0x48] sm:$0xff] %v5298
        %5427 = vst [vmem:[%s258 + $0x50] sm:$0xff] %v5299
        %5428 = vst [vmem:[%s258 + $0x58] sm:$0xff] %v5300
        %5429 = vst [vmem:[%s258 + $0x60] sm:$0xff] %v5301
        %5430 = vst [vmem:[%s258 + $0x68] sm:$0xff] %v5302
        %5431 = vst [vmem:[%s258 + $0x70] sm:$0xff] %v5303
        %5432 = vst [vmem:[%s258 + $0x78] sm:$0xff] %v5304
        %5433 = vst [vmem:[%s258 + $0x80] sm:$0xff] %v5305
        %5434 = vst [vmem:[%s258 + $0x88] sm:$0xff] %v5306
        %5435 = vst [vmem:[%s258 + $0x90] sm:$0xff] %v5307
        %5436 = vst [vmem:[%s258 + $0x98] sm:$0xff] %v5308
        %5437 = vst [vmem:[%s258 + $0xa0] sm:$0xff] %v5309
        %5438 = vst [vmem:[%s258 + $0xa8] sm:$0xff] %v5310
        %5439 = vst [vmem:[%s258 + $0xb0] sm:$0xff] %v5311
        %5440 = vst [vmem:[%s258 + $0xb8] sm:$0xff] %v5312
        %5441 = vst [vmem:[%s258 + $0xc0] sm:$0xff] %v5313
        %5442 = vst [vmem:[%s258 + $0xc8] sm:$0xff] %v5314
        %5443 = vst [vmem:[%s258 + $0xd0] sm:$0xff] %v5315
        %5444 = vst [vmem:[%s258 + $0xd8] sm:$0xff] %v5316
        %5445 = vst [vmem:[%s258 + $0xe0] sm:$0xff] %v5317
        %5446 = vst [vmem:[%s258 + $0xe8] sm:$0xff] %v5318
        %5447 = vst [vmem:[%s258 + $0xf0] sm:$0xff] %v5319
        %5448 = vst [vmem:[%s258 + $0xf8] sm:$0xff] %v5320
        %5449 = vst [vmem:[%s258 + $0x100] sm:$0xff] %v5321
        %5450 = vst [vmem:[%s258 + $0x108] sm:$0xff] %v5322
        %5451 = vst [vmem:[%s258 + $0x110] sm:$0xff] %v5323
        %5452 = vst [vmem:[%s258 + $0x118] sm:$0xff] %v5324
        %5453 = vst [vmem:[%s258 + $0x120] sm:$0xff] %v5325
        %5454 = vst [vmem:[%s258 + $0x128] sm:$0xff] %v5326
        %5455 = vst [vmem:[%s258 + $0x130] sm:$0xff] %v5327
        %5456 = vst [vmem:[%s258 + $0x138] sm:$0xff] %v5328
        %5457 = vst [vmem:[%s258 + $0x140] sm:$0xff] %v5329
        %5458 = vst [vmem:[%s258 + $0x148] sm:$0xff] %v5330
        %5459 = vst [vmem:[%s258 + $0x150] sm:$0xff] %v5331
        %5460 = vst [vmem:[%s258 + $0x158] sm:$0xff] %v5332
        %5461 = vst [vmem:[%s258 + $0x160] sm:$0xff] %v5333
        %5462 = vst [vmem:[%s258 + $0x168] sm:$0xff] %v5334
        %5463 = vst [vmem:[%s258 + $0x170] sm:$0xff] %v5335
        %5464 = vst [vmem:[%s258 + $0x178] sm:$0xff] %v5336
        %5465 = vst [vmem:[%s258 + $0x180] sm:$0xff] %v5337
        %5466 = vst [vmem:[%s258 + $0x188] sm:$0xff] %v5338
        %5467 = vst [vmem:[%s258 + $0x190] sm:$0xff] %v5339
        %5468 = vst [vmem:[%s258 + $0x198] sm:$0xff] %v5340
        %5469 = vst [vmem:[%s258 + $0x1a0] sm:$0xff] %v5341
        %5470 = vst [vmem:[%s258 + $0x1a8] sm:$0xff] %v5342
        %5471 = vst [vmem:[%s258 + $0x1b0] sm:$0xff] %v5343
        %5472 = vst [vmem:[%s258 + $0x1b8] sm:$0xff] %v5344
        %5473 = vst [vmem:[%s258 + $0x1c0] sm:$0xff] %v5345
        %5474 = vst [vmem:[%s258 + $0x1c8] sm:$0xff] %v5346
        %5475 = vst [vmem:[%s258 + $0x1d0] sm:$0xff] %v5347
        %5476 = vst [vmem:[%s258 + $0x1d8] sm:$0xff] %v5348
        %5477 = vst [vmem:[%s258 + $0x1e0] sm:$0xff] %v5349
        %5478 = vst [vmem:[%s258 + $0x1e8] sm:$0xff] %v5350
        %5479 = vst [vmem:[%s258 + $0x1f0] sm:$0xff] %v5351
        %5480 = vst [vmem:[%s258 + $0x1f8] sm:$0xff] %v5352
        %5481 = vst [vmem:[%s258 + $0x200] sm:$0xff] %v5353
        %5482 = vst [vmem:[%s258 + $0x208] sm:$0xff] %v5354
        %5483 = vst [vmem:[%s258 + $0x210] sm:$0xff] %v5355
        %5484 = vst [vmem:[%s258 + $0x218] sm:$0xff] %v5356
        %5485 = vst [vmem:[%s258 + $0x220] sm:$0xff] %v5357
        %5486 = vst [vmem:[%s258 + $0x228] sm:$0xff] %v5358
        %5487 = vst [vmem:[%s258 + $0x230] sm:$0xff] %v5359
        %5488 = vst [vmem:[%s258 + $0x238] sm:$0xff] %v5360
        %5489 = vst [vmem:[%s258 + $0x240] sm:$0xff] %v5361
        %5490 = vst [vmem:[%s258 + $0x248] sm:$0xff] %v5362
        %5491 = vst [vmem:[%s258 + $0x250] sm:$0xff] %v5363
        %5492 = vst [vmem:[%s258 + $0x258] sm:$0xff] %v5364
        %5493 = vst [vmem:[%s258 + $0x260] sm:$0xff] %v5365
        %5494 = vst [vmem:[%s258 + $0x268] sm:$0xff] %v5366
        %5495 = vst [vmem:[%s258 + $0x270] sm:$0xff] %v5367
        %5496 = vst [vmem:[%s258 + $0x278] sm:$0xff] %v5368
        %5497 = vst [vmem:[%s258 + $0x280] sm:$0xff] %v5369
        %5498 = vst [vmem:[%s258 + $0x288] sm:$0xff] %v5370
        %5499 = vst [vmem:[%s258 + $0x290] sm:$0xff] %v5371
        %5500 = vst [vmem:[%s258 + $0x298] sm:$0xff] %v5372
        %5501 = vst [vmem:[%s258 + $0x2a0] sm:$0xff] %v5373
        %5502 = vst [vmem:[%s258 + $0x2a8] sm:$0xff] %v5374
        %5503 = vst [vmem:[%s258 + $0x2b0] sm:$0xff] %v5375
        %5504 = vst [vmem:[%s258 + $0x2b8] sm:$0xff] %v5376
        %5505 = vst [vmem:[%s258 + $0x2c0] sm:$0xff] %v5377
        %5506 = vst [vmem:[%s258 + $0x2c8] sm:$0xff] %v5378
        %5507 = vst [vmem:[%s258 + $0x2d0] sm:$0xff] %v5379
        %5508 = vst [vmem:[%s258 + $0x2d8] sm:$0xff] %v5380
        %5509 = vst [vmem:[%s258 + $0x2e0] sm:$0xff] %v5381
        %5510 = vst [vmem:[%s258 + $0x2e8] sm:$0xff] %v5382
        %5511 = vst [vmem:[%s258 + $0x2f0] sm:$0xff] %v5383
        %5512 = vst [vmem:[%s258 + $0x2f8] sm:$0xff] %v5384
        %5513 = vst [vmem:[%s258 + $0x300] sm:$0xff] %v5385
        %5514 = vst [vmem:[%s258 + $0x308] sm:$0xff] %v5386
        %5515 = vst [vmem:[%s258 + $0x310] sm:$0xff] %v5387
        %5516 = vst [vmem:[%s258 + $0x318] sm:$0xff] %v5388
        %5517 = vst [vmem:[%s258 + $0x320] sm:$0xff] %v5389
        %5518 = vst [vmem:[%s258 + $0x328] sm:$0xff] %v5390
        %5519 = vst [vmem:[%s258 + $0x330] sm:$0xff] %v5391
        %5520 = vst [vmem:[%s258 + $0x338] sm:$0xff] %v5392
        %5521 = vst [vmem:[%s258 + $0x340] sm:$0xff] %v5393
        %5522 = vst [vmem:[%s258 + $0x348] sm:$0xff] %v5394
        %5523 = vst [vmem:[%s258 + $0x350] sm:$0xff] %v5395
        %5524 = vst [vmem:[%s258 + $0x358] sm:$0xff] %v5396
        %5525 = vst [vmem:[%s258 + $0x360] sm:$0xff] %v5397
        %5526 = vst [vmem:[%s258 + $0x368] sm:$0xff] %v5398
        %5527 = vst [vmem:[%s258 + $0x370] sm:$0xff] %v5399
        %5528 = vst [vmem:[%s258 + $0x378] sm:$0xff] %v5400
        %5529 = vst [vmem:[%s258 + $0x380] sm:$0xff] %v5401
        %5530 = vst [vmem:[%s258 + $0x388] sm:$0xff] %v5402
        %5531 = vst [vmem:[%s258 + $0x390] sm:$0xff] %v5403
        %5532 = vst [vmem:[%s258 + $0x398] sm:$0xff] %v5404
        %5533 = vst [vmem:[%s258 + $0x3a0] sm:$0xff] %v5405
        %5534 = vst [vmem:[%s258 + $0x3a8] sm:$0xff] %v5406
        %5535 = vst [vmem:[%s258 + $0x3b0] sm:$0xff] %v5407
        %5536 = vst [vmem:[%s258 + $0x3b8] sm:$0xff] %v5408
        %5537 = vst [vmem:[%s258 + $0x3c0] sm:$0xff] %v5409
        %5538 = vst [vmem:[%s258 + $0x3c8] sm:$0xff] %v5410
        %5539 = vst [vmem:[%s258 + $0x3d0] sm:$0xff] %v5411
        %5540 = vst [vmem:[%s258 + $0x3d8] sm:$0xff] %v5412
        %5541 = vst [vmem:[%s258 + $0x3e0] sm:$0xff] %v5413
        %5542 = vst [vmem:[%s258 + $0x3e8] sm:$0xff] %v5414
        %5543 = vst [vmem:[%s258 + $0x3f0] sm:$0xff] %v5415
        %5544 = vst [vmem:[%s258 + $0x3f8] sm:$0xff] %v5416
        %s5545 = sand.u32 %s120, 1
        %s5546 = scalar_lea.sflag [#allocation4], %s5545
        %s5547 = sand.u32 %s120, 1
        %s5548 = smul.addr %s5547, 1024
        %s5549 = scalar_lea.vmem [#allocation10], %s5548
        // Predicated region
        $region53: #{tpu_custom_call.1} parent=35 // pred_check
          %p5550 = pneg %p130
        $region54: #{tpu_custom_call.1} parent=35 // pred_check_branch
          %5552 = sbr.rel (%p5550) target = $region56
        $region55: #{tpu_custom_call.1} parent=35 // pred_region
          %s5553 = smul.u32 32, %s23
          %s5555 = ssub.s32 16384, 16384
          %5556 = vsyncadd %s5546, %s5555
          %s5557 = smul.addr %s5553, 4
          %s5558 = smul.addr %s5557, 128
          %s5559 = scalar_lea.hbm %s4, %s5558
          %s5560 = sshll.u32 %s5549, 4
          %s5561 = int_to_ptr.vmem [resolvable:$true] %s5560
          %5566 = dma.vmem_to_hbm [thread:$0]  %s5561, 16384, %s5559, %s5546, 512, 512, 32
        $region56: #{tpu_custom_call.1} parent=35 // pred_fallthru
          _
      $region36: #{tpu_custom_call.1} parent=5 // pred_fallthru
        _
      %p5567 = scmp.le.s32.totalorder 2, %s18
      // Predicated region
      $region57: #{tpu_custom_call.1} parent=5 // pred_check
        %p5568 = pneg %p5567
      $region58: #{tpu_custom_call.1} parent=5 // pred_check_branch
        %5570 = sbr.rel (%p5568) target = $region60
      $region59: #{tpu_custom_call.1} parent=5 // pred_region
        %s5571 = ssub.s32 %s18, 2
        // Predicated region
        $region61: #{tpu_custom_call.1} parent=59 // pred_check
          %p5572 = pneg %p136
        $region62: #{tpu_custom_call.1} parent=59 // pred_check_branch
          %5574 = sbr.rel (%p5572) target = $region64
        $region63: #{tpu_custom_call.1} parent=59 // pred_region
          %s5575 = sand.u32 %s121, 1
          %s5576 = scalar_lea.sflag [#allocation4], %s5575
          %s5577 = sand.u32 %s121, 1
          %s5578 = smul.addr %s5577, 1024
          %s5579 = scalar_lea.vmem [#allocation10], %s5578
          %5580 = dma.done %s5576, 16384
        $region64: #{tpu_custom_call.1} parent=59 // pred_fallthru
          _
      $region60: #{tpu_custom_call.1} parent=5 // pred_fallthru
        _
    $region6: #{tpu_custom_call.1} parent=1 // loop_footer
      %s22 = sadd.s32 1, %s18
    $region7: #{tpu_custom_call.1} parent=1 // loop_footer_branch
      %17 = sbr.rel target = $region3
    $region8: #{tpu_custom_call.1} parent=1 // loop_exit
      _
    %5581 = vsyncpa [#allocation3], 1
    %s5582 = scalar_lea.sflag [#allocation3], 1
    %5583 = vsyncpa %s5582, 1
    %5584 = vsyncpa [#allocation6], 1
    %5585 = vsyncpa [#allocation9], 1
    %5586 = vsyncpa [#allocation4], 1
    %s5587 = scalar_lea.sflag [#allocation4], 1
    %5588 = vsyncpa %s5587, 1

</llo_original>
